<compile_context>
chip_gen: v6e
topology: v6e:2x2x1
jax: 0.10.0
libtpu: 0.0.40
codegen_flags: <defaults>
</compile_context>

<pallas_src>
import functools

import jax
import jax.numpy as jnp
import numpy as np
from jax.experimental import pallas as pl
from jax.experimental.pallas import tpu as pltpu

BN_EPS = 1e-5
_VMEM_LIMIT = 32 * 1024 * 1024  # portable across v5e / v6e / v7x


def _round_up(x, m):
    return ((x + m - 1) // m) * m


# ----------------------------------------------------------------------------
# Pallas kernels
# ----------------------------------------------------------------------------
def _fused_1x1_3x3_s1_kernel(xw_ref, mask_ref, w1_ref, b1_ref, w2_ref, b2_ref, o_ref):
    """branch1: 1x1 reduce (+BN+ReLU) -> 3x3 stride-1 pad-1 conv (+BN+ReLU).

    xw_ref : (1, H+2, W, 3*Cin) bf16  -- W-tap-expanded, spatially padded input
    mask_ref: ((H+2)*W, 3*F)    f32   -- zeroes the conv-padding positions post-ReLU
    w1_ref : (3*Cin, 3*F)       bf16  -- block-diagonal 1x1 weight (one block per W-tap)
    b1_ref : (1, 3*F)           f32
    w2_ref : (3, 3*F, CoutP)    bf16  -- per-kernel-row 3x3 weight
    b2_ref : (1, CoutP)         f32
    o_ref  : (1, H, W, CoutP)   bf16
    """
    Hp, W, C3 = xw_ref.shape[1], xw_ref.shape[2], xw_ref.shape[3]
    H, CoutP = o_ref.shape[1], o_ref.shape[3]

    xw = xw_ref[0].reshape(Hp * W, C3)                      # layout-preserving (W % 8 == 0)
    h = jnp.dot(xw, w1_ref[...], preferred_element_type=jnp.float32)
    h = jnp.maximum(h + b1_ref[...], 0.0) * mask_ref[...]   # zero the padding ring
    h = h.astype(jnp.bfloat16)                              # ((H+2)*W, 3*F)

    acc = jnp.zeros((H * W, CoutP), jnp.float32)
    for i in range(3):                                      # kernel rows; 8-aligned slices
        acc = acc + jnp.dot(h[i * W:i * W + H * W, :], w2_ref[i],
                            preferred_element_type=jnp.float32)
    out = jnp.maximum(acc + b2_ref[...], 0.0).astype(o_ref.dtype)
    o_ref[0] = out.reshape(H, W, CoutP)


def _conv3x3_s2_kernel(xw_ref, w_ref, b_ref, o_ref):
    """3x3 stride-2 pad-0 conv (+BN+ReLU) on a W-tap-expanded input.

    xw_ref: (1, Hin, Wo, 3*CinP) bf16   w_ref: (3, 3*CinP, CoutP) bf16
    b_ref : (1, CoutP) f32              o_ref: (1, Ho, Wo, CoutP)  f32
    """
    Ho, Wo, CoutP = o_ref.shape[1], o_ref.shape[2], o_ref.shape[3]
    w_taps = [w_ref[i] for i in range(3)]
    bias = jnp.broadcast_to(b_ref[...], (Wo, CoutP))
    for ho in range(Ho):
        acc = jnp.zeros((Wo, CoutP), jnp.float32)
        for i in range(3):
            acc = acc + jnp.dot(xw_ref[0, 2 * ho + i], w_taps[i],
                                preferred_element_type=jnp.float32)
        o_ref[0, ho] = jnp.maximum(acc + bias, 0.0).astype(o_ref.dtype)


def _fused_1x1_3x3_s2_kernel(xw_ref, w1_ref, b1_ref, w2_ref, b2_ref, o_ref):
    """branch2: 1x1 reduce (+BN+ReLU) fused into a 3x3 stride-2 pad-0 conv (+BN+ReLU).

    xw_ref: (1, Hin, Wo, 3*Cin) bf16    w1_ref: (3*Cin, 3*F) bf16 (block-diagonal)
    b1_ref: (1, 3*F) f32                w2_ref: (3, 3*F, CoutP) bf16
    b2_ref: (1, CoutP) f32              o_ref : (1, Ho, Wo, CoutP) f32
    """
    Ho, Wo, CoutP = o_ref.shape[1], o_ref.shape[2], o_ref.shape[3]
    w1 = w1_ref[...]
    b1 = b1_ref[...]
    w_taps = [w2_ref[i] for i in range(3)]
    bias2 = jnp.broadcast_to(b2_ref[...], (Wo, CoutP))
    for ho in range(Ho):
        acc = jnp.zeros((Wo, CoutP), jnp.float32)
        for i in range(3):
            xr = xw_ref[0, 2 * ho + i]                              # (Wo, 3*Cin)
            h = jnp.dot(xr, w1, preferred_element_type=jnp.float32)  # fused 1x1 (per W-tap block)
            h = jnp.maximum(h + b1, 0.0).astype(jnp.bfloat16)
            acc = acc + jnp.dot(h, w_taps[i], preferred_element_type=jnp.float32)
        o_ref[0, ho] = jnp.maximum(acc + bias2, 0.0).astype(o_ref.dtype)


# ----------------------------------------------------------------------------
# pallas_call wrappers
# ----------------------------------------------------------------------------
def _compiler_params():
    return pltpu.CompilerParams(dimension_semantics=("parallel",),
                                vmem_limit_bytes=_VMEM_LIMIT)


def conv1x1_conv3x3_s1p1(xw, mask, w1, b1, w2, b2):
    N, Hp, W, C3 = xw.shape
    H = Hp - 2
    F3 = w1.shape[1]
    CoutP = w2.shape[2]
    return pl.pallas_call(
        _fused_1x1_3x3_s1_kernel,
        out_shape=jax.ShapeDtypeStruct((N, H, W, CoutP), jnp.bfloat16),
        grid=(N,),
        in_specs=[
            pl.BlockSpec((1, Hp, W, C3), lambda n: (n, 0, 0, 0)),
            pl.BlockSpec((Hp * W, F3), lambda n: (0, 0)),       # VMEM-resident
            pl.BlockSpec((C3, F3), lambda n: (0, 0)),
            pl.BlockSpec((1, F3), lambda n: (0, 0)),
            pl.BlockSpec((3, F3, CoutP), lambda n: (0, 0, 0)),
            pl.BlockSpec((1, CoutP), lambda n: (0, 0)),
        ],
        out_specs=pl.BlockSpec((1, H, W, CoutP), lambda n: (n, 0, 0, 0)),
        compiler_params=_compiler_params(),
    )(xw, mask, w1, b1, w2, b2)


def conv3x3_s2(xw, w, b, Ho):
    N, Hin, Wo, C3 = xw.shape
    CoutP = w.shape[2]
    return pl.pallas_call(
        _conv3x3_s2_kernel,
        out_shape=jax.ShapeDtypeStruct((N, Ho, Wo, CoutP), jnp.float32),
        grid=(N,),
        in_specs=[
            pl.BlockSpec((1, Hin, Wo, C3), lambda n: (n, 0, 0, 0)),
            pl.BlockSpec((3, C3, CoutP), lambda n: (0, 0, 0)),
            pl.BlockSpec((1, CoutP), lambda n: (0, 0)),
        ],
        out_specs=pl.BlockSpec((1, Ho, Wo, CoutP), lambda n: (n, 0, 0, 0)),
        compiler_params=_compiler_params(),
    )(xw, w, b)


def conv1x1_conv3x3_s2(xw, w1, b1, w2, b2, Ho):
    N, Hin, Wo, C3 = xw.shape
    F3 = w1.shape[1]
    CoutP = w2.shape[2]
    return pl.pallas_call(
        _fused_1x1_3x3_s2_kernel,
        out_shape=jax.ShapeDtypeStruct((N, Ho, Wo, CoutP), jnp.float32),
        grid=(N,),
        in_specs=[
            pl.BlockSpec((1, Hin, Wo, C3), lambda n: (n, 0, 0, 0)),
            pl.BlockSpec((C3, F3), lambda n: (0, 0)),
            pl.BlockSpec((1, F3), lambda n: (0, 0)),
            pl.BlockSpec((3, F3, CoutP), lambda n: (0, 0, 0)),
            pl.BlockSpec((1, CoutP), lambda n: (0, 0)),
        ],
        out_specs=pl.BlockSpec((1, Ho, Wo, CoutP), lambda n: (n, 0, 0, 0)),
        compiler_params=_compiler_params(),
    )(xw, w1, b1, w2, b2)


# ----------------------------------------------------------------------------
# Parameter init (deterministic, synthetic), BN folding and weight preparation
# ----------------------------------------------------------------------------
def init_convblock(key, cin, cout, k):
    ks = jax.random.split(key, 6)
    return dict(
        w=0.1 * jax.random.normal(ks[0], (cout, cin, k, k), jnp.float32),  # OIHW
        b=0.1 * jax.random.normal(ks[1], (cout,), jnp.float32),
        gamma=1.0 + 0.1 * jax.random.normal(ks[2], (cout,), jnp.float32),
        beta=0.1 * jax.random.normal(ks[3], (cout,), jnp.float32),
        mean=0.1 * jax.random.normal(ks[4], (cout,), jnp.float32),
        var=1.0 + 0.1 * jnp.abs(jax.random.normal(ks[5], (cout,), jnp.float32)),
    )


def init_inception_red(key, in_channels, f_3x3_r, add_ch=0):
    ks = jax.random.split(key, 5)
    return dict(
        b1_0=init_convblock(ks[0], in_channels, f_3x3_r, 1),
        b1_1=init_convblock(ks[1], f_3x3_r, 178 + add_ch, 3),
        b1_2=init_convblock(ks[2], 178 + add_ch, 178 + add_ch, 3),
        b2_0=init_convblock(ks[3], in_channels, f_3x3_r, 1),
        b2_1=init_convblock(ks[4], f_3x3_r, 302 + add_ch, 3),
    )


def _fold_bn(p):
    """Fold eval-mode BatchNorm (+ conv bias) into ((kh,kw,cin), cout) matrix + bias."""
    scale = p["gamma"] / jnp.sqrt(p["var"] + BN_EPS)
    w_eff = p["w"] * scale[:, None, None, None]                  # OIHW scaled
    b_eff = (p["b"] - p["mean"]) * scale + p["beta"]
    cout = w_eff.shape[0]
    w_mat = jnp.transpose(w_eff, (2, 3, 1, 0)).reshape(-1, cout)  # (kh*kw*cin, cout)
    return w_mat, b_eff


def _block_diag3(w):
    """(cin, f) -> (3*cin, 3*f) block-diagonal (one block per W-tap)."""
    cin, f = w.shape
    z = jnp.zeros((cin, f), w.dtype)
    return jnp.concatenate([
        jnp.concatenate([w, z, z], axis=1),
        jnp.concatenate([z, w, z], axis=1),
        jnp.concatenate([z, z, w], axis=1),
    ], axis=0)


def _build_pad_mask(H, W, f1):
    """Mask (post 1x1+ReLU) that zeroes the conv-padding ring of the 3x3/s1/p1 conv."""
    Hp = H + 2
    h_idx = np.arange(Hp * W) // W                 # padded row index
    wo_idx = np.arange(Hp * W) % W                 # output column index
    j_idx = np.arange(3 * f1) // f1                # W-tap index per channel block
    win = wo_idx[:, None] + j_idx[None, :]         # padded column actually read
    mask = ((h_idx >= 1) & (h_idx <= H))[:, None] & (win >= 1) & (win <= W)
    return jnp.asarray(mask.astype(np.float32))


def prepare_inception_red(params, height, width):
    """BN-fold, pad to 128-lane multiples, lay out per kernel-row, cast to bf16 (once)."""
    f1 = params["b1_0"]["w"].shape[0]
    c1 = params["b1_1"]["w"].shape[0]
    c2 = params["b2_1"]["w"].shape[0]
    c1p = _round_up(c1, 128)
    c2p = _round_up(c2, 128)

    # branch1 stage 1 (1x1 reduce), block-diagonal for the W-tap-expanded layout
    w, b = _fold_bn(params["b1_0"])
    a_w1 = _block_diag3(w).astype(jnp.bfloat16)
    a_b1 = jnp.tile(b, 3).reshape(1, 3 * f1).astype(jnp.float32)

    # branch1 stage 2 (3x3 s1 p1): per-kernel-row weights, Cout padded to 256
    w, b = _fold_bn(params["b1_1"])                       # (9*f1, c1)
    a_w2 = jnp.pad(w.reshape(3, 3 * f1, c1),
                   ((0, 0), (0, 0), (0, c1p - c1))).astype(jnp.bfloat16)
    a_b2 = jnp.pad(b, (0, c1p - c1)).reshape(1, c1p).astype(jnp.float32)

    # branch1 stage 3 (3x3 s2): zero K-rows for the carried channel padding of b1_mid
    w, b = _fold_bn(params["b1_2"])                       # (9*c1, c1)
    w = jnp.pad(w.reshape(3, 3, c1, c1),
                ((0, 0), (0, 0), (0, c1p - c1), (0, c1p - c1)))
    c_w = w.reshape(3, 3 * c1p, c1p).astype(jnp.bfloat16)
    c_b = jnp.pad(b, (0, c1p - c1)).reshape(1, c1p).astype(jnp.float32)

    # branch2 stage 1 (1x1 reduce)
    w, b = _fold_bn(params["b2_0"])
    b_w1 = _block_diag3(w).astype(jnp.bfloat16)
    b_b1 = jnp.tile(b, 3).reshape(1, 3 * f1).astype(jnp.float32)

    # branch2 stage 2 (3x3 s2)
    w, b = _fold_bn(params["b2_1"])                       # (9*f1, c2)
    b_w2 = jnp.pad(w.reshape(3, 3 * f1, c2),
                   ((0, 0), (0, 0), (0, c2p - c2))).astype(jnp.bfloat16)
    b_b2 = jnp.pad(b, (0, c2p - c2)).reshape(1, c2p).astype(jnp.float32)

    prep = dict(a_w1=a_w1, a_b1=a_b1, a_w2=a_w2, a_b2=a_b2,
                a_mask=_build_pad_mask(height, width, f1),
                c_w=c_w, c_b=c_b,
                b_w1=b_w1, b_b1=b_b1, b_w2=b_w2, b_b2=b_b2)
    return prep, c1, c2


# ----------------------------------------------------------------------------
# InceptionRed forward (Pallas)
# ----------------------------------------------------------------------------
def _w_expand_s1(xpad, W):
    """Concat the 3 W-taps (stride 1) along channels: (N,H+2,W+2,C) -> (N,H+2,W,3C)."""
    return jnp.concatenate([xpad[:, :, 0:W, :],
                            xpad[:, :, 1:W + 1, :],
                            xpad[:, :, 2:W + 2, :]], axis=-1)


def _w_expand_s2(x, Wo):
    """Concat the 3 W-taps (stride 2) along channels: (N,H,W,C) -> (N,H,Wo,3C)."""
    return jnp.concatenate([x[:, :, 0:2 * Wo - 1:2, :],
                            x[:, :, 1:2 * Wo:2, :],
                            x[:, :, 2:2 * Wo + 1:2, :]], axis=-1)


def _inception_red_forward(x_nchw, prep, *, c1, c2):
    N, Cin, H, W = x_nchw.shape
    assert W % 8 == 0, "in-kernel reshapes assume the image width is a multiple of 8"
    Ho = (H - 3) // 2 + 1
    Wo = (W - 3) // 2 + 1

    x = jnp.transpose(x_nchw, (0, 2, 3, 1))               # NCHW -> NHWC (f32, for maxpool)
    xb = x.astype(jnp.bfloat16)

    # branch1 stages 1+2 (fused 1x1 -> 3x3/s1/p1) -> lane-padded (N,H,W,256) bf16
    xpad = jnp.pad(xb, ((0, 0), (1, 1), (1, 1), (0, 0)))
    b1_mid = conv1x1_conv3x3_s1p1(_w_expand_s1(xpad, W), prep["a_mask"],
                                  prep["a_w1"], prep["a_b1"],
                                  prep["a_w2"], prep["a_b2"])

    # branch1 stage 3 (3x3/s2/p0) -> (N,Ho,Wo,256) f32
    b1_out = conv3x3_s2(_w_expand_s2(b1_mid, Wo), prep["c_w"], prep["c_b"], Ho)

    # branch2 (fused 1x1 -> 3x3/s2/p0) -> (N,Ho,Wo,384) f32
    b2_out = conv1x1_conv3x3_s2(_w_expand_s2(xb, Wo), prep["b_w1"], prep["b_b1"],
                                prep["b_w2"], prep["b_b2"], Ho)

    # branch3: maxpool 3x3/s2/p0 (C=4: lax.reduce_window per review)
    pool = jax.lax.reduce_window(x, -jnp.inf, jax.lax.max,
                                 (1, 3, 3, 1), (1, 2, 2, 1), "VALID")

    # Single valid-channel slice + concat at the very end, then back to NCHW.
    out = jnp.concatenate([b1_out[..., :c1], b2_out[..., :c2], pool], axis=-1)
    return jnp.transpose(out, (0, 3, 1, 2))


# ----------------------------------------------------------------------------
# Pure-JAX reference (NCHW, mirrors the PyTorch module) for verification
# ----------------------------------------------------------------------------
def _convblock_ref(x, p, stride, padding):
    y = jax.lax.conv_general_dilated(
        x, p["w"], (stride, stride), ((padding, padding), (padding, padding)),
        dimension_numbers=("NCHW", "OIHW", "NCHW"),
        precision=jax.lax.Precision.HIGHEST,
    )
    y = y + p["b"][None, :, None, None]
    scale = (p["gamma"] / jnp.sqrt(p["var"] + BN_EPS))[None, :, None, None]
    y = (y - p["mean"][None, :, None, None]) * scale + p["beta"][None, :, None, None]
    return jnp.maximum(y, 0.0)


def inception_red_ref(x, params):
    b1 = _convblock_ref(x, params["b1_0"], 1, 0)
    b1 = _convblock_ref(b1, params["b1_1"], 1, 1)
    b1 = _convblock_ref(b1, params["b1_2"], 2, 0)
    b2 = _convblock_ref(x, params["b2_0"], 1, 0)
    b2 = _convblock_ref(b2, params["b2_1"], 2, 0)
    b3 = jax.lax.reduce_window(
        x, -jnp.inf, jax.lax.max, (1, 1, 3, 3), (1, 1, 2, 2), "VALID"
    )
    return jnp.concatenate([b1, b2, b3], axis=1)


# ----------------------------------------------------------------------------
if __name__ == "__main__":
    key = jax.random.PRNGKey(0)
    kx, kp = jax.random.split(key)

    # Small shapes consistent with the module: N=2, in_channels=4, H=W=16.
    in_channels, f_3x3_r, add_ch = 4, 8, 0
    x = jax.random.normal(kx, (2, in_channels, 16, 16), jnp.float32)
    params = init_inception_red(kp, in_channels, f_3x3_r, add_ch)

    # Fold BN / pad / cast / lay out weights once, outside the per-forward trace.
    prep, c1, c2 = prepare_inception_red(params, 16, 16)
    forward = jax.jit(functools.partial(_inception_red_forward, c1=c1, c2=c2))

    out = jax.block_until_ready(forward(x, prep))

    # Expected output: (2, 178 + 302 + 4, 7, 7)
    assert out.shape == (2, c1 + c2 + in_channels, 7, 7), out.shape

    ref = jax.block_until_ready(inception_red_ref(x, params))
    # bf16 MXU path vs f32 HIGHEST reference: allow bf16-level tolerance.
    np.testing.assert_allclose(np.asarray(out), np.asarray(ref), rtol=3e-2, atol=3e-2)

    print("KERNEL_OK")
</pallas_src>

<mosaic_0001>
module attributes {stable_mosaic.version = 11 : i64} {
  func.func @_fused_1x1_3x3_s2_kernel(%arg0: i32, %arg1: memref<1x16x7x12xbf16, #tpu.memory_space<vmem>>, %arg2: memref<12x24xbf16, #tpu.memory_space<vmem>>, %arg3: memref<1x24xf32, #tpu.memory_space<vmem>>, %arg4: memref<3x24x384xbf16, #tpu.memory_space<vmem>>, %arg5: memref<1x384xf32, #tpu.memory_space<vmem>>, %arg6: memref<1x7x7x384xf32, #tpu.memory_space<vmem>>) attributes {dimension_semantics = [#tpu.dimension_semantics<parallel>], iteration_bounds = array<i64: 2>, scalar_prefetch = 0 : i64, scratch_operands = 0 : i64, tpu.core_type = #tpu.core_type<tc>, window_params = [{transform_indices = @transform_0, window_bounds = array<i64: 1, 16, 7, 12>}, {pipeline_mode = #tpu.pipeline_mode<synchronous>, transform_indices = @transform_1, window_bounds = array<i64: 12, 24>}, {pipeline_mode = #tpu.pipeline_mode<synchronous>, transform_indices = @transform_2, window_bounds = array<i64: 1, 24>}, {pipeline_mode = #tpu.pipeline_mode<synchronous>, transform_indices = @transform_3, window_bounds = array<i64: 3, 24, 384>}, {pipeline_mode = #tpu.pipeline_mode<synchronous>, transform_indices = @transform_4, window_bounds = array<i64: 1, 384>}, {transform_indices = @transform_5, window_bounds = array<i64: 1, 7, 7, 384>}]} {
    %c0 = arith.constant 0 : index
    %c0_0 = arith.constant 0 : index
    %0 = vector.load %arg2[%c0, %c0_0] : memref<12x24xbf16, #tpu.memory_space<vmem>>, vector<12x24xbf16>
    %c0_1 = arith.constant 0 : index
    %c0_2 = arith.constant 0 : index
    %1 = vector.load %arg3[%c0_1, %c0_2] : memref<1x24xf32, #tpu.memory_space<vmem>>, vector<1x24xf32>
    %c0_3 = arith.constant 0 : index
    %c0_4 = arith.constant 0 : index
    %c0_5 = arith.constant 0 : index
    %2 = vector.load %arg4[%c0_3, %c0_4, %c0_5] : memref<3x24x384xbf16, #tpu.memory_space<vmem>>, vector<1x24x384xbf16>
    %3 = vector.shape_cast %2 : vector<1x24x384xbf16> to vector<24x384xbf16>
    %c1 = arith.constant 1 : index
    %c0_6 = arith.constant 0 : index
    %c0_7 = arith.constant 0 : index
    %4 = vector.load %arg4[%c1, %c0_6, %c0_7] : memref<3x24x384xbf16, #tpu.memory_space<vmem>>, vector<1x24x384xbf16>
    %5 = vector.shape_cast %4 : vector<1x24x384xbf16> to vector<24x384xbf16>
    %c2 = arith.constant 2 : index
    %c0_8 = arith.constant 0 : index
    %c0_9 = arith.constant 0 : index
    %6 = vector.load %arg4[%c2, %c0_8, %c0_9] : memref<3x24x384xbf16, #tpu.memory_space<vmem>>, vector<1x24x384xbf16>
    %7 = vector.shape_cast %6 : vector<1x24x384xbf16> to vector<24x384xbf16>
    %c0_10 = arith.constant 0 : index
    %c0_11 = arith.constant 0 : index
    %8 = vector.load %arg5[%c0_10, %c0_11] : memref<1x384xf32, #tpu.memory_space<vmem>>, vector<1x384xf32>
    %9 = vector.shape_cast %8 : vector<1x384xf32> to vector<1x384xf32>
    %10 = vector.broadcast %9 : vector<1x384xf32> to vector<7x384xf32>
    %cst = arith.constant 0.000000e+00 : f32
    %11 = vector.broadcast %cst : f32 to vector<7x384xf32>
    %c0_12 = arith.constant 0 : index
    %c0_13 = arith.constant 0 : index
    %c0_14 = arith.constant 0 : index
    %c0_15 = arith.constant 0 : index
    %12 = vector.load %arg1[%c0_12, %c0_13, %c0_14, %c0_15] : memref<1x16x7x12xbf16, #tpu.memory_space<vmem>>, vector<1x1x7x12xbf16>
    %13 = vector.shape_cast %12 : vector<1x1x7x12xbf16> to vector<7x12xbf16>
    %cst_16 = arith.constant dense<0.000000e+00> : vector<7x24xf32>
    %14 = tpu.matmul %13, %0, %cst_16 {dimension_numbers = #tpu.dot_dimension_numbers<[1], [0], [0], [1], [0, 0, 1, 1], [], []>} : vector<7x12xbf16>, vector<12x24xbf16>, vector<7x24xf32> -> vector<7x24xf32>
    %15 = vector.broadcast %1 : vector<1x24xf32> to vector<7x24xf32>
    %16 = arith.addf %14, %15 : vector<7x24xf32>
    %cst_17 = arith.constant 0.000000e+00 : f32
    %17 = vector.broadcast %cst_17 : f32 to vector<7x24xf32>
    %18 = arith.maximumf %16, %17 : vector<7x24xf32>
    %19 = arith.truncf %18 : vector<7x24xf32> to vector<7x24xbf16>
    %cst_18 = arith.constant dense<0.000000e+00> : vector<7x384xf32>
    %20 = tpu.matmul %19, %3, %cst_18 {dimension_numbers = #tpu.dot_dimension_numbers<[1], [0], [0], [1], [0, 0, 1, 1], [], []>} : vector<7x24xbf16>, vector<24x384xbf16>, vector<7x384xf32> -> vector<7x384xf32>
    %21 = arith.addf %11, %20 : vector<7x384xf32>
    %c0_19 = arith.constant 0 : index
    %c1_20 = arith.constant 1 : index
    %c0_21 = arith.constant 0 : index
    %c0_22 = arith.constant 0 : index
    %22 = vector.load %arg1[%c0_19, %c1_20, %c0_21, %c0_22] : memref<1x16x7x12xbf16, #tpu.memory_space<vmem>>, vector<1x1x7x12xbf16>
    %23 = vector.shape_cast %22 : vector<1x1x7x12xbf16> to vector<7x12xbf16>
    %cst_23 = arith.constant dense<0.000000e+00> : vector<7x24xf32>
    %24 = tpu.matmul %23, %0, %cst_23 {dimension_numbers = #tpu.dot_dimension_numbers<[1], [0], [0], [1], [0, 0, 1, 1], [], []>} : vector<7x12xbf16>, vector<12x24xbf16>, vector<7x24xf32> -> vector<7x24xf32>
    %25 = vector.broadcast %1 : vector<1x24xf32> to vector<7x24xf32>
    %26 = arith.addf %24, %25 : vector<7x24xf32>
    %cst_24 = arith.constant 0.000000e+00 : f32
    %27 = vector.broadcast %cst_24 : f32 to vector<7x24xf32>
    %28 = arith.maximumf %26, %27 : vector<7x24xf32>
    %29 = arith.truncf %28 : vector<7x24xf32> to vector<7x24xbf16>
    %cst_25 = arith.constant dense<0.000000e+00> : vector<7x384xf32>
    %30 = tpu.matmul %29, %5, %cst_25 {dimension_numbers = #tpu.dot_dimension_numbers<[1], [0], [0], [1], [0, 0, 1, 1], [], []>} : vector<7x24xbf16>, vector<24x384xbf16>, vector<7x384xf32> -> vector<7x384xf32>
    %31 = arith.addf %21, %30 : vector<7x384xf32>
    %c0_26 = arith.constant 0 : index
    %c2_27 = arith.constant 2 : index
    %c0_28 = arith.constant 0 : index
    %c0_29 = arith.constant 0 : index
    %32 = vector.load %arg1[%c0_26, %c2_27, %c0_28, %c0_29] : memref<1x16x7x12xbf16, #tpu.memory_space<vmem>>, vector<1x1x7x12xbf16>
    %33 = vector.shape_cast %32 : vector<1x1x7x12xbf16> to vector<7x12xbf16>
    %cst_30 = arith.constant dense<0.000000e+00> : vector<7x24xf32>
    %34 = tpu.matmul %33, %0, %cst_30 {dimension_numbers = #tpu.dot_dimension_numbers<[1], [0], [0], [1], [0, 0, 1, 1], [], []>} : vector<7x12xbf16>, vector<12x24xbf16>, vector<7x24xf32> -> vector<7x24xf32>
    %35 = vector.broadcast %1 : vector<1x24xf32> to vector<7x24xf32>
    %36 = arith.addf %34, %35 : vector<7x24xf32>
    %cst_31 = arith.constant 0.000000e+00 : f32
    %37 = vector.broadcast %cst_31 : f32 to vector<7x24xf32>
    %38 = arith.maximumf %36, %37 : vector<7x24xf32>
    %39 = arith.truncf %38 : vector<7x24xf32> to vector<7x24xbf16>
    %cst_32 = arith.constant dense<0.000000e+00> : vector<7x384xf32>
    %40 = tpu.matmul %39, %7, %cst_32 {dimension_numbers = #tpu.dot_dimension_numbers<[1], [0], [0], [1], [0, 0, 1, 1], [], []>} : vector<7x24xbf16>, vector<24x384xbf16>, vector<7x384xf32> -> vector<7x384xf32>
    %41 = arith.addf %31, %40 : vector<7x384xf32>
    %42 = arith.addf %41, %10 : vector<7x384xf32>
    %cst_33 = arith.constant 0.000000e+00 : f32
    %43 = vector.broadcast %cst_33 : f32 to vector<7x384xf32>
    %44 = arith.maximumf %42, %43 : vector<7x384xf32>
    %c0_34 = arith.constant 0 : index
    %c0_35 = arith.constant 0 : index
    %c0_36 = arith.constant 0 : index
    %c0_37 = arith.constant 0 : index
    %45 = vector.load %arg6[%c0_34, %c0_35, %c0_36, %c0_37] : memref<1x7x7x384xf32, #tpu.memory_space<vmem>>, vector<1x1x7x384xf32>
    %46 = vector.shape_cast %45 : vector<1x1x7x384xf32> to vector<7x384xf32>
    %47 = vector.shape_cast %44 : vector<7x384xf32> to vector<1x1x7x384xf32>
    tpu.vector_store %arg6[%c0_34, %c0_35, %c0_36, %c0_37], %47 {strides = array<i32>} : memref<1x7x7x384xf32, #tpu.memory_space<vmem>>, vector<1x1x7x384xf32>,
    %cst_38 = arith.constant 0.000000e+00 : f32
    %48 = vector.broadcast %cst_38 : f32 to vector<7x384xf32>
    %c0_39 = arith.constant 0 : index
    %c2_40 = arith.constant 2 : index
    %c0_41 = arith.constant 0 : index
    %c0_42 = arith.constant 0 : index
    %49 = vector.load %arg1[%c0_39, %c2_40, %c0_41, %c0_42] : memref<1x16x7x12xbf16, #tpu.memory_space<vmem>>, vector<1x1x7x12xbf16>
    %50 = vector.shape_cast %49 : vector<1x1x7x12xbf16> to vector<7x12xbf16>
    %cst_43 = arith.constant dense<0.000000e+00> : vector<7x24xf32>
    %51 = tpu.matmul %50, %0, %cst_43 {dimension_numbers = #tpu.dot_dimension_numbers<[1], [0], [0], [1], [0, 0, 1, 1], [], []>} : vector<7x12xbf16>, vector<12x24xbf16>, vector<7x24xf32> -> vector<7x24xf32>
    %52 = vector.broadcast %1 : vector<1x24xf32> to vector<7x24xf32>
    %53 = arith.addf %51, %52 : vector<7x24xf32>
    %cst_44 = arith.constant 0.000000e+00 : f32
    %54 = vector.broadcast %cst_44 : f32 to vector<7x24xf32>
    %55 = arith.maximumf %53, %54 : vector<7x24xf32>
    %56 = arith.truncf %55 : vector<7x24xf32> to vector<7x24xbf16>
    %cst_45 = arith.constant dense<0.000000e+00> : vector<7x384xf32>
    %57 = tpu.matmul %56, %3, %cst_45 {dimension_numbers = #tpu.dot_dimension_numbers<[1], [0], [0], [1], [0, 0, 1, 1], [], []>} : vector<7x24xbf16>, vector<24x384xbf16>, vector<7x384xf32> -> vector<7x384xf32>
    %58 = arith.addf %48, %57 : vector<7x384xf32>
    %c0_46 = arith.constant 0 : index
    %c3 = arith.constant 3 : index
    %c0_47 = arith.constant 0 : index
    %c0_48 = arith.constant 0 : index
    %59 = vector.load %arg1[%c0_46, %c3, %c0_47, %c0_48] : memref<1x16x7x12xbf16, #tpu.memory_space<vmem>>, vector<1x1x7x12xbf16>
    %60 = vector.shape_cast %59 : vector<1x1x7x12xbf16> to vector<7x12xbf16>
    %cst_49 = arith.constant dense<0.000000e+00> : vector<7x24xf32>
    %61 = tpu.matmul %60, %0, %cst_49 {dimension_numbers = #tpu.dot_dimension_numbers<[1], [0], [0], [1], [0, 0, 1, 1], [], []>} : vector<7x12xbf16>, vector<12x24xbf16>, vector<7x24xf32> -> vector<7x24xf32>
    %62 = vector.broadcast %1 : vector<1x24xf32> to vector<7x24xf32>
    %63 = arith.addf %61, %62 : vector<7x24xf32>
    %cst_50 = arith.constant 0.000000e+00 : f32
    %64 = vector.broadcast %cst_50 : f32 to vector<7x24xf32>
    %65 = arith.maximumf %63, %64 : vector<7x24xf32>
    %66 = arith.truncf %65 : vector<7x24xf32> to vector<7x24xbf16>
    %cst_51 = arith.constant dense<0.000000e+00> : vector<7x384xf32>
    %67 = tpu.matmul %66, %5, %cst_51 {dimension_numbers = #tpu.dot_dimension_numbers<[1], [0], [0], [1], [0, 0, 1, 1], [], []>} : vector<7x24xbf16>, vector<24x384xbf16>, vector<7x384xf32> -> vector<7x384xf32>
    %68 = arith.addf %58, %67 : vector<7x384xf32>
    %c0_52 = arith.constant 0 : index
    %c4 = arith.constant 4 : index
    %c0_53 = arith.constant 0 : index
    %c0_54 = arith.constant 0 : index
    %69 = vector.load %arg1[%c0_52, %c4, %c0_53, %c0_54] : memref<1x16x7x12xbf16, #tpu.memory_space<vmem>>, vector<1x1x7x12xbf16>
    %70 = vector.shape_cast %69 : vector<1x1x7x12xbf16> to vector<7x12xbf16>
    %cst_55 = arith.constant dense<0.000000e+00> : vector<7x24xf32>
    %71 = tpu.matmul %70, %0, %cst_55 {dimension_numbers = #tpu.dot_dimension_numbers<[1], [0], [0], [1], [0, 0, 1, 1], [], []>} : vector<7x12xbf16>, vector<12x24xbf16>, vector<7x24xf32> -> vector<7x24xf32>
    %72 = vector.broadcast %1 : vector<1x24xf32> to vector<7x24xf32>
    %73 = arith.addf %71, %72 : vector<7x24xf32>
    %cst_56 = arith.constant 0.000000e+00 : f32
    %74 = vector.broadcast %cst_56 : f32 to vector<7x24xf32>
    %75 = arith.maximumf %73, %74 : vector<7x24xf32>
    %76 = arith.truncf %75 : vector<7x24xf32> to vector<7x24xbf16>
    %cst_57 = arith.constant dense<0.000000e+00> : vector<7x384xf32>
    %77 = tpu.matmul %76, %7, %cst_57 {dimension_numbers = #tpu.dot_dimension_numbers<[1], [0], [0], [1], [0, 0, 1, 1], [], []>} : vector<7x24xbf16>, vector<24x384xbf16>, vector<7x384xf32> -> vector<7x384xf32>
    %78 = arith.addf %68, %77 : vector<7x384xf32>
    %79 = arith.addf %78, %10 : vector<7x384xf32>
    %cst_58 = arith.constant 0.000000e+00 : f32
    %80 = vector.broadcast %cst_58 : f32 to vector<7x384xf32>
    %81 = arith.maximumf %79, %80 : vector<7x384xf32>
    %c0_59 = arith.constant 0 : index
    %c1_60 = arith.constant 1 : index
    %c0_61 = arith.constant 0 : index
    %c0_62 = arith.constant 0 : index
    %82 = vector.load %arg6[%c0_59, %c1_60, %c0_61, %c0_62] : memref<1x7x7x384xf32, #tpu.memory_space<vmem>>, vector<1x1x7x384xf32>
    %83 = vector.shape_cast %82 : vector<1x1x7x384xf32> to vector<7x384xf32>
    %84 = vector.shape_cast %81 : vector<7x384xf32> to vector<1x1x7x384xf32>
    tpu.vector_store %arg6[%c0_59, %c1_60, %c0_61, %c0_62], %84 {strides = array<i32>} : memref<1x7x7x384xf32, #tpu.memory_space<vmem>>, vector<1x1x7x384xf32>,
    %cst_63 = arith.constant 0.000000e+00 : f32
    %85 = vector.broadcast %cst_63 : f32 to vector<7x384xf32>
    %c0_64 = arith.constant 0 : index
    %c4_65 = arith.constant 4 : index
    %c0_66 = arith.constant 0 : index
    %c0_67 = arith.constant 0 : index
    %86 = vector.load %arg1[%c0_64, %c4_65, %c0_66, %c0_67] : memref<1x16x7x12xbf16, #tpu.memory_space<vmem>>, vector<1x1x7x12xbf16>
    %87 = vector.shape_cast %86 : vector<1x1x7x12xbf16> to vector<7x12xbf16>
    %cst_68 = arith.constant dense<0.000000e+00> : vector<7x24xf32>
    %88 = tpu.matmul %87, %0, %cst_68 {dimension_numbers = #tpu.dot_dimension_numbers<[1], [0], [0], [1], [0, 0, 1, 1], [], []>} : vector<7x12xbf16>, vector<12x24xbf16>, vector<7x24xf32> -> vector<7x24xf32>
    %89 = vector.broadcast %1 : vector<1x24xf32> to vector<7x24xf32>
    %90 = arith.addf %88, %89 : vector<7x24xf32>
    %cst_69 = arith.constant 0.000000e+00 : f32
    %91 = vector.broadcast %cst_69 : f32 to vector<7x24xf32>
    %92 = arith.maximumf %90, %91 : vector<7x24xf32>
    %93 = arith.truncf %92 : vector<7x24xf32> to vector<7x24xbf16>
    %cst_70 = arith.constant dense<0.000000e+00> : vector<7x384xf32>
    %94 = tpu.matmul %93, %3, %cst_70 {dimension_numbers = #tpu.dot_dimension_numbers<[1], [0], [0], [1], [0, 0, 1, 1], [], []>} : vector<7x24xbf16>, vector<24x384xbf16>, vector<7x384xf32> -> vector<7x384xf32>
    %95 = arith.addf %85, %94 : vector<7x384xf32>
    %c0_71 = arith.constant 0 : index
    %c5 = arith.constant 5 : index
    %c0_72 = arith.constant 0 : index
    %c0_73 = arith.constant 0 : index
    %96 = vector.load %arg1[%c0_71, %c5, %c0_72, %c0_73] : memref<1x16x7x12xbf16, #tpu.memory_space<vmem>>, vector<1x1x7x12xbf16>
    %97 = vector.shape_cast %96 : vector<1x1x7x12xbf16> to vector<7x12xbf16>
    %cst_74 = arith.constant dense<0.000000e+00> : vector<7x24xf32>
    %98 = tpu.matmul %97, %0, %cst_74 {dimension_numbers = #tpu.dot_dimension_numbers<[1], [0], [0], [1], [0, 0, 1, 1], [], []>} : vector<7x12xbf16>, vector<12x24xbf16>, vector<7x24xf32> -> vector<7x24xf32>
    %99 = vector.broadcast %1 : vector<1x24xf32> to vector<7x24xf32>
    %100 = arith.addf %98, %99 : vector<7x24xf32>
    %cst_75 = arith.constant 0.000000e+00 : f32
    %101 = vector.broadcast %cst_75 : f32 to vector<7x24xf32>
    %102 = arith.maximumf %100, %101 : vector<7x24xf32>
    %103 = arith.truncf %102 : vector<7x24xf32> to vector<7x24xbf16>
    %cst_76 = arith.constant dense<0.000000e+00> : vector<7x384xf32>
    %104 = tpu.matmul %103, %5, %cst_76 {dimension_numbers = #tpu.dot_dimension_numbers<[1], [0], [0], [1], [0, 0, 1, 1], [], []>} : vector<7x24xbf16>, vector<24x384xbf16>, vector<7x384xf32> -> vector<7x384xf32>
    %105 = arith.addf %95, %104 : vector<7x384xf32>
    %c0_77 = arith.constant 0 : index
    %c6 = arith.constant 6 : index
    %c0_78 = arith.constant 0 : index
    %c0_79 = arith.constant 0 : index
    %106 = vector.load %arg1[%c0_77, %c6, %c0_78, %c0_79] : memref<1x16x7x12xbf16, #tpu.memory_space<vmem>>, vector<1x1x7x12xbf16>
    %107 = vector.shape_cast %106 : vector<1x1x7x12xbf16> to vector<7x12xbf16>
    %cst_80 = arith.constant dense<0.000000e+00> : vector<7x24xf32>
    %108 = tpu.matmul %107, %0, %cst_80 {dimension_numbers = #tpu.dot_dimension_numbers<[1], [0], [0], [1], [0, 0, 1, 1], [], []>} : vector<7x12xbf16>, vector<12x24xbf16>, vector<7x24xf32> -> vector<7x24xf32>
    %109 = vector.broadcast %1 : vector<1x24xf32> to vector<7x24xf32>
    %110 = arith.addf %108, %109 : vector<7x24xf32>
    %cst_81 = arith.constant 0.000000e+00 : f32
    %111 = vector.broadcast %cst_81 : f32 to vector<7x24xf32>
    %112 = arith.maximumf %110, %111 : vector<7x24xf32>
    %113 = arith.truncf %112 : vector<7x24xf32> to vector<7x24xbf16>
    %cst_82 = arith.constant dense<0.000000e+00> : vector<7x384xf32>
    %114 = tpu.matmul %113, %7, %cst_82 {dimension_numbers = #tpu.dot_dimension_numbers<[1], [0], [0], [1], [0, 0, 1, 1], [], []>} : vector<7x24xbf16>, vector<24x384xbf16>, vector<7x384xf32> -> vector<7x384xf32>
    %115 = arith.addf %105, %114 : vector<7x384xf32>
    %116 = arith.addf %115, %10 : vector<7x384xf32>
    %cst_83 = arith.constant 0.000000e+00 : f32
    %117 = vector.broadcast %cst_83 : f32 to vector<7x384xf32>
    %118 = arith.maximumf %116, %117 : vector<7x384xf32>
    %c0_84 = arith.constant 0 : index
    %c2_85 = arith.constant 2 : index
    %c0_86 = arith.constant 0 : index
    %c0_87 = arith.constant 0 : index
    %119 = vector.load %arg6[%c0_84, %c2_85, %c0_86, %c0_87] : memref<1x7x7x384xf32, #tpu.memory_space<vmem>>, vector<1x1x7x384xf32>
    %120 = vector.shape_cast %119 : vector<1x1x7x384xf32> to vector<7x384xf32>
    %121 = vector.shape_cast %118 : vector<7x384xf32> to vector<1x1x7x384xf32>
    tpu.vector_store %arg6[%c0_84, %c2_85, %c0_86, %c0_87], %121 {strides = array<i32>} : memref<1x7x7x384xf32, #tpu.memory_space<vmem>>, vector<1x1x7x384xf32>,
    %cst_88 = arith.constant 0.000000e+00 : f32
    %122 = vector.broadcast %cst_88 : f32 to vector<7x384xf32>
    %c0_89 = arith.constant 0 : index
    %c6_90 = arith.constant 6 : index
    %c0_91 = arith.constant 0 : index
    %c0_92 = arith.constant 0 : index
    %123 = vector.load %arg1[%c0_89, %c6_90, %c0_91, %c0_92] : memref<1x16x7x12xbf16, #tpu.memory_space<vmem>>, vector<1x1x7x12xbf16>
    %124 = vector.shape_cast %123 : vector<1x1x7x12xbf16> to vector<7x12xbf16>
    %cst_93 = arith.constant dense<0.000000e+00> : vector<7x24xf32>
    %125 = tpu.matmul %124, %0, %cst_93 {dimension_numbers = #tpu.dot_dimension_numbers<[1], [0], [0], [1], [0, 0, 1, 1], [], []>} : vector<7x12xbf16>, vector<12x24xbf16>, vector<7x24xf32> -> vector<7x24xf32>
    %126 = vector.broadcast %1 : vector<1x24xf32> to vector<7x24xf32>
    %127 = arith.addf %125, %126 : vector<7x24xf32>
    %cst_94 = arith.constant 0.000000e+00 : f32
    %128 = vector.broadcast %cst_94 : f32 to vector<7x24xf32>
    %129 = arith.maximumf %127, %128 : vector<7x24xf32>
    %130 = arith.truncf %129 : vector<7x24xf32> to vector<7x24xbf16>
    %cst_95 = arith.constant dense<0.000000e+00> : vector<7x384xf32>
    %131 = tpu.matmul %130, %3, %cst_95 {dimension_numbers = #tpu.dot_dimension_numbers<[1], [0], [0], [1], [0, 0, 1, 1], [], []>} : vector<7x24xbf16>, vector<24x384xbf16>, vector<7x384xf32> -> vector<7x384xf32>
    %132 = arith.addf %122, %131 : vector<7x384xf32>
    %c0_96 = arith.constant 0 : index
    %c7 = arith.constant 7 : index
    %c0_97 = arith.constant 0 : index
    %c0_98 = arith.constant 0 : index
    %133 = vector.load %arg1[%c0_96, %c7, %c0_97, %c0_98] : memref<1x16x7x12xbf16, #tpu.memory_space<vmem>>, vector<1x1x7x12xbf16>
    %134 = vector.shape_cast %133 : vector<1x1x7x12xbf16> to vector<7x12xbf16>
    %cst_99 = arith.constant dense<0.000000e+00> : vector<7x24xf32>
    %135 = tpu.matmul %134, %0, %cst_99 {dimension_numbers = #tpu.dot_dimension_numbers<[1], [0], [0], [1], [0, 0, 1, 1], [], []>} : vector<7x12xbf16>, vector<12x24xbf16>, vector<7x24xf32> -> vector<7x24xf32>
    %136 = vector.broadcast %1 : vector<1x24xf32> to vector<7x24xf32>
    %137 = arith.addf %135, %136 : vector<7x24xf32>
    %cst_100 = arith.constant 0.000000e+00 : f32
    %138 = vector.broadcast %cst_100 : f32 to vector<7x24xf32>
    %139 = arith.maximumf %137, %138 : vector<7x24xf32>
    %140 = arith.truncf %139 : vector<7x24xf32> to vector<7x24xbf16>
    %cst_101 = arith.constant dense<0.000000e+00> : vector<7x384xf32>
    %141 = tpu.matmul %140, %5, %cst_101 {dimension_numbers = #tpu.dot_dimension_numbers<[1], [0], [0], [1], [0, 0, 1, 1], [], []>} : vector<7x24xbf16>, vector<24x384xbf16>, vector<7x384xf32> -> vector<7x384xf32>
    %142 = arith.addf %132, %141 : vector<7x384xf32>
    %c0_102 = arith.constant 0 : index
    %c8 = arith.constant 8 : index
    %c0_103 = arith.constant 0 : index
    %c0_104 = arith.constant 0 : index
    %143 = vector.load %arg1[%c0_102, %c8, %c0_103, %c0_104] : memref<1x16x7x12xbf16, #tpu.memory_space<vmem>>, vector<1x1x7x12xbf16>
    %144 = vector.shape_cast %143 : vector<1x1x7x12xbf16> to vector<7x12xbf16>
    %cst_105 = arith.constant dense<0.000000e+00> : vector<7x24xf32>
    %145 = tpu.matmul %144, %0, %cst_105 {dimension_numbers = #tpu.dot_dimension_numbers<[1], [0], [0], [1], [0, 0, 1, 1], [], []>} : vector<7x12xbf16>, vector<12x24xbf16>, vector<7x24xf32> -> vector<7x24xf32>
    %146 = vector.broadcast %1 : vector<1x24xf32> to vector<7x24xf32>
    %147 = arith.addf %145, %146 : vector<7x24xf32>
    %cst_106 = arith.constant 0.000000e+00 : f32
    %148 = vector.broadcast %cst_106 : f32 to vector<7x24xf32>
    %149 = arith.maximumf %147, %148 : vector<7x24xf32>
    %150 = arith.truncf %149 : vector<7x24xf32> to vector<7x24xbf16>
    %cst_107 = arith.constant dense<0.000000e+00> : vector<7x384xf32>
    %151 = tpu.matmul %150, %7, %cst_107 {dimension_numbers = #tpu.dot_dimension_numbers<[1], [0], [0], [1], [0, 0, 1, 1], [], []>} : vector<7x24xbf16>, vector<24x384xbf16>, vector<7x384xf32> -> vector<7x384xf32>
    %152 = arith.addf %142, %151 : vector<7x384xf32>
    %153 = arith.addf %152, %10 : vector<7x384xf32>
    %cst_108 = arith.constant 0.000000e+00 : f32
    %154 = vector.broadcast %cst_108 : f32 to vector<7x384xf32>
    %155 = arith.maximumf %153, %154 : vector<7x384xf32>
    %c0_109 = arith.constant 0 : index
    %c3_110 = arith.constant 3 : index
    %c0_111 = arith.constant 0 : index
    %c0_112 = arith.constant 0 : index
    %156 = vector.load %arg6[%c0_109, %c3_110, %c0_111, %c0_112] : memref<1x7x7x384xf32, #tpu.memory_space<vmem>>, vector<1x1x7x384xf32>
    %157 = vector.shape_cast %156 : vector<1x1x7x384xf32> to vector<7x384xf32>
    %158 = vector.shape_cast %155 : vector<7x384xf32> to vector<1x1x7x384xf32>
    tpu.vector_store %arg6[%c0_109, %c3_110, %c0_111, %c0_112], %158 {strides = array<i32>} : memref<1x7x7x384xf32, #tpu.memory_space<vmem>>, vector<1x1x7x384xf32>,
    %cst_113 = arith.constant 0.000000e+00 : f32
    %159 = vector.broadcast %cst_113 : f32 to vector<7x384xf32>
    %c0_114 = arith.constant 0 : index
    %c8_115 = arith.constant 8 : index
    %c0_116 = arith.constant 0 : index
    %c0_117 = arith.constant 0 : index
    %160 = vector.load %arg1[%c0_114, %c8_115, %c0_116, %c0_117] : memref<1x16x7x12xbf16, #tpu.memory_space<vmem>>, vector<1x1x7x12xbf16>
    %161 = vector.shape_cast %160 : vector<1x1x7x12xbf16> to vector<7x12xbf16>
    %cst_118 = arith.constant dense<0.000000e+00> : vector<7x24xf32>
    %162 = tpu.matmul %161, %0, %cst_118 {dimension_numbers = #tpu.dot_dimension_numbers<[1], [0], [0], [1], [0, 0, 1, 1], [], []>} : vector<7x12xbf16>, vector<12x24xbf16>, vector<7x24xf32> -> vector<7x24xf32>
    %163 = vector.broadcast %1 : vector<1x24xf32> to vector<7x24xf32>
    %164 = arith.addf %162, %163 : vector<7x24xf32>
    %cst_119 = arith.constant 0.000000e+00 : f32
    %165 = vector.broadcast %cst_119 : f32 to vector<7x24xf32>
    %166 = arith.maximumf %164, %165 : vector<7x24xf32>
    %167 = arith.truncf %166 : vector<7x24xf32> to vector<7x24xbf16>
    %cst_120 = arith.constant dense<0.000000e+00> : vector<7x384xf32>
    %168 = tpu.matmul %167, %3, %cst_120 {dimension_numbers = #tpu.dot_dimension_numbers<[1], [0], [0], [1], [0, 0, 1, 1], [], []>} : vector<7x24xbf16>, vector<24x384xbf16>, vector<7x384xf32> -> vector<7x384xf32>
    %169 = arith.addf %159, %168 : vector<7x384xf32>
    %c0_121 = arith.constant 0 : index
    %c9 = arith.constant 9 : index
    %c0_122 = arith.constant 0 : index
    %c0_123 = arith.constant 0 : index
    %170 = vector.load %arg1[%c0_121, %c9, %c0_122, %c0_123] : memref<1x16x7x12xbf16, #tpu.memory_space<vmem>>, vector<1x1x7x12xbf16>
    %171 = vector.shape_cast %170 : vector<1x1x7x12xbf16> to vector<7x12xbf16>
    %cst_124 = arith.constant dense<0.000000e+00> : vector<7x24xf32>
    %172 = tpu.matmul %171, %0, %cst_124 {dimension_numbers = #tpu.dot_dimension_numbers<[1], [0], [0], [1], [0, 0, 1, 1], [], []>} : vector<7x12xbf16>, vector<12x24xbf16>, vector<7x24xf32> -> vector<7x24xf32>
    %173 = vector.broadcast %1 : vector<1x24xf32> to vector<7x24xf32>
    %174 = arith.addf %172, %173 : vector<7x24xf32>
    %cst_125 = arith.constant 0.000000e+00 : f32
    %175 = vector.broadcast %cst_125 : f32 to vector<7x24xf32>
    %176 = arith.maximumf %174, %175 : vector<7x24xf32>
    %177 = arith.truncf %176 : vector<7x24xf32> to vector<7x24xbf16>
    %cst_126 = arith.constant dense<0.000000e+00> : vector<7x384xf32>
    %178 = tpu.matmul %177, %5, %cst_126 {dimension_numbers = #tpu.dot_dimension_numbers<[1], [0], [0], [1], [0, 0, 1, 1], [], []>} : vector<7x24xbf16>, vector<24x384xbf16>, vector<7x384xf32> -> vector<7x384xf32>
    %179 = arith.addf %169, %178 : vector<7x384xf32>
    %c0_127 = arith.constant 0 : index
    %c10 = arith.constant 10 : index
    %c0_128 = arith.constant 0 : index
    %c0_129 = arith.constant 0 : index
    %180 = vector.load %arg1[%c0_127, %c10, %c0_128, %c0_129] : memref<1x16x7x12xbf16, #tpu.memory_space<vmem>>, vector<1x1x7x12xbf16>
    %181 = vector.shape_cast %180 : vector<1x1x7x12xbf16> to vector<7x12xbf16>
    %cst_130 = arith.constant dense<0.000000e+00> : vector<7x24xf32>
    %182 = tpu.matmul %181, %0, %cst_130 {dimension_numbers = #tpu.dot_dimension_numbers<[1], [0], [0], [1], [0, 0, 1, 1], [], []>} : vector<7x12xbf16>, vector<12x24xbf16>, vector<7x24xf32> -> vector<7x24xf32>
    %183 = vector.broadcast %1 : vector<1x24xf32> to vector<7x24xf32>
    %184 = arith.addf %182, %183 : vector<7x24xf32>
    %cst_131 = arith.constant 0.000000e+00 : f32
    %185 = vector.broadcast %cst_131 : f32 to vector<7x24xf32>
    %186 = arith.maximumf %184, %185 : vector<7x24xf32>
    %187 = arith.truncf %186 : vector<7x24xf32> to vector<7x24xbf16>
    %cst_132 = arith.constant dense<0.000000e+00> : vector<7x384xf32>
    %188 = tpu.matmul %187, %7, %cst_132 {dimension_numbers = #tpu.dot_dimension_numbers<[1], [0], [0], [1], [0, 0, 1, 1], [], []>} : vector<7x24xbf16>, vector<24x384xbf16>, vector<7x384xf32> -> vector<7x384xf32>
    %189 = arith.addf %179, %188 : vector<7x384xf32>
    %190 = arith.addf %189, %10 : vector<7x384xf32>
    %cst_133 = arith.constant 0.000000e+00 : f32
    %191 = vector.broadcast %cst_133 : f32 to vector<7x384xf32>
    %192 = arith.maximumf %190, %191 : vector<7x384xf32>
    %c0_134 = arith.constant 0 : index
    %c4_135 = arith.constant 4 : index
    %c0_136 = arith.constant 0 : index
    %c0_137 = arith.constant 0 : index
    %193 = vector.load %arg6[%c0_134, %c4_135, %c0_136, %c0_137] : memref<1x7x7x384xf32, #tpu.memory_space<vmem>>, vector<1x1x7x384xf32>
    %194 = vector.shape_cast %193 : vector<1x1x7x384xf32> to vector<7x384xf32>
    %195 = vector.shape_cast %192 : vector<7x384xf32> to vector<1x1x7x384xf32>
    tpu.vector_store %arg6[%c0_134, %c4_135, %c0_136, %c0_137], %195 {strides = array<i32>} : memref<1x7x7x384xf32, #tpu.memory_space<vmem>>, vector<1x1x7x384xf32>,
    %cst_138 = arith.constant 0.000000e+00 : f32
    %196 = vector.broadcast %cst_138 : f32 to vector<7x384xf32>
    %c0_139 = arith.constant 0 : index
    %c10_140 = arith.constant 10 : index
    %c0_141 = arith.constant 0 : index
    %c0_142 = arith.constant 0 : index
    %197 = vector.load %arg1[%c0_139, %c10_140, %c0_141, %c0_142] : memref<1x16x7x12xbf16, #tpu.memory_space<vmem>>, vector<1x1x7x12xbf16>
    %198 = vector.shape_cast %197 : vector<1x1x7x12xbf16> to vector<7x12xbf16>
    %cst_143 = arith.constant dense<0.000000e+00> : vector<7x24xf32>
    %199 = tpu.matmul %198, %0, %cst_143 {dimension_numbers = #tpu.dot_dimension_numbers<[1], [0], [0], [1], [0, 0, 1, 1], [], []>} : vector<7x12xbf16>, vector<12x24xbf16>, vector<7x24xf32> -> vector<7x24xf32>
    %200 = vector.broadcast %1 : vector<1x24xf32> to vector<7x24xf32>
    %201 = arith.addf %199, %200 : vector<7x24xf32>
    %cst_144 = arith.constant 0.000000e+00 : f32
    %202 = vector.broadcast %cst_144 : f32 to vector<7x24xf32>
    %203 = arith.maximumf %201, %202 : vector<7x24xf32>
    %204 = arith.truncf %203 : vector<7x24xf32> to vector<7x24xbf16>
    %cst_145 = arith.constant dense<0.000000e+00> : vector<7x384xf32>
    %205 = tpu.matmul %204, %3, %cst_145 {dimension_numbers = #tpu.dot_dimension_numbers<[1], [0], [0], [1], [0, 0, 1, 1], [], []>} : vector<7x24xbf16>, vector<24x384xbf16>, vector<7x384xf32> -> vector<7x384xf32>
    %206 = arith.addf %196, %205 : vector<7x384xf32>
    %c0_146 = arith.constant 0 : index
    %c11 = arith.constant 11 : index
    %c0_147 = arith.constant 0 : index
    %c0_148 = arith.constant 0 : index
    %207 = vector.load %arg1[%c0_146, %c11, %c0_147, %c0_148] : memref<1x16x7x12xbf16, #tpu.memory_space<vmem>>, vector<1x1x7x12xbf16>
    %208 = vector.shape_cast %207 : vector<1x1x7x12xbf16> to vector<7x12xbf16>
    %cst_149 = arith.constant dense<0.000000e+00> : vector<7x24xf32>
    %209 = tpu.matmul %208, %0, %cst_149 {dimension_numbers = #tpu.dot_dimension_numbers<[1], [0], [0], [1], [0, 0, 1, 1], [], []>} : vector<7x12xbf16>, vector<12x24xbf16>, vector<7x24xf32> -> vector<7x24xf32>
    %210 = vector.broadcast %1 : vector<1x24xf32> to vector<7x24xf32>
    %211 = arith.addf %209, %210 : vector<7x24xf32>
    %cst_150 = arith.constant 0.000000e+00 : f32
    %212 = vector.broadcast %cst_150 : f32 to vector<7x24xf32>
    %213 = arith.maximumf %211, %212 : vector<7x24xf32>
    %214 = arith.truncf %213 : vector<7x24xf32> to vector<7x24xbf16>
    %cst_151 = arith.constant dense<0.000000e+00> : vector<7x384xf32>
    %215 = tpu.matmul %214, %5, %cst_151 {dimension_numbers = #tpu.dot_dimension_numbers<[1], [0], [0], [1], [0, 0, 1, 1], [], []>} : vector<7x24xbf16>, vector<24x384xbf16>, vector<7x384xf32> -> vector<7x384xf32>
    %216 = arith.addf %206, %215 : vector<7x384xf32>
    %c0_152 = arith.constant 0 : index
    %c12 = arith.constant 12 : index
    %c0_153 = arith.constant 0 : index
    %c0_154 = arith.constant 0 : index
    %217 = vector.load %arg1[%c0_152, %c12, %c0_153, %c0_154] : memref<1x16x7x12xbf16, #tpu.memory_space<vmem>>, vector<1x1x7x12xbf16>
    %218 = vector.shape_cast %217 : vector<1x1x7x12xbf16> to vector<7x12xbf16>
    %cst_155 = arith.constant dense<0.000000e+00> : vector<7x24xf32>
    %219 = tpu.matmul %218, %0, %cst_155 {dimension_numbers = #tpu.dot_dimension_numbers<[1], [0], [0], [1], [0, 0, 1, 1], [], []>} : vector<7x12xbf16>, vector<12x24xbf16>, vector<7x24xf32> -> vector<7x24xf32>
    %220 = vector.broadcast %1 : vector<1x24xf32> to vector<7x24xf32>
    %221 = arith.addf %219, %220 : vector<7x24xf32>
    %cst_156 = arith.constant 0.000000e+00 : f32
    %222 = vector.broadcast %cst_156 : f32 to vector<7x24xf32>
    %223 = arith.maximumf %221, %222 : vector<7x24xf32>
    %224 = arith.truncf %223 : vector<7x24xf32> to vector<7x24xbf16>
    %cst_157 = arith.constant dense<0.000000e+00> : vector<7x384xf32>
    %225 = tpu.matmul %224, %7, %cst_157 {dimension_numbers = #tpu.dot_dimension_numbers<[1], [0], [0], [1], [0, 0, 1, 1], [], []>} : vector<7x24xbf16>, vector<24x384xbf16>, vector<7x384xf32> -> vector<7x384xf32>
    %226 = arith.addf %216, %225 : vector<7x384xf32>
    %227 = arith.addf %226, %10 : vector<7x384xf32>
    %cst_158 = arith.constant 0.000000e+00 : f32
    %228 = vector.broadcast %cst_158 : f32 to vector<7x384xf32>
    %229 = arith.maximumf %227, %228 : vector<7x384xf32>
    %c0_159 = arith.constant 0 : index
    %c5_160 = arith.constant 5 : index
    %c0_161 = arith.constant 0 : index
    %c0_162 = arith.constant 0 : index
    %230 = vector.load %arg6[%c0_159, %c5_160, %c0_161, %c0_162] : memref<1x7x7x384xf32, #tpu.memory_space<vmem>>, vector<1x1x7x384xf32>
    %231 = vector.shape_cast %230 : vector<1x1x7x384xf32> to vector<7x384xf32>
    %232 = vector.shape_cast %229 : vector<7x384xf32> to vector<1x1x7x384xf32>
    tpu.vector_store %arg6[%c0_159, %c5_160, %c0_161, %c0_162], %232 {strides = array<i32>} : memref<1x7x7x384xf32, #tpu.memory_space<vmem>>, vector<1x1x7x384xf32>,
    %cst_163 = arith.constant 0.000000e+00 : f32
    %233 = vector.broadcast %cst_163 : f32 to vector<7x384xf32>
    %c0_164 = arith.constant 0 : index
    %c12_165 = arith.constant 12 : index
    %c0_166 = arith.constant 0 : index
    %c0_167 = arith.constant 0 : index
    %234 = vector.load %arg1[%c0_164, %c12_165, %c0_166, %c0_167] : memref<1x16x7x12xbf16, #tpu.memory_space<vmem>>, vector<1x1x7x12xbf16>
    %235 = vector.shape_cast %234 : vector<1x1x7x12xbf16> to vector<7x12xbf16>
    %cst_168 = arith.constant dense<0.000000e+00> : vector<7x24xf32>
    %236 = tpu.matmul %235, %0, %cst_168 {dimension_numbers = #tpu.dot_dimension_numbers<[1], [0], [0], [1], [0, 0, 1, 1], [], []>} : vector<7x12xbf16>, vector<12x24xbf16>, vector<7x24xf32> -> vector<7x24xf32>
    %237 = vector.broadcast %1 : vector<1x24xf32> to vector<7x24xf32>
    %238 = arith.addf %236, %237 : vector<7x24xf32>
    %cst_169 = arith.constant 0.000000e+00 : f32
    %239 = vector.broadcast %cst_169 : f32 to vector<7x24xf32>
    %240 = arith.maximumf %238, %239 : vector<7x24xf32>
    %241 = arith.truncf %240 : vector<7x24xf32> to vector<7x24xbf16>
    %cst_170 = arith.constant dense<0.000000e+00> : vector<7x384xf32>
    %242 = tpu.matmul %241, %3, %cst_170 {dimension_numbers = #tpu.dot_dimension_numbers<[1], [0], [0], [1], [0, 0, 1, 1], [], []>} : vector<7x24xbf16>, vector<24x384xbf16>, vector<7x384xf32> -> vector<7x384xf32>
    %243 = arith.addf %233, %242 : vector<7x384xf32>
    %c0_171 = arith.constant 0 : index
    %c13 = arith.constant 13 : index
    %c0_172 = arith.constant 0 : index
    %c0_173 = arith.constant 0 : index
    %244 = vector.load %arg1[%c0_171, %c13, %c0_172, %c0_173] : memref<1x16x7x12xbf16, #tpu.memory_space<vmem>>, vector<1x1x7x12xbf16>
    %245 = vector.shape_cast %244 : vector<1x1x7x12xbf16> to vector<7x12xbf16>
    %cst_174 = arith.constant dense<0.000000e+00> : vector<7x24xf32>
    %246 = tpu.matmul %245, %0, %cst_174 {dimension_numbers = #tpu.dot_dimension_numbers<[1], [0], [0], [1], [0, 0, 1, 1], [], []>} : vector<7x12xbf16>, vector<12x24xbf16>, vector<7x24xf32> -> vector<7x24xf32>
    %247 = vector.broadcast %1 : vector<1x24xf32> to vector<7x24xf32>
    %248 = arith.addf %246, %247 : vector<7x24xf32>
    %cst_175 = arith.constant 0.000000e+00 : f32
    %249 = vector.broadcast %cst_175 : f32 to vector<7x24xf32>
    %250 = arith.maximumf %248, %249 : vector<7x24xf32>
    %251 = arith.truncf %250 : vector<7x24xf32> to vector<7x24xbf16>
    %cst_176 = arith.constant dense<0.000000e+00> : vector<7x384xf32>
    %252 = tpu.matmul %251, %5, %cst_176 {dimension_numbers = #tpu.dot_dimension_numbers<[1], [0], [0], [1], [0, 0, 1, 1], [], []>} : vector<7x24xbf16>, vector<24x384xbf16>, vector<7x384xf32> -> vector<7x384xf32>
    %253 = arith.addf %243, %252 : vector<7x384xf32>
    %c0_177 = arith.constant 0 : index
    %c14 = arith.constant 14 : index
    %c0_178 = arith.constant 0 : index
    %c0_179 = arith.constant 0 : index
    %254 = vector.load %arg1[%c0_177, %c14, %c0_178, %c0_179] : memref<1x16x7x12xbf16, #tpu.memory_space<vmem>>, vector<1x1x7x12xbf16>
    %255 = vector.shape_cast %254 : vector<1x1x7x12xbf16> to vector<7x12xbf16>
    %cst_180 = arith.constant dense<0.000000e+00> : vector<7x24xf32>
    %256 = tpu.matmul %255, %0, %cst_180 {dimension_numbers = #tpu.dot_dimension_numbers<[1], [0], [0], [1], [0, 0, 1, 1], [], []>} : vector<7x12xbf16>, vector<12x24xbf16>, vector<7x24xf32> -> vector<7x24xf32>
    %257 = vector.broadcast %1 : vector<1x24xf32> to vector<7x24xf32>
    %258 = arith.addf %256, %257 : vector<7x24xf32>
    %cst_181 = arith.constant 0.000000e+00 : f32
    %259 = vector.broadcast %cst_181 : f32 to vector<7x24xf32>
    %260 = arith.maximumf %258, %259 : vector<7x24xf32>
    %261 = arith.truncf %260 : vector<7x24xf32> to vector<7x24xbf16>
    %cst_182 = arith.constant dense<0.000000e+00> : vector<7x384xf32>
    %262 = tpu.matmul %261, %7, %cst_182 {dimension_numbers = #tpu.dot_dimension_numbers<[1], [0], [0], [1], [0, 0, 1, 1], [], []>} : vector<7x24xbf16>, vector<24x384xbf16>, vector<7x384xf32> -> vector<7x384xf32>
    %263 = arith.addf %253, %262 : vector<7x384xf32>
    %264 = arith.addf %263, %10 : vector<7x384xf32>
    %cst_183 = arith.constant 0.000000e+00 : f32
    %265 = vector.broadcast %cst_183 : f32 to vector<7x384xf32>
    %266 = arith.maximumf %264, %265 : vector<7x384xf32>
    %c0_184 = arith.constant 0 : index
    %c6_185 = arith.constant 6 : index
    %c0_186 = arith.constant 0 : index
    %c0_187 = arith.constant 0 : index
    %267 = vector.load %arg6[%c0_184, %c6_185, %c0_186, %c0_187] : memref<1x7x7x384xf32, #tpu.memory_space<vmem>>, vector<1x1x7x384xf32>
    %268 = vector.shape_cast %267 : vector<1x1x7x384xf32> to vector<7x384xf32>
    %269 = vector.shape_cast %266 : vector<7x384xf32> to vector<1x1x7x384xf32>
    tpu.vector_store %arg6[%c0_184, %c6_185, %c0_186, %c0_187], %269 {strides = array<i32>} : memref<1x7x7x384xf32, #tpu.memory_space<vmem>>, vector<1x1x7x384xf32>,
    return
  }
  func.func @transform_0(%arg0: i32) -> (i32, i32, i32, i32) {
    %c0_i32 = arith.constant 0 : i32
    %c0_i32_0 = arith.constant 0 : i32
    %c0_i32_1 = arith.constant 0 : i32
    %c0_i32_2 = arith.constant 0 : i32
    return %arg0, %c0_i32, %c0_i32_0, %c0_i32_1 : i32, i32, i32, i32
  }
  func.func @transform_1(%arg0: i32) -> (i32, i32) {
    %c0_i32 = arith.constant 0 : i32
    %c0_i32_0 = arith.constant 0 : i32
    %c0_i32_1 = arith.constant 0 : i32
    return %c0_i32, %c0_i32_0 : i32, i32
  }
  func.func @transform_2(%arg0: i32) -> (i32, i32) {
    %c0_i32 = arith.constant 0 : i32
    %c0_i32_0 = arith.constant 0 : i32
    %c0_i32_1 = arith.constant 0 : i32
    return %c0_i32, %c0_i32_0 : i32, i32
  }
  func.func @transform_3(%arg0: i32) -> (i32, i32, i32) {
    %c0_i32 = arith.constant 0 : i32
    %c0_i32_0 = arith.constant 0 : i32
    %c0_i32_1 = arith.constant 0 : i32
    %c0_i32_2 = arith.constant 0 : i32
    return %c0_i32, %c0_i32_0, %c0_i32_1 : i32, i32, i32
  }
  func.func @transform_4(%arg0: i32) -> (i32, i32) {
    %c0_i32 = arith.constant 0 : i32
    %c0_i32_0 = arith.constant 0 : i32
    %c0_i32_1 = arith.constant 0 : i32
    return %c0_i32, %c0_i32_0 : i32, i32
  }
  func.func @transform_5(%arg0: i32) -> (i32, i32, i32, i32) {
    %c0_i32 = arith.constant 0 : i32
    %c0_i32_0 = arith.constant 0 : i32
    %c0_i32_1 = arith.constant 0 : i32
    %c0_i32_2 = arith.constant 0 : i32
    return %arg0, %c0_i32, %c0_i32_0, %c0_i32_1 : i32, i32, i32, i32
  }
}

module attributes {stable_mosaic.version = 11 : i64} {
  func.func @_fused_1x1_3x3_s1_kernel(%arg0: i32, %arg1: memref<1x18x16x12xbf16, #tpu.memory_space<vmem>>, %arg2: memref<288x24xf32, #tpu.memory_space<vmem>>, %arg3: memref<12x24xbf16, #tpu.memory_space<vmem>>, %arg4: memref<1x24xf32, #tpu.memory_space<vmem>>, %arg5: memref<3x24x256xbf16, #tpu.memory_space<vmem>>, %arg6: memref<1x256xf32, #tpu.memory_space<vmem>>, %arg7: memref<1x16x16x256xbf16, #tpu.memory_space<vmem>>) attributes {dimension_semantics = [#tpu.dimension_semantics<parallel>], iteration_bounds = array<i64: 2>, scalar_prefetch = 0 : i64, scratch_operands = 0 : i64, tpu.core_type = #tpu.core_type<tc>, window_params = [{transform_indices = @transform_0, window_bounds = array<i64: 1, 18, 16, 12>}, {pipeline_mode = #tpu.pipeline_mode<synchronous>, transform_indices = @transform_1, window_bounds = array<i64: 288, 24>}, {pipeline_mode = #tpu.pipeline_mode<synchronous>, transform_indices = @transform_2, window_bounds = array<i64: 12, 24>}, {pipeline_mode = #tpu.pipeline_mode<synchronous>, transform_indices = @transform_3, window_bounds = array<i64: 1, 24>}, {pipeline_mode = #tpu.pipeline_mode<synchronous>, transform_indices = @transform_4, window_bounds = array<i64: 3, 24, 256>}, {pipeline_mode = #tpu.pipeline_mode<synchronous>, transform_indices = @transform_5, window_bounds = array<i64: 1, 256>}, {transform_indices = @transform_6, window_bounds = array<i64: 1, 16, 16, 256>}]} {
    %c0 = arith.constant 0 : index
    %c0_0 = arith.constant 0 : index
    %c0_1 = arith.constant 0 : index
    %c0_2 = arith.constant 0 : index
    %0 = vector.load %arg1[%c0, %c0_0, %c0_1, %c0_2] : memref<1x18x16x12xbf16, #tpu.memory_space<vmem>>, vector<1x18x16x12xbf16>
    %1 = vector.shape_cast %0 : vector<1x18x16x12xbf16> to vector<18x16x12xbf16>
    %2 = vector.shape_cast %1 : vector<18x16x12xbf16> to vector<288x12xbf16>
    %c0_3 = arith.constant 0 : index
    %c0_4 = arith.constant 0 : index
    %3 = vector.load %arg3[%c0_3, %c0_4] : memref<12x24xbf16, #tpu.memory_space<vmem>>, vector<12x24xbf16>
    %cst = arith.constant dense<0.000000e+00> : vector<288x24xf32>
    %4 = tpu.matmul %2, %3, %cst {dimension_numbers = #tpu.dot_dimension_numbers<[1], [0], [0], [1], [0, 0, 1, 1], [], []>} : vector<288x12xbf16>, vector<12x24xbf16>, vector<288x24xf32> -> vector<288x24xf32>
    %c0_5 = arith.constant 0 : index
    %c0_6 = arith.constant 0 : index
    %5 = vector.load %arg4[%c0_5, %c0_6] : memref<1x24xf32, #tpu.memory_space<vmem>>, vector<1x24xf32>
    %6 = vector.broadcast %5 : vector<1x24xf32> to vector<288x24xf32>
    %7 = arith.addf %4, %6 : vector<288x24xf32>
    %cst_7 = arith.constant 0.000000e+00 : f32
    %8 = vector.broadcast %cst_7 : f32 to vector<288x24xf32>
    %9 = arith.maximumf %7, %8 : vector<288x24xf32>
    %c0_8 = arith.constant 0 : index
    %c0_9 = arith.constant 0 : index
    %10 = vector.load %arg2[%c0_8, %c0_9] : memref<288x24xf32, #tpu.memory_space<vmem>>, vector<288x24xf32>
    %11 = arith.mulf %9, %10 : vector<288x24xf32>
    %12 = arith.truncf %11 : vector<288x24xf32> to vector<288x24xbf16>
    %cst_10 = arith.constant 0.000000e+00 : f32
    %13 = vector.broadcast %cst_10 : f32 to vector<256x256xf32>
    %14 = vector.extract_strided_slice %12 {offsets = [0, 0], sizes = [256, 24], strides = [1, 1]} : vector<288x24xbf16> to vector<256x24xbf16>
    %c0_11 = arith.constant 0 : index
    %c0_12 = arith.constant 0 : index
    %c0_13 = arith.constant 0 : index
    %15 = vector.load %arg5[%c0_11, %c0_12, %c0_13] : memref<3x24x256xbf16, #tpu.memory_space<vmem>>, vector<1x24x256xbf16>
    %16 = vector.shape_cast %15 : vector<1x24x256xbf16> to vector<24x256xbf16>
    %cst_14 = arith.constant dense<0.000000e+00> : vector<256x256xf32>
    %17 = tpu.matmul %14, %16, %cst_14 {dimension_numbers = #tpu.dot_dimension_numbers<[1], [0], [0], [1], [0, 0, 1, 1], [], []>} : vector<256x24xbf16>, vector<24x256xbf16>, vector<256x256xf32> -> vector<256x256xf32>
    %18 = arith.addf %13, %17 : vector<256x256xf32>
    %19 = vector.extract_strided_slice %12 {offsets = [16, 0], sizes = [256, 24], strides = [1, 1]} : vector<288x24xbf16> to vector<256x24xbf16>
    %c1 = arith.constant 1 : index
    %c0_15 = arith.constant 0 : index
    %c0_16 = arith.constant 0 : index
    %20 = vector.load %arg5[%c1, %c0_15, %c0_16] : memref<3x24x256xbf16, #tpu.memory_space<vmem>>, vector<1x24x256xbf16>
    %21 = vector.shape_cast %20 : vector<1x24x256xbf16> to vector<24x256xbf16>
    %cst_17 = arith.constant dense<0.000000e+00> : vector<256x256xf32>
    %22 = tpu.matmul %19, %21, %cst_17 {dimension_numbers = #tpu.dot_dimension_numbers<[1], [0], [0], [1], [0, 0, 1, 1], [], []>} : vector<256x24xbf16>, vector<24x256xbf16>, vector<256x256xf32> -> vector<256x256xf32>
    %23 = arith.addf %18, %22 : vector<256x256xf32>
    %24 = vector.extract_strided_slice %12 {offsets = [32, 0], sizes = [256, 24], strides = [1, 1]} : vector<288x24xbf16> to vector<256x24xbf16>
    %c2 = arith.constant 2 : index
    %c0_18 = arith.constant 0 : index
    %c0_19 = arith.constant 0 : index
    %25 = vector.load %arg5[%c2, %c0_18, %c0_19] : memref<3x24x256xbf16, #tpu.memory_space<vmem>>, vector<1x24x256xbf16>
    %26 = vector.shape_cast %25 : vector<1x24x256xbf16> to vector<24x256xbf16>
    %cst_20 = arith.constant dense<0.000000e+00> : vector<256x256xf32>
    %27 = tpu.matmul %24, %26, %cst_20 {dimension_numbers = #tpu.dot_dimension_numbers<[1], [0], [0], [1], [0, 0, 1, 1], [], []>} : vector<256x24xbf16>, vector<24x256xbf16>, vector<256x256xf32> -> vector<256x256xf32>
    %28 = arith.addf %23, %27 : vector<256x256xf32>
    %c0_21 = arith.constant 0 : index
    %c0_22 = arith.constant 0 : index
    %29 = vector.load %arg6[%c0_21, %c0_22] : memref<1x256xf32, #tpu.memory_space<vmem>>, vector<1x256xf32>
    %30 = vector.broadcast %29 : vector<1x256xf32> to vector<256x256xf32>
    %31 = arith.addf %28, %30 : vector<256x256xf32>
    %cst_23 = arith.constant 0.000000e+00 : f32
    %32 = vector.broadcast %cst_23 : f32 to vector<256x256xf32>
    %33 = arith.maximumf %31, %32 : vector<256x256xf32>
    %34 = arith.truncf %33 : vector<256x256xf32> to vector<256x256xbf16>
    %35 = vector.shape_cast %34 : vector<256x256xbf16> to vector<16x16x256xbf16>
    %c0_24 = arith.constant 0 : index
    %c0_25 = arith.constant 0 : index
    %c0_26 = arith.constant 0 : index
    %c0_27 = arith.constant 0 : index
    %36 = vector.load %arg7[%c0_24, %c0_25, %c0_26, %c0_27] : memref<1x16x16x256xbf16, #tpu.memory_space<vmem>>, vector<1x16x16x256xbf16>
    %37 = vector.shape_cast %36 : vector<1x16x16x256xbf16> to vector<16x16x256xbf16>
    %38 = vector.shape_cast %35 : vector<16x16x256xbf16> to vector<1x16x16x256xbf16>
    tpu.vector_store %arg7[%c0_24, %c0_25, %c0_26, %c0_27], %38 {strides = array<i32>} : memref<1x16x16x256xbf16, #tpu.memory_space<vmem>>, vector<1x16x16x256xbf16>,
    return
  }
  func.func @transform_0(%arg0: i32) -> (i32, i32, i32, i32) {
    %c0_i32 = arith.constant 0 : i32
    %c0_i32_0 = arith.constant 0 : i32
    %c0_i32_1 = arith.constant 0 : i32
    %c0_i32_2 = arith.constant 0 : i32
    return %arg0, %c0_i32, %c0_i32_0, %c0_i32_1 : i32, i32, i32, i32
  }
  func.func @transform_1(%arg0: i32) -> (i32, i32) {
    %c0_i32 = arith.constant 0 : i32
    %c0_i32_0 = arith.constant 0 : i32
    %c0_i32_1 = arith.constant 0 : i32
    return %c0_i32, %c0_i32_0 : i32, i32
  }
  func.func @transform_2(%arg0: i32) -> (i32, i32) {
    %c0_i32 = arith.constant 0 : i32
    %c0_i32_0 = arith.constant 0 : i32
    %c0_i32_1 = arith.constant 0 : i32
    return %c0_i32, %c0_i32_0 : i32, i32
  }
  func.func @transform_3(%arg0: i32) -> (i32, i32) {
    %c0_i32 = arith.constant 0 : i32
    %c0_i32_0 = arith.constant 0 : i32
    %c0_i32_1 = arith.constant 0 : i32
    return %c0_i32, %c0_i32_0 : i32, i32
  }
  func.func @transform_4(%arg0: i32) -> (i32, i32, i32) {
    %c0_i32 = arith.constant 0 : i32
    %c0_i32_0 = arith.constant 0 : i32
    %c0_i32_1 = arith.constant 0 : i32
    %c0_i32_2 = arith.constant 0 : i32
    return %c0_i32, %c0_i32_0, %c0_i32_1 : i32, i32, i32
  }
  func.func @transform_5(%arg0: i32) -> (i32, i32) {
    %c0_i32 = arith.constant 0 : i32
    %c0_i32_0 = arith.constant 0 : i32
    %c0_i32_1 = arith.constant 0 : i32
    return %c0_i32, %c0_i32_0 : i32, i32
  }
  func.func @transform_6(%arg0: i32) -> (i32, i32, i32, i32) {
    %c0_i32 = arith.constant 0 : i32
    %c0_i32_0 = arith.constant 0 : i32
    %c0_i32_1 = arith.constant 0 : i32
    %c0_i32_2 = arith.constant 0 : i32
    return %arg0, %c0_i32, %c0_i32_0, %c0_i32_1 : i32, i32, i32, i32
  }
}

module attributes {stable_mosaic.version = 11 : i64} {
  func.func @_conv3x3_s2_kernel(%arg0: i32, %arg1: memref<1x16x7x768xbf16, #tpu.memory_space<vmem>>, %arg2: memref<3x768x256xbf16, #tpu.memory_space<vmem>>, %arg3: memref<1x256xf32, #tpu.memory_space<vmem>>, %arg4: memref<1x7x7x256xf32, #tpu.memory_space<vmem>>) attributes {dimension_semantics = [#tpu.dimension_semantics<parallel>], iteration_bounds = array<i64: 2>, scalar_prefetch = 0 : i64, scratch_operands = 0 : i64, tpu.core_type = #tpu.core_type<tc>, window_params = [{transform_indices = @transform_0, window_bounds = array<i64: 1, 16, 7, 768>}, {pipeline_mode = #tpu.pipeline_mode<synchronous>, transform_indices = @transform_1, window_bounds = array<i64: 3, 768, 256>}, {pipeline_mode = #tpu.pipeline_mode<synchronous>, transform_indices = @transform_2, window_bounds = array<i64: 1, 256>}, {transform_indices = @transform_3, window_bounds = array<i64: 1, 7, 7, 256>}]} {
    %c0 = arith.constant 0 : index
    %c0_0 = arith.constant 0 : index
    %c0_1 = arith.constant 0 : index
    %0 = vector.load %arg2[%c0, %c0_0, %c0_1] : memref<3x768x256xbf16, #tpu.memory_space<vmem>>, vector<1x768x256xbf16>
    %1 = vector.shape_cast %0 : vector<1x768x256xbf16> to vector<768x256xbf16>
    %c1 = arith.constant 1 : index
    %c0_2 = arith.constant 0 : index
    %c0_3 = arith.constant 0 : index
    %2 = vector.load %arg2[%c1, %c0_2, %c0_3] : memref<3x768x256xbf16, #tpu.memory_space<vmem>>, vector<1x768x256xbf16>
    %3 = vector.shape_cast %2 : vector<1x768x256xbf16> to vector<768x256xbf16>
    %c2 = arith.constant 2 : index
    %c0_4 = arith.constant 0 : index
    %c0_5 = arith.constant 0 : index
    %4 = vector.load %arg2[%c2, %c0_4, %c0_5] : memref<3x768x256xbf16, #tpu.memory_space<vmem>>, vector<1x768x256xbf16>
    %5 = vector.shape_cast %4 : vector<1x768x256xbf16> to vector<768x256xbf16>
    %c0_6 = arith.constant 0 : index
    %c0_7 = arith.constant 0 : index
    %6 = vector.load %arg3[%c0_6, %c0_7] : memref<1x256xf32, #tpu.memory_space<vmem>>, vector<1x256xf32>
    %7 = vector.shape_cast %6 : vector<1x256xf32> to vector<1x256xf32>
    %8 = vector.broadcast %7 : vector<1x256xf32> to vector<7x256xf32>
    %cst = arith.constant 0.000000e+00 : f32
    %9 = vector.broadcast %cst : f32 to vector<7x256xf32>
    %c0_8 = arith.constant 0 : index
    %c0_9 = arith.constant 0 : index
    %c0_10 = arith.constant 0 : index
    %c0_11 = arith.constant 0 : index
    %10 = vector.load %arg1[%c0_8, %c0_9, %c0_10, %c0_11] : memref<1x16x7x768xbf16, #tpu.memory_space<vmem>>, vector<1x1x7x768xbf16>
    %11 = vector.shape_cast %10 : vector<1x1x7x768xbf16> to vector<7x768xbf16>
    %cst_12 = arith.constant dense<0.000000e+00> : vector<7x256xf32>
    %12 = tpu.matmul %11, %1, %cst_12 {dimension_numbers = #tpu.dot_dimension_numbers<[1], [0], [0], [1], [0, 0, 1, 1], [], []>} : vector<7x768xbf16>, vector<768x256xbf16>, vector<7x256xf32> -> vector<7x256xf32>
    %13 = arith.addf %9, %12 : vector<7x256xf32>
    %c0_13 = arith.constant 0 : index
    %c1_14 = arith.constant 1 : index
    %c0_15 = arith.constant 0 : index
    %c0_16 = arith.constant 0 : index
    %14 = vector.load %arg1[%c0_13, %c1_14, %c0_15, %c0_16] : memref<1x16x7x768xbf16, #tpu.memory_space<vmem>>, vector<1x1x7x768xbf16>
    %15 = vector.shape_cast %14 : vector<1x1x7x768xbf16> to vector<7x768xbf16>
    %cst_17 = arith.constant dense<0.000000e+00> : vector<7x256xf32>
    %16 = tpu.matmul %15, %3, %cst_17 {dimension_numbers = #tpu.dot_dimension_numbers<[1], [0], [0], [1], [0, 0, 1, 1], [], []>} : vector<7x768xbf16>, vector<768x256xbf16>, vector<7x256xf32> -> vector<7x256xf32>
    %17 = arith.addf %13, %16 : vector<7x256xf32>
    %c0_18 = arith.constant 0 : index
    %c2_19 = arith.constant 2 : index
    %c0_20 = arith.constant 0 : index
    %c0_21 = arith.constant 0 : index
    %18 = vector.load %arg1[%c0_18, %c2_19, %c0_20, %c0_21] : memref<1x16x7x768xbf16, #tpu.memory_space<vmem>>, vector<1x1x7x768xbf16>
    %19 = vector.shape_cast %18 : vector<1x1x7x768xbf16> to vector<7x768xbf16>
    %cst_22 = arith.constant dense<0.000000e+00> : vector<7x256xf32>
    %20 = tpu.matmul %19, %5, %cst_22 {dimension_numbers = #tpu.dot_dimension_numbers<[1], [0], [0], [1], [0, 0, 1, 1], [], []>} : vector<7x768xbf16>, vector<768x256xbf16>, vector<7x256xf32> -> vector<7x256xf32>
    %21 = arith.addf %17, %20 : vector<7x256xf32>
    %22 = arith.addf %21, %8 : vector<7x256xf32>
    %cst_23 = arith.constant 0.000000e+00 : f32
    %23 = vector.broadcast %cst_23 : f32 to vector<7x256xf32>
    %24 = arith.maximumf %22, %23 : vector<7x256xf32>
    %c0_24 = arith.constant 0 : index
    %c0_25 = arith.constant 0 : index
    %c0_26 = arith.constant 0 : index
    %c0_27 = arith.constant 0 : index
    %25 = vector.load %arg4[%c0_24, %c0_25, %c0_26, %c0_27] : memref<1x7x7x256xf32, #tpu.memory_space<vmem>>, vector<1x1x7x256xf32>
    %26 = vector.shape_cast %25 : vector<1x1x7x256xf32> to vector<7x256xf32>
    %27 = vector.shape_cast %24 : vector<7x256xf32> to vector<1x1x7x256xf32>
    tpu.vector_store %arg4[%c0_24, %c0_25, %c0_26, %c0_27], %27 {strides = array<i32>} : memref<1x7x7x256xf32, #tpu.memory_space<vmem>>, vector<1x1x7x256xf32>,
    %cst_28 = arith.constant 0.000000e+00 : f32
    %28 = vector.broadcast %cst_28 : f32 to vector<7x256xf32>
    %c0_29 = arith.constant 0 : index
    %c2_30 = arith.constant 2 : index
    %c0_31 = arith.constant 0 : index
    %c0_32 = arith.constant 0 : index
    %29 = vector.load %arg1[%c0_29, %c2_30, %c0_31, %c0_32] : memref<1x16x7x768xbf16, #tpu.memory_space<vmem>>, vector<1x1x7x768xbf16>
    %30 = vector.shape_cast %29 : vector<1x1x7x768xbf16> to vector<7x768xbf16>
    %cst_33 = arith.constant dense<0.000000e+00> : vector<7x256xf32>
    %31 = tpu.matmul %30, %1, %cst_33 {dimension_numbers = #tpu.dot_dimension_numbers<[1], [0], [0], [1], [0, 0, 1, 1], [], []>} : vector<7x768xbf16>, vector<768x256xbf16>, vector<7x256xf32> -> vector<7x256xf32>
    %32 = arith.addf %28, %31 : vector<7x256xf32>
    %c0_34 = arith.constant 0 : index
    %c3 = arith.constant 3 : index
    %c0_35 = arith.constant 0 : index
    %c0_36 = arith.constant 0 : index
    %33 = vector.load %arg1[%c0_34, %c3, %c0_35, %c0_36] : memref<1x16x7x768xbf16, #tpu.memory_space<vmem>>, vector<1x1x7x768xbf16>
    %34 = vector.shape_cast %33 : vector<1x1x7x768xbf16> to vector<7x768xbf16>
    %cst_37 = arith.constant dense<0.000000e+00> : vector<7x256xf32>
    %35 = tpu.matmul %34, %3, %cst_37 {dimension_numbers = #tpu.dot_dimension_numbers<[1], [0], [0], [1], [0, 0, 1, 1], [], []>} : vector<7x768xbf16>, vector<768x256xbf16>, vector<7x256xf32> -> vector<7x256xf32>
    %36 = arith.addf %32, %35 : vector<7x256xf32>
    %c0_38 = arith.constant 0 : index
    %c4 = arith.constant 4 : index
    %c0_39 = arith.constant 0 : index
    %c0_40 = arith.constant 0 : index
    %37 = vector.load %arg1[%c0_38, %c4, %c0_39, %c0_40] : memref<1x16x7x768xbf16, #tpu.memory_space<vmem>>, vector<1x1x7x768xbf16>
    %38 = vector.shape_cast %37 : vector<1x1x7x768xbf16> to vector<7x768xbf16>
    %cst_41 = arith.constant dense<0.000000e+00> : vector<7x256xf32>
    %39 = tpu.matmul %38, %5, %cst_41 {dimension_numbers = #tpu.dot_dimension_numbers<[1], [0], [0], [1], [0, 0, 1, 1], [], []>} : vector<7x768xbf16>, vector<768x256xbf16>, vector<7x256xf32> -> vector<7x256xf32>
    %40 = arith.addf %36, %39 : vector<7x256xf32>
    %41 = arith.addf %40, %8 : vector<7x256xf32>
    %cst_42 = arith.constant 0.000000e+00 : f32
    %42 = vector.broadcast %cst_42 : f32 to vector<7x256xf32>
    %43 = arith.maximumf %41, %42 : vector<7x256xf32>
    %c0_43 = arith.constant 0 : index
    %c1_44 = arith.constant 1 : index
    %c0_45 = arith.constant 0 : index
    %c0_46 = arith.constant 0 : index
    %44 = vector.load %arg4[%c0_43, %c1_44, %c0_45, %c0_46] : memref<1x7x7x256xf32, #tpu.memory_space<vmem>>, vector<1x1x7x256xf32>
    %45 = vector.shape_cast %44 : vector<1x1x7x256xf32> to vector<7x256xf32>
    %46 = vector.shape_cast %43 : vector<7x256xf32> to vector<1x1x7x256xf32>
    tpu.vector_store %arg4[%c0_43, %c1_44, %c0_45, %c0_46], %46 {strides = array<i32>} : memref<1x7x7x256xf32, #tpu.memory_space<vmem>>, vector<1x1x7x256xf32>,
    %cst_47 = arith.constant 0.000000e+00 : f32
    %47 = vector.broadcast %cst_47 : f32 to vector<7x256xf32>
    %c0_48 = arith.constant 0 : index
    %c4_49 = arith.constant 4 : index
    %c0_50 = arith.constant 0 : index
    %c0_51 = arith.constant 0 : index
    %48 = vector.load %arg1[%c0_48, %c4_49, %c0_50, %c0_51] : memref<1x16x7x768xbf16, #tpu.memory_space<vmem>>, vector<1x1x7x768xbf16>
    %49 = vector.shape_cast %48 : vector<1x1x7x768xbf16> to vector<7x768xbf16>
    %cst_52 = arith.constant dense<0.000000e+00> : vector<7x256xf32>
    %50 = tpu.matmul %49, %1, %cst_52 {dimension_numbers = #tpu.dot_dimension_numbers<[1], [0], [0], [1], [0, 0, 1, 1], [], []>} : vector<7x768xbf16>, vector<768x256xbf16>, vector<7x256xf32> -> vector<7x256xf32>
    %51 = arith.addf %47, %50 : vector<7x256xf32>
    %c0_53 = arith.constant 0 : index
    %c5 = arith.constant 5 : index
    %c0_54 = arith.constant 0 : index
    %c0_55 = arith.constant 0 : index
    %52 = vector.load %arg1[%c0_53, %c5, %c0_54, %c0_55] : memref<1x16x7x768xbf16, #tpu.memory_space<vmem>>, vector<1x1x7x768xbf16>
    %53 = vector.shape_cast %52 : vector<1x1x7x768xbf16> to vector<7x768xbf16>
    %cst_56 = arith.constant dense<0.000000e+00> : vector<7x256xf32>
    %54 = tpu.matmul %53, %3, %cst_56 {dimension_numbers = #tpu.dot_dimension_numbers<[1], [0], [0], [1], [0, 0, 1, 1], [], []>} : vector<7x768xbf16>, vector<768x256xbf16>, vector<7x256xf32> -> vector<7x256xf32>
    %55 = arith.addf %51, %54 : vector<7x256xf32>
    %c0_57 = arith.constant 0 : index
    %c6 = arith.constant 6 : index
    %c0_58 = arith.constant 0 : index
    %c0_59 = arith.constant 0 : index
    %56 = vector.load %arg1[%c0_57, %c6, %c0_58, %c0_59] : memref<1x16x7x768xbf16, #tpu.memory_space<vmem>>, vector<1x1x7x768xbf16>
    %57 = vector.shape_cast %56 : vector<1x1x7x768xbf16> to vector<7x768xbf16>
    %cst_60 = arith.constant dense<0.000000e+00> : vector<7x256xf32>
    %58 = tpu.matmul %57, %5, %cst_60 {dimension_numbers = #tpu.dot_dimension_numbers<[1], [0], [0], [1], [0, 0, 1, 1], [], []>} : vector<7x768xbf16>, vector<768x256xbf16>, vector<7x256xf32> -> vector<7x256xf32>
    %59 = arith.addf %55, %58 : vector<7x256xf32>
    %60 = arith.addf %59, %8 : vector<7x256xf32>
    %cst_61 = arith.constant 0.000000e+00 : f32
    %61 = vector.broadcast %cst_61 : f32 to vector<7x256xf32>
    %62 = arith.maximumf %60, %61 : vector<7x256xf32>
    %c0_62 = arith.constant 0 : index
    %c2_63 = arith.constant 2 : index
    %c0_64 = arith.constant 0 : index
    %c0_65 = arith.constant 0 : index
    %63 = vector.load %arg4[%c0_62, %c2_63, %c0_64, %c0_65] : memref<1x7x7x256xf32, #tpu.memory_space<vmem>>, vector<1x1x7x256xf32>
    %64 = vector.shape_cast %63 : vector<1x1x7x256xf32> to vector<7x256xf32>
    %65 = vector.shape_cast %62 : vector<7x256xf32> to vector<1x1x7x256xf32>
    tpu.vector_store %arg4[%c0_62, %c2_63, %c0_64, %c0_65], %65 {strides = array<i32>} : memref<1x7x7x256xf32, #tpu.memory_space<vmem>>, vector<1x1x7x256xf32>,
    %cst_66 = arith.constant 0.000000e+00 : f32
    %66 = vector.broadcast %cst_66 : f32 to vector<7x256xf32>
    %c0_67 = arith.constant 0 : index
    %c6_68 = arith.constant 6 : index
    %c0_69 = arith.constant 0 : index
    %c0_70 = arith.constant 0 : index
    %67 = vector.load %arg1[%c0_67, %c6_68, %c0_69, %c0_70] : memref<1x16x7x768xbf16, #tpu.memory_space<vmem>>, vector<1x1x7x768xbf16>
    %68 = vector.shape_cast %67 : vector<1x1x7x768xbf16> to vector<7x768xbf16>
    %cst_71 = arith.constant dense<0.000000e+00> : vector<7x256xf32>
    %69 = tpu.matmul %68, %1, %cst_71 {dimension_numbers = #tpu.dot_dimension_numbers<[1], [0], [0], [1], [0, 0, 1, 1], [], []>} : vector<7x768xbf16>, vector<768x256xbf16>, vector<7x256xf32> -> vector<7x256xf32>
    %70 = arith.addf %66, %69 : vector<7x256xf32>
    %c0_72 = arith.constant 0 : index
    %c7 = arith.constant 7 : index
    %c0_73 = arith.constant 0 : index
    %c0_74 = arith.constant 0 : index
    %71 = vector.load %arg1[%c0_72, %c7, %c0_73, %c0_74] : memref<1x16x7x768xbf16, #tpu.memory_space<vmem>>, vector<1x1x7x768xbf16>
    %72 = vector.shape_cast %71 : vector<1x1x7x768xbf16> to vector<7x768xbf16>
    %cst_75 = arith.constant dense<0.000000e+00> : vector<7x256xf32>
    %73 = tpu.matmul %72, %3, %cst_75 {dimension_numbers = #tpu.dot_dimension_numbers<[1], [0], [0], [1], [0, 0, 1, 1], [], []>} : vector<7x768xbf16>, vector<768x256xbf16>, vector<7x256xf32> -> vector<7x256xf32>
    %74 = arith.addf %70, %73 : vector<7x256xf32>
    %c0_76 = arith.constant 0 : index
    %c8 = arith.constant 8 : index
    %c0_77 = arith.constant 0 : index
    %c0_78 = arith.constant 0 : index
    %75 = vector.load %arg1[%c0_76, %c8, %c0_77, %c0_78] : memref<1x16x7x768xbf16, #tpu.memory_space<vmem>>, vector<1x1x7x768xbf16>
    %76 = vector.shape_cast %75 : vector<1x1x7x768xbf16> to vector<7x768xbf16>
    %cst_79 = arith.constant dense<0.000000e+00> : vector<7x256xf32>
    %77 = tpu.matmul %76, %5, %cst_79 {dimension_numbers = #tpu.dot_dimension_numbers<[1], [0], [0], [1], [0, 0, 1, 1], [], []>} : vector<7x768xbf16>, vector<768x256xbf16>, vector<7x256xf32> -> vector<7x256xf32>
    %78 = arith.addf %74, %77 : vector<7x256xf32>
    %79 = arith.addf %78, %8 : vector<7x256xf32>
    %cst_80 = arith.constant 0.000000e+00 : f32
    %80 = vector.broadcast %cst_80 : f32 to vector<7x256xf32>
    %81 = arith.maximumf %79, %80 : vector<7x256xf32>
    %c0_81 = arith.constant 0 : index
    %c3_82 = arith.constant 3 : index
    %c0_83 = arith.constant 0 : index
    %c0_84 = arith.constant 0 : index
    %82 = vector.load %arg4[%c0_81, %c3_82, %c0_83, %c0_84] : memref<1x7x7x256xf32, #tpu.memory_space<vmem>>, vector<1x1x7x256xf32>
    %83 = vector.shape_cast %82 : vector<1x1x7x256xf32> to vector<7x256xf32>
    %84 = vector.shape_cast %81 : vector<7x256xf32> to vector<1x1x7x256xf32>
    tpu.vector_store %arg4[%c0_81, %c3_82, %c0_83, %c0_84], %84 {strides = array<i32>} : memref<1x7x7x256xf32, #tpu.memory_space<vmem>>, vector<1x1x7x256xf32>,
    %cst_85 = arith.constant 0.000000e+00 : f32
    %85 = vector.broadcast %cst_85 : f32 to vector<7x256xf32>
    %c0_86 = arith.constant 0 : index
    %c8_87 = arith.constant 8 : index
    %c0_88 = arith.constant 0 : index
    %c0_89 = arith.constant 0 : index
    %86 = vector.load %arg1[%c0_86, %c8_87, %c0_88, %c0_89] : memref<1x16x7x768xbf16, #tpu.memory_space<vmem>>, vector<1x1x7x768xbf16>
    %87 = vector.shape_cast %86 : vector<1x1x7x768xbf16> to vector<7x768xbf16>
    %cst_90 = arith.constant dense<0.000000e+00> : vector<7x256xf32>
    %88 = tpu.matmul %87, %1, %cst_90 {dimension_numbers = #tpu.dot_dimension_numbers<[1], [0], [0], [1], [0, 0, 1, 1], [], []>} : vector<7x768xbf16>, vector<768x256xbf16>, vector<7x256xf32> -> vector<7x256xf32>
    %89 = arith.addf %85, %88 : vector<7x256xf32>
    %c0_91 = arith.constant 0 : index
    %c9 = arith.constant 9 : index
    %c0_92 = arith.constant 0 : index
    %c0_93 = arith.constant 0 : index
    %90 = vector.load %arg1[%c0_91, %c9, %c0_92, %c0_93] : memref<1x16x7x768xbf16, #tpu.memory_space<vmem>>, vector<1x1x7x768xbf16>
    %91 = vector.shape_cast %90 : vector<1x1x7x768xbf16> to vector<7x768xbf16>
    %cst_94 = arith.constant dense<0.000000e+00> : vector<7x256xf32>
    %92 = tpu.matmul %91, %3, %cst_94 {dimension_numbers = #tpu.dot_dimension_numbers<[1], [0], [0], [1], [0, 0, 1, 1], [], []>} : vector<7x768xbf16>, vector<768x256xbf16>, vector<7x256xf32> -> vector<7x256xf32>
    %93 = arith.addf %89, %92 : vector<7x256xf32>
    %c0_95 = arith.constant 0 : index
    %c10 = arith.constant 10 : index
    %c0_96 = arith.constant 0 : index
    %c0_97 = arith.constant 0 : index
    %94 = vector.load %arg1[%c0_95, %c10, %c0_96, %c0_97] : memref<1x16x7x768xbf16, #tpu.memory_space<vmem>>, vector<1x1x7x768xbf16>
    %95 = vector.shape_cast %94 : vector<1x1x7x768xbf16> to vector<7x768xbf16>
    %cst_98 = arith.constant dense<0.000000e+00> : vector<7x256xf32>
    %96 = tpu.matmul %95, %5, %cst_98 {dimension_numbers = #tpu.dot_dimension_numbers<[1], [0], [0], [1], [0, 0, 1, 1], [], []>} : vector<7x768xbf16>, vector<768x256xbf16>, vector<7x256xf32> -> vector<7x256xf32>
    %97 = arith.addf %93, %96 : vector<7x256xf32>
    %98 = arith.addf %97, %8 : vector<7x256xf32>
    %cst_99 = arith.constant 0.000000e+00 : f32
    %99 = vector.broadcast %cst_99 : f32 to vector<7x256xf32>
    %100 = arith.maximumf %98, %99 : vector<7x256xf32>
    %c0_100 = arith.constant 0 : index
    %c4_101 = arith.constant 4 : index
    %c0_102 = arith.constant 0 : index
    %c0_103 = arith.constant 0 : index
    %101 = vector.load %arg4[%c0_100, %c4_101, %c0_102, %c0_103] : memref<1x7x7x256xf32, #tpu.memory_space<vmem>>, vector<1x1x7x256xf32>
    %102 = vector.shape_cast %101 : vector<1x1x7x256xf32> to vector<7x256xf32>
    %103 = vector.shape_cast %100 : vector<7x256xf32> to vector<1x1x7x256xf32>
    tpu.vector_store %arg4[%c0_100, %c4_101, %c0_102, %c0_103], %103 {strides = array<i32>} : memref<1x7x7x256xf32, #tpu.memory_space<vmem>>, vector<1x1x7x256xf32>,
    %cst_104 = arith.constant 0.000000e+00 : f32
    %104 = vector.broadcast %cst_104 : f32 to vector<7x256xf32>
    %c0_105 = arith.constant 0 : index
    %c10_106 = arith.constant 10 : index
    %c0_107 = arith.constant 0 : index
    %c0_108 = arith.constant 0 : index
    %105 = vector.load %arg1[%c0_105, %c10_106, %c0_107, %c0_108] : memref<1x16x7x768xbf16, #tpu.memory_space<vmem>>, vector<1x1x7x768xbf16>
    %106 = vector.shape_cast %105 : vector<1x1x7x768xbf16> to vector<7x768xbf16>
    %cst_109 = arith.constant dense<0.000000e+00> : vector<7x256xf32>
    %107 = tpu.matmul %106, %1, %cst_109 {dimension_numbers = #tpu.dot_dimension_numbers<[1], [0], [0], [1], [0, 0, 1, 1], [], []>} : vector<7x768xbf16>, vector<768x256xbf16>, vector<7x256xf32> -> vector<7x256xf32>
    %108 = arith.addf %104, %107 : vector<7x256xf32>
    %c0_110 = arith.constant 0 : index
    %c11 = arith.constant 11 : index
    %c0_111 = arith.constant 0 : index
    %c0_112 = arith.constant 0 : index
    %109 = vector.load %arg1[%c0_110, %c11, %c0_111, %c0_112] : memref<1x16x7x768xbf16, #tpu.memory_space<vmem>>, vector<1x1x7x768xbf16>
    %110 = vector.shape_cast %109 : vector<1x1x7x768xbf16> to vector<7x768xbf16>
    %cst_113 = arith.constant dense<0.000000e+00> : vector<7x256xf32>
    %111 = tpu.matmul %110, %3, %cst_113 {dimension_numbers = #tpu.dot_dimension_numbers<[1], [0], [0], [1], [0, 0, 1, 1], [], []>} : vector<7x768xbf16>, vector<768x256xbf16>, vector<7x256xf32> -> vector<7x256xf32>
    %112 = arith.addf %108, %111 : vector<7x256xf32>
    %c0_114 = arith.constant 0 : index
    %c12 = arith.constant 12 : index
    %c0_115 = arith.constant 0 : index
    %c0_116 = arith.constant 0 : index
    %113 = vector.load %arg1[%c0_114, %c12, %c0_115, %c0_116] : memref<1x16x7x768xbf16, #tpu.memory_space<vmem>>, vector<1x1x7x768xbf16>
    %114 = vector.shape_cast %113 : vector<1x1x7x768xbf16> to vector<7x768xbf16>
    %cst_117 = arith.constant dense<0.000000e+00> : vector<7x256xf32>
    %115 = tpu.matmul %114, %5, %cst_117 {dimension_numbers = #tpu.dot_dimension_numbers<[1], [0], [0], [1], [0, 0, 1, 1], [], []>} : vector<7x768xbf16>, vector<768x256xbf16>, vector<7x256xf32> -> vector<7x256xf32>
    %116 = arith.addf %112, %115 : vector<7x256xf32>
    %117 = arith.addf %116, %8 : vector<7x256xf32>
    %cst_118 = arith.constant 0.000000e+00 : f32
    %118 = vector.broadcast %cst_118 : f32 to vector<7x256xf32>
    %119 = arith.maximumf %117, %118 : vector<7x256xf32>
    %c0_119 = arith.constant 0 : index
    %c5_120 = arith.constant 5 : index
    %c0_121 = arith.constant 0 : index
    %c0_122 = arith.constant 0 : index
    %120 = vector.load %arg4[%c0_119, %c5_120, %c0_121, %c0_122] : memref<1x7x7x256xf32, #tpu.memory_space<vmem>>, vector<1x1x7x256xf32>
    %121 = vector.shape_cast %120 : vector<1x1x7x256xf32> to vector<7x256xf32>
    %122 = vector.shape_cast %119 : vector<7x256xf32> to vector<1x1x7x256xf32>
    tpu.vector_store %arg4[%c0_119, %c5_120, %c0_121, %c0_122], %122 {strides = array<i32>} : memref<1x7x7x256xf32, #tpu.memory_space<vmem>>, vector<1x1x7x256xf32>,
    %cst_123 = arith.constant 0.000000e+00 : f32
    %123 = vector.broadcast %cst_123 : f32 to vector<7x256xf32>
    %c0_124 = arith.constant 0 : index
    %c12_125 = arith.constant 12 : index
    %c0_126 = arith.constant 0 : index
    %c0_127 = arith.constant 0 : index
    %124 = vector.load %arg1[%c0_124, %c12_125, %c0_126, %c0_127] : memref<1x16x7x768xbf16, #tpu.memory_space<vmem>>, vector<1x1x7x768xbf16>
    %125 = vector.shape_cast %124 : vector<1x1x7x768xbf16> to vector<7x768xbf16>
    %cst_128 = arith.constant dense<0.000000e+00> : vector<7x256xf32>
    %126 = tpu.matmul %125, %1, %cst_128 {dimension_numbers = #tpu.dot_dimension_numbers<[1], [0], [0], [1], [0, 0, 1, 1], [], []>} : vector<7x768xbf16>, vector<768x256xbf16>, vector<7x256xf32> -> vector<7x256xf32>
    %127 = arith.addf %123, %126 : vector<7x256xf32>
    %c0_129 = arith.constant 0 : index
    %c13 = arith.constant 13 : index
    %c0_130 = arith.constant 0 : index
    %c0_131 = arith.constant 0 : index
    %128 = vector.load %arg1[%c0_129, %c13, %c0_130, %c0_131] : memref<1x16x7x768xbf16, #tpu.memory_space<vmem>>, vector<1x1x7x768xbf16>
    %129 = vector.shape_cast %128 : vector<1x1x7x768xbf16> to vector<7x768xbf16>
    %cst_132 = arith.constant dense<0.000000e+00> : vector<7x256xf32>
    %130 = tpu.matmul %129, %3, %cst_132 {dimension_numbers = #tpu.dot_dimension_numbers<[1], [0], [0], [1], [0, 0, 1, 1], [], []>} : vector<7x768xbf16>, vector<768x256xbf16>, vector<7x256xf32> -> vector<7x256xf32>
    %131 = arith.addf %127, %130 : vector<7x256xf32>
    %c0_133 = arith.constant 0 : index
    %c14 = arith.constant 14 : index
    %c0_134 = arith.constant 0 : index
    %c0_135 = arith.constant 0 : index
    %132 = vector.load %arg1[%c0_133, %c14, %c0_134, %c0_135] : memref<1x16x7x768xbf16, #tpu.memory_space<vmem>>, vector<1x1x7x768xbf16>
    %133 = vector.shape_cast %132 : vector<1x1x7x768xbf16> to vector<7x768xbf16>
    %cst_136 = arith.constant dense<0.000000e+00> : vector<7x256xf32>
    %134 = tpu.matmul %133, %5, %cst_136 {dimension_numbers = #tpu.dot_dimension_numbers<[1], [0], [0], [1], [0, 0, 1, 1], [], []>} : vector<7x768xbf16>, vector<768x256xbf16>, vector<7x256xf32> -> vector<7x256xf32>
    %135 = arith.addf %131, %134 : vector<7x256xf32>
    %136 = arith.addf %135, %8 : vector<7x256xf32>
    %cst_137 = arith.constant 0.000000e+00 : f32
    %137 = vector.broadcast %cst_137 : f32 to vector<7x256xf32>
    %138 = arith.maximumf %136, %137 : vector<7x256xf32>
    %c0_138 = arith.constant 0 : index
    %c6_139 = arith.constant 6 : index
    %c0_140 = arith.constant 0 : index
    %c0_141 = arith.constant 0 : index
    %139 = vector.load %arg4[%c0_138, %c6_139, %c0_140, %c0_141] : memref<1x7x7x256xf32, #tpu.memory_space<vmem>>, vector<1x1x7x256xf32>
    %140 = vector.shape_cast %139 : vector<1x1x7x256xf32> to vector<7x256xf32>
    %141 = vector.shape_cast %138 : vector<7x256xf32> to vector<1x1x7x256xf32>
    tpu.vector_store %arg4[%c0_138, %c6_139, %c0_140, %c0_141], %141 {strides = array<i32>} : memref<1x7x7x256xf32, #tpu.memory_space<vmem>>, vector<1x1x7x256xf32>,
    return
  }
  func.func @transform_0(%arg0: i32) -> (i32, i32, i32, i32) {
    %c0_i32 = arith.constant 0 : i32
    %c0_i32_0 = arith.constant 0 : i32
    %c0_i32_1 = arith.constant 0 : i32
    %c0_i32_2 = arith.constant 0 : i32
    return %arg0, %c0_i32, %c0_i32_0, %c0_i32_1 : i32, i32, i32, i32
  }
  func.func @transform_1(%arg0: i32) -> (i32, i32, i32) {
    %c0_i32 = arith.constant 0 : i32
    %c0_i32_0 = arith.constant 0 : i32
    %c0_i32_1 = arith.constant 0 : i32
    %c0_i32_2 = arith.constant 0 : i32
    return %c0_i32, %c0_i32_0, %c0_i32_1 : i32, i32, i32
  }
  func.func @transform_2(%arg0: i32) -> (i32, i32) {
    %c0_i32 = arith.constant 0 : i32
    %c0_i32_0 = arith.constant 0 : i32
    %c0_i32_1 = arith.constant 0 : i32
    return %c0_i32, %c0_i32_0 : i32, i32
  }
  func.func @transform_3(%arg0: i32) -> (i32, i32, i32, i32) {
    %c0_i32 = arith.constant 0 : i32
    %c0_i32_0 = arith.constant 0 : i32
    %c0_i32_1 = arith.constant 0 : i32
    %c0_i32_2 = arith.constant 0 : i32
    return %arg0, %c0_i32, %c0_i32_0, %c0_i32_1 : i32, i32, i32, i32
  }
}

</mosaic_0001>

<llo_original>
// kernel: _inception_red_forward.3
$region0: #{_inception_red_forward.3}
  #allocation0 [shape = 'u32[]', space=smem, size = 0x4, offset = 0x4, fixed_abs, tag = 'smem constant byte address 0x4 - core index']
  #allocation1 [shape = 'u32[144,128]{1,0:T(1,128)}', space=vmem, size = 0x12000, scoped, tag = 'internal scratch']
  %s0 = inlined_call_operand.vmem [shape: bf16[2,18,16,12], index: 0, kind: input, shape index: {}]
  %s1 = inlined_call_operand.vmem [shape: f32[288,24], index: 1, kind: input, shape index: {}]
  %s2 = inlined_call_operand.vmem [shape: bf16[12,24], index: 2, kind: input, shape index: {}]
  %s3 = inlined_call_operand.vmem [shape: f32[1,24], index: 3, kind: input, shape index: {}]
  %s4 = inlined_call_operand.vmem [shape: bf16[3,24,256], index: 4, kind: input, shape index: {}]
  %s5 = inlined_call_operand.vmem [shape: f32[1,256], index: 5, kind: input, shape index: {}]
  %s6 = inlined_call_operand.vmem [shape: bf16[2,16,16,256], index: 6, kind: output, shape index: {}]
  %s7 = sld [smem:[#allocation0]]
  $region57: #{_inception_red_forward.3} parent=0
    _
  %s9 = ssub.s32 1, %s7
  %s10 = scalar_select 0, %s9, %s7
  loop: start=0, step=1, limit=4
  $region2: #{_inception_red_forward.3} parent=0 // loop_pre_header
    _
  $region3: #{_inception_red_forward.3} parent=0 // loop_header
    %s12 = sphi 0, %s16
    %p13 = scmp.ge.s32.totalorder %s12, 4
    %s22 = sphi 0, %s24
    %s25 = sphi 0, %s22
    %s26 = sphi 0, %s25
    %s42 = sphi 0, %s26
    %s46 = sphi 0, %s46
    %s48 = sphi 0, %s46
    %s49 = sphi 0, %s48
    %s63 = sphi 0, %s49
    %s67 = sphi 0, %s67
    %s69 = sphi 0, %s67
    %s70 = sphi 0, %s69
    %s84 = sphi 0, %s70
    %s88 = sphi 0, %s88
    %s90 = sphi 0, %s88
    %s91 = sphi 0, %s90
    %s105 = sphi 0, %s91
    %s109 = sphi 0, %s109
    %s111 = sphi 0, %s109
    %s112 = sphi 0, %s111
    %s126 = sphi 0, %s112
    %s130 = sphi 0, %s130
    %s132 = sphi 0, %s130
    %s133 = sphi 0, %s132
    %s147 = sphi 0, %s133
    %s153 = sphi 0, %s155
    %s156 = sphi 0, %s153
    %s157 = sphi 0, %s156
    %s173 = sphi 0, %s157
  $region4: #{_inception_red_forward.3} parent=0 // loop_header_branch
    %15 = sbr.rel (%p13) target = $region8
  $region5: #{_inception_red_forward.3} parent=0 // loop_body
    %s17 = ssub.s32 %s12, 1
    %s18 = ssub.s32 %s12, 2
    %s19 = sadd.s32 %s12, 1
    %s20 = ssub.s32 %s12, %s19
    %p21 = scmp.eq.s32.totalorder %s20, 0
    %s23 = sadd.s32 %s22, 1
    %s24 = scalar_select %p21, %s22, %s23
    %p27 = pneg %p21
    %p28 = scmp.eq.s32.totalorder %s12, 1
    %p29 = por %p27, %p28
    %p30 = scmp.ne.s32.totalorder %s22, %s25
    %p31 = scmp.eq.s32.totalorder %s12, 0
    %p32 = por %p30, %p31
    %p33 = scmp.ne.s32.totalorder %s22, %s25
    %p34 = scmp.eq.s32.totalorder %s17, 1
    %p35 = por %p33, %p34
    %p36 = scmp.ne.s32.totalorder %s25, %s26
    %p37 = scmp.eq.s32.totalorder %s17, 0
    %p38 = por %p36, %p37
    %p39 = scmp.ne.s32.totalorder %s25, %s26
    %p40 = scmp.eq.s32.totalorder %s18, 1
    %p41 = por %p39, %p40
    %p43 = scmp.ne.s32.totalorder %s26, %s42
    %p44 = scmp.eq.s32.totalorder %s18, 0
    %p45 = por %p43, %p44
    %s47 = sadd.s32 %s46, 1
    %p50 = scmp.eq.s32.totalorder %s12, 1
    %p51 = scmp.ne.s32.totalorder %s46, %s48
    %p52 = scmp.eq.s32.totalorder %s12, 0
    %p53 = por %p51, %p52
    %p54 = scmp.ne.s32.totalorder %s46, %s48
    %p55 = scmp.eq.s32.totalorder %s17, 1
    %p56 = por %p54, %p55
    %p57 = scmp.ne.s32.totalorder %s48, %s49
    %p58 = scmp.eq.s32.totalorder %s17, 0
    %p59 = por %p57, %p58
    %p60 = scmp.ne.s32.totalorder %s48, %s49
    %p61 = scmp.eq.s32.totalorder %s18, 1
    %p62 = por %p60, %p61
    %p64 = scmp.ne.s32.totalorder %s49, %s63
    %p65 = scmp.eq.s32.totalorder %s18, 0
    %p66 = por %p64, %p65
    %s68 = sadd.s32 %s67, 1
    %p71 = scmp.eq.s32.totalorder %s12, 1
    %p72 = scmp.ne.s32.totalorder %s67, %s69
    %p73 = scmp.eq.s32.totalorder %s12, 0
    %p74 = por %p72, %p73
    %p75 = scmp.ne.s32.totalorder %s67, %s69
    %p76 = scmp.eq.s32.totalorder %s17, 1
    %p77 = por %p75, %p76
    %p78 = scmp.ne.s32.totalorder %s69, %s70
    %p79 = scmp.eq.s32.totalorder %s17, 0
    %p80 = por %p78, %p79
    %p81 = scmp.ne.s32.totalorder %s69, %s70
    %p82 = scmp.eq.s32.totalorder %s18, 1
    %p83 = por %p81, %p82
    %p85 = scmp.ne.s32.totalorder %s70, %s84
    %p86 = scmp.eq.s32.totalorder %s18, 0
    %p87 = por %p85, %p86
    %s89 = sadd.s32 %s88, 1
    %p92 = scmp.eq.s32.totalorder %s12, 1
    %p93 = scmp.ne.s32.totalorder %s88, %s90
    %p94 = scmp.eq.s32.totalorder %s12, 0
    %p95 = por %p93, %p94
    %p96 = scmp.ne.s32.totalorder %s88, %s90
    %p97 = scmp.eq.s32.totalorder %s17, 1
    %p98 = por %p96, %p97
    %p99 = scmp.ne.s32.totalorder %s90, %s91
    %p100 = scmp.eq.s32.totalorder %s17, 0
    %p101 = por %p99, %p100
    %p102 = scmp.ne.s32.totalorder %s90, %s91
    %p103 = scmp.eq.s32.totalorder %s18, 1
    %p104 = por %p102, %p103
    %p106 = scmp.ne.s32.totalorder %s91, %s105
    %p107 = scmp.eq.s32.totalorder %s18, 0
    %p108 = por %p106, %p107
    %s110 = sadd.s32 %s109, 1
    %p113 = scmp.eq.s32.totalorder %s12, 1
    %p114 = scmp.ne.s32.totalorder %s109, %s111
    %p115 = scmp.eq.s32.totalorder %s12, 0
    %p116 = por %p114, %p115
    %p117 = scmp.ne.s32.totalorder %s109, %s111
    %p118 = scmp.eq.s32.totalorder %s17, 1
    %p119 = por %p117, %p118
    %p120 = scmp.ne.s32.totalorder %s111, %s112
    %p121 = scmp.eq.s32.totalorder %s17, 0
    %p122 = por %p120, %p121
    %p123 = scmp.ne.s32.totalorder %s111, %s112
    %p124 = scmp.eq.s32.totalorder %s18, 1
    %p125 = por %p123, %p124
    %p127 = scmp.ne.s32.totalorder %s112, %s126
    %p128 = scmp.eq.s32.totalorder %s18, 0
    %p129 = por %p127, %p128
    %s131 = sadd.s32 %s130, 1
    %p134 = scmp.eq.s32.totalorder %s12, 1
    %p135 = scmp.ne.s32.totalorder %s130, %s132
    %p136 = scmp.eq.s32.totalorder %s12, 0
    %p137 = por %p135, %p136
    %p138 = scmp.ne.s32.totalorder %s130, %s132
    %p139 = scmp.eq.s32.totalorder %s17, 1
    %p140 = por %p138, %p139
    %p141 = scmp.ne.s32.totalorder %s132, %s133
    %p142 = scmp.eq.s32.totalorder %s17, 0
    %p143 = por %p141, %p142
    %p144 = scmp.ne.s32.totalorder %s132, %s133
    %p145 = scmp.eq.s32.totalorder %s18, 1
    %p146 = por %p144, %p145
    %p148 = scmp.ne.s32.totalorder %s133, %s147
    %p149 = scmp.eq.s32.totalorder %s18, 0
    %p150 = por %p148, %p149
    %s151 = ssub.s32 %s12, %s19
    %p152 = scmp.eq.s32.totalorder %s151, 0
    %s154 = sadd.s32 %s153, 1
    %s155 = scalar_select %p152, %s153, %s154
    %p158 = pneg %p152
    %p159 = scmp.eq.s32.totalorder %s12, 1
    %p160 = por %p158, %p159
    %p161 = scmp.ne.s32.totalorder %s153, %s156
    %p162 = scmp.eq.s32.totalorder %s12, 0
    %p163 = por %p161, %p162
    %p164 = scmp.ne.s32.totalorder %s153, %s156
    %p165 = scmp.eq.s32.totalorder %s17, 1
    %p166 = por %p164, %p165
    %p167 = scmp.ne.s32.totalorder %s156, %s157
    %p168 = scmp.eq.s32.totalorder %s17, 0
    %p169 = por %p167, %p168
    %p170 = scmp.ne.s32.totalorder %s156, %s157
    %p171 = scmp.eq.s32.totalorder %s18, 1
    %p172 = por %p170, %p171
    %p174 = scmp.ne.s32.totalorder %s157, %s173
    %p175 = scmp.eq.s32.totalorder %s18, 0
    %p176 = por %p174, %p175
    %p177 = scmp.le.s32.totalorder 1, %s12
    %p178 = scmp.lt.s32.totalorder %s12, 3
    %p179 = pnand %p177, %p178
    %p180 = pneg %p179
    // Predicated region
    $region9: #{_inception_red_forward.3} parent=5 // pred_check
      _
    $region10: #{_inception_red_forward.3} parent=5 // pred_check_branch
      %182 = sbr.rel (%p179) target = $region12
    $region11: #{_inception_red_forward.3} parent=5 // pred_region
      %s183 = ssub.s32 %s12, 1
      // Predicated region
      $region13: #{_inception_red_forward.3} parent=11 // pred_check
        %p184 = pneg %p59
      $region14: #{_inception_red_forward.3} parent=11 // pred_check_branch
        %186 = sbr.rel (%p184) target = $region16
      $region15: #{_inception_red_forward.3} parent=11 // pred_region
        _
      $region16: #{_inception_red_forward.3} parent=11 // pred_fallthru
        _
      // Predicated region
      $region17: #{_inception_red_forward.3} parent=11 // pred_check
        %p187 = pneg %p80
      $region18: #{_inception_red_forward.3} parent=11 // pred_check_branch
        %189 = sbr.rel (%p187) target = $region20
      $region19: #{_inception_red_forward.3} parent=11 // pred_region
        _
      $region20: #{_inception_red_forward.3} parent=11 // pred_fallthru
        _
      // Predicated region
      $region21: #{_inception_red_forward.3} parent=11 // pred_check
        %p190 = pneg %p101
      $region22: #{_inception_red_forward.3} parent=11 // pred_check_branch
        %192 = sbr.rel (%p190) target = $region24
      $region23: #{_inception_red_forward.3} parent=11 // pred_region
        _
      $region24: #{_inception_red_forward.3} parent=11 // pred_fallthru
        _
      // Predicated region
      $region25: #{_inception_red_forward.3} parent=11 // pred_check
        %p193 = pneg %p122
      $region26: #{_inception_red_forward.3} parent=11 // pred_check_branch
        %195 = sbr.rel (%p193) target = $region28
      $region27: #{_inception_red_forward.3} parent=11 // pred_region
        _
      $region28: #{_inception_red_forward.3} parent=11 // pred_fallthru
        _
      // Predicated region
      $region29: #{_inception_red_forward.3} parent=11 // pred_check
        %p196 = pneg %p143
      $region30: #{_inception_red_forward.3} parent=11 // pred_check_branch
        %198 = sbr.rel (%p196) target = $region32
      $region31: #{_inception_red_forward.3} parent=11 // pred_region
        _
      $region32: #{_inception_red_forward.3} parent=11 // pred_fallthru
        _
    $region12: #{_inception_red_forward.3} parent=5 // pred_fallthru
      _
    %p199 = scmp.lt.s32.totalorder %s12, 2
    // Predicated region
    $region33: #{_inception_red_forward.3} parent=5 // pred_check
      %p200 = pneg %p199
    $region34: #{_inception_red_forward.3} parent=5 // pred_check_branch
      %202 = sbr.rel (%p200) target = $region36
    $region35: #{_inception_red_forward.3} parent=5 // pred_region
      // Predicated region
      $region37: #{_inception_red_forward.3} parent=35 // pred_check
        %p203 = pneg %p32
      $region38: #{_inception_red_forward.3} parent=35 // pred_check_branch
        %205 = sbr.rel (%p203) target = $region40
      $region39: #{_inception_red_forward.3} parent=35 // pred_region
        %p206 = scmp.lt.s32.totalorder %s12, 1
        %s207 = scalar_select %p206, %s12, 1
        %s208 = smul.addr %s207, 36
        %s209 = smul.addr %s208, 4
        %s210 = scalar_lea.vmem %s0, %s209
      $region40: #{_inception_red_forward.3} parent=35 // pred_fallthru
        _
    $region36: #{_inception_red_forward.3} parent=5 // pred_fallthru
      _
    %p211 = scmp.le.s32.totalorder 1, %s12
    %p212 = scmp.lt.s32.totalorder %s12, 3
    %p213 = pnand %p211, %p212
    %p214 = pneg %p213
    // Predicated region
    $region41: #{_inception_red_forward.3} parent=5 // pred_check
      _
    $region42: #{_inception_red_forward.3} parent=5 // pred_check_branch
      %216 = sbr.rel (%p213) target = $region44
    $region43: #{_inception_red_forward.3} parent=5 // pred_region
      %s217 = ssub.s32 %s12, 1
      %p218 = scmp.lt.s32.totalorder %s17, 1
      %s219 = scalar_select %p218, %s17, 1
      %s220 = smul.addr %s219, 36
      %s221 = smul.addr %s220, 4
      %s222 = scalar_lea.vmem %s0, %s221
      %p223 = pneg %p38
      %p224 = pneg %p35
      %p225 = pneg %p59
      %p226 = pneg %p56
      %p227 = pneg %p80
      %p228 = pneg %p77
      %p229 = pneg %p101
      %p230 = pneg %p98
      %p231 = pneg %p122
      %p232 = pneg %p119
      %p233 = pneg %p143
      %p234 = pneg %p140
      %p235 = pneg %p169
      %p236 = pneg %p166
      %p237 = scmp.lt.s32.totalorder %s17, 1
      %s238 = scalar_select %p237, %s17, 1
      %s239 = smul.addr %s238, 64
      %s240 = smul.addr %s239, 4
      %s241 = scalar_lea.vmem %s6, %s240
      %p242 = scmp.lt.s32.totalorder %s17, 1
      %s243 = scalar_select %p242, %s17, 1
      %s244 = smul.addr %s243, 36
      %s245 = smul.addr %s244, 4
      %s246 = scalar_lea.vmem %s0, %s245
      %p247 = scmp.lt.s32.totalorder %s17, 1
      %s248 = scalar_select %p247, %s17, 1
      %s249 = smul.addr %s248, 64
      %s250 = smul.addr %s249, 4
      %s251 = scalar_lea.vmem %s6, %s250
      %v253 = vld [vmem:[%s246] sm:$0xf]
      %v254 = vld [vmem:[%s246 + $0x4] sm:$0xf]
      %v255 = vld [vmem:[%s246 + $0x8] sm:$0xf]
      %v256 = vld [vmem:[%s246 + $0xc] sm:$0xf]
      %v257 = vld [vmem:[%s246 + $0x10] sm:$0xf]
      %v258 = vld [vmem:[%s246 + $0x14] sm:$0xf]
      %v259 = vld [vmem:[%s246 + $0x18] sm:$0xf]
      %v260 = vld [vmem:[%s246 + $0x1c] sm:$0xf]
      %v261 = vld [vmem:[%s246 + $0x20] sm:$0xf]
      %v262 = vld [vmem:[%s246 + $0x24] sm:$0xf]
      %v263 = vld [vmem:[%s246 + $0x28] sm:$0xf]
      %v264 = vld [vmem:[%s246 + $0x2c] sm:$0xf]
      %v265 = vld [vmem:[%s246 + $0x30] sm:$0xf]
      %v266 = vld [vmem:[%s246 + $0x34] sm:$0xf]
      %v267 = vld [vmem:[%s246 + $0x38] sm:$0xf]
      %v268 = vld [vmem:[%s246 + $0x3c] sm:$0xf]
      %v269 = vld [vmem:[%s246 + $0x40] sm:$0xf]
      %v270 = vld [vmem:[%s246 + $0x44] sm:$0xf]
      %v271 = vld [vmem:[%s246 + $0x48] sm:$0xf]
      %v272 = vld [vmem:[%s246 + $0x4c] sm:$0xf]
      %v273 = vld [vmem:[%s246 + $0x50] sm:$0xf]
      %v274 = vld [vmem:[%s246 + $0x54] sm:$0xf]
      %v275 = vld [vmem:[%s246 + $0x58] sm:$0xf]
      %v276 = vld [vmem:[%s246 + $0x5c] sm:$0xf]
      %v277 = vld [vmem:[%s246 + $0x60] sm:$0xf]
      %v278 = vld [vmem:[%s246 + $0x64] sm:$0xf]
      %v279 = vld [vmem:[%s246 + $0x68] sm:$0xf]
      %v280 = vld [vmem:[%s246 + $0x6c] sm:$0xf]
      %v281 = vld [vmem:[%s246 + $0x70] sm:$0xf]
      %v282 = vld [vmem:[%s246 + $0x74] sm:$0xf]
      %v283 = vld [vmem:[%s246 + $0x78] sm:$0xf]
      %v284 = vld [vmem:[%s246 + $0x7c] sm:$0xf]
      %v285 = vld [vmem:[%s246 + $0x80] sm:$0xf]
      %v286 = vld [vmem:[%s246 + $0x84] sm:$0xf]
      %v287 = vld [vmem:[%s246 + $0x88] sm:$0xf]
      %v288 = vld [vmem:[%s246 + $0x8c] sm:$0xf]
      %v289 = vld [vmem:[%s2] sm:$0xf]
      %v290 = vld [vmem:[%s2 + $0x4] sm:$0x3]
      %v291 = vld [vmem:[%s3] sm:$0x1]
      %v293 = vlaneseq
      %v294 = vshrl.u32 %v293, 7
      %v295 = vsub.s32 0, %v294
      %v296 = vrot.slane %v291, %v295
      %v334 = vunpack.c.l.b16 %v253
      %v335 = vunpack.c.l.b16 %v254
      %v336 = vunpack.c.l.b16 %v255
      %v337 = vunpack.c.l.b16 %v256
      %v338 = vunpack.c.l.b16 %v257
      %v339 = vunpack.c.l.b16 %v258
      %v340 = vunpack.c.l.b16 %v259
      %v341 = vunpack.c.l.b16 %v260
      %v342 = vunpack.c.l.b16 %v261
      %v343 = vunpack.c.l.b16 %v262
      %v344 = vunpack.c.l.b16 %v263
      %v345 = vunpack.c.l.b16 %v264
      %v346 = vunpack.c.l.b16 %v265
      %v347 = vunpack.c.l.b16 %v266
      %v348 = vunpack.c.l.b16 %v267
      %v349 = vunpack.c.l.b16 %v268
      %v350 = vunpack.c.l.b16 %v269
      %v351 = vunpack.c.l.b16 %v270
      %v352 = vunpack.c.l.b16 %v271
      %v353 = vunpack.c.l.b16 %v272
      %v354 = vunpack.c.l.b16 %v273
      %v355 = vunpack.c.l.b16 %v274
      %v356 = vunpack.c.l.b16 %v275
      %v357 = vunpack.c.l.b16 %v276
      %v358 = vunpack.c.l.b16 %v277
      %v359 = vunpack.c.l.b16 %v278
      %v360 = vunpack.c.l.b16 %v279
      %v361 = vunpack.c.l.b16 %v280
      %v362 = vunpack.c.l.b16 %v281
      %v363 = vunpack.c.l.b16 %v282
      %v364 = vunpack.c.l.b16 %v283
      %v365 = vunpack.c.l.b16 %v284
      %v366 = vunpack.c.l.b16 %v285
      %v367 = vunpack.c.l.b16 %v286
      %v368 = vunpack.c.l.b16 %v287
      %v369 = vunpack.c.l.b16 %v288
      %v370 = vpack.c.b16 %v335, %v334
      %v371 = vpack.c.b16 %v337, %v336
      %v372 = vpack.c.b16 %v339, %v338
      %v373 = vpack.c.b16 %v341, %v340
      %v374 = vpack.c.b16 %v343, %v342
      %v375 = vpack.c.b16 %v345, %v344
      %v376 = vpack.c.b16 %v347, %v346
      %v377 = vpack.c.b16 %v349, %v348
      %v378 = vpack.c.b16 %v351, %v350
      %v379 = vpack.c.b16 %v353, %v352
      %v380 = vpack.c.b16 %v355, %v354
      %v381 = vpack.c.b16 %v357, %v356
      %v382 = vpack.c.b16 %v359, %v358
      %v383 = vpack.c.b16 %v361, %v360
      %v384 = vpack.c.b16 %v363, %v362
      %v385 = vpack.c.b16 %v365, %v364
      %v386 = vpack.c.b16 %v367, %v366
      %v387 = vpack.c.b16 %v369, %v368
      %v390 = vunpack.c.l.b16 %v289
      %v391 = vunpack.c.l.b16 %v290
      %v392 = vpack.c.b16 %v391, %v390
      %vm393 = vcmask 97280
      %v395 = vsel %vm393, %v370, 0
      %v398 = vsel %vm393, %v371, 0
      %v401 = vsel %vm393, %v372, 0
      %v404 = vsel %vm393, %v373, 0
      %v407 = vsel %vm393, %v374, 0
      %v410 = vsel %vm393, %v375, 0
      %v413 = vsel %vm393, %v376, 0
      %v416 = vsel %vm393, %v377, 0
      %v419 = vsel %vm393, %v378, 0
      %v422 = vsel %vm393, %v379, 0
      %v425 = vsel %vm393, %v380, 0
      %v428 = vsel %vm393, %v381, 0
      %v431 = vsel %vm393, %v382, 0
      %v434 = vsel %vm393, %v383, 0
      %v437 = vsel %vm393, %v384, 0
      %v440 = vsel %vm393, %v385, 0
      %v443 = vsel %vm393, %v386, 0
      %v446 = vsel %vm393, %v387, 0
      %vm448 = vcmask 1045504
      %v450 = vsel %vm448, %v392, 0
      %452 = vmatprep.subr.bf16.mxu0 0
      %453 = vmatpush1.bf16.msra.mxu0 0
      %454 = vmatprep.subr.bf16.mxu0 0
      %455 = vmatpush1.bf16.msra.mxu0 0
      %456 = vmatprep.subr.bf16.mxu0 0
      %457 = vmatpush1.bf16.msra.mxu0 0
      %458 = vmatprep.subr.bf16.mxu0 0
      %459 = vmatpush1.bf16.msra.mxu0 0
      %460 = vmatprep.subr.bf16.mxu0 0
      %461 = vmatpush1.bf16.msra.mxu0 0
      %462 = vmatprep.subr.bf16.mxu0 0
      %463 = vmatpush1.bf16.msra.mxu0 0
      %464 = vmatprep.subr.bf16.mxu0 0
      %465 = vmatpush1.bf16.msra.mxu0 0
      %466 = vmatprep.subr.bf16.mxu0 0
      %467 = vmatpush1.bf16.msra.mxu0 %v450
      %468 = vmatprep.subr.bf16.mxu0 0
      %469 = vmatpush2.bf16.msra.mxu0 0
      %470 = vmatprep.subr.bf16.mxu0 0
      %471 = vmatpush2.bf16.msra.mxu0 0
      %472 = vmatprep.subr.bf16.mxu0 0
      %473 = vmatpush2.bf16.msra.mxu0 0
      %474 = vmatprep.subr.bf16.mxu0 0
      %475 = vmatpush2.bf16.msra.mxu0 0
      %476 = vmatprep.subr.bf16.mxu0 0
      %477 = vmatpush2.bf16.msra.mxu0 0
      %478 = vmatprep.subr.bf16.mxu0 0
      %479 = vmatpush2.bf16.msra.mxu0 0
      %480 = vmatprep.subr.bf16.mxu0 0
      %481 = vmatpush2.bf16.msra.mxu0 0
      %482 = vmatprep.subr.bf16.mxu0 0
      %483 = vmatpush2.bf16.msra.mxu0 0
      %484 = vmatprep.mubr.bf16.mxu0 0
      %485 = vmatmul.mubr.bf16.gmra.mxu0 %v395
      %v486 = vpop.f32.mrf.mxu0
      %v487 = vadd.f32 %v296, %v486
      %v488 = vpop.f32.mrf.mxu0
      %v489 = vpop.f32.mrf.mxu0
      %v490 = vadd.f32 %v296, %v489
      %v491 = vpop.f32.mrf.mxu0
      %492 = vmatprep.mubr.bf16.mxu0 0
      %493 = vmatmul.mubr.bf16.gmra.mxu0 %v398
      %v494 = vpop.f32.mrf.mxu0
      %v495 = vadd.f32 %v296, %v494
      %v496 = vpop.f32.mrf.mxu0
      %v497 = vpop.f32.mrf.mxu0
      %v498 = vadd.f32 %v296, %v497
      %v499 = vpop.f32.mrf.mxu0
      %500 = vmatprep.mubr.bf16.mxu0 0
      %501 = vmatmul.mubr.bf16.gmra.mxu0 %v401
      %v502 = vpop.f32.mrf.mxu0
      %v503 = vadd.f32 %v296, %v502
      %v504 = vpop.f32.mrf.mxu0
      %v505 = vpop.f32.mrf.mxu0
      %v506 = vadd.f32 %v296, %v505
      %v507 = vpop.f32.mrf.mxu0
      %508 = vmatprep.mubr.bf16.mxu0 0
      %509 = vmatmul.mubr.bf16.gmra.mxu0 %v404
      %v510 = vpop.f32.mrf.mxu0
      %v511 = vadd.f32 %v296, %v510
      %v512 = vpop.f32.mrf.mxu0
      %v513 = vpop.f32.mrf.mxu0
      %v514 = vadd.f32 %v296, %v513
      %v515 = vpop.f32.mrf.mxu0
      %516 = vmatprep.mubr.bf16.mxu0 0
      %517 = vmatmul.mubr.bf16.gmra.mxu0 %v407
      %v518 = vpop.f32.mrf.mxu0
      %v519 = vadd.f32 %v296, %v518
      %v520 = vpop.f32.mrf.mxu0
      %v521 = vpop.f32.mrf.mxu0
      %v522 = vadd.f32 %v296, %v521
      %v523 = vpop.f32.mrf.mxu0
      %524 = vmatprep.mubr.bf16.mxu0 0
      %525 = vmatmul.mubr.bf16.gmra.mxu0 %v410
      %v526 = vpop.f32.mrf.mxu0
      %v527 = vadd.f32 %v296, %v526
      %v528 = vpop.f32.mrf.mxu0
      %v529 = vpop.f32.mrf.mxu0
      %v530 = vadd.f32 %v296, %v529
      %v531 = vpop.f32.mrf.mxu0
      %532 = vmatprep.mubr.bf16.mxu0 0
      %533 = vmatmul.mubr.bf16.gmra.mxu0 %v413
      %v534 = vpop.f32.mrf.mxu0
      %v535 = vadd.f32 %v296, %v534
      %v536 = vpop.f32.mrf.mxu0
      %v537 = vpop.f32.mrf.mxu0
      %v538 = vadd.f32 %v296, %v537
      %v539 = vpop.f32.mrf.mxu0
      %540 = vmatprep.mubr.bf16.mxu0 0
      %541 = vmatmul.mubr.bf16.gmra.mxu0 %v416
      %v542 = vpop.f32.mrf.mxu0
      %v543 = vadd.f32 %v296, %v542
      %v544 = vpop.f32.mrf.mxu0
      %v545 = vpop.f32.mrf.mxu0
      %v546 = vadd.f32 %v296, %v545
      %v547 = vpop.f32.mrf.mxu0
      %548 = vmatprep.mubr.bf16.mxu0 0
      %549 = vmatmul.mubr.bf16.gmra.mxu0 %v419
      %v550 = vpop.f32.mrf.mxu0
      %v551 = vadd.f32 %v296, %v550
      %v552 = vpop.f32.mrf.mxu0
      %v553 = vpop.f32.mrf.mxu0
      %v554 = vadd.f32 %v296, %v553
      %v555 = vpop.f32.mrf.mxu0
      %556 = vmatprep.mubr.bf16.mxu0 0
      %557 = vmatmul.mubr.bf16.gmra.mxu0 %v422
      %v558 = vpop.f32.mrf.mxu0
      %v559 = vadd.f32 %v296, %v558
      %v560 = vpop.f32.mrf.mxu0
      %v561 = vpop.f32.mrf.mxu0
      %v562 = vadd.f32 %v296, %v561
      %v563 = vpop.f32.mrf.mxu0
      %564 = vmatprep.mubr.bf16.mxu0 0
      %565 = vmatmul.mubr.bf16.gmra.mxu0 %v425
      %v566 = vpop.f32.mrf.mxu0
      %v567 = vadd.f32 %v296, %v566
      %v568 = vpop.f32.mrf.mxu0
      %v569 = vpop.f32.mrf.mxu0
      %v570 = vadd.f32 %v296, %v569
      %v571 = vpop.f32.mrf.mxu0
      %572 = vmatprep.mubr.bf16.mxu0 0
      %573 = vmatmul.mubr.bf16.gmra.mxu0 %v428
      %v574 = vpop.f32.mrf.mxu0
      %v575 = vadd.f32 %v296, %v574
      %v576 = vpop.f32.mrf.mxu0
      %v577 = vpop.f32.mrf.mxu0
      %v578 = vadd.f32 %v296, %v577
      %v579 = vpop.f32.mrf.mxu0
      %580 = vmatprep.mubr.bf16.mxu0 0
      %581 = vmatmul.mubr.bf16.gmra.mxu0 %v431
      %v582 = vpop.f32.mrf.mxu0
      %v583 = vadd.f32 %v296, %v582
      %v584 = vpop.f32.mrf.mxu0
      %v585 = vpop.f32.mrf.mxu0
      %v586 = vadd.f32 %v296, %v585
      %v587 = vpop.f32.mrf.mxu0
      %588 = vmatprep.mubr.bf16.mxu0 0
      %589 = vmatmul.mubr.bf16.gmra.mxu0 %v434
      %v590 = vpop.f32.mrf.mxu0
      %v591 = vadd.f32 %v296, %v590
      %v592 = vpop.f32.mrf.mxu0
      %v593 = vpop.f32.mrf.mxu0
      %v594 = vadd.f32 %v296, %v593
      %v595 = vpop.f32.mrf.mxu0
      %596 = vmatprep.mubr.bf16.mxu0 0
      %597 = vmatmul.mubr.bf16.gmra.mxu0 %v437
      %v598 = vpop.f32.mrf.mxu0
      %v599 = vadd.f32 %v296, %v598
      %v600 = vpop.f32.mrf.mxu0
      %v601 = vpop.f32.mrf.mxu0
      %v602 = vadd.f32 %v296, %v601
      %v603 = vpop.f32.mrf.mxu0
      %604 = vmatprep.mubr.bf16.mxu0 0
      %605 = vmatmul.mubr.bf16.gmra.mxu0 %v440
      %v606 = vpop.f32.mrf.mxu0
      %v607 = vadd.f32 %v296, %v606
      %v608 = vpop.f32.mrf.mxu0
      %v609 = vpop.f32.mrf.mxu0
      %v610 = vadd.f32 %v296, %v609
      %v611 = vpop.f32.mrf.mxu0
      %612 = vmatprep.mubr.bf16.mxu0 0
      %613 = vmatmul.mubr.bf16.gmra.mxu0 %v443
      %v614 = vpop.f32.mrf.mxu0
      %v615 = vadd.f32 %v296, %v614
      %v616 = vpop.f32.mrf.mxu0
      %v617 = vpop.f32.mrf.mxu0
      %v618 = vadd.f32 %v296, %v617
      %v619 = vpop.f32.mrf.mxu0
      %620 = vmatprep.mubr.bf16.mxu0 0
      %621 = vmatmul.mubr.bf16.gmra.mxu0 %v446
      %v622 = vpop.f32.mrf.mxu0
      %v623 = vadd.f32 %v296, %v622
      %v624 = vpop.f32.mrf.mxu0
      %v625 = vpop.f32.mrf.mxu0
      %v626 = vadd.f32 %v296, %v625
      %v627 = vpop.f32.mrf.mxu0
      %628 = vdwg.mxu0
      %v629 = vmax.f32 %v487, 0.0
      %v630 = vmax.f32 %v490, 0.0
      %v631 = vmax.f32 %v495, 0.0
      %v632 = vmax.f32 %v498, 0.0
      %v633 = vmax.f32 %v503, 0.0
      %v634 = vmax.f32 %v506, 0.0
      %v635 = vmax.f32 %v511, 0.0
      %v636 = vmax.f32 %v514, 0.0
      %v637 = vmax.f32 %v519, 0.0
      %v638 = vmax.f32 %v522, 0.0
      %v639 = vmax.f32 %v527, 0.0
      %v640 = vmax.f32 %v530, 0.0
      %v641 = vmax.f32 %v535, 0.0
      %v642 = vmax.f32 %v538, 0.0
      %v643 = vmax.f32 %v543, 0.0
      %v644 = vmax.f32 %v546, 0.0
      %v645 = vmax.f32 %v551, 0.0
      %v646 = vmax.f32 %v554, 0.0
      %v647 = vmax.f32 %v559, 0.0
      %v648 = vmax.f32 %v562, 0.0
      %v649 = vmax.f32 %v567, 0.0
      %v650 = vmax.f32 %v570, 0.0
      %v651 = vmax.f32 %v575, 0.0
      %v652 = vmax.f32 %v578, 0.0
      %v653 = vmax.f32 %v583, 0.0
      %v654 = vmax.f32 %v586, 0.0
      %v655 = vmax.f32 %v591, 0.0
      %v656 = vmax.f32 %v594, 0.0
      %v657 = vmax.f32 %v599, 0.0
      %v658 = vmax.f32 %v602, 0.0
      %v659 = vmax.f32 %v607, 0.0
      %v660 = vmax.f32 %v610, 0.0
      %v661 = vmax.f32 %v615, 0.0
      %v662 = vmax.f32 %v618, 0.0
      %v663 = vmax.f32 %v623, 0.0
      %v664 = vmax.f32 %v626, 0.0
      %v665 = vld [vmem:[%s1] sm:$0xff]
      %v666 = vld [vmem:[%s1 + $0x8] sm:$0xff]
      %v667 = vld [vmem:[%s1 + $0x10] sm:$0xff]
      %v668 = vld [vmem:[%s1 + $0x18] sm:$0xff]
      %v669 = vld [vmem:[%s1 + $0x20] sm:$0xff]
      %v670 = vld [vmem:[%s1 + $0x28] sm:$0xff]
      %v671 = vld [vmem:[%s1 + $0x30] sm:$0xff]
      %v672 = vld [vmem:[%s1 + $0x38] sm:$0xff]
      %v673 = vld [vmem:[%s1 + $0x40] sm:$0xff]
      %v674 = vld [vmem:[%s1 + $0x48] sm:$0xff]
      %v675 = vld [vmem:[%s1 + $0x50] sm:$0xff]
      %v676 = vld [vmem:[%s1 + $0x58] sm:$0xff]
      %v677 = vld [vmem:[%s1 + $0x60] sm:$0xff]
      %v678 = vld [vmem:[%s1 + $0x68] sm:$0xff]
      %v679 = vld [vmem:[%s1 + $0x70] sm:$0xff]
      %v680 = vld [vmem:[%s1 + $0x78] sm:$0xff]
      %v681 = vld [vmem:[%s1 + $0x80] sm:$0xff]
      %v682 = vld [vmem:[%s1 + $0x88] sm:$0xff]
      %v683 = vld [vmem:[%s1 + $0x90] sm:$0xff]
      %v684 = vld [vmem:[%s1 + $0x98] sm:$0xff]
      %v685 = vld [vmem:[%s1 + $0xa0] sm:$0xff]
      %v686 = vld [vmem:[%s1 + $0xa8] sm:$0xff]
      %v687 = vld [vmem:[%s1 + $0xb0] sm:$0xff]
      %v688 = vld [vmem:[%s1 + $0xb8] sm:$0xff]
      %v689 = vld [vmem:[%s1 + $0xc0] sm:$0xff]
      %v690 = vld [vmem:[%s1 + $0xc8] sm:$0xff]
      %v691 = vld [vmem:[%s1 + $0xd0] sm:$0xff]
      %v692 = vld [vmem:[%s1 + $0xd8] sm:$0xff]
      %v693 = vld [vmem:[%s1 + $0xe0] sm:$0xff]
      %v694 = vld [vmem:[%s1 + $0xe8] sm:$0xff]
      %v695 = vld [vmem:[%s1 + $0xf0] sm:$0xff]
      %v696 = vld [vmem:[%s1 + $0xf8] sm:$0xff]
      %v697 = vld [vmem:[%s1 + $0x100] sm:$0xff]
      %v698 = vld [vmem:[%s1 + $0x108] sm:$0xff]
      %v699 = vld [vmem:[%s1 + $0x110] sm:$0xff]
      %v700 = vld [vmem:[%s1 + $0x118] sm:$0xff]
      %v701 = vmul.f32 %v629, %v665
      %v702 = vmul.f32 %v630, %v666
      %v703 = vmul.f32 %v631, %v667
      %v704 = vmul.f32 %v632, %v668
      %v705 = vmul.f32 %v633, %v669
      %v706 = vmul.f32 %v634, %v670
      %v707 = vmul.f32 %v635, %v671
      %v708 = vmul.f32 %v636, %v672
      %v709 = vmul.f32 %v637, %v673
      %v710 = vmul.f32 %v638, %v674
      %v711 = vmul.f32 %v639, %v675
      %v712 = vmul.f32 %v640, %v676
      %v713 = vmul.f32 %v641, %v677
      %v714 = vmul.f32 %v642, %v678
      %v715 = vmul.f32 %v643, %v679
      %v716 = vmul.f32 %v644, %v680
      %v717 = vmul.f32 %v645, %v681
      %v718 = vmul.f32 %v646, %v682
      %v719 = vmul.f32 %v647, %v683
      %v720 = vmul.f32 %v648, %v684
      %v721 = vmul.f32 %v649, %v685
      %v722 = vmul.f32 %v650, %v686
      %v723 = vmul.f32 %v651, %v687
      %v724 = vmul.f32 %v652, %v688
      %v725 = vmul.f32 %v653, %v689
      %v726 = vmul.f32 %v654, %v690
      %v727 = vmul.f32 %v655, %v691
      %v728 = vmul.f32 %v656, %v692
      %v729 = vmul.f32 %v657, %v693
      %v730 = vmul.f32 %v658, %v694
      %v731 = vmul.f32 %v659, %v695
      %v732 = vmul.f32 %v660, %v696
      %v733 = vmul.f32 %v661, %v697
      %v734 = vmul.f32 %v662, %v698
      %v735 = vmul.f32 %v663, %v699
      %v736 = vmul.f32 %v664, %v700
      %v737 = vpack.c.bf16 %v702, %v701
      %v738 = vpack.c.bf16 %v704, %v703
      %v739 = vpack.c.bf16 %v706, %v705
      %v740 = vpack.c.bf16 %v708, %v707
      %v741 = vpack.c.bf16 %v710, %v709
      %v742 = vpack.c.bf16 %v712, %v711
      %v743 = vpack.c.bf16 %v714, %v713
      %v744 = vpack.c.bf16 %v716, %v715
      %v745 = vpack.c.bf16 %v718, %v717
      %v746 = vpack.c.bf16 %v720, %v719
      %v747 = vpack.c.bf16 %v722, %v721
      %v748 = vpack.c.bf16 %v724, %v723
      %v749 = vpack.c.bf16 %v726, %v725
      %v750 = vpack.c.bf16 %v728, %v727
      %v751 = vpack.c.bf16 %v730, %v729
      %v752 = vpack.c.bf16 %v732, %v731
      %v753 = vpack.c.bf16 %v734, %v733
      %v754 = vpack.c.bf16 %v736, %v735
      %v755 = vld [vmem:[%s4] sm:$0xff]
      %v756 = vld [vmem:[%s4 + $0x8] sm:$0xff]
      %v757 = vld [vmem:[%s4 + $0x10] sm:$0xff]
      %s758 = scalar_lea.vmem %s4, 24
      %v759 = vld [vmem:[%s758] sm:$0xff]
      %v760 = vld [vmem:[%s758 + $0x8] sm:$0xff]
      %v761 = vld [vmem:[%s758 + $0x10] sm:$0xff]
      %v765 = vunpack.c.l.b16 %v759
      %v766 = vunpack.c.h.b16 %v759
      %v767 = vunpack.c.l.b16 %v760
      %v768 = vunpack.c.h.b16 %v760
      %v769 = vunpack.c.l.b16 %v761
      %v770 = vunpack.c.h.b16 %v761
      %v771 = vpack.c.b16 %v767, %v765
      %v772 = vpack.c.b16 %v768, %v766
      %v773 = vpack.c.b16 %v769, %v769
      %v774 = vpack.c.b16 %v770, %v770
      %vm777 = vcmask 195584
      %v779 = vsel %vm777, %v738, 0
      %v782 = vsel %vm777, %v739, 0
      %v785 = vsel %vm777, %v740, 0
      %v788 = vsel %vm777, %v741, 0
      %v791 = vsel %vm777, %v742, 0
      %v794 = vsel %vm777, %v743, 0
      %v797 = vsel %vm777, %v744, 0
      %v800 = vsel %vm777, %v745, 0
      %v803 = vsel %vm777, %v746, 0
      %v806 = vsel %vm777, %v747, 0
      %v809 = vsel %vm777, %v748, 0
      %v812 = vsel %vm777, %v749, 0
      %v815 = vsel %vm777, %v750, 0
      %v818 = vsel %vm777, %v751, 0
      %v821 = vsel %vm777, %v752, 0
      %v824 = vsel %vm777, %v753, 0
      %vm826 = vcmask 1043456
      %v828 = vsel %vm826, %v773, 0
      %v831 = vsel %vm826, %v774, 0
      %833 = vmatprep.subr.bf16.mxu0 0
      %834 = vmatpush1.bf16.msra.mxu0 0
      %835 = vmatprep.subr.bf16.mxu0 0
      %836 = vmatpush1.bf16.msra.mxu0 0
      %837 = vmatprep.subr.bf16.mxu0 0
      %838 = vmatpush1.bf16.msra.mxu0 0
      %839 = vmatprep.subr.bf16.mxu0 0
      %840 = vmatpush1.bf16.msra.mxu0 0
      %841 = vmatprep.subr.bf16.mxu0 0
      %842 = vmatpush1.bf16.msra.mxu0 0
      %843 = vmatprep.subr.bf16.mxu0 0
      %844 = vmatpush1.bf16.msra.mxu0 0
      %845 = vmatprep.subr.bf16.mxu0 %v831
      %846 = vmatpush1.bf16.msra.mxu0 %v828
      %847 = vmatprep.subr.bf16.mxu0 %v772
      %848 = vmatpush1.bf16.msra.mxu0 %v771
      %849 = vmatprep.subr.bf16.mxu0 0
      %850 = vmatpush2.bf16.msra.mxu0 0
      %851 = vmatprep.subr.bf16.mxu0 0
      %852 = vmatpush2.bf16.msra.mxu0 0
      %853 = vmatprep.subr.bf16.mxu0 0
      %854 = vmatpush2.bf16.msra.mxu0 0
      %855 = vmatprep.subr.bf16.mxu0 0
      %856 = vmatpush2.bf16.msra.mxu0 0
      %857 = vmatprep.subr.bf16.mxu0 0
      %858 = vmatpush2.bf16.msra.mxu0 0
      %859 = vmatprep.subr.bf16.mxu0 0
      %860 = vmatpush2.bf16.msra.mxu0 0
      %861 = vmatprep.subr.bf16.mxu0 0
      %862 = vmatpush2.bf16.msra.mxu0 0
      %863 = vmatprep.subr.bf16.mxu0 0
      %864 = vmatpush2.bf16.msra.mxu0 0
      %865 = vmatprep.mubr.bf16.mxu0 0
      %866 = vmatmul.mubr.bf16.gmra.mxu0 %v779
      %v867 = vpop.f32.mrf.mxu0
      %v868 = vadd.f32 0.0, %v867
      %v869 = vpop.f32.mrf.mxu0
      %v870 = vadd.f32 0.0, %v869
      %v871 = vpop.f32.mrf.mxu0
      %v872 = vadd.f32 0.0, %v871
      %v873 = vpop.f32.mrf.mxu0
      %v874 = vadd.f32 0.0, %v873
      %875 = vmatprep.mubr.bf16.mxu0 0
      %876 = vmatmul.mubr.bf16.gmra.mxu0 %v782
      %v877 = vpop.f32.mrf.mxu0
      %v878 = vadd.f32 0.0, %v877
      %v879 = vpop.f32.mrf.mxu0
      %v880 = vadd.f32 0.0, %v879
      %v881 = vpop.f32.mrf.mxu0
      %v882 = vadd.f32 0.0, %v881
      %v883 = vpop.f32.mrf.mxu0
      %v884 = vadd.f32 0.0, %v883
      %885 = vmatprep.mubr.bf16.mxu0 0
      %886 = vmatmul.mubr.bf16.gmra.mxu0 %v785
      %v887 = vpop.f32.mrf.mxu0
      %v888 = vadd.f32 0.0, %v887
      %v889 = vpop.f32.mrf.mxu0
      %v890 = vadd.f32 0.0, %v889
      %v891 = vpop.f32.mrf.mxu0
      %v892 = vadd.f32 0.0, %v891
      %v893 = vpop.f32.mrf.mxu0
      %v894 = vadd.f32 0.0, %v893
      %895 = vmatprep.mubr.bf16.mxu0 0
      %896 = vmatmul.mubr.bf16.gmra.mxu0 %v788
      %v897 = vpop.f32.mrf.mxu0
      %v898 = vadd.f32 0.0, %v897
      %v899 = vpop.f32.mrf.mxu0
      %v900 = vadd.f32 0.0, %v899
      %v901 = vpop.f32.mrf.mxu0
      %v902 = vadd.f32 0.0, %v901
      %v903 = vpop.f32.mrf.mxu0
      %v904 = vadd.f32 0.0, %v903
      %905 = vmatprep.mubr.bf16.mxu0 0
      %906 = vmatmul.mubr.bf16.gmra.mxu0 %v791
      %v907 = vpop.f32.mrf.mxu0
      %v908 = vadd.f32 0.0, %v907
      %v909 = vpop.f32.mrf.mxu0
      %v910 = vadd.f32 0.0, %v909
      %v911 = vpop.f32.mrf.mxu0
      %v912 = vadd.f32 0.0, %v911
      %v913 = vpop.f32.mrf.mxu0
      %v914 = vadd.f32 0.0, %v913
      %915 = vmatprep.mubr.bf16.mxu0 0
      %916 = vmatmul.mubr.bf16.gmra.mxu0 %v794
      %v917 = vpop.f32.mrf.mxu0
      %v918 = vadd.f32 0.0, %v917
      %v919 = vpop.f32.mrf.mxu0
      %v920 = vadd.f32 0.0, %v919
      %v921 = vpop.f32.mrf.mxu0
      %v922 = vadd.f32 0.0, %v921
      %v923 = vpop.f32.mrf.mxu0
      %v924 = vadd.f32 0.0, %v923
      %925 = vmatprep.mubr.bf16.mxu0 0
      %926 = vmatmul.mubr.bf16.gmra.mxu0 %v797
      %v927 = vpop.f32.mrf.mxu0
      %v928 = vadd.f32 0.0, %v927
      %v929 = vpop.f32.mrf.mxu0
      %v930 = vadd.f32 0.0, %v929
      %v931 = vpop.f32.mrf.mxu0
      %v932 = vadd.f32 0.0, %v931
      %v933 = vpop.f32.mrf.mxu0
      %v934 = vadd.f32 0.0, %v933
      %935 = vmatprep.mubr.bf16.mxu0 0
      %936 = vmatmul.mubr.bf16.gmra.mxu0 %v800
      %v937 = vpop.f32.mrf.mxu0
      %v938 = vadd.f32 0.0, %v937
      %v939 = vpop.f32.mrf.mxu0
      %v940 = vadd.f32 0.0, %v939
      %v941 = vpop.f32.mrf.mxu0
      %v942 = vadd.f32 0.0, %v941
      %v943 = vpop.f32.mrf.mxu0
      %v944 = vadd.f32 0.0, %v943
      %945 = vmatprep.mubr.bf16.mxu0 0
      %946 = vmatmul.mubr.bf16.gmra.mxu0 %v803
      %v947 = vpop.f32.mrf.mxu0
      %v948 = vadd.f32 0.0, %v947
      %v949 = vpop.f32.mrf.mxu0
      %v950 = vadd.f32 0.0, %v949
      %v951 = vpop.f32.mrf.mxu0
      %v952 = vadd.f32 0.0, %v951
      %v953 = vpop.f32.mrf.mxu0
      %v954 = vadd.f32 0.0, %v953
      %955 = vmatprep.mubr.bf16.mxu0 0
      %956 = vmatmul.mubr.bf16.gmra.mxu0 %v806
      %v957 = vpop.f32.mrf.mxu0
      %v958 = vadd.f32 0.0, %v957
      %v959 = vpop.f32.mrf.mxu0
      %v960 = vadd.f32 0.0, %v959
      %v961 = vpop.f32.mrf.mxu0
      %v962 = vadd.f32 0.0, %v961
      %v963 = vpop.f32.mrf.mxu0
      %v964 = vadd.f32 0.0, %v963
      %965 = vmatprep.mubr.bf16.mxu0 0
      %966 = vmatmul.mubr.bf16.gmra.mxu0 %v809
      %v967 = vpop.f32.mrf.mxu0
      %v968 = vadd.f32 0.0, %v967
      %v969 = vpop.f32.mrf.mxu0
      %v970 = vadd.f32 0.0, %v969
      %v971 = vpop.f32.mrf.mxu0
      %v972 = vadd.f32 0.0, %v971
      %v973 = vpop.f32.mrf.mxu0
      %v974 = vadd.f32 0.0, %v973
      %975 = vmatprep.mubr.bf16.mxu0 0
      %976 = vmatmul.mubr.bf16.gmra.mxu0 %v812
      %v977 = vpop.f32.mrf.mxu0
      %v978 = vadd.f32 0.0, %v977
      %v979 = vpop.f32.mrf.mxu0
      %v980 = vadd.f32 0.0, %v979
      %v981 = vpop.f32.mrf.mxu0
      %v982 = vadd.f32 0.0, %v981
      %v983 = vpop.f32.mrf.mxu0
      %v984 = vadd.f32 0.0, %v983
      %985 = vmatprep.mubr.bf16.mxu0 0
      %986 = vmatmul.mubr.bf16.gmra.mxu0 %v815
      %v987 = vpop.f32.mrf.mxu0
      %v988 = vadd.f32 0.0, %v987
      %v989 = vpop.f32.mrf.mxu0
      %v990 = vadd.f32 0.0, %v989
      %v991 = vpop.f32.mrf.mxu0
      %v992 = vadd.f32 0.0, %v991
      %v993 = vpop.f32.mrf.mxu0
      %v994 = vadd.f32 0.0, %v993
      %995 = vmatprep.mubr.bf16.mxu0 0
      %996 = vmatmul.mubr.bf16.gmra.mxu0 %v818
      %v997 = vpop.f32.mrf.mxu0
      %v998 = vadd.f32 0.0, %v997
      %v999 = vpop.f32.mrf.mxu0
      %v1000 = vadd.f32 0.0, %v999
      %v1001 = vpop.f32.mrf.mxu0
      %v1002 = vadd.f32 0.0, %v1001
      %v1003 = vpop.f32.mrf.mxu0
      %v1004 = vadd.f32 0.0, %v1003
      %1005 = vmatprep.mubr.bf16.mxu0 0
      %1006 = vmatmul.mubr.bf16.gmra.mxu0 %v821
      %v1007 = vpop.f32.mrf.mxu0
      %v1008 = vadd.f32 0.0, %v1007
      %v1009 = vpop.f32.mrf.mxu0
      %v1010 = vadd.f32 0.0, %v1009
      %v1011 = vpop.f32.mrf.mxu0
      %v1012 = vadd.f32 0.0, %v1011
      %v1013 = vpop.f32.mrf.mxu0
      %v1014 = vadd.f32 0.0, %v1013
      %1015 = vmatprep.mubr.bf16.mxu0 0
      %1016 = vmatmul.mubr.bf16.gmra.mxu0 %v824
      %v1017 = vpop.f32.mrf.mxu0
      %v1018 = vadd.f32 0.0, %v1017
      %v1019 = vpop.f32.mrf.mxu0
      %v1020 = vadd.f32 0.0, %v1019
      %v1021 = vpop.f32.mrf.mxu0
      %v1022 = vadd.f32 0.0, %v1021
      %v1023 = vpop.f32.mrf.mxu0
      %v1024 = vadd.f32 0.0, %v1023
      %1025 = vdwg.mxu0
      %v1029 = vunpack.c.l.b16 %v755
      %v1030 = vunpack.c.h.b16 %v755
      %v1031 = vunpack.c.l.b16 %v756
      %v1032 = vunpack.c.h.b16 %v756
      %v1033 = vunpack.c.l.b16 %v757
      %v1034 = vunpack.c.h.b16 %v757
      %v1035 = vpack.c.b16 %v1031, %v1029
      %v1036 = vpack.c.b16 %v1032, %v1030
      %v1037 = vpack.c.b16 %v1033, %v1033
      %v1038 = vpack.c.b16 %v1034, %v1034
      %v1042 = vsel %vm777, %v737, 0
      %v1045 = vsel %vm826, %v1037, 0
      %v1048 = vsel %vm826, %v1038, 0
      %1050 = vmatprep.subr.bf16.mxu0 0
      %1051 = vmatpush1.bf16.msra.mxu0 0
      %1052 = vmatprep.subr.bf16.mxu0 0
      %1053 = vmatpush1.bf16.msra.mxu0 0
      %1054 = vmatprep.subr.bf16.mxu0 0
      %1055 = vmatpush1.bf16.msra.mxu0 0
      %1056 = vmatprep.subr.bf16.mxu0 0
      %1057 = vmatpush1.bf16.msra.mxu0 0
      %1058 = vmatprep.subr.bf16.mxu0 0
      %1059 = vmatpush1.bf16.msra.mxu0 0
      %1060 = vmatprep.subr.bf16.mxu0 0
      %1061 = vmatpush1.bf16.msra.mxu0 0
      %1062 = vmatprep.subr.bf16.mxu0 %v1048
      %1063 = vmatpush1.bf16.msra.mxu0 %v1045
      %1064 = vmatprep.subr.bf16.mxu0 %v1036
      %1065 = vmatpush1.bf16.msra.mxu0 %v1035
      %1066 = vmatprep.subr.bf16.mxu0 0
      %1067 = vmatpush2.bf16.msra.mxu0 0
      %1068 = vmatprep.subr.bf16.mxu0 0
      %1069 = vmatpush2.bf16.msra.mxu0 0
      %1070 = vmatprep.subr.bf16.mxu0 0
      %1071 = vmatpush2.bf16.msra.mxu0 0
      %1072 = vmatprep.subr.bf16.mxu0 0
      %1073 = vmatpush2.bf16.msra.mxu0 0
      %1074 = vmatprep.subr.bf16.mxu0 0
      %1075 = vmatpush2.bf16.msra.mxu0 0
      %1076 = vmatprep.subr.bf16.mxu0 0
      %1077 = vmatpush2.bf16.msra.mxu0 0
      %1078 = vmatprep.subr.bf16.mxu0 0
      %1079 = vmatpush2.bf16.msra.mxu0 0
      %1080 = vmatprep.subr.bf16.mxu0 0
      %1081 = vmatpush2.bf16.msra.mxu0 0
      %1082 = vmatprep.mubr.bf16.mxu0 0
      %1083 = vmatmul.mubr.bf16.gmra.mxu0 %v1042
      %v1084 = vpop.f32.mrf.mxu0
      %v1085 = vadd.f32 %v868, %v1084
      %v1086 = vpop.f32.mrf.mxu0
      %v1087 = vadd.f32 %v870, %v1086
      %v1088 = vpop.f32.mrf.mxu0
      %v1089 = vadd.f32 %v872, %v1088
      %v1090 = vpop.f32.mrf.mxu0
      %v1091 = vadd.f32 %v874, %v1090
      %1092 = vmatprep.mubr.bf16.mxu0 0
      %1093 = vmatmul.mubr.bf16.gmra.mxu0 %v779
      %v1094 = vpop.f32.mrf.mxu0
      %v1095 = vadd.f32 %v878, %v1094
      %v1096 = vpop.f32.mrf.mxu0
      %v1097 = vadd.f32 %v880, %v1096
      %v1098 = vpop.f32.mrf.mxu0
      %v1099 = vadd.f32 %v882, %v1098
      %v1100 = vpop.f32.mrf.mxu0
      %v1101 = vadd.f32 %v884, %v1100
      %1102 = vmatprep.mubr.bf16.mxu0 0
      %1103 = vmatmul.mubr.bf16.gmra.mxu0 %v782
      %v1104 = vpop.f32.mrf.mxu0
      %v1105 = vadd.f32 %v888, %v1104
      %v1106 = vpop.f32.mrf.mxu0
      %v1107 = vadd.f32 %v890, %v1106
      %v1108 = vpop.f32.mrf.mxu0
      %v1109 = vadd.f32 %v892, %v1108
      %v1110 = vpop.f32.mrf.mxu0
      %v1111 = vadd.f32 %v894, %v1110
      %1112 = vmatprep.mubr.bf16.mxu0 0
      %1113 = vmatmul.mubr.bf16.gmra.mxu0 %v785
      %v1114 = vpop.f32.mrf.mxu0
      %v1115 = vadd.f32 %v898, %v1114
      %v1116 = vpop.f32.mrf.mxu0
      %v1117 = vadd.f32 %v900, %v1116
      %v1118 = vpop.f32.mrf.mxu0
      %v1119 = vadd.f32 %v902, %v1118
      %v1120 = vpop.f32.mrf.mxu0
      %v1121 = vadd.f32 %v904, %v1120
      %1122 = vmatprep.mubr.bf16.mxu0 0
      %1123 = vmatmul.mubr.bf16.gmra.mxu0 %v788
      %v1124 = vpop.f32.mrf.mxu0
      %v1125 = vadd.f32 %v908, %v1124
      %v1126 = vpop.f32.mrf.mxu0
      %v1127 = vadd.f32 %v910, %v1126
      %v1128 = vpop.f32.mrf.mxu0
      %v1129 = vadd.f32 %v912, %v1128
      %v1130 = vpop.f32.mrf.mxu0
      %v1131 = vadd.f32 %v914, %v1130
      %1132 = vmatprep.mubr.bf16.mxu0 0
      %1133 = vmatmul.mubr.bf16.gmra.mxu0 %v791
      %v1134 = vpop.f32.mrf.mxu0
      %v1135 = vadd.f32 %v918, %v1134
      %v1136 = vpop.f32.mrf.mxu0
      %v1137 = vadd.f32 %v920, %v1136
      %v1138 = vpop.f32.mrf.mxu0
      %v1139 = vadd.f32 %v922, %v1138
      %v1140 = vpop.f32.mrf.mxu0
      %v1141 = vadd.f32 %v924, %v1140
      %1142 = vmatprep.mubr.bf16.mxu0 0
      %1143 = vmatmul.mubr.bf16.gmra.mxu0 %v794
      %v1144 = vpop.f32.mrf.mxu0
      %v1145 = vadd.f32 %v928, %v1144
      %v1146 = vpop.f32.mrf.mxu0
      %v1147 = vadd.f32 %v930, %v1146
      %v1148 = vpop.f32.mrf.mxu0
      %v1149 = vadd.f32 %v932, %v1148
      %v1150 = vpop.f32.mrf.mxu0
      %v1151 = vadd.f32 %v934, %v1150
      %1152 = vmatprep.mubr.bf16.mxu0 0
      %1153 = vmatmul.mubr.bf16.gmra.mxu0 %v797
      %v1154 = vpop.f32.mrf.mxu0
      %v1155 = vadd.f32 %v938, %v1154
      %v1156 = vpop.f32.mrf.mxu0
      %v1157 = vadd.f32 %v940, %v1156
      %v1158 = vpop.f32.mrf.mxu0
      %v1159 = vadd.f32 %v942, %v1158
      %v1160 = vpop.f32.mrf.mxu0
      %v1161 = vadd.f32 %v944, %v1160
      %1162 = vmatprep.mubr.bf16.mxu0 0
      %1163 = vmatmul.mubr.bf16.gmra.mxu0 %v800
      %v1164 = vpop.f32.mrf.mxu0
      %v1165 = vadd.f32 %v948, %v1164
      %v1166 = vpop.f32.mrf.mxu0
      %v1167 = vadd.f32 %v950, %v1166
      %v1168 = vpop.f32.mrf.mxu0
      %v1169 = vadd.f32 %v952, %v1168
      %v1170 = vpop.f32.mrf.mxu0
      %v1171 = vadd.f32 %v954, %v1170
      %1172 = vmatprep.mubr.bf16.mxu0 0
      %1173 = vmatmul.mubr.bf16.gmra.mxu0 %v803
      %v1174 = vpop.f32.mrf.mxu0
      %v1175 = vadd.f32 %v958, %v1174
      %v1176 = vpop.f32.mrf.mxu0
      %v1177 = vadd.f32 %v960, %v1176
      %v1178 = vpop.f32.mrf.mxu0
      %v1179 = vadd.f32 %v962, %v1178
      %v1180 = vpop.f32.mrf.mxu0
      %v1181 = vadd.f32 %v964, %v1180
      %1182 = vmatprep.mubr.bf16.mxu0 0
      %1183 = vmatmul.mubr.bf16.gmra.mxu0 %v806
      %v1184 = vpop.f32.mrf.mxu0
      %v1185 = vadd.f32 %v968, %v1184
      %v1186 = vpop.f32.mrf.mxu0
      %v1187 = vadd.f32 %v970, %v1186
      %v1188 = vpop.f32.mrf.mxu0
      %v1189 = vadd.f32 %v972, %v1188
      %v1190 = vpop.f32.mrf.mxu0
      %v1191 = vadd.f32 %v974, %v1190
      %1192 = vmatprep.mubr.bf16.mxu0 0
      %1193 = vmatmul.mubr.bf16.gmra.mxu0 %v809
      %v1194 = vpop.f32.mrf.mxu0
      %v1195 = vadd.f32 %v978, %v1194
      %v1196 = vpop.f32.mrf.mxu0
      %v1197 = vadd.f32 %v980, %v1196
      %v1198 = vpop.f32.mrf.mxu0
      %v1199 = vadd.f32 %v982, %v1198
      %v1200 = vpop.f32.mrf.mxu0
      %v1201 = vadd.f32 %v984, %v1200
      %1202 = vmatprep.mubr.bf16.mxu0 0
      %1203 = vmatmul.mubr.bf16.gmra.mxu0 %v812
      %v1204 = vpop.f32.mrf.mxu0
      %v1205 = vadd.f32 %v988, %v1204
      %v1206 = vpop.f32.mrf.mxu0
      %v1207 = vadd.f32 %v990, %v1206
      %v1208 = vpop.f32.mrf.mxu0
      %v1209 = vadd.f32 %v992, %v1208
      %v1210 = vpop.f32.mrf.mxu0
      %v1211 = vadd.f32 %v994, %v1210
      %1212 = vmatprep.mubr.bf16.mxu0 0
      %1213 = vmatmul.mubr.bf16.gmra.mxu0 %v815
      %v1214 = vpop.f32.mrf.mxu0
      %v1215 = vadd.f32 %v998, %v1214
      %v1216 = vpop.f32.mrf.mxu0
      %v1217 = vadd.f32 %v1000, %v1216
      %v1218 = vpop.f32.mrf.mxu0
      %v1219 = vadd.f32 %v1002, %v1218
      %v1220 = vpop.f32.mrf.mxu0
      %v1221 = vadd.f32 %v1004, %v1220
      %1222 = vmatprep.mubr.bf16.mxu0 0
      %1223 = vmatmul.mubr.bf16.gmra.mxu0 %v818
      %v1224 = vpop.f32.mrf.mxu0
      %v1225 = vadd.f32 %v1008, %v1224
      %v1226 = vpop.f32.mrf.mxu0
      %v1227 = vadd.f32 %v1010, %v1226
      %v1228 = vpop.f32.mrf.mxu0
      %v1229 = vadd.f32 %v1012, %v1228
      %v1230 = vpop.f32.mrf.mxu0
      %v1231 = vadd.f32 %v1014, %v1230
      %1232 = vmatprep.mubr.bf16.mxu0 0
      %1233 = vmatmul.mubr.bf16.gmra.mxu0 %v821
      %v1234 = vpop.f32.mrf.mxu0
      %v1235 = vadd.f32 %v1018, %v1234
      %v1236 = vpop.f32.mrf.mxu0
      %v1237 = vadd.f32 %v1020, %v1236
      %v1238 = vpop.f32.mrf.mxu0
      %v1239 = vadd.f32 %v1022, %v1238
      %v1240 = vpop.f32.mrf.mxu0
      %v1241 = vadd.f32 %v1024, %v1240
      %1242 = vdwg.mxu0
      %s1243 = scalar_lea.vmem %s4, 48
      %v1244 = vld [vmem:[%s1243] sm:$0xff]
      %v1245 = vld [vmem:[%s1243 + $0x8] sm:$0xff]
      %v1246 = vld [vmem:[%s1243 + $0x10] sm:$0xff]
      %v1250 = vunpack.c.l.b16 %v1244
      %v1251 = vunpack.c.h.b16 %v1244
      %v1252 = vunpack.c.l.b16 %v1245
      %v1253 = vunpack.c.h.b16 %v1245
      %v1254 = vunpack.c.l.b16 %v1246
      %v1255 = vunpack.c.h.b16 %v1246
      %v1256 = vpack.c.b16 %v1252, %v1250
      %v1257 = vpack.c.b16 %v1253, %v1251
      %v1258 = vpack.c.b16 %v1254, %v1254
      %v1259 = vpack.c.b16 %v1255, %v1255
      %v1263 = vsel %vm777, %v754, 0
      %v1266 = vsel %vm826, %v1258, 0
      %v1269 = vsel %vm826, %v1259, 0
      %1271 = vmatprep.subr.bf16.mxu0 0
      %1272 = vmatpush1.bf16.msra.mxu0 0
      %1273 = vmatprep.subr.bf16.mxu0 0
      %1274 = vmatpush1.bf16.msra.mxu0 0
      %1275 = vmatprep.subr.bf16.mxu0 0
      %1276 = vmatpush1.bf16.msra.mxu0 0
      %1277 = vmatprep.subr.bf16.mxu0 0
      %1278 = vmatpush1.bf16.msra.mxu0 0
      %1279 = vmatprep.subr.bf16.mxu0 0
      %1280 = vmatpush1.bf16.msra.mxu0 0
      %1281 = vmatprep.subr.bf16.mxu0 0
      %1282 = vmatpush1.bf16.msra.mxu0 0
      %1283 = vmatprep.subr.bf16.mxu0 %v1269
      %1284 = vmatpush1.bf16.msra.mxu0 %v1266
      %1285 = vmatprep.subr.bf16.mxu0 %v1257
      %1286 = vmatpush1.bf16.msra.mxu0 %v1256
      %1287 = vmatprep.subr.bf16.mxu0 0
      %1288 = vmatpush2.bf16.msra.mxu0 0
      %1289 = vmatprep.subr.bf16.mxu0 0
      %1290 = vmatpush2.bf16.msra.mxu0 0
      %1291 = vmatprep.subr.bf16.mxu0 0
      %1292 = vmatpush2.bf16.msra.mxu0 0
      %1293 = vmatprep.subr.bf16.mxu0 0
      %1294 = vmatpush2.bf16.msra.mxu0 0
      %1295 = vmatprep.subr.bf16.mxu0 0
      %1296 = vmatpush2.bf16.msra.mxu0 0
      %1297 = vmatprep.subr.bf16.mxu0 0
      %1298 = vmatpush2.bf16.msra.mxu0 0
      %1299 = vmatprep.subr.bf16.mxu0 0
      %1300 = vmatpush2.bf16.msra.mxu0 0
      %1301 = vmatprep.subr.bf16.mxu0 0
      %1302 = vmatpush2.bf16.msra.mxu0 0
      %1303 = vmatprep.mubr.bf16.mxu0 0
      %1304 = vmatmul.mubr.bf16.gmra.mxu0 %v782
      %v1305 = vpop.f32.mrf.mxu0
      %v1306 = vadd.f32 0.0, %v1305
      %v1307 = vpop.f32.mrf.mxu0
      %v1308 = vadd.f32 0.0, %v1307
      %v1309 = vpop.f32.mrf.mxu0
      %v1310 = vadd.f32 0.0, %v1309
      %v1311 = vpop.f32.mrf.mxu0
      %v1312 = vadd.f32 0.0, %v1311
      %1313 = vmatprep.mubr.bf16.mxu0 0
      %1314 = vmatmul.mubr.bf16.gmra.mxu0 %v785
      %v1315 = vpop.f32.mrf.mxu0
      %v1316 = vadd.f32 0.0, %v1315
      %v1317 = vpop.f32.mrf.mxu0
      %v1318 = vadd.f32 0.0, %v1317
      %v1319 = vpop.f32.mrf.mxu0
      %v1320 = vadd.f32 0.0, %v1319
      %v1321 = vpop.f32.mrf.mxu0
      %v1322 = vadd.f32 0.0, %v1321
      %1323 = vmatprep.mubr.bf16.mxu0 0
      %1324 = vmatmul.mubr.bf16.gmra.mxu0 %v788
      %v1325 = vpop.f32.mrf.mxu0
      %v1326 = vadd.f32 0.0, %v1325
      %v1327 = vpop.f32.mrf.mxu0
      %v1328 = vadd.f32 0.0, %v1327
      %v1329 = vpop.f32.mrf.mxu0
      %v1330 = vadd.f32 0.0, %v1329
      %v1331 = vpop.f32.mrf.mxu0
      %v1332 = vadd.f32 0.0, %v1331
      %1333 = vmatprep.mubr.bf16.mxu0 0
      %1334 = vmatmul.mubr.bf16.gmra.mxu0 %v791
      %v1335 = vpop.f32.mrf.mxu0
      %v1336 = vadd.f32 0.0, %v1335
      %v1337 = vpop.f32.mrf.mxu0
      %v1338 = vadd.f32 0.0, %v1337
      %v1339 = vpop.f32.mrf.mxu0
      %v1340 = vadd.f32 0.0, %v1339
      %v1341 = vpop.f32.mrf.mxu0
      %v1342 = vadd.f32 0.0, %v1341
      %1343 = vmatprep.mubr.bf16.mxu0 0
      %1344 = vmatmul.mubr.bf16.gmra.mxu0 %v794
      %v1345 = vpop.f32.mrf.mxu0
      %v1346 = vadd.f32 0.0, %v1345
      %v1347 = vpop.f32.mrf.mxu0
      %v1348 = vadd.f32 0.0, %v1347
      %v1349 = vpop.f32.mrf.mxu0
      %v1350 = vadd.f32 0.0, %v1349
      %v1351 = vpop.f32.mrf.mxu0
      %v1352 = vadd.f32 0.0, %v1351
      %1353 = vmatprep.mubr.bf16.mxu0 0
      %1354 = vmatmul.mubr.bf16.gmra.mxu0 %v797
      %v1355 = vpop.f32.mrf.mxu0
      %v1356 = vadd.f32 0.0, %v1355
      %v1357 = vpop.f32.mrf.mxu0
      %v1358 = vadd.f32 0.0, %v1357
      %v1359 = vpop.f32.mrf.mxu0
      %v1360 = vadd.f32 0.0, %v1359
      %v1361 = vpop.f32.mrf.mxu0
      %v1362 = vadd.f32 0.0, %v1361
      %1363 = vmatprep.mubr.bf16.mxu0 0
      %1364 = vmatmul.mubr.bf16.gmra.mxu0 %v800
      %v1365 = vpop.f32.mrf.mxu0
      %v1366 = vadd.f32 0.0, %v1365
      %v1367 = vpop.f32.mrf.mxu0
      %v1368 = vadd.f32 0.0, %v1367
      %v1369 = vpop.f32.mrf.mxu0
      %v1370 = vadd.f32 0.0, %v1369
      %v1371 = vpop.f32.mrf.mxu0
      %v1372 = vadd.f32 0.0, %v1371
      %1373 = vmatprep.mubr.bf16.mxu0 0
      %1374 = vmatmul.mubr.bf16.gmra.mxu0 %v803
      %v1375 = vpop.f32.mrf.mxu0
      %v1376 = vadd.f32 0.0, %v1375
      %v1377 = vpop.f32.mrf.mxu0
      %v1378 = vadd.f32 0.0, %v1377
      %v1379 = vpop.f32.mrf.mxu0
      %v1380 = vadd.f32 0.0, %v1379
      %v1381 = vpop.f32.mrf.mxu0
      %v1382 = vadd.f32 0.0, %v1381
      %1383 = vmatprep.mubr.bf16.mxu0 0
      %1384 = vmatmul.mubr.bf16.gmra.mxu0 %v806
      %v1385 = vpop.f32.mrf.mxu0
      %v1386 = vadd.f32 0.0, %v1385
      %v1387 = vpop.f32.mrf.mxu0
      %v1388 = vadd.f32 0.0, %v1387
      %v1389 = vpop.f32.mrf.mxu0
      %v1390 = vadd.f32 0.0, %v1389
      %v1391 = vpop.f32.mrf.mxu0
      %v1392 = vadd.f32 0.0, %v1391
      %1393 = vmatprep.mubr.bf16.mxu0 0
      %1394 = vmatmul.mubr.bf16.gmra.mxu0 %v809
      %v1395 = vpop.f32.mrf.mxu0
      %v1396 = vadd.f32 0.0, %v1395
      %v1397 = vpop.f32.mrf.mxu0
      %v1398 = vadd.f32 0.0, %v1397
      %v1399 = vpop.f32.mrf.mxu0
      %v1400 = vadd.f32 0.0, %v1399
      %v1401 = vpop.f32.mrf.mxu0
      %v1402 = vadd.f32 0.0, %v1401
      %1403 = vmatprep.mubr.bf16.mxu0 0
      %1404 = vmatmul.mubr.bf16.gmra.mxu0 %v812
      %v1405 = vpop.f32.mrf.mxu0
      %v1406 = vadd.f32 0.0, %v1405
      %v1407 = vpop.f32.mrf.mxu0
      %v1408 = vadd.f32 0.0, %v1407
      %v1409 = vpop.f32.mrf.mxu0
      %v1410 = vadd.f32 0.0, %v1409
      %v1411 = vpop.f32.mrf.mxu0
      %v1412 = vadd.f32 0.0, %v1411
      %1413 = vmatprep.mubr.bf16.mxu0 0
      %1414 = vmatmul.mubr.bf16.gmra.mxu0 %v815
      %v1415 = vpop.f32.mrf.mxu0
      %v1416 = vadd.f32 0.0, %v1415
      %v1417 = vpop.f32.mrf.mxu0
      %v1418 = vadd.f32 0.0, %v1417
      %v1419 = vpop.f32.mrf.mxu0
      %v1420 = vadd.f32 0.0, %v1419
      %v1421 = vpop.f32.mrf.mxu0
      %v1422 = vadd.f32 0.0, %v1421
      %1423 = vmatprep.mubr.bf16.mxu0 0
      %1424 = vmatmul.mubr.bf16.gmra.mxu0 %v818
      %v1425 = vpop.f32.mrf.mxu0
      %v1426 = vadd.f32 0.0, %v1425
      %v1427 = vpop.f32.mrf.mxu0
      %v1428 = vadd.f32 0.0, %v1427
      %v1429 = vpop.f32.mrf.mxu0
      %v1430 = vadd.f32 0.0, %v1429
      %v1431 = vpop.f32.mrf.mxu0
      %v1432 = vadd.f32 0.0, %v1431
      %1433 = vmatprep.mubr.bf16.mxu0 0
      %1434 = vmatmul.mubr.bf16.gmra.mxu0 %v821
      %v1435 = vpop.f32.mrf.mxu0
      %v1436 = vadd.f32 0.0, %v1435
      %v1437 = vpop.f32.mrf.mxu0
      %v1438 = vadd.f32 0.0, %v1437
      %v1439 = vpop.f32.mrf.mxu0
      %v1440 = vadd.f32 0.0, %v1439
      %v1441 = vpop.f32.mrf.mxu0
      %v1442 = vadd.f32 0.0, %v1441
      %1443 = vmatprep.mubr.bf16.mxu0 0
      %1444 = vmatmul.mubr.bf16.gmra.mxu0 %v824
      %v1445 = vpop.f32.mrf.mxu0
      %v1446 = vadd.f32 0.0, %v1445
      %v1447 = vpop.f32.mrf.mxu0
      %v1448 = vadd.f32 0.0, %v1447
      %v1449 = vpop.f32.mrf.mxu0
      %v1450 = vadd.f32 0.0, %v1449
      %v1451 = vpop.f32.mrf.mxu0
      %v1452 = vadd.f32 0.0, %v1451
      %1453 = vmatprep.mubr.bf16.mxu0 0
      %1454 = vmatmul.mubr.bf16.gmra.mxu0 %v1263
      %v1455 = vpop.f32.mrf.mxu0
      %v1456 = vadd.f32 0.0, %v1455
      %v1457 = vpop.f32.mrf.mxu0
      %v1458 = vadd.f32 0.0, %v1457
      %v1459 = vpop.f32.mrf.mxu0
      %v1460 = vadd.f32 0.0, %v1459
      %v1461 = vpop.f32.mrf.mxu0
      %v1462 = vadd.f32 0.0, %v1461
      %1463 = vdwg.mxu0
      %v1464 = vadd.f32 %v1085, %v1306
      %v1465 = vadd.f32 %v1087, %v1308
      %v1466 = vadd.f32 %v1089, %v1310
      %v1467 = vadd.f32 %v1091, %v1312
      %v1468 = vadd.f32 %v1095, %v1316
      %v1469 = vadd.f32 %v1097, %v1318
      %v1470 = vadd.f32 %v1099, %v1320
      %v1471 = vadd.f32 %v1101, %v1322
      %v1472 = vadd.f32 %v1105, %v1326
      %v1473 = vadd.f32 %v1107, %v1328
      %v1474 = vadd.f32 %v1109, %v1330
      %v1475 = vadd.f32 %v1111, %v1332
      %v1476 = vadd.f32 %v1115, %v1336
      %v1477 = vadd.f32 %v1117, %v1338
      %v1478 = vadd.f32 %v1119, %v1340
      %v1479 = vadd.f32 %v1121, %v1342
      %v1480 = vadd.f32 %v1125, %v1346
      %v1481 = vadd.f32 %v1127, %v1348
      %v1482 = vadd.f32 %v1129, %v1350
      %v1483 = vadd.f32 %v1131, %v1352
      %v1484 = vadd.f32 %v1135, %v1356
      %v1485 = vadd.f32 %v1137, %v1358
      %v1486 = vadd.f32 %v1139, %v1360
      %v1487 = vadd.f32 %v1141, %v1362
      %v1488 = vadd.f32 %v1145, %v1366
      %v1489 = vadd.f32 %v1147, %v1368
      %v1490 = vadd.f32 %v1149, %v1370
      %v1491 = vadd.f32 %v1151, %v1372
      %v1492 = vadd.f32 %v1155, %v1376
      %v1493 = vadd.f32 %v1157, %v1378
      %v1494 = vadd.f32 %v1159, %v1380
      %v1495 = vadd.f32 %v1161, %v1382
      %v1496 = vadd.f32 %v1165, %v1386
      %v1497 = vadd.f32 %v1167, %v1388
      %v1498 = vadd.f32 %v1169, %v1390
      %v1499 = vadd.f32 %v1171, %v1392
      %v1500 = vadd.f32 %v1175, %v1396
      %v1501 = vadd.f32 %v1177, %v1398
      %v1502 = vadd.f32 %v1179, %v1400
      %v1503 = vadd.f32 %v1181, %v1402
      %v1504 = vadd.f32 %v1185, %v1406
      %v1505 = vadd.f32 %v1187, %v1408
      %v1506 = vadd.f32 %v1189, %v1410
      %v1507 = vadd.f32 %v1191, %v1412
      %v1508 = vadd.f32 %v1195, %v1416
      %v1509 = vadd.f32 %v1197, %v1418
      %v1510 = vadd.f32 %v1199, %v1420
      %v1511 = vadd.f32 %v1201, %v1422
      %v1512 = vadd.f32 %v1205, %v1426
      %v1513 = vadd.f32 %v1207, %v1428
      %v1514 = vadd.f32 %v1209, %v1430
      %v1515 = vadd.f32 %v1211, %v1432
      %v1516 = vadd.f32 %v1215, %v1436
      %v1517 = vadd.f32 %v1217, %v1438
      %v1518 = vadd.f32 %v1219, %v1440
      %v1519 = vadd.f32 %v1221, %v1442
      %v1520 = vadd.f32 %v1225, %v1446
      %v1521 = vadd.f32 %v1227, %v1448
      %v1522 = vadd.f32 %v1229, %v1450
      %v1523 = vadd.f32 %v1231, %v1452
      %v1524 = vadd.f32 %v1235, %v1456
      %v1525 = vadd.f32 %v1237, %v1458
      %v1526 = vadd.f32 %v1239, %v1460
      %v1527 = vadd.f32 %v1241, %v1462
      %v1528 = vld [vmem:[%s5] sm:$0x3]
      %v1530 = vlaneseq
      %v1531 = vshrl.u32 %v1530, 7
      %v1532 = vsub.s32 0, %v1531
      %v1533 = vrot.slane %v1528, %v1532
      %v1534 = vlaneseq
      %v1535 = vshrl.u32 %v1534, 7
      %v1536 = vsub.s32 1, %v1535
      %v1537 = vrot.slane %v1528, %v1536
      %v1540 = vadd.f32 %v1464, %v1533
      %v1541 = vadd.f32 %v1465, %v1537
      %v1542 = vadd.f32 %v1466, %v1533
      %v1543 = vadd.f32 %v1467, %v1537
      %v1544 = vadd.f32 %v1468, %v1533
      %v1545 = vadd.f32 %v1469, %v1537
      %v1546 = vadd.f32 %v1470, %v1533
      %v1547 = vadd.f32 %v1471, %v1537
      %v1548 = vadd.f32 %v1472, %v1533
      %v1549 = vadd.f32 %v1473, %v1537
      %v1550 = vadd.f32 %v1474, %v1533
      %v1551 = vadd.f32 %v1475, %v1537
      %v1552 = vadd.f32 %v1476, %v1533
      %v1553 = vadd.f32 %v1477, %v1537
      %v1554 = vadd.f32 %v1478, %v1533
      %v1555 = vadd.f32 %v1479, %v1537
      %v1556 = vadd.f32 %v1480, %v1533
      %v1557 = vadd.f32 %v1481, %v1537
      %v1558 = vadd.f32 %v1482, %v1533
      %v1559 = vadd.f32 %v1483, %v1537
      %v1560 = vadd.f32 %v1484, %v1533
      %v1561 = vadd.f32 %v1485, %v1537
      %v1562 = vadd.f32 %v1486, %v1533
      %v1563 = vadd.f32 %v1487, %v1537
      %v1564 = vadd.f32 %v1488, %v1533
      %v1565 = vadd.f32 %v1489, %v1537
      %v1566 = vadd.f32 %v1490, %v1533
      %v1567 = vadd.f32 %v1491, %v1537
      %v1568 = vadd.f32 %v1492, %v1533
      %v1569 = vadd.f32 %v1493, %v1537
      %v1570 = vadd.f32 %v1494, %v1533
      %v1571 = vadd.f32 %v1495, %v1537
      %v1572 = vadd.f32 %v1496, %v1533
      %v1573 = vadd.f32 %v1497, %v1537
      %v1574 = vadd.f32 %v1498, %v1533
      %v1575 = vadd.f32 %v1499, %v1537
      %v1576 = vadd.f32 %v1500, %v1533
      %v1577 = vadd.f32 %v1501, %v1537
      %v1578 = vadd.f32 %v1502, %v1533
      %v1579 = vadd.f32 %v1503, %v1537
      %v1580 = vadd.f32 %v1504, %v1533
      %v1581 = vadd.f32 %v1505, %v1537
      %v1582 = vadd.f32 %v1506, %v1533
      %v1583 = vadd.f32 %v1507, %v1537
      %v1584 = vadd.f32 %v1508, %v1533
      %v1585 = vadd.f32 %v1509, %v1537
      %v1586 = vadd.f32 %v1510, %v1533
      %v1587 = vadd.f32 %v1511, %v1537
      %v1588 = vadd.f32 %v1512, %v1533
      %v1589 = vadd.f32 %v1513, %v1537
      %v1590 = vadd.f32 %v1514, %v1533
      %v1591 = vadd.f32 %v1515, %v1537
      %v1592 = vadd.f32 %v1516, %v1533
      %v1593 = vadd.f32 %v1517, %v1537
      %v1594 = vadd.f32 %v1518, %v1533
      %v1595 = vadd.f32 %v1519, %v1537
      %v1596 = vadd.f32 %v1520, %v1533
      %v1597 = vadd.f32 %v1521, %v1537
      %v1598 = vadd.f32 %v1522, %v1533
      %v1599 = vadd.f32 %v1523, %v1537
      %v1600 = vadd.f32 %v1524, %v1533
      %v1601 = vadd.f32 %v1525, %v1537
      %v1602 = vadd.f32 %v1526, %v1533
      %v1603 = vadd.f32 %v1527, %v1537
      %v1604 = vmax.f32 %v1540, 0.0
      %v1605 = vmax.f32 %v1541, 0.0
      %v1606 = vmax.f32 %v1542, 0.0
      %v1607 = vmax.f32 %v1543, 0.0
      %v1608 = vmax.f32 %v1544, 0.0
      %v1609 = vmax.f32 %v1545, 0.0
      %v1610 = vmax.f32 %v1546, 0.0
      %v1611 = vmax.f32 %v1547, 0.0
      %v1612 = vmax.f32 %v1548, 0.0
      %v1613 = vmax.f32 %v1549, 0.0
      %v1614 = vmax.f32 %v1550, 0.0
      %v1615 = vmax.f32 %v1551, 0.0
      %v1616 = vmax.f32 %v1552, 0.0
      %v1617 = vmax.f32 %v1553, 0.0
      %v1618 = vmax.f32 %v1554, 0.0
      %v1619 = vmax.f32 %v1555, 0.0
      %v1620 = vmax.f32 %v1556, 0.0
      %v1621 = vmax.f32 %v1557, 0.0
      %v1622 = vmax.f32 %v1558, 0.0
      %v1623 = vmax.f32 %v1559, 0.0
      %v1624 = vmax.f32 %v1560, 0.0
      %v1625 = vmax.f32 %v1561, 0.0
      %v1626 = vmax.f32 %v1562, 0.0
      %v1627 = vmax.f32 %v1563, 0.0
      %v1628 = vmax.f32 %v1564, 0.0
      %v1629 = vmax.f32 %v1565, 0.0
      %v1630 = vmax.f32 %v1566, 0.0
      %v1631 = vmax.f32 %v1567, 0.0
      %v1632 = vmax.f32 %v1568, 0.0
      %v1633 = vmax.f32 %v1569, 0.0
      %v1634 = vmax.f32 %v1570, 0.0
      %v1635 = vmax.f32 %v1571, 0.0
      %v1636 = vmax.f32 %v1572, 0.0
      %v1637 = vmax.f32 %v1573, 0.0
      %v1638 = vmax.f32 %v1574, 0.0
      %v1639 = vmax.f32 %v1575, 0.0
      %v1640 = vmax.f32 %v1576, 0.0
      %v1641 = vmax.f32 %v1577, 0.0
      %v1642 = vmax.f32 %v1578, 0.0
      %v1643 = vmax.f32 %v1579, 0.0
      %v1644 = vmax.f32 %v1580, 0.0
      %v1645 = vmax.f32 %v1581, 0.0
      %v1646 = vmax.f32 %v1582, 0.0
      %v1647 = vmax.f32 %v1583, 0.0
      %v1648 = vmax.f32 %v1584, 0.0
      %v1649 = vmax.f32 %v1585, 0.0
      %v1650 = vmax.f32 %v1586, 0.0
      %v1651 = vmax.f32 %v1587, 0.0
      %v1652 = vmax.f32 %v1588, 0.0
      %v1653 = vmax.f32 %v1589, 0.0
      %v1654 = vmax.f32 %v1590, 0.0
      %v1655 = vmax.f32 %v1591, 0.0
      %v1656 = vmax.f32 %v1592, 0.0
      %v1657 = vmax.f32 %v1593, 0.0
      %v1658 = vmax.f32 %v1594, 0.0
      %v1659 = vmax.f32 %v1595, 0.0
      %v1660 = vmax.f32 %v1596, 0.0
      %v1661 = vmax.f32 %v1597, 0.0
      %v1662 = vmax.f32 %v1598, 0.0
      %v1663 = vmax.f32 %v1599, 0.0
      %v1664 = vmax.f32 %v1600, 0.0
      %v1665 = vmax.f32 %v1601, 0.0
      %v1666 = vmax.f32 %v1602, 0.0
      %v1667 = vmax.f32 %v1603, 0.0
      %v1668 = vpack.c.bf16 %v1606, %v1604
      %v1669 = vpack.c.bf16 %v1607, %v1605
      %v1670 = vpack.c.bf16 %v1610, %v1608
      %v1671 = vpack.c.bf16 %v1611, %v1609
      %v1672 = vpack.c.bf16 %v1614, %v1612
      %v1673 = vpack.c.bf16 %v1615, %v1613
      %v1674 = vpack.c.bf16 %v1618, %v1616
      %v1675 = vpack.c.bf16 %v1619, %v1617
      %v1676 = vpack.c.bf16 %v1622, %v1620
      %v1677 = vpack.c.bf16 %v1623, %v1621
      %v1678 = vpack.c.bf16 %v1626, %v1624
      %v1679 = vpack.c.bf16 %v1627, %v1625
      %v1680 = vpack.c.bf16 %v1630, %v1628
      %v1681 = vpack.c.bf16 %v1631, %v1629
      %v1682 = vpack.c.bf16 %v1634, %v1632
      %v1683 = vpack.c.bf16 %v1635, %v1633
      %v1684 = vpack.c.bf16 %v1638, %v1636
      %v1685 = vpack.c.bf16 %v1639, %v1637
      %v1686 = vpack.c.bf16 %v1642, %v1640
      %v1687 = vpack.c.bf16 %v1643, %v1641
      %v1688 = vpack.c.bf16 %v1646, %v1644
      %v1689 = vpack.c.bf16 %v1647, %v1645
      %v1690 = vpack.c.bf16 %v1650, %v1648
      %v1691 = vpack.c.bf16 %v1651, %v1649
      %v1692 = vpack.c.bf16 %v1654, %v1652
      %v1693 = vpack.c.bf16 %v1655, %v1653
      %v1694 = vpack.c.bf16 %v1658, %v1656
      %v1695 = vpack.c.bf16 %v1659, %v1657
      %v1696 = vpack.c.bf16 %v1662, %v1660
      %v1697 = vpack.c.bf16 %v1663, %v1661
      %v1698 = vpack.c.bf16 %v1666, %v1664
      %v1699 = vpack.c.bf16 %v1667, %v1665
      %v1732 = vunpack.c.l.b16 %v1668
      %v1733 = vunpack.c.l.b16 %v1669
      %v1734 = vunpack.c.h.b16 %v1668
      %v1735 = vunpack.c.h.b16 %v1669
      %v1736 = vunpack.c.l.b16 %v1670
      %v1737 = vunpack.c.l.b16 %v1671
      %v1738 = vunpack.c.h.b16 %v1670
      %v1739 = vunpack.c.h.b16 %v1671
      %v1740 = vunpack.c.l.b16 %v1672
      %v1741 = vunpack.c.l.b16 %v1673
      %v1742 = vunpack.c.h.b16 %v1672
      %v1743 = vunpack.c.h.b16 %v1673
      %v1744 = vunpack.c.l.b16 %v1674
      %v1745 = vunpack.c.l.b16 %v1675
      %v1746 = vunpack.c.h.b16 %v1674
      %v1747 = vunpack.c.h.b16 %v1675
      %v1748 = vunpack.c.l.b16 %v1676
      %v1749 = vunpack.c.l.b16 %v1677
      %v1750 = vunpack.c.h.b16 %v1676
      %v1751 = vunpack.c.h.b16 %v1677
      %v1752 = vunpack.c.l.b16 %v1678
      %v1753 = vunpack.c.l.b16 %v1679
      %v1754 = vunpack.c.h.b16 %v1678
      %v1755 = vunpack.c.h.b16 %v1679
      %v1756 = vunpack.c.l.b16 %v1680
      %v1757 = vunpack.c.l.b16 %v1681
      %v1758 = vunpack.c.h.b16 %v1680
      %v1759 = vunpack.c.h.b16 %v1681
      %v1760 = vunpack.c.l.b16 %v1682
      %v1761 = vunpack.c.l.b16 %v1683
      %v1762 = vunpack.c.h.b16 %v1682
      %v1763 = vunpack.c.h.b16 %v1683
      %v1764 = vunpack.c.l.b16 %v1684
      %v1765 = vunpack.c.l.b16 %v1685
      %v1766 = vunpack.c.h.b16 %v1684
      %v1767 = vunpack.c.h.b16 %v1685
      %v1768 = vunpack.c.l.b16 %v1686
      %v1769 = vunpack.c.l.b16 %v1687
      %v1770 = vunpack.c.h.b16 %v1686
      %v1771 = vunpack.c.h.b16 %v1687
      %v1772 = vunpack.c.l.b16 %v1688
      %v1773 = vunpack.c.l.b16 %v1689
      %v1774 = vunpack.c.h.b16 %v1688
      %v1775 = vunpack.c.h.b16 %v1689
      %v1776 = vunpack.c.l.b16 %v1690
      %v1777 = vunpack.c.l.b16 %v1691
      %v1778 = vunpack.c.h.b16 %v1690
      %v1779 = vunpack.c.h.b16 %v1691
      %v1780 = vunpack.c.l.b16 %v1692
      %v1781 = vunpack.c.l.b16 %v1693
      %v1782 = vunpack.c.h.b16 %v1692
      %v1783 = vunpack.c.h.b16 %v1693
      %v1784 = vunpack.c.l.b16 %v1694
      %v1785 = vunpack.c.l.b16 %v1695
      %v1786 = vunpack.c.h.b16 %v1694
      %v1787 = vunpack.c.h.b16 %v1695
      %v1788 = vunpack.c.l.b16 %v1696
      %v1789 = vunpack.c.l.b16 %v1697
      %v1790 = vunpack.c.h.b16 %v1696
      %v1791 = vunpack.c.h.b16 %v1697
      %v1792 = vunpack.c.l.b16 %v1698
      %v1793 = vunpack.c.l.b16 %v1699
      %v1794 = vunpack.c.h.b16 %v1698
      %v1795 = vunpack.c.h.b16 %v1699
      %v1796 = vpack.c.b16 %v1733, %v1732
      %v1797 = vpack.c.b16 %v1735, %v1734
      %v1798 = vpack.c.b16 %v1737, %v1736
      %v1799 = vpack.c.b16 %v1739, %v1738
      %v1800 = vpack.c.b16 %v1741, %v1740
      %v1801 = vpack.c.b16 %v1743, %v1742
      %v1802 = vpack.c.b16 %v1745, %v1744
      %v1803 = vpack.c.b16 %v1747, %v1746
      %v1804 = vpack.c.b16 %v1749, %v1748
      %v1805 = vpack.c.b16 %v1751, %v1750
      %v1806 = vpack.c.b16 %v1753, %v1752
      %v1807 = vpack.c.b16 %v1755, %v1754
      %v1808 = vpack.c.b16 %v1757, %v1756
      %v1809 = vpack.c.b16 %v1759, %v1758
      %v1810 = vpack.c.b16 %v1761, %v1760
      %v1811 = vpack.c.b16 %v1763, %v1762
      %v1812 = vpack.c.b16 %v1765, %v1764
      %v1813 = vpack.c.b16 %v1767, %v1766
      %v1814 = vpack.c.b16 %v1769, %v1768
      %v1815 = vpack.c.b16 %v1771, %v1770
      %v1816 = vpack.c.b16 %v1773, %v1772
      %v1817 = vpack.c.b16 %v1775, %v1774
      %v1818 = vpack.c.b16 %v1777, %v1776
      %v1819 = vpack.c.b16 %v1779, %v1778
      %v1820 = vpack.c.b16 %v1781, %v1780
      %v1821 = vpack.c.b16 %v1783, %v1782
      %v1822 = vpack.c.b16 %v1785, %v1784
      %v1823 = vpack.c.b16 %v1787, %v1786
      %v1824 = vpack.c.b16 %v1789, %v1788
      %v1825 = vpack.c.b16 %v1791, %v1790
      %v1826 = vpack.c.b16 %v1793, %v1792
      %v1827 = vpack.c.b16 %v1795, %v1794
      %1860 = vst [vmem:[%s251] sm:$0xff] %v1796
      %1861 = vst [vmem:[%s251 + $0x8] sm:$0xff] %v1797
      %1862 = vst [vmem:[%s251 + $0x10] sm:$0xff] %v1798
      %1863 = vst [vmem:[%s251 + $0x18] sm:$0xff] %v1799
      %1864 = vst [vmem:[%s251 + $0x20] sm:$0xff] %v1800
      %1865 = vst [vmem:[%s251 + $0x28] sm:$0xff] %v1801
      %1866 = vst [vmem:[%s251 + $0x30] sm:$0xff] %v1802
      %1867 = vst [vmem:[%s251 + $0x38] sm:$0xff] %v1803
      %1868 = vst [vmem:[%s251 + $0x40] sm:$0xff] %v1804
      %1869 = vst [vmem:[%s251 + $0x48] sm:$0xff] %v1805
      %1870 = vst [vmem:[%s251 + $0x50] sm:$0xff] %v1806
      %1871 = vst [vmem:[%s251 + $0x58] sm:$0xff] %v1807
      %1872 = vst [vmem:[%s251 + $0x60] sm:$0xff] %v1808
      %1873 = vst [vmem:[%s251 + $0x68] sm:$0xff] %v1809
      %1874 = vst [vmem:[%s251 + $0x70] sm:$0xff] %v1810
      %1875 = vst [vmem:[%s251 + $0x78] sm:$0xff] %v1811
      %1876 = vst [vmem:[%s251 + $0x80] sm:$0xff] %v1812
      %1877 = vst [vmem:[%s251 + $0x88] sm:$0xff] %v1813
      %1878 = vst [vmem:[%s251 + $0x90] sm:$0xff] %v1814
      %1879 = vst [vmem:[%s251 + $0x98] sm:$0xff] %v1815
      %1880 = vst [vmem:[%s251 + $0xa0] sm:$0xff] %v1816
      %1881 = vst [vmem:[%s251 + $0xa8] sm:$0xff] %v1817
      %1882 = vst [vmem:[%s251 + $0xb0] sm:$0xff] %v1818
      %1883 = vst [vmem:[%s251 + $0xb8] sm:$0xff] %v1819
      %1884 = vst [vmem:[%s251 + $0xc0] sm:$0xff] %v1820
      %1885 = vst [vmem:[%s251 + $0xc8] sm:$0xff] %v1821
      %1886 = vst [vmem:[%s251 + $0xd0] sm:$0xff] %v1822
      %1887 = vst [vmem:[%s251 + $0xd8] sm:$0xff] %v1823
      %1888 = vst [vmem:[%s251 + $0xe0] sm:$0xff] %v1824
      %1889 = vst [vmem:[%s251 + $0xe8] sm:$0xff] %v1825
      %1890 = vst [vmem:[%s251 + $0xf0] sm:$0xff] %v1826
      %1891 = vst [vmem:[%s251 + $0xf8] sm:$0xff] %v1827
      %p1892 = scmp.lt.s32.totalorder %s17, 1
      %s1893 = scalar_select %p1892, %s17, 1
      %s1894 = smul.addr %s1893, 64
      %s1895 = smul.addr %s1894, 4
      %s1896 = scalar_lea.vmem %s6, %s1895
      // Predicated region
      $region45: #{_inception_red_forward.3} parent=43 // pred_check
        %p1897 = pneg %p166
      $region46: #{_inception_red_forward.3} parent=43 // pred_check_branch
        %1899 = sbr.rel (%p1897) target = $region48
      $region47: #{_inception_red_forward.3} parent=43 // pred_region
        _
      $region48: #{_inception_red_forward.3} parent=43 // pred_fallthru
        _
    $region44: #{_inception_red_forward.3} parent=5 // pred_fallthru
      _
    %p1900 = scmp.le.s32.totalorder 2, %s12
    // Predicated region
    $region49: #{_inception_red_forward.3} parent=5 // pred_check
      %p1901 = pneg %p1900
    $region50: #{_inception_red_forward.3} parent=5 // pred_check_branch
      %1903 = sbr.rel (%p1901) target = $region52
    $region51: #{_inception_red_forward.3} parent=5 // pred_region
      %s1904 = ssub.s32 %s12, 2
      // Predicated region
      $region53: #{_inception_red_forward.3} parent=51 // pred_check
        %p1905 = pneg %p172
      $region54: #{_inception_red_forward.3} parent=51 // pred_check_branch
        %1907 = sbr.rel (%p1905) target = $region56
      $region55: #{_inception_red_forward.3} parent=51 // pred_region
        %p1908 = scmp.lt.s32.totalorder %s18, 1
        %s1909 = scalar_select %p1908, %s18, 1
        %s1910 = smul.addr %s1909, 64
        %s1911 = smul.addr %s1910, 4
        %s1912 = scalar_lea.vmem %s6, %s1911
      $region56: #{_inception_red_forward.3} parent=51 // pred_fallthru
        _
    $region52: #{_inception_red_forward.3} parent=5 // pred_fallthru
      _
  $region6: #{_inception_red_forward.3} parent=0 // loop_footer
    %s16 = sadd.s32 1, %s12
  $region7: #{_inception_red_forward.3} parent=0 // loop_footer_branch
    %11 = sbr.rel target = $region3
  $region8: #{_inception_red_forward.3} parent=0 // loop_exit
    _

// kernel: _inception_red_forward.5
$region0: #{_inception_red_forward.5}
  #allocation0 [shape = 'u32[]', space=smem, size = 0x4, offset = 0x4, fixed_abs, tag = 'smem constant byte address 0x4 - core index']
  #allocation1 [shape = 'u32[144,128]{1,0:T(1,128)}', space=vmem, size = 0x12000, scoped, tag = 'internal scratch']
  %s0 = inlined_call_operand.vmem [shape: bf16[2,16,7,12], index: 0, kind: input, shape index: {}]
  %s1 = inlined_call_operand.vmem [shape: bf16[12,24], index: 1, kind: input, shape index: {}]
  %s2 = inlined_call_operand.vmem [shape: f32[1,24], index: 2, kind: input, shape index: {}]
  %s3 = inlined_call_operand.vmem [shape: bf16[3,24,384], index: 3, kind: input, shape index: {}]
  %s4 = inlined_call_operand.vmem [shape: f32[1,384], index: 4, kind: input, shape index: {}]
  %s5 = inlined_call_operand.vmem [shape: f32[2,7,7,384], index: 5, kind: output, shape index: {}]
  %s6 = sld [smem:[#allocation0]]
  $region53: #{_inception_red_forward.5} parent=0
    _
  %s8 = ssub.s32 1, %s6
  %s9 = scalar_select 0, %s8, %s6
  loop: start=0, step=1, limit=4
  $region2: #{_inception_red_forward.5} parent=0 // loop_pre_header
    _
  $region3: #{_inception_red_forward.5} parent=0 // loop_header
    %s11 = sphi 0, %s15
    %p12 = scmp.ge.s32.totalorder %s11, 4
    %s21 = sphi 0, %s23
    %s24 = sphi 0, %s21
    %s25 = sphi 0, %s24
    %s41 = sphi 0, %s25
    %s45 = sphi 0, %s45
    %s47 = sphi 0, %s45
    %s48 = sphi 0, %s47
    %s62 = sphi 0, %s48
    %s66 = sphi 0, %s66
    %s68 = sphi 0, %s66
    %s69 = sphi 0, %s68
    %s83 = sphi 0, %s69
    %s87 = sphi 0, %s87
    %s89 = sphi 0, %s87
    %s90 = sphi 0, %s89
    %s104 = sphi 0, %s90
    %s108 = sphi 0, %s108
    %s110 = sphi 0, %s108
    %s111 = sphi 0, %s110
    %s125 = sphi 0, %s111
    %s131 = sphi 0, %s133
    %s134 = sphi 0, %s131
    %s135 = sphi 0, %s134
    %s151 = sphi 0, %s135
  $region4: #{_inception_red_forward.5} parent=0 // loop_header_branch
    %14 = sbr.rel (%p12) target = $region8
  $region5: #{_inception_red_forward.5} parent=0 // loop_body
    %s16 = ssub.s32 %s11, 1
    %s17 = ssub.s32 %s11, 2
    %s18 = sadd.s32 %s11, 1
    %s19 = ssub.s32 %s11, %s18
    %p20 = scmp.eq.s32.totalorder %s19, 0
    %s22 = sadd.s32 %s21, 1
    %s23 = scalar_select %p20, %s21, %s22
    %p26 = pneg %p20
    %p27 = scmp.eq.s32.totalorder %s11, 1
    %p28 = por %p26, %p27
    %p29 = scmp.ne.s32.totalorder %s21, %s24
    %p30 = scmp.eq.s32.totalorder %s11, 0
    %p31 = por %p29, %p30
    %p32 = scmp.ne.s32.totalorder %s21, %s24
    %p33 = scmp.eq.s32.totalorder %s16, 1
    %p34 = por %p32, %p33
    %p35 = scmp.ne.s32.totalorder %s24, %s25
    %p36 = scmp.eq.s32.totalorder %s16, 0
    %p37 = por %p35, %p36
    %p38 = scmp.ne.s32.totalorder %s24, %s25
    %p39 = scmp.eq.s32.totalorder %s17, 1
    %p40 = por %p38, %p39
    %p42 = scmp.ne.s32.totalorder %s25, %s41
    %p43 = scmp.eq.s32.totalorder %s17, 0
    %p44 = por %p42, %p43
    %s46 = sadd.s32 %s45, 1
    %p49 = scmp.eq.s32.totalorder %s11, 1
    %p50 = scmp.ne.s32.totalorder %s45, %s47
    %p51 = scmp.eq.s32.totalorder %s11, 0
    %p52 = por %p50, %p51
    %p53 = scmp.ne.s32.totalorder %s45, %s47
    %p54 = scmp.eq.s32.totalorder %s16, 1
    %p55 = por %p53, %p54
    %p56 = scmp.ne.s32.totalorder %s47, %s48
    %p57 = scmp.eq.s32.totalorder %s16, 0
    %p58 = por %p56, %p57
    %p59 = scmp.ne.s32.totalorder %s47, %s48
    %p60 = scmp.eq.s32.totalorder %s17, 1
    %p61 = por %p59, %p60
    %p63 = scmp.ne.s32.totalorder %s48, %s62
    %p64 = scmp.eq.s32.totalorder %s17, 0
    %p65 = por %p63, %p64
    %s67 = sadd.s32 %s66, 1
    %p70 = scmp.eq.s32.totalorder %s11, 1
    %p71 = scmp.ne.s32.totalorder %s66, %s68
    %p72 = scmp.eq.s32.totalorder %s11, 0
    %p73 = por %p71, %p72
    %p74 = scmp.ne.s32.totalorder %s66, %s68
    %p75 = scmp.eq.s32.totalorder %s16, 1
    %p76 = por %p74, %p75
    %p77 = scmp.ne.s32.totalorder %s68, %s69
    %p78 = scmp.eq.s32.totalorder %s16, 0
    %p79 = por %p77, %p78
    %p80 = scmp.ne.s32.totalorder %s68, %s69
    %p81 = scmp.eq.s32.totalorder %s17, 1
    %p82 = por %p80, %p81
    %p84 = scmp.ne.s32.totalorder %s69, %s83
    %p85 = scmp.eq.s32.totalorder %s17, 0
    %p86 = por %p84, %p85
    %s88 = sadd.s32 %s87, 1
    %p91 = scmp.eq.s32.totalorder %s11, 1
    %p92 = scmp.ne.s32.totalorder %s87, %s89
    %p93 = scmp.eq.s32.totalorder %s11, 0
    %p94 = por %p92, %p93
    %p95 = scmp.ne.s32.totalorder %s87, %s89
    %p96 = scmp.eq.s32.totalorder %s16, 1
    %p97 = por %p95, %p96
    %p98 = scmp.ne.s32.totalorder %s89, %s90
    %p99 = scmp.eq.s32.totalorder %s16, 0
    %p100 = por %p98, %p99
    %p101 = scmp.ne.s32.totalorder %s89, %s90
    %p102 = scmp.eq.s32.totalorder %s17, 1
    %p103 = por %p101, %p102
    %p105 = scmp.ne.s32.totalorder %s90, %s104
    %p106 = scmp.eq.s32.totalorder %s17, 0
    %p107 = por %p105, %p106
    %s109 = sadd.s32 %s108, 1
    %p112 = scmp.eq.s32.totalorder %s11, 1
    %p113 = scmp.ne.s32.totalorder %s108, %s110
    %p114 = scmp.eq.s32.totalorder %s11, 0
    %p115 = por %p113, %p114
    %p116 = scmp.ne.s32.totalorder %s108, %s110
    %p117 = scmp.eq.s32.totalorder %s16, 1
    %p118 = por %p116, %p117
    %p119 = scmp.ne.s32.totalorder %s110, %s111
    %p120 = scmp.eq.s32.totalorder %s16, 0
    %p121 = por %p119, %p120
    %p122 = scmp.ne.s32.totalorder %s110, %s111
    %p123 = scmp.eq.s32.totalorder %s17, 1
    %p124 = por %p122, %p123
    %p126 = scmp.ne.s32.totalorder %s111, %s125
    %p127 = scmp.eq.s32.totalorder %s17, 0
    %p128 = por %p126, %p127
    %s129 = ssub.s32 %s11, %s18
    %p130 = scmp.eq.s32.totalorder %s129, 0
    %s132 = sadd.s32 %s131, 1
    %s133 = scalar_select %p130, %s131, %s132
    %p136 = pneg %p130
    %p137 = scmp.eq.s32.totalorder %s11, 1
    %p138 = por %p136, %p137
    %p139 = scmp.ne.s32.totalorder %s131, %s134
    %p140 = scmp.eq.s32.totalorder %s11, 0
    %p141 = por %p139, %p140
    %p142 = scmp.ne.s32.totalorder %s131, %s134
    %p143 = scmp.eq.s32.totalorder %s16, 1
    %p144 = por %p142, %p143
    %p145 = scmp.ne.s32.totalorder %s134, %s135
    %p146 = scmp.eq.s32.totalorder %s16, 0
    %p147 = por %p145, %p146
    %p148 = scmp.ne.s32.totalorder %s134, %s135
    %p149 = scmp.eq.s32.totalorder %s17, 1
    %p150 = por %p148, %p149
    %p152 = scmp.ne.s32.totalorder %s135, %s151
    %p153 = scmp.eq.s32.totalorder %s17, 0
    %p154 = por %p152, %p153
    %p155 = scmp.le.s32.totalorder 1, %s11
    %p156 = scmp.lt.s32.totalorder %s11, 3
    %p157 = pnand %p155, %p156
    %p158 = pneg %p157
    // Predicated region
    $region9: #{_inception_red_forward.5} parent=5 // pred_check
      _
    $region10: #{_inception_red_forward.5} parent=5 // pred_check_branch
      %160 = sbr.rel (%p157) target = $region12
    $region11: #{_inception_red_forward.5} parent=5 // pred_region
      %s161 = ssub.s32 %s11, 1
      // Predicated region
      $region13: #{_inception_red_forward.5} parent=11 // pred_check
        %p162 = pneg %p58
      $region14: #{_inception_red_forward.5} parent=11 // pred_check_branch
        %164 = sbr.rel (%p162) target = $region16
      $region15: #{_inception_red_forward.5} parent=11 // pred_region
        _
      $region16: #{_inception_red_forward.5} parent=11 // pred_fallthru
        _
      // Predicated region
      $region17: #{_inception_red_forward.5} parent=11 // pred_check
        %p165 = pneg %p79
      $region18: #{_inception_red_forward.5} parent=11 // pred_check_branch
        %167 = sbr.rel (%p165) target = $region20
      $region19: #{_inception_red_forward.5} parent=11 // pred_region
        _
      $region20: #{_inception_red_forward.5} parent=11 // pred_fallthru
        _
      // Predicated region
      $region21: #{_inception_red_forward.5} parent=11 // pred_check
        %p168 = pneg %p100
      $region22: #{_inception_red_forward.5} parent=11 // pred_check_branch
        %170 = sbr.rel (%p168) target = $region24
      $region23: #{_inception_red_forward.5} parent=11 // pred_region
        _
      $region24: #{_inception_red_forward.5} parent=11 // pred_fallthru
        _
      // Predicated region
      $region25: #{_inception_red_forward.5} parent=11 // pred_check
        %p171 = pneg %p121
      $region26: #{_inception_red_forward.5} parent=11 // pred_check_branch
        %173 = sbr.rel (%p171) target = $region28
      $region27: #{_inception_red_forward.5} parent=11 // pred_region
        _
      $region28: #{_inception_red_forward.5} parent=11 // pred_fallthru
        _
    $region12: #{_inception_red_forward.5} parent=5 // pred_fallthru
      _
    %p174 = scmp.lt.s32.totalorder %s11, 2
    // Predicated region
    $region29: #{_inception_red_forward.5} parent=5 // pred_check
      %p175 = pneg %p174
    $region30: #{_inception_red_forward.5} parent=5 // pred_check_branch
      %177 = sbr.rel (%p175) target = $region32
    $region31: #{_inception_red_forward.5} parent=5 // pred_region
      // Predicated region
      $region33: #{_inception_red_forward.5} parent=31 // pred_check
        %p178 = pneg %p31
      $region34: #{_inception_red_forward.5} parent=31 // pred_check_branch
        %180 = sbr.rel (%p178) target = $region36
      $region35: #{_inception_red_forward.5} parent=31 // pred_region
        %p181 = scmp.lt.s32.totalorder %s11, 1
        %s182 = scalar_select %p181, %s11, 1
        %s183 = smul.addr %s182, 16
        %s184 = smul.addr %s183, 4
        %s185 = scalar_lea.vmem %s0, %s184
      $region36: #{_inception_red_forward.5} parent=31 // pred_fallthru
        _
    $region32: #{_inception_red_forward.5} parent=5 // pred_fallthru
      _
    %p186 = scmp.le.s32.totalorder 1, %s11
    %p187 = scmp.lt.s32.totalorder %s11, 3
    %p188 = pnand %p186, %p187
    %p189 = pneg %p188
    // Predicated region
    $region37: #{_inception_red_forward.5} parent=5 // pred_check
      _
    $region38: #{_inception_red_forward.5} parent=5 // pred_check_branch
      %191 = sbr.rel (%p188) target = $region40
    $region39: #{_inception_red_forward.5} parent=5 // pred_region
      %s192 = ssub.s32 %s11, 1
      %p193 = scmp.lt.s32.totalorder %s16, 1
      %s194 = scalar_select %p193, %s16, 1
      %s195 = smul.addr %s194, 16
      %s196 = smul.addr %s195, 4
      %s197 = scalar_lea.vmem %s0, %s196
      %p198 = pneg %p37
      %p199 = pneg %p34
      %p200 = pneg %p58
      %p201 = pneg %p55
      %p202 = pneg %p79
      %p203 = pneg %p76
      %p204 = pneg %p100
      %p205 = pneg %p97
      %p206 = pneg %p121
      %p207 = pneg %p118
      %p208 = pneg %p147
      %p209 = pneg %p144
      %p210 = scmp.lt.s32.totalorder %s16, 1
      %s211 = scalar_select %p210, %s16, 1
      %s212 = smul.addr %s211, 21
      %s213 = smul.addr %s212, 8
      %s214 = scalar_lea.vmem %s5, %s213
      %p215 = scmp.lt.s32.totalorder %s16, 1
      %s216 = scalar_select %p215, %s16, 1
      %s217 = smul.addr %s216, 16
      %s218 = smul.addr %s217, 4
      %s219 = scalar_lea.vmem %s0, %s218
      %p220 = scmp.lt.s32.totalorder %s16, 1
      %s221 = scalar_select %p220, %s16, 1
      %s222 = smul.addr %s221, 21
      %s223 = smul.addr %s222, 8
      %s224 = scalar_lea.vmem %s5, %s223
      %v226 = vld [vmem:[%s1] sm:$0xf]
      %v227 = vld [vmem:[%s1 + $0x4] sm:$0x3]
      %v228 = vld [vmem:[%s2] sm:$0x1]
      %v229 = vld [vmem:[%s3] sm:$0xff]
      %v230 = vld [vmem:[%s3 + $0x8] sm:$0xf]
      %v231 = vld [vmem:[%s3 + $0xc] sm:$0xff]
      %v232 = vld [vmem:[%s3 + $0x14] sm:$0xf]
      %v233 = vld [vmem:[%s3 + $0x18] sm:$0xff]
      %v234 = vld [vmem:[%s3 + $0x20] sm:$0xf]
      %s235 = scalar_lea.vmem %s3, 36
      %v236 = vld [vmem:[%s235] sm:$0xff]
      %v237 = vld [vmem:[%s235 + $0x8] sm:$0xf]
      %v238 = vld [vmem:[%s235 + $0xc] sm:$0xff]
      %v239 = vld [vmem:[%s235 + $0x14] sm:$0xf]
      %v240 = vld [vmem:[%s235 + $0x18] sm:$0xff]
      %v241 = vld [vmem:[%s235 + $0x20] sm:$0xf]
      %s242 = scalar_lea.vmem %s3, 72
      %v243 = vld [vmem:[%s242] sm:$0xff]
      %v244 = vld [vmem:[%s242 + $0x8] sm:$0xf]
      %v245 = vld [vmem:[%s242 + $0xc] sm:$0xff]
      %v246 = vld [vmem:[%s242 + $0x14] sm:$0xf]
      %v247 = vld [vmem:[%s242 + $0x18] sm:$0xff]
      %v248 = vld [vmem:[%s242 + $0x20] sm:$0xf]
      %v249 = vld [vmem:[%s4] sm:$0x7]
      %v251 = vlaneseq
      %v252 = vshrl.u32 %v251, 7
      %v253 = vsub.s32 0, %v252
      %v254 = vrot.slane %v249, %v253
      %v255 = vlaneseq
      %v256 = vshrl.u32 %v255, 7
      %v257 = vsub.s32 1, %v256
      %v258 = vrot.slane %v249, %v257
      %v259 = vlaneseq
      %v260 = vshrl.u32 %v259, 7
      %v261 = vsub.s32 2, %v260
      %v262 = vrot.slane %v249, %v261
      %v266 = vld [vmem:[%s219] sm:$0xf]
      %v268 = vlaneseq
      %v269 = vshrl.u32 %v268, 7
      %v270 = vsub.s32 0, %v269
      %v271 = vrot.slane %v228, %v270
      %v275 = vunpack.c.l.b16 %v226
      %v276 = vunpack.c.l.b16 %v227
      %v277 = vpack.c.b16 %v276, %v275
      %vm278 = vcmask 97280
      %v280 = vsel %vm278, %v266, 0
      %vm282 = vcmask 1045504
      %v284 = vsel %vm282, %v277, 0
      %286 = vmatprep.subr.bf16.mxu0 0
      %287 = vmatpush1.bf16.msra.mxu0 0
      %288 = vmatprep.subr.bf16.mxu0 0
      %289 = vmatpush1.bf16.msra.mxu0 0
      %290 = vmatprep.subr.bf16.mxu0 0
      %291 = vmatpush1.bf16.msra.mxu0 0
      %292 = vmatprep.subr.bf16.mxu0 0
      %293 = vmatpush1.bf16.msra.mxu0 0
      %294 = vmatprep.subr.bf16.mxu0 0
      %295 = vmatpush1.bf16.msra.mxu0 0
      %296 = vmatprep.subr.bf16.mxu0 0
      %297 = vmatpush1.bf16.msra.mxu0 0
      %298 = vmatprep.subr.bf16.mxu0 0
      %299 = vmatpush1.bf16.msra.mxu0 0
      %300 = vmatprep.subr.bf16.mxu0 0
      %301 = vmatpush1.bf16.msra.mxu0 %v284
      %302 = vmatprep.subr.bf16.mxu0 0
      %303 = vmatpush2.bf16.msra.mxu0 0
      %304 = vmatprep.subr.bf16.mxu0 0
      %305 = vmatpush2.bf16.msra.mxu0 0
      %306 = vmatprep.subr.bf16.mxu0 0
      %307 = vmatpush2.bf16.msra.mxu0 0
      %308 = vmatprep.subr.bf16.mxu0 0
      %309 = vmatpush2.bf16.msra.mxu0 0
      %310 = vmatprep.subr.bf16.mxu0 0
      %311 = vmatpush2.bf16.msra.mxu0 0
      %312 = vmatprep.subr.bf16.mxu0 0
      %313 = vmatpush2.bf16.msra.mxu0 0
      %314 = vmatprep.subr.bf16.mxu0 0
      %315 = vmatpush2.bf16.msra.mxu0 0
      %316 = vmatprep.subr.bf16.mxu0 0
      %317 = vmatpush2.bf16.msra.mxu0 0
      %318 = vmatprep.mubr.bf16.mxu0 0
      %319 = vmatmul.mubr.bf16.gmra.mxu0 %v280
      %v320 = vpop.f32.mrf.mxu0
      %v321 = vadd.f32 %v271, %v320
      %v322 = vpop.f32.mrf.mxu0
      %v323 = vpop.f32.mrf.mxu0
      %v324 = vpop.f32.mrf.mxu0
      %325 = vdwg.mxu0
      %v326 = vmax.f32 %v321, 0.0
      %v327 = vpack.c.bf16 %v326, %v326
      %s328 = scalar_lea.vmem %s219, 4
      %v329 = vld [vmem:[%s328] sm:$0xf]
      %v331 = vsel %vm278, %v329, 0
      %333 = vmatprep.subr.bf16.mxu0 0
      %334 = vmatpush1.bf16.msra.mxu0 0
      %335 = vmatprep.subr.bf16.mxu0 0
      %336 = vmatpush1.bf16.msra.mxu0 0
      %337 = vmatprep.subr.bf16.mxu0 0
      %338 = vmatpush1.bf16.msra.mxu0 0
      %339 = vmatprep.subr.bf16.mxu0 0
      %340 = vmatpush1.bf16.msra.mxu0 0
      %341 = vmatprep.subr.bf16.mxu0 0
      %342 = vmatpush1.bf16.msra.mxu0 0
      %343 = vmatprep.subr.bf16.mxu0 0
      %344 = vmatpush1.bf16.msra.mxu0 0
      %345 = vmatprep.subr.bf16.mxu0 0
      %346 = vmatpush1.bf16.msra.mxu0 0
      %347 = vmatprep.subr.bf16.mxu0 0
      %348 = vmatpush1.bf16.msra.mxu0 %v284
      %349 = vmatprep.subr.bf16.mxu0 0
      %350 = vmatpush2.bf16.msra.mxu0 0
      %351 = vmatprep.subr.bf16.mxu0 0
      %352 = vmatpush2.bf16.msra.mxu0 0
      %353 = vmatprep.subr.bf16.mxu0 0
      %354 = vmatpush2.bf16.msra.mxu0 0
      %355 = vmatprep.subr.bf16.mxu0 0
      %356 = vmatpush2.bf16.msra.mxu0 0
      %357 = vmatprep.subr.bf16.mxu0 0
      %358 = vmatpush2.bf16.msra.mxu0 0
      %359 = vmatprep.subr.bf16.mxu0 0
      %360 = vmatpush2.bf16.msra.mxu0 0
      %361 = vmatprep.subr.bf16.mxu0 0
      %362 = vmatpush2.bf16.msra.mxu0 0
      %363 = vmatprep.subr.bf16.mxu0 0
      %364 = vmatpush2.bf16.msra.mxu0 0
      %365 = vmatprep.mubr.bf16.mxu0 0
      %366 = vmatmul.mubr.bf16.gmra.mxu0 %v331
      %v367 = vpop.f32.mrf.mxu0
      %v368 = vadd.f32 %v271, %v367
      %v369 = vpop.f32.mrf.mxu0
      %v370 = vpop.f32.mrf.mxu0
      %v371 = vpop.f32.mrf.mxu0
      %372 = vdwg.mxu0
      %v373 = vmax.f32 %v368, 0.0
      %v374 = vpack.c.bf16 %v373, %v373
      %v381 = vunpack.c.l.b16 %v236
      %v382 = vunpack.c.h.b16 %v236
      %v383 = vunpack.c.l.b16 %v237
      %v384 = vunpack.c.l.b16 %v238
      %v385 = vunpack.c.h.b16 %v238
      %v386 = vunpack.c.l.b16 %v239
      %v387 = vunpack.c.l.b16 %v240
      %v388 = vunpack.c.h.b16 %v240
      %v389 = vunpack.c.l.b16 %v241
      %v390 = vpack.c.b16 %v384, %v381
      %v391 = vpack.c.b16 %v385, %v382
      %v392 = vpack.c.b16 %v386, %v383
      %v393 = vpack.c.b16 %v387, %v387
      %v394 = vpack.c.b16 %v388, %v388
      %v395 = vpack.c.b16 %v389, %v389
      %vm399 = vcmask 195584
      %v401 = vsel %vm399, %v374, 0
      %vm403 = vcmask 1043456
      %v405 = vsel %vm403, %v393, 0
      %v408 = vsel %vm403, %v394, 0
      %v411 = vsel %vm403, %v395, 0
      %413 = vmatprep.subr.bf16.mxu0 0
      %414 = vmatpush1.bf16.msra.mxu0 0
      %415 = vmatprep.subr.bf16.mxu0 0
      %416 = vmatpush1.bf16.msra.mxu0 0
      %417 = vmatprep.subr.bf16.mxu0 0
      %418 = vmatpush1.bf16.msra.mxu0 0
      %419 = vmatprep.subr.bf16.mxu0 0
      %420 = vmatpush1.bf16.msra.mxu0 0
      %421 = vmatprep.subr.bf16.mxu0 0
      %422 = vmatpush1.bf16.msra.mxu0 0
      %423 = vmatprep.subr.bf16.mxu0 0
      %424 = vmatpush1.bf16.msra.mxu0 0
      %425 = vmatprep.subr.bf16.mxu0 %v408
      %426 = vmatpush1.bf16.msra.mxu0 %v405
      %427 = vmatprep.subr.bf16.mxu0 %v391
      %428 = vmatpush1.bf16.msra.mxu0 %v390
      %429 = vmatprep.subr.bf16.mxu0 0
      %430 = vmatpush2.bf16.msra.mxu0 0
      %431 = vmatprep.subr.bf16.mxu0 0
      %432 = vmatpush2.bf16.msra.mxu0 0
      %433 = vmatprep.subr.bf16.mxu0 0
      %434 = vmatpush2.bf16.msra.mxu0 0
      %435 = vmatprep.subr.bf16.mxu0 0
      %436 = vmatpush2.bf16.msra.mxu0 0
      %437 = vmatprep.subr.bf16.mxu0 0
      %438 = vmatpush2.bf16.msra.mxu0 0
      %439 = vmatprep.subr.bf16.mxu0 0
      %440 = vmatpush2.bf16.msra.mxu0 0
      %441 = vmatprep.subr.bf16.mxu0 0
      %442 = vmatpush2.bf16.msra.mxu0 0
      %443 = vmatprep.subr.bf16.mxu0 0
      %444 = vmatpush2.bf16.msra.mxu0 0
      %445 = vmatprep.mubr.bf16.mxu0 0
      %446 = vmatmul.mubr.bf16.gmra.mxu0 %v401
      %v447 = vpop.f32.mrf.mxu0
      %v448 = vadd.f32 0.0, %v447
      %v449 = vpop.f32.mrf.mxu0
      %v450 = vadd.f32 0.0, %v449
      %v451 = vpop.f32.mrf.mxu0
      %v452 = vpop.f32.mrf.mxu0
      %453 = vdwg.mxu0
      %454 = vmatprep.subr.bf16.mxu0 0
      %455 = vmatpush1.bf16.msra.mxu0 0
      %456 = vmatprep.subr.bf16.mxu0 0
      %457 = vmatpush1.bf16.msra.mxu0 0
      %458 = vmatprep.subr.bf16.mxu0 0
      %459 = vmatpush1.bf16.msra.mxu0 0
      %460 = vmatprep.subr.bf16.mxu0 0
      %461 = vmatpush1.bf16.msra.mxu0 0
      %462 = vmatprep.subr.bf16.mxu0 0
      %463 = vmatpush1.bf16.msra.mxu0 0
      %464 = vmatprep.subr.bf16.mxu0 0
      %465 = vmatpush1.bf16.msra.mxu0 0
      %466 = vmatprep.subr.bf16.mxu0 0
      %467 = vmatpush1.bf16.msra.mxu0 %v411
      %468 = vmatprep.subr.bf16.mxu0 0
      %469 = vmatpush1.bf16.msra.mxu0 %v392
      %470 = vmatprep.subr.bf16.mxu0 0
      %471 = vmatpush2.bf16.msra.mxu0 0
      %472 = vmatprep.subr.bf16.mxu0 0
      %473 = vmatpush2.bf16.msra.mxu0 0
      %474 = vmatprep.subr.bf16.mxu0 0
      %475 = vmatpush2.bf16.msra.mxu0 0
      %476 = vmatprep.subr.bf16.mxu0 0
      %477 = vmatpush2.bf16.msra.mxu0 0
      %478 = vmatprep.subr.bf16.mxu0 0
      %479 = vmatpush2.bf16.msra.mxu0 0
      %480 = vmatprep.subr.bf16.mxu0 0
      %481 = vmatpush2.bf16.msra.mxu0 0
      %482 = vmatprep.subr.bf16.mxu0 0
      %483 = vmatpush2.bf16.msra.mxu0 0
      %484 = vmatprep.subr.bf16.mxu0 0
      %485 = vmatpush2.bf16.msra.mxu0 0
      %486 = vmatprep.mubr.bf16.mxu0 0
      %487 = vmatmul.mubr.bf16.gmra.mxu0 %v401
      %v488 = vpop.f32.mrf.mxu0
      %v489 = vadd.f32 0.0, %v488
      %v490 = vpop.f32.mrf.mxu0
      %v491 = vpop.f32.mrf.mxu0
      %v492 = vpop.f32.mrf.mxu0
      %493 = vdwg.mxu0
      %v500 = vunpack.c.l.b16 %v229
      %v501 = vunpack.c.h.b16 %v229
      %v502 = vunpack.c.l.b16 %v230
      %v503 = vunpack.c.l.b16 %v231
      %v504 = vunpack.c.h.b16 %v231
      %v505 = vunpack.c.l.b16 %v232
      %v506 = vunpack.c.l.b16 %v233
      %v507 = vunpack.c.h.b16 %v233
      %v508 = vunpack.c.l.b16 %v234
      %v509 = vpack.c.b16 %v503, %v500
      %v510 = vpack.c.b16 %v504, %v501
      %v511 = vpack.c.b16 %v505, %v502
      %v512 = vpack.c.b16 %v506, %v506
      %v513 = vpack.c.b16 %v507, %v507
      %v514 = vpack.c.b16 %v508, %v508
      %v519 = vsel %vm399, %v327, 0
      %v522 = vsel %vm403, %v512, 0
      %v525 = vsel %vm403, %v513, 0
      %v528 = vsel %vm403, %v514, 0
      %530 = vmatprep.subr.bf16.mxu0 0
      %531 = vmatpush1.bf16.msra.mxu0 0
      %532 = vmatprep.subr.bf16.mxu0 0
      %533 = vmatpush1.bf16.msra.mxu0 0
      %534 = vmatprep.subr.bf16.mxu0 0
      %535 = vmatpush1.bf16.msra.mxu0 0
      %536 = vmatprep.subr.bf16.mxu0 0
      %537 = vmatpush1.bf16.msra.mxu0 0
      %538 = vmatprep.subr.bf16.mxu0 0
      %539 = vmatpush1.bf16.msra.mxu0 0
      %540 = vmatprep.subr.bf16.mxu0 0
      %541 = vmatpush1.bf16.msra.mxu0 0
      %542 = vmatprep.subr.bf16.mxu0 %v525
      %543 = vmatpush1.bf16.msra.mxu0 %v522
      %544 = vmatprep.subr.bf16.mxu0 %v510
      %545 = vmatpush1.bf16.msra.mxu0 %v509
      %546 = vmatprep.subr.bf16.mxu0 0
      %547 = vmatpush2.bf16.msra.mxu0 0
      %548 = vmatprep.subr.bf16.mxu0 0
      %549 = vmatpush2.bf16.msra.mxu0 0
      %550 = vmatprep.subr.bf16.mxu0 0
      %551 = vmatpush2.bf16.msra.mxu0 0
      %552 = vmatprep.subr.bf16.mxu0 0
      %553 = vmatpush2.bf16.msra.mxu0 0
      %554 = vmatprep.subr.bf16.mxu0 0
      %555 = vmatpush2.bf16.msra.mxu0 0
      %556 = vmatprep.subr.bf16.mxu0 0
      %557 = vmatpush2.bf16.msra.mxu0 0
      %558 = vmatprep.subr.bf16.mxu0 0
      %559 = vmatpush2.bf16.msra.mxu0 0
      %560 = vmatprep.subr.bf16.mxu0 0
      %561 = vmatpush2.bf16.msra.mxu0 0
      %562 = vmatprep.mubr.bf16.mxu0 0
      %563 = vmatmul.mubr.bf16.gmra.mxu0 %v519
      %v564 = vpop.f32.mrf.mxu0
      %v565 = vadd.f32 %v448, %v564
      %v566 = vpop.f32.mrf.mxu0
      %v567 = vadd.f32 %v450, %v566
      %v568 = vpop.f32.mrf.mxu0
      %v569 = vpop.f32.mrf.mxu0
      %570 = vdwg.mxu0
      %571 = vmatprep.subr.bf16.mxu0 0
      %572 = vmatpush1.bf16.msra.mxu0 0
      %573 = vmatprep.subr.bf16.mxu0 0
      %574 = vmatpush1.bf16.msra.mxu0 0
      %575 = vmatprep.subr.bf16.mxu0 0
      %576 = vmatpush1.bf16.msra.mxu0 0
      %577 = vmatprep.subr.bf16.mxu0 0
      %578 = vmatpush1.bf16.msra.mxu0 0
      %579 = vmatprep.subr.bf16.mxu0 0
      %580 = vmatpush1.bf16.msra.mxu0 0
      %581 = vmatprep.subr.bf16.mxu0 0
      %582 = vmatpush1.bf16.msra.mxu0 0
      %583 = vmatprep.subr.bf16.mxu0 0
      %584 = vmatpush1.bf16.msra.mxu0 %v528
      %585 = vmatprep.subr.bf16.mxu0 0
      %586 = vmatpush1.bf16.msra.mxu0 %v511
      %587 = vmatprep.subr.bf16.mxu0 0
      %588 = vmatpush2.bf16.msra.mxu0 0
      %589 = vmatprep.subr.bf16.mxu0 0
      %590 = vmatpush2.bf16.msra.mxu0 0
      %591 = vmatprep.subr.bf16.mxu0 0
      %592 = vmatpush2.bf16.msra.mxu0 0
      %593 = vmatprep.subr.bf16.mxu0 0
      %594 = vmatpush2.bf16.msra.mxu0 0
      %595 = vmatprep.subr.bf16.mxu0 0
      %596 = vmatpush2.bf16.msra.mxu0 0
      %597 = vmatprep.subr.bf16.mxu0 0
      %598 = vmatpush2.bf16.msra.mxu0 0
      %599 = vmatprep.subr.bf16.mxu0 0
      %600 = vmatpush2.bf16.msra.mxu0 0
      %601 = vmatprep.subr.bf16.mxu0 0
      %602 = vmatpush2.bf16.msra.mxu0 0
      %603 = vmatprep.mubr.bf16.mxu0 0
      %604 = vmatmul.mubr.bf16.gmra.mxu0 %v519
      %v605 = vpop.f32.mrf.mxu0
      %v606 = vadd.f32 %v489, %v605
      %v607 = vpop.f32.mrf.mxu0
      %v608 = vpop.f32.mrf.mxu0
      %v609 = vpop.f32.mrf.mxu0
      %610 = vdwg.mxu0
      %s611 = scalar_lea.vmem %s219, 8
      %v612 = vld [vmem:[%s611] sm:$0xf]
      %v614 = vsel %vm278, %v612, 0
      %616 = vmatprep.subr.bf16.mxu0 0
      %617 = vmatpush1.bf16.msra.mxu0 0
      %618 = vmatprep.subr.bf16.mxu0 0
      %619 = vmatpush1.bf16.msra.mxu0 0
      %620 = vmatprep.subr.bf16.mxu0 0
      %621 = vmatpush1.bf16.msra.mxu0 0
      %622 = vmatprep.subr.bf16.mxu0 0
      %623 = vmatpush1.bf16.msra.mxu0 0
      %624 = vmatprep.subr.bf16.mxu0 0
      %625 = vmatpush1.bf16.msra.mxu0 0
      %626 = vmatprep.subr.bf16.mxu0 0
      %627 = vmatpush1.bf16.msra.mxu0 0
      %628 = vmatprep.subr.bf16.mxu0 0
      %629 = vmatpush1.bf16.msra.mxu0 0
      %630 = vmatprep.subr.bf16.mxu0 0
      %631 = vmatpush1.bf16.msra.mxu0 %v284
      %632 = vmatprep.subr.bf16.mxu0 0
      %633 = vmatpush2.bf16.msra.mxu0 0
      %634 = vmatprep.subr.bf16.mxu0 0
      %635 = vmatpush2.bf16.msra.mxu0 0
      %636 = vmatprep.subr.bf16.mxu0 0
      %637 = vmatpush2.bf16.msra.mxu0 0
      %638 = vmatprep.subr.bf16.mxu0 0
      %639 = vmatpush2.bf16.msra.mxu0 0
      %640 = vmatprep.subr.bf16.mxu0 0
      %641 = vmatpush2.bf16.msra.mxu0 0
      %642 = vmatprep.subr.bf16.mxu0 0
      %643 = vmatpush2.bf16.msra.mxu0 0
      %644 = vmatprep.subr.bf16.mxu0 0
      %645 = vmatpush2.bf16.msra.mxu0 0
      %646 = vmatprep.subr.bf16.mxu0 0
      %647 = vmatpush2.bf16.msra.mxu0 0
      %648 = vmatprep.mubr.bf16.mxu0 0
      %649 = vmatmul.mubr.bf16.gmra.mxu0 %v614
      %v650 = vpop.f32.mrf.mxu0
      %v651 = vadd.f32 %v271, %v650
      %v652 = vpop.f32.mrf.mxu0
      %v653 = vpop.f32.mrf.mxu0
      %v654 = vpop.f32.mrf.mxu0
      %655 = vdwg.mxu0
      %v656 = vmax.f32 %v651, 0.0
      %v657 = vpack.c.bf16 %v656, %v656
      %v664 = vunpack.c.l.b16 %v243
      %v665 = vunpack.c.h.b16 %v243
      %v666 = vunpack.c.l.b16 %v244
      %v667 = vunpack.c.l.b16 %v245
      %v668 = vunpack.c.h.b16 %v245
      %v669 = vunpack.c.l.b16 %v246
      %v670 = vunpack.c.l.b16 %v247
      %v671 = vunpack.c.h.b16 %v247
      %v672 = vunpack.c.l.b16 %v248
      %v673 = vpack.c.b16 %v667, %v664
      %v674 = vpack.c.b16 %v668, %v665
      %v675 = vpack.c.b16 %v669, %v666
      %v676 = vpack.c.b16 %v670, %v670
      %v677 = vpack.c.b16 %v671, %v671
      %v678 = vpack.c.b16 %v672, %v672
      %v683 = vsel %vm399, %v657, 0
      %v686 = vsel %vm403, %v676, 0
      %v689 = vsel %vm403, %v677, 0
      %v692 = vsel %vm403, %v678, 0
      %694 = vmatprep.subr.bf16.mxu0 0
      %695 = vmatpush1.bf16.msra.mxu0 0
      %696 = vmatprep.subr.bf16.mxu0 0
      %697 = vmatpush1.bf16.msra.mxu0 0
      %698 = vmatprep.subr.bf16.mxu0 0
      %699 = vmatpush1.bf16.msra.mxu0 0
      %700 = vmatprep.subr.bf16.mxu0 0
      %701 = vmatpush1.bf16.msra.mxu0 0
      %702 = vmatprep.subr.bf16.mxu0 0
      %703 = vmatpush1.bf16.msra.mxu0 0
      %704 = vmatprep.subr.bf16.mxu0 0
      %705 = vmatpush1.bf16.msra.mxu0 0
      %706 = vmatprep.subr.bf16.mxu0 %v689
      %707 = vmatpush1.bf16.msra.mxu0 %v686
      %708 = vmatprep.subr.bf16.mxu0 %v674
      %709 = vmatpush1.bf16.msra.mxu0 %v673
      %710 = vmatprep.subr.bf16.mxu0 0
      %711 = vmatpush2.bf16.msra.mxu0 0
      %712 = vmatprep.subr.bf16.mxu0 0
      %713 = vmatpush2.bf16.msra.mxu0 0
      %714 = vmatprep.subr.bf16.mxu0 0
      %715 = vmatpush2.bf16.msra.mxu0 0
      %716 = vmatprep.subr.bf16.mxu0 0
      %717 = vmatpush2.bf16.msra.mxu0 0
      %718 = vmatprep.subr.bf16.mxu0 0
      %719 = vmatpush2.bf16.msra.mxu0 0
      %720 = vmatprep.subr.bf16.mxu0 0
      %721 = vmatpush2.bf16.msra.mxu0 0
      %722 = vmatprep.subr.bf16.mxu0 0
      %723 = vmatpush2.bf16.msra.mxu0 0
      %724 = vmatprep.subr.bf16.mxu0 0
      %725 = vmatpush2.bf16.msra.mxu0 0
      %726 = vmatprep.mubr.bf16.mxu0 0
      %727 = vmatmul.mubr.bf16.gmra.mxu0 %v683
      %v728 = vpop.f32.mrf.mxu0
      %v729 = vadd.f32 0.0, %v728
      %v730 = vpop.f32.mrf.mxu0
      %v731 = vadd.f32 0.0, %v730
      %v732 = vpop.f32.mrf.mxu0
      %v733 = vpop.f32.mrf.mxu0
      %734 = vdwg.mxu0
      %735 = vmatprep.subr.bf16.mxu0 0
      %736 = vmatpush1.bf16.msra.mxu0 0
      %737 = vmatprep.subr.bf16.mxu0 0
      %738 = vmatpush1.bf16.msra.mxu0 0
      %739 = vmatprep.subr.bf16.mxu0 0
      %740 = vmatpush1.bf16.msra.mxu0 0
      %741 = vmatprep.subr.bf16.mxu0 0
      %742 = vmatpush1.bf16.msra.mxu0 0
      %743 = vmatprep.subr.bf16.mxu0 0
      %744 = vmatpush1.bf16.msra.mxu0 0
      %745 = vmatprep.subr.bf16.mxu0 0
      %746 = vmatpush1.bf16.msra.mxu0 0
      %747 = vmatprep.subr.bf16.mxu0 0
      %748 = vmatpush1.bf16.msra.mxu0 %v692
      %749 = vmatprep.subr.bf16.mxu0 0
      %750 = vmatpush1.bf16.msra.mxu0 %v675
      %751 = vmatprep.subr.bf16.mxu0 0
      %752 = vmatpush2.bf16.msra.mxu0 0
      %753 = vmatprep.subr.bf16.mxu0 0
      %754 = vmatpush2.bf16.msra.mxu0 0
      %755 = vmatprep.subr.bf16.mxu0 0
      %756 = vmatpush2.bf16.msra.mxu0 0
      %757 = vmatprep.subr.bf16.mxu0 0
      %758 = vmatpush2.bf16.msra.mxu0 0
      %759 = vmatprep.subr.bf16.mxu0 0
      %760 = vmatpush2.bf16.msra.mxu0 0
      %761 = vmatprep.subr.bf16.mxu0 0
      %762 = vmatpush2.bf16.msra.mxu0 0
      %763 = vmatprep.subr.bf16.mxu0 0
      %764 = vmatpush2.bf16.msra.mxu0 0
      %765 = vmatprep.subr.bf16.mxu0 0
      %766 = vmatpush2.bf16.msra.mxu0 0
      %767 = vmatprep.mubr.bf16.mxu0 0
      %768 = vmatmul.mubr.bf16.gmra.mxu0 %v683
      %v769 = vpop.f32.mrf.mxu0
      %v770 = vadd.f32 0.0, %v769
      %v771 = vpop.f32.mrf.mxu0
      %v772 = vpop.f32.mrf.mxu0
      %v773 = vpop.f32.mrf.mxu0
      %774 = vdwg.mxu0
      %v775 = vadd.f32 %v565, %v729
      %v776 = vadd.f32 %v567, %v731
      %v777 = vadd.f32 %v606, %v770
      %v778 = vadd.f32 %v775, %v254
      %v779 = vadd.f32 %v776, %v258
      %v780 = vadd.f32 %v777, %v262
      %v781 = vmax.f32 %v778, 0.0
      %v782 = vmax.f32 %v779, 0.0
      %v783 = vmax.f32 %v780, 0.0
      %784 = vst [vmem:[%s224] sm:$0x7f] %v781
      %785 = vst [vmem:[%s224 + $0x8] sm:$0x7f] %v782
      %786 = vst [vmem:[%s224 + $0x10] sm:$0x7f] %v783
      %v787 = vld [vmem:[%s611] sm:$0xf]
      %v789 = vsel %vm278, %v787, 0
      %791 = vmatprep.subr.bf16.mxu0 0
      %792 = vmatpush1.bf16.msra.mxu0 0
      %793 = vmatprep.subr.bf16.mxu0 0
      %794 = vmatpush1.bf16.msra.mxu0 0
      %795 = vmatprep.subr.bf16.mxu0 0
      %796 = vmatpush1.bf16.msra.mxu0 0
      %797 = vmatprep.subr.bf16.mxu0 0
      %798 = vmatpush1.bf16.msra.mxu0 0
      %799 = vmatprep.subr.bf16.mxu0 0
      %800 = vmatpush1.bf16.msra.mxu0 0
      %801 = vmatprep.subr.bf16.mxu0 0
      %802 = vmatpush1.bf16.msra.mxu0 0
      %803 = vmatprep.subr.bf16.mxu0 0
      %804 = vmatpush1.bf16.msra.mxu0 0
      %805 = vmatprep.subr.bf16.mxu0 0
      %806 = vmatpush1.bf16.msra.mxu0 %v284
      %807 = vmatprep.subr.bf16.mxu0 0
      %808 = vmatpush2.bf16.msra.mxu0 0
      %809 = vmatprep.subr.bf16.mxu0 0
      %810 = vmatpush2.bf16.msra.mxu0 0
      %811 = vmatprep.subr.bf16.mxu0 0
      %812 = vmatpush2.bf16.msra.mxu0 0
      %813 = vmatprep.subr.bf16.mxu0 0
      %814 = vmatpush2.bf16.msra.mxu0 0
      %815 = vmatprep.subr.bf16.mxu0 0
      %816 = vmatpush2.bf16.msra.mxu0 0
      %817 = vmatprep.subr.bf16.mxu0 0
      %818 = vmatpush2.bf16.msra.mxu0 0
      %819 = vmatprep.subr.bf16.mxu0 0
      %820 = vmatpush2.bf16.msra.mxu0 0
      %821 = vmatprep.subr.bf16.mxu0 0
      %822 = vmatpush2.bf16.msra.mxu0 0
      %823 = vmatprep.mubr.bf16.mxu0 0
      %824 = vmatmul.mubr.bf16.gmra.mxu0 %v789
      %v825 = vpop.f32.mrf.mxu0
      %v826 = vadd.f32 %v271, %v825
      %v827 = vpop.f32.mrf.mxu0
      %v828 = vpop.f32.mrf.mxu0
      %v829 = vpop.f32.mrf.mxu0
      %830 = vdwg.mxu0
      %v831 = vmax.f32 %v826, 0.0
      %v832 = vpack.c.bf16 %v831, %v831
      %s833 = scalar_lea.vmem %s219, 12
      %v834 = vld [vmem:[%s833] sm:$0xf]
      %v836 = vsel %vm278, %v834, 0
      %838 = vmatprep.subr.bf16.mxu0 0
      %839 = vmatpush1.bf16.msra.mxu0 0
      %840 = vmatprep.subr.bf16.mxu0 0
      %841 = vmatpush1.bf16.msra.mxu0 0
      %842 = vmatprep.subr.bf16.mxu0 0
      %843 = vmatpush1.bf16.msra.mxu0 0
      %844 = vmatprep.subr.bf16.mxu0 0
      %845 = vmatpush1.bf16.msra.mxu0 0
      %846 = vmatprep.subr.bf16.mxu0 0
      %847 = vmatpush1.bf16.msra.mxu0 0
      %848 = vmatprep.subr.bf16.mxu0 0
      %849 = vmatpush1.bf16.msra.mxu0 0
      %850 = vmatprep.subr.bf16.mxu0 0
      %851 = vmatpush1.bf16.msra.mxu0 0
      %852 = vmatprep.subr.bf16.mxu0 0
      %853 = vmatpush1.bf16.msra.mxu0 %v284
      %854 = vmatprep.subr.bf16.mxu0 0
      %855 = vmatpush2.bf16.msra.mxu0 0
      %856 = vmatprep.subr.bf16.mxu0 0
      %857 = vmatpush2.bf16.msra.mxu0 0
      %858 = vmatprep.subr.bf16.mxu0 0
      %859 = vmatpush2.bf16.msra.mxu0 0
      %860 = vmatprep.subr.bf16.mxu0 0
      %861 = vmatpush2.bf16.msra.mxu0 0
      %862 = vmatprep.subr.bf16.mxu0 0
      %863 = vmatpush2.bf16.msra.mxu0 0
      %864 = vmatprep.subr.bf16.mxu0 0
      %865 = vmatpush2.bf16.msra.mxu0 0
      %866 = vmatprep.subr.bf16.mxu0 0
      %867 = vmatpush2.bf16.msra.mxu0 0
      %868 = vmatprep.subr.bf16.mxu0 0
      %869 = vmatpush2.bf16.msra.mxu0 0
      %870 = vmatprep.mubr.bf16.mxu0 0
      %871 = vmatmul.mubr.bf16.gmra.mxu0 %v836
      %v872 = vpop.f32.mrf.mxu0
      %v873 = vadd.f32 %v271, %v872
      %v874 = vpop.f32.mrf.mxu0
      %v875 = vpop.f32.mrf.mxu0
      %v876 = vpop.f32.mrf.mxu0
      %877 = vdwg.mxu0
      %v878 = vmax.f32 %v873, 0.0
      %v879 = vpack.c.bf16 %v878, %v878
      %v881 = vsel %vm399, %v879, 0
      %883 = vmatprep.subr.bf16.mxu0 0
      %884 = vmatpush1.bf16.msra.mxu0 0
      %885 = vmatprep.subr.bf16.mxu0 0
      %886 = vmatpush1.bf16.msra.mxu0 0
      %887 = vmatprep.subr.bf16.mxu0 0
      %888 = vmatpush1.bf16.msra.mxu0 0
      %889 = vmatprep.subr.bf16.mxu0 0
      %890 = vmatpush1.bf16.msra.mxu0 0
      %891 = vmatprep.subr.bf16.mxu0 0
      %892 = vmatpush1.bf16.msra.mxu0 0
      %893 = vmatprep.subr.bf16.mxu0 0
      %894 = vmatpush1.bf16.msra.mxu0 0
      %895 = vmatprep.subr.bf16.mxu0 %v408
      %896 = vmatpush1.bf16.msra.mxu0 %v405
      %897 = vmatprep.subr.bf16.mxu0 %v391
      %898 = vmatpush1.bf16.msra.mxu0 %v390
      %899 = vmatprep.subr.bf16.mxu0 0
      %900 = vmatpush2.bf16.msra.mxu0 0
      %901 = vmatprep.subr.bf16.mxu0 0
      %902 = vmatpush2.bf16.msra.mxu0 0
      %903 = vmatprep.subr.bf16.mxu0 0
      %904 = vmatpush2.bf16.msra.mxu0 0
      %905 = vmatprep.subr.bf16.mxu0 0
      %906 = vmatpush2.bf16.msra.mxu0 0
      %907 = vmatprep.subr.bf16.mxu0 0
      %908 = vmatpush2.bf16.msra.mxu0 0
      %909 = vmatprep.subr.bf16.mxu0 0
      %910 = vmatpush2.bf16.msra.mxu0 0
      %911 = vmatprep.subr.bf16.mxu0 0
      %912 = vmatpush2.bf16.msra.mxu0 0
      %913 = vmatprep.subr.bf16.mxu0 0
      %914 = vmatpush2.bf16.msra.mxu0 0
      %915 = vmatprep.mubr.bf16.mxu0 0
      %916 = vmatmul.mubr.bf16.gmra.mxu0 %v881
      %v917 = vpop.f32.mrf.mxu0
      %v918 = vadd.f32 0.0, %v917
      %v919 = vpop.f32.mrf.mxu0
      %v920 = vadd.f32 0.0, %v919
      %v921 = vpop.f32.mrf.mxu0
      %v922 = vpop.f32.mrf.mxu0
      %923 = vdwg.mxu0
      %924 = vmatprep.subr.bf16.mxu0 0
      %925 = vmatpush1.bf16.msra.mxu0 0
      %926 = vmatprep.subr.bf16.mxu0 0
      %927 = vmatpush1.bf16.msra.mxu0 0
      %928 = vmatprep.subr.bf16.mxu0 0
      %929 = vmatpush1.bf16.msra.mxu0 0
      %930 = vmatprep.subr.bf16.mxu0 0
      %931 = vmatpush1.bf16.msra.mxu0 0
      %932 = vmatprep.subr.bf16.mxu0 0
      %933 = vmatpush1.bf16.msra.mxu0 0
      %934 = vmatprep.subr.bf16.mxu0 0
      %935 = vmatpush1.bf16.msra.mxu0 0
      %936 = vmatprep.subr.bf16.mxu0 0
      %937 = vmatpush1.bf16.msra.mxu0 %v411
      %938 = vmatprep.subr.bf16.mxu0 0
      %939 = vmatpush1.bf16.msra.mxu0 %v392
      %940 = vmatprep.subr.bf16.mxu0 0
      %941 = vmatpush2.bf16.msra.mxu0 0
      %942 = vmatprep.subr.bf16.mxu0 0
      %943 = vmatpush2.bf16.msra.mxu0 0
      %944 = vmatprep.subr.bf16.mxu0 0
      %945 = vmatpush2.bf16.msra.mxu0 0
      %946 = vmatprep.subr.bf16.mxu0 0
      %947 = vmatpush2.bf16.msra.mxu0 0
      %948 = vmatprep.subr.bf16.mxu0 0
      %949 = vmatpush2.bf16.msra.mxu0 0
      %950 = vmatprep.subr.bf16.mxu0 0
      %951 = vmatpush2.bf16.msra.mxu0 0
      %952 = vmatprep.subr.bf16.mxu0 0
      %953 = vmatpush2.bf16.msra.mxu0 0
      %954 = vmatprep.subr.bf16.mxu0 0
      %955 = vmatpush2.bf16.msra.mxu0 0
      %956 = vmatprep.mubr.bf16.mxu0 0
      %957 = vmatmul.mubr.bf16.gmra.mxu0 %v881
      %v958 = vpop.f32.mrf.mxu0
      %v959 = vadd.f32 0.0, %v958
      %v960 = vpop.f32.mrf.mxu0
      %v961 = vpop.f32.mrf.mxu0
      %v962 = vpop.f32.mrf.mxu0
      %963 = vdwg.mxu0
      %v965 = vsel %vm399, %v832, 0
      %967 = vmatprep.subr.bf16.mxu0 0
      %968 = vmatpush1.bf16.msra.mxu0 0
      %969 = vmatprep.subr.bf16.mxu0 0
      %970 = vmatpush1.bf16.msra.mxu0 0
      %971 = vmatprep.subr.bf16.mxu0 0
      %972 = vmatpush1.bf16.msra.mxu0 0
      %973 = vmatprep.subr.bf16.mxu0 0
      %974 = vmatpush1.bf16.msra.mxu0 0
      %975 = vmatprep.subr.bf16.mxu0 0
      %976 = vmatpush1.bf16.msra.mxu0 0
      %977 = vmatprep.subr.bf16.mxu0 0
      %978 = vmatpush1.bf16.msra.mxu0 0
      %979 = vmatprep.subr.bf16.mxu0 %v525
      %980 = vmatpush1.bf16.msra.mxu0 %v522
      %981 = vmatprep.subr.bf16.mxu0 %v510
      %982 = vmatpush1.bf16.msra.mxu0 %v509
      %983 = vmatprep.subr.bf16.mxu0 0
      %984 = vmatpush2.bf16.msra.mxu0 0
      %985 = vmatprep.subr.bf16.mxu0 0
      %986 = vmatpush2.bf16.msra.mxu0 0
      %987 = vmatprep.subr.bf16.mxu0 0
      %988 = vmatpush2.bf16.msra.mxu0 0
      %989 = vmatprep.subr.bf16.mxu0 0
      %990 = vmatpush2.bf16.msra.mxu0 0
      %991 = vmatprep.subr.bf16.mxu0 0
      %992 = vmatpush2.bf16.msra.mxu0 0
      %993 = vmatprep.subr.bf16.mxu0 0
      %994 = vmatpush2.bf16.msra.mxu0 0
      %995 = vmatprep.subr.bf16.mxu0 0
      %996 = vmatpush2.bf16.msra.mxu0 0
      %997 = vmatprep.subr.bf16.mxu0 0
      %998 = vmatpush2.bf16.msra.mxu0 0
      %999 = vmatprep.mubr.bf16.mxu0 0
      %1000 = vmatmul.mubr.bf16.gmra.mxu0 %v965
      %v1001 = vpop.f32.mrf.mxu0
      %v1002 = vadd.f32 %v918, %v1001
      %v1003 = vpop.f32.mrf.mxu0
      %v1004 = vadd.f32 %v920, %v1003
      %v1005 = vpop.f32.mrf.mxu0
      %v1006 = vpop.f32.mrf.mxu0
      %1007 = vdwg.mxu0
      %1008 = vmatprep.subr.bf16.mxu0 0
      %1009 = vmatpush1.bf16.msra.mxu0 0
      %1010 = vmatprep.subr.bf16.mxu0 0
      %1011 = vmatpush1.bf16.msra.mxu0 0
      %1012 = vmatprep.subr.bf16.mxu0 0
      %1013 = vmatpush1.bf16.msra.mxu0 0
      %1014 = vmatprep.subr.bf16.mxu0 0
      %1015 = vmatpush1.bf16.msra.mxu0 0
      %1016 = vmatprep.subr.bf16.mxu0 0
      %1017 = vmatpush1.bf16.msra.mxu0 0
      %1018 = vmatprep.subr.bf16.mxu0 0
      %1019 = vmatpush1.bf16.msra.mxu0 0
      %1020 = vmatprep.subr.bf16.mxu0 0
      %1021 = vmatpush1.bf16.msra.mxu0 %v528
      %1022 = vmatprep.subr.bf16.mxu0 0
      %1023 = vmatpush1.bf16.msra.mxu0 %v511
      %1024 = vmatprep.subr.bf16.mxu0 0
      %1025 = vmatpush2.bf16.msra.mxu0 0
      %1026 = vmatprep.subr.bf16.mxu0 0
      %1027 = vmatpush2.bf16.msra.mxu0 0
      %1028 = vmatprep.subr.bf16.mxu0 0
      %1029 = vmatpush2.bf16.msra.mxu0 0
      %1030 = vmatprep.subr.bf16.mxu0 0
      %1031 = vmatpush2.bf16.msra.mxu0 0
      %1032 = vmatprep.subr.bf16.mxu0 0
      %1033 = vmatpush2.bf16.msra.mxu0 0
      %1034 = vmatprep.subr.bf16.mxu0 0
      %1035 = vmatpush2.bf16.msra.mxu0 0
      %1036 = vmatprep.subr.bf16.mxu0 0
      %1037 = vmatpush2.bf16.msra.mxu0 0
      %1038 = vmatprep.subr.bf16.mxu0 0
      %1039 = vmatpush2.bf16.msra.mxu0 0
      %1040 = vmatprep.mubr.bf16.mxu0 0
      %1041 = vmatmul.mubr.bf16.gmra.mxu0 %v965
      %v1042 = vpop.f32.mrf.mxu0
      %v1043 = vadd.f32 %v959, %v1042
      %v1044 = vpop.f32.mrf.mxu0
      %v1045 = vpop.f32.mrf.mxu0
      %v1046 = vpop.f32.mrf.mxu0
      %1047 = vdwg.mxu0
      %s1048 = scalar_lea.vmem %s219, 16
      %v1049 = vld [vmem:[%s1048] sm:$0xf]
      %v1051 = vsel %vm278, %v1049, 0
      %1053 = vmatprep.subr.bf16.mxu0 0
      %1054 = vmatpush1.bf16.msra.mxu0 0
      %1055 = vmatprep.subr.bf16.mxu0 0
      %1056 = vmatpush1.bf16.msra.mxu0 0
      %1057 = vmatprep.subr.bf16.mxu0 0
      %1058 = vmatpush1.bf16.msra.mxu0 0
      %1059 = vmatprep.subr.bf16.mxu0 0
      %1060 = vmatpush1.bf16.msra.mxu0 0
      %1061 = vmatprep.subr.bf16.mxu0 0
      %1062 = vmatpush1.bf16.msra.mxu0 0
      %1063 = vmatprep.subr.bf16.mxu0 0
      %1064 = vmatpush1.bf16.msra.mxu0 0
      %1065 = vmatprep.subr.bf16.mxu0 0
      %1066 = vmatpush1.bf16.msra.mxu0 0
      %1067 = vmatprep.subr.bf16.mxu0 0
      %1068 = vmatpush1.bf16.msra.mxu0 %v284
      %1069 = vmatprep.subr.bf16.mxu0 0
      %1070 = vmatpush2.bf16.msra.mxu0 0
      %1071 = vmatprep.subr.bf16.mxu0 0
      %1072 = vmatpush2.bf16.msra.mxu0 0
      %1073 = vmatprep.subr.bf16.mxu0 0
      %1074 = vmatpush2.bf16.msra.mxu0 0
      %1075 = vmatprep.subr.bf16.mxu0 0
      %1076 = vmatpush2.bf16.msra.mxu0 0
      %1077 = vmatprep.subr.bf16.mxu0 0
      %1078 = vmatpush2.bf16.msra.mxu0 0
      %1079 = vmatprep.subr.bf16.mxu0 0
      %1080 = vmatpush2.bf16.msra.mxu0 0
      %1081 = vmatprep.subr.bf16.mxu0 0
      %1082 = vmatpush2.bf16.msra.mxu0 0
      %1083 = vmatprep.subr.bf16.mxu0 0
      %1084 = vmatpush2.bf16.msra.mxu0 0
      %1085 = vmatprep.mubr.bf16.mxu0 0
      %1086 = vmatmul.mubr.bf16.gmra.mxu0 %v1051
      %v1087 = vpop.f32.mrf.mxu0
      %v1088 = vadd.f32 %v271, %v1087
      %v1089 = vpop.f32.mrf.mxu0
      %v1090 = vpop.f32.mrf.mxu0
      %v1091 = vpop.f32.mrf.mxu0
      %1092 = vdwg.mxu0
      %v1093 = vmax.f32 %v1088, 0.0
      %v1094 = vpack.c.bf16 %v1093, %v1093
      %v1096 = vsel %vm399, %v1094, 0
      %1098 = vmatprep.subr.bf16.mxu0 0
      %1099 = vmatpush1.bf16.msra.mxu0 0
      %1100 = vmatprep.subr.bf16.mxu0 0
      %1101 = vmatpush1.bf16.msra.mxu0 0
      %1102 = vmatprep.subr.bf16.mxu0 0
      %1103 = vmatpush1.bf16.msra.mxu0 0
      %1104 = vmatprep.subr.bf16.mxu0 0
      %1105 = vmatpush1.bf16.msra.mxu0 0
      %1106 = vmatprep.subr.bf16.mxu0 0
      %1107 = vmatpush1.bf16.msra.mxu0 0
      %1108 = vmatprep.subr.bf16.mxu0 0
      %1109 = vmatpush1.bf16.msra.mxu0 0
      %1110 = vmatprep.subr.bf16.mxu0 %v689
      %1111 = vmatpush1.bf16.msra.mxu0 %v686
      %1112 = vmatprep.subr.bf16.mxu0 %v674
      %1113 = vmatpush1.bf16.msra.mxu0 %v673
      %1114 = vmatprep.subr.bf16.mxu0 0
      %1115 = vmatpush2.bf16.msra.mxu0 0
      %1116 = vmatprep.subr.bf16.mxu0 0
      %1117 = vmatpush2.bf16.msra.mxu0 0
      %1118 = vmatprep.subr.bf16.mxu0 0
      %1119 = vmatpush2.bf16.msra.mxu0 0
      %1120 = vmatprep.subr.bf16.mxu0 0
      %1121 = vmatpush2.bf16.msra.mxu0 0
      %1122 = vmatprep.subr.bf16.mxu0 0
      %1123 = vmatpush2.bf16.msra.mxu0 0
      %1124 = vmatprep.subr.bf16.mxu0 0
      %1125 = vmatpush2.bf16.msra.mxu0 0
      %1126 = vmatprep.subr.bf16.mxu0 0
      %1127 = vmatpush2.bf16.msra.mxu0 0
      %1128 = vmatprep.subr.bf16.mxu0 0
      %1129 = vmatpush2.bf16.msra.mxu0 0
      %1130 = vmatprep.mubr.bf16.mxu0 0
      %1131 = vmatmul.mubr.bf16.gmra.mxu0 %v1096
      %v1132 = vpop.f32.mrf.mxu0
      %v1133 = vadd.f32 0.0, %v1132
      %v1134 = vpop.f32.mrf.mxu0
      %v1135 = vadd.f32 0.0, %v1134
      %v1136 = vpop.f32.mrf.mxu0
      %v1137 = vpop.f32.mrf.mxu0
      %1138 = vdwg.mxu0
      %1139 = vmatprep.subr.bf16.mxu0 0
      %1140 = vmatpush1.bf16.msra.mxu0 0
      %1141 = vmatprep.subr.bf16.mxu0 0
      %1142 = vmatpush1.bf16.msra.mxu0 0
      %1143 = vmatprep.subr.bf16.mxu0 0
      %1144 = vmatpush1.bf16.msra.mxu0 0
      %1145 = vmatprep.subr.bf16.mxu0 0
      %1146 = vmatpush1.bf16.msra.mxu0 0
      %1147 = vmatprep.subr.bf16.mxu0 0
      %1148 = vmatpush1.bf16.msra.mxu0 0
      %1149 = vmatprep.subr.bf16.mxu0 0
      %1150 = vmatpush1.bf16.msra.mxu0 0
      %1151 = vmatprep.subr.bf16.mxu0 0
      %1152 = vmatpush1.bf16.msra.mxu0 %v692
      %1153 = vmatprep.subr.bf16.mxu0 0
      %1154 = vmatpush1.bf16.msra.mxu0 %v675
      %1155 = vmatprep.subr.bf16.mxu0 0
      %1156 = vmatpush2.bf16.msra.mxu0 0
      %1157 = vmatprep.subr.bf16.mxu0 0
      %1158 = vmatpush2.bf16.msra.mxu0 0
      %1159 = vmatprep.subr.bf16.mxu0 0
      %1160 = vmatpush2.bf16.msra.mxu0 0
      %1161 = vmatprep.subr.bf16.mxu0 0
      %1162 = vmatpush2.bf16.msra.mxu0 0
      %1163 = vmatprep.subr.bf16.mxu0 0
      %1164 = vmatpush2.bf16.msra.mxu0 0
      %1165 = vmatprep.subr.bf16.mxu0 0
      %1166 = vmatpush2.bf16.msra.mxu0 0
      %1167 = vmatprep.subr.bf16.mxu0 0
      %1168 = vmatpush2.bf16.msra.mxu0 0
      %1169 = vmatprep.subr.bf16.mxu0 0
      %1170 = vmatpush2.bf16.msra.mxu0 0
      %1171 = vmatprep.mubr.bf16.mxu0 0
      %1172 = vmatmul.mubr.bf16.gmra.mxu0 %v1096
      %v1173 = vpop.f32.mrf.mxu0
      %v1174 = vadd.f32 0.0, %v1173
      %v1175 = vpop.f32.mrf.mxu0
      %v1176 = vpop.f32.mrf.mxu0
      %v1177 = vpop.f32.mrf.mxu0
      %1178 = vdwg.mxu0
      %v1179 = vadd.f32 %v1002, %v1133
      %v1180 = vadd.f32 %v1004, %v1135
      %v1181 = vadd.f32 %v1043, %v1174
      %v1182 = vadd.f32 %v1179, %v254
      %v1183 = vadd.f32 %v1180, %v258
      %v1184 = vadd.f32 %v1181, %v262
      %v1185 = vmax.f32 %v1182, 0.0
      %v1186 = vmax.f32 %v1183, 0.0
      %v1187 = vmax.f32 %v1184, 0.0
      %s1188 = scalar_lea.vmem %s224, 24
      %1189 = vst [vmem:[%s1188] sm:$0x7f] %v1185
      %1190 = vst [vmem:[%s1188 + $0x8] sm:$0x7f] %v1186
      %1191 = vst [vmem:[%s1188 + $0x10] sm:$0x7f] %v1187
      %v1192 = vld [vmem:[%s1048] sm:$0xf]
      %v1194 = vsel %vm278, %v1192, 0
      %1196 = vmatprep.subr.bf16.mxu0 0
      %1197 = vmatpush1.bf16.msra.mxu0 0
      %1198 = vmatprep.subr.bf16.mxu0 0
      %1199 = vmatpush1.bf16.msra.mxu0 0
      %1200 = vmatprep.subr.bf16.mxu0 0
      %1201 = vmatpush1.bf16.msra.mxu0 0
      %1202 = vmatprep.subr.bf16.mxu0 0
      %1203 = vmatpush1.bf16.msra.mxu0 0
      %1204 = vmatprep.subr.bf16.mxu0 0
      %1205 = vmatpush1.bf16.msra.mxu0 0
      %1206 = vmatprep.subr.bf16.mxu0 0
      %1207 = vmatpush1.bf16.msra.mxu0 0
      %1208 = vmatprep.subr.bf16.mxu0 0
      %1209 = vmatpush1.bf16.msra.mxu0 0
      %1210 = vmatprep.subr.bf16.mxu0 0
      %1211 = vmatpush1.bf16.msra.mxu0 %v284
      %1212 = vmatprep.subr.bf16.mxu0 0
      %1213 = vmatpush2.bf16.msra.mxu0 0
      %1214 = vmatprep.subr.bf16.mxu0 0
      %1215 = vmatpush2.bf16.msra.mxu0 0
      %1216 = vmatprep.subr.bf16.mxu0 0
      %1217 = vmatpush2.bf16.msra.mxu0 0
      %1218 = vmatprep.subr.bf16.mxu0 0
      %1219 = vmatpush2.bf16.msra.mxu0 0
      %1220 = vmatprep.subr.bf16.mxu0 0
      %1221 = vmatpush2.bf16.msra.mxu0 0
      %1222 = vmatprep.subr.bf16.mxu0 0
      %1223 = vmatpush2.bf16.msra.mxu0 0
      %1224 = vmatprep.subr.bf16.mxu0 0
      %1225 = vmatpush2.bf16.msra.mxu0 0
      %1226 = vmatprep.subr.bf16.mxu0 0
      %1227 = vmatpush2.bf16.msra.mxu0 0
      %1228 = vmatprep.mubr.bf16.mxu0 0
      %1229 = vmatmul.mubr.bf16.gmra.mxu0 %v1194
      %v1230 = vpop.f32.mrf.mxu0
      %v1231 = vadd.f32 %v271, %v1230
      %v1232 = vpop.f32.mrf.mxu0
      %v1233 = vpop.f32.mrf.mxu0
      %v1234 = vpop.f32.mrf.mxu0
      %1235 = vdwg.mxu0
      %v1236 = vmax.f32 %v1231, 0.0
      %v1237 = vpack.c.bf16 %v1236, %v1236
      %s1238 = scalar_lea.vmem %s219, 20
      %v1239 = vld [vmem:[%s1238] sm:$0xf]
      %v1241 = vsel %vm278, %v1239, 0
      %1243 = vmatprep.subr.bf16.mxu0 0
      %1244 = vmatpush1.bf16.msra.mxu0 0
      %1245 = vmatprep.subr.bf16.mxu0 0
      %1246 = vmatpush1.bf16.msra.mxu0 0
      %1247 = vmatprep.subr.bf16.mxu0 0
      %1248 = vmatpush1.bf16.msra.mxu0 0
      %1249 = vmatprep.subr.bf16.mxu0 0
      %1250 = vmatpush1.bf16.msra.mxu0 0
      %1251 = vmatprep.subr.bf16.mxu0 0
      %1252 = vmatpush1.bf16.msra.mxu0 0
      %1253 = vmatprep.subr.bf16.mxu0 0
      %1254 = vmatpush1.bf16.msra.mxu0 0
      %1255 = vmatprep.subr.bf16.mxu0 0
      %1256 = vmatpush1.bf16.msra.mxu0 0
      %1257 = vmatprep.subr.bf16.mxu0 0
      %1258 = vmatpush1.bf16.msra.mxu0 %v284
      %1259 = vmatprep.subr.bf16.mxu0 0
      %1260 = vmatpush2.bf16.msra.mxu0 0
      %1261 = vmatprep.subr.bf16.mxu0 0
      %1262 = vmatpush2.bf16.msra.mxu0 0
      %1263 = vmatprep.subr.bf16.mxu0 0
      %1264 = vmatpush2.bf16.msra.mxu0 0
      %1265 = vmatprep.subr.bf16.mxu0 0
      %1266 = vmatpush2.bf16.msra.mxu0 0
      %1267 = vmatprep.subr.bf16.mxu0 0
      %1268 = vmatpush2.bf16.msra.mxu0 0
      %1269 = vmatprep.subr.bf16.mxu0 0
      %1270 = vmatpush2.bf16.msra.mxu0 0
      %1271 = vmatprep.subr.bf16.mxu0 0
      %1272 = vmatpush2.bf16.msra.mxu0 0
      %1273 = vmatprep.subr.bf16.mxu0 0
      %1274 = vmatpush2.bf16.msra.mxu0 0
      %1275 = vmatprep.mubr.bf16.mxu0 0
      %1276 = vmatmul.mubr.bf16.gmra.mxu0 %v1241
      %v1277 = vpop.f32.mrf.mxu0
      %v1278 = vadd.f32 %v271, %v1277
      %v1279 = vpop.f32.mrf.mxu0
      %v1280 = vpop.f32.mrf.mxu0
      %v1281 = vpop.f32.mrf.mxu0
      %1282 = vdwg.mxu0
      %v1283 = vmax.f32 %v1278, 0.0
      %v1284 = vpack.c.bf16 %v1283, %v1283
      %v1286 = vsel %vm399, %v1284, 0
      %1288 = vmatprep.subr.bf16.mxu0 0
      %1289 = vmatpush1.bf16.msra.mxu0 0
      %1290 = vmatprep.subr.bf16.mxu0 0
      %1291 = vmatpush1.bf16.msra.mxu0 0
      %1292 = vmatprep.subr.bf16.mxu0 0
      %1293 = vmatpush1.bf16.msra.mxu0 0
      %1294 = vmatprep.subr.bf16.mxu0 0
      %1295 = vmatpush1.bf16.msra.mxu0 0
      %1296 = vmatprep.subr.bf16.mxu0 0
      %1297 = vmatpush1.bf16.msra.mxu0 0
      %1298 = vmatprep.subr.bf16.mxu0 0
      %1299 = vmatpush1.bf16.msra.mxu0 0
      %1300 = vmatprep.subr.bf16.mxu0 %v408
      %1301 = vmatpush1.bf16.msra.mxu0 %v405
      %1302 = vmatprep.subr.bf16.mxu0 %v391
      %1303 = vmatpush1.bf16.msra.mxu0 %v390
      %1304 = vmatprep.subr.bf16.mxu0 0
      %1305 = vmatpush2.bf16.msra.mxu0 0
      %1306 = vmatprep.subr.bf16.mxu0 0
      %1307 = vmatpush2.bf16.msra.mxu0 0
      %1308 = vmatprep.subr.bf16.mxu0 0
      %1309 = vmatpush2.bf16.msra.mxu0 0
      %1310 = vmatprep.subr.bf16.mxu0 0
      %1311 = vmatpush2.bf16.msra.mxu0 0
      %1312 = vmatprep.subr.bf16.mxu0 0
      %1313 = vmatpush2.bf16.msra.mxu0 0
      %1314 = vmatprep.subr.bf16.mxu0 0
      %1315 = vmatpush2.bf16.msra.mxu0 0
      %1316 = vmatprep.subr.bf16.mxu0 0
      %1317 = vmatpush2.bf16.msra.mxu0 0
      %1318 = vmatprep.subr.bf16.mxu0 0
      %1319 = vmatpush2.bf16.msra.mxu0 0
      %1320 = vmatprep.mubr.bf16.mxu0 0
      %1321 = vmatmul.mubr.bf16.gmra.mxu0 %v1286
      %v1322 = vpop.f32.mrf.mxu0
      %v1323 = vadd.f32 0.0, %v1322
      %v1324 = vpop.f32.mrf.mxu0
      %v1325 = vadd.f32 0.0, %v1324
      %v1326 = vpop.f32.mrf.mxu0
      %v1327 = vpop.f32.mrf.mxu0
      %1328 = vdwg.mxu0
      %1329 = vmatprep.subr.bf16.mxu0 0
      %1330 = vmatpush1.bf16.msra.mxu0 0
      %1331 = vmatprep.subr.bf16.mxu0 0
      %1332 = vmatpush1.bf16.msra.mxu0 0
      %1333 = vmatprep.subr.bf16.mxu0 0
      %1334 = vmatpush1.bf16.msra.mxu0 0
      %1335 = vmatprep.subr.bf16.mxu0 0
      %1336 = vmatpush1.bf16.msra.mxu0 0
      %1337 = vmatprep.subr.bf16.mxu0 0
      %1338 = vmatpush1.bf16.msra.mxu0 0
      %1339 = vmatprep.subr.bf16.mxu0 0
      %1340 = vmatpush1.bf16.msra.mxu0 0
      %1341 = vmatprep.subr.bf16.mxu0 0
      %1342 = vmatpush1.bf16.msra.mxu0 %v411
      %1343 = vmatprep.subr.bf16.mxu0 0
      %1344 = vmatpush1.bf16.msra.mxu0 %v392
      %1345 = vmatprep.subr.bf16.mxu0 0
      %1346 = vmatpush2.bf16.msra.mxu0 0
      %1347 = vmatprep.subr.bf16.mxu0 0
      %1348 = vmatpush2.bf16.msra.mxu0 0
      %1349 = vmatprep.subr.bf16.mxu0 0
      %1350 = vmatpush2.bf16.msra.mxu0 0
      %1351 = vmatprep.subr.bf16.mxu0 0
      %1352 = vmatpush2.bf16.msra.mxu0 0
      %1353 = vmatprep.subr.bf16.mxu0 0
      %1354 = vmatpush2.bf16.msra.mxu0 0
      %1355 = vmatprep.subr.bf16.mxu0 0
      %1356 = vmatpush2.bf16.msra.mxu0 0
      %1357 = vmatprep.subr.bf16.mxu0 0
      %1358 = vmatpush2.bf16.msra.mxu0 0
      %1359 = vmatprep.subr.bf16.mxu0 0
      %1360 = vmatpush2.bf16.msra.mxu0 0
      %1361 = vmatprep.mubr.bf16.mxu0 0
      %1362 = vmatmul.mubr.bf16.gmra.mxu0 %v1286
      %v1363 = vpop.f32.mrf.mxu0
      %v1364 = vadd.f32 0.0, %v1363
      %v1365 = vpop.f32.mrf.mxu0
      %v1366 = vpop.f32.mrf.mxu0
      %v1367 = vpop.f32.mrf.mxu0
      %1368 = vdwg.mxu0
      %v1370 = vsel %vm399, %v1237, 0
      %1372 = vmatprep.subr.bf16.mxu0 0
      %1373 = vmatpush1.bf16.msra.mxu0 0
      %1374 = vmatprep.subr.bf16.mxu0 0
      %1375 = vmatpush1.bf16.msra.mxu0 0
      %1376 = vmatprep.subr.bf16.mxu0 0
      %1377 = vmatpush1.bf16.msra.mxu0 0
      %1378 = vmatprep.subr.bf16.mxu0 0
      %1379 = vmatpush1.bf16.msra.mxu0 0
      %1380 = vmatprep.subr.bf16.mxu0 0
      %1381 = vmatpush1.bf16.msra.mxu0 0
      %1382 = vmatprep.subr.bf16.mxu0 0
      %1383 = vmatpush1.bf16.msra.mxu0 0
      %1384 = vmatprep.subr.bf16.mxu0 %v525
      %1385 = vmatpush1.bf16.msra.mxu0 %v522
      %1386 = vmatprep.subr.bf16.mxu0 %v510
      %1387 = vmatpush1.bf16.msra.mxu0 %v509
      %1388 = vmatprep.subr.bf16.mxu0 0
      %1389 = vmatpush2.bf16.msra.mxu0 0
      %1390 = vmatprep.subr.bf16.mxu0 0
      %1391 = vmatpush2.bf16.msra.mxu0 0
      %1392 = vmatprep.subr.bf16.mxu0 0
      %1393 = vmatpush2.bf16.msra.mxu0 0
      %1394 = vmatprep.subr.bf16.mxu0 0
      %1395 = vmatpush2.bf16.msra.mxu0 0
      %1396 = vmatprep.subr.bf16.mxu0 0
      %1397 = vmatpush2.bf16.msra.mxu0 0
      %1398 = vmatprep.subr.bf16.mxu0 0
      %1399 = vmatpush2.bf16.msra.mxu0 0
      %1400 = vmatprep.subr.bf16.mxu0 0
      %1401 = vmatpush2.bf16.msra.mxu0 0
      %1402 = vmatprep.subr.bf16.mxu0 0
      %1403 = vmatpush2.bf16.msra.mxu0 0
      %1404 = vmatprep.mubr.bf16.mxu0 0
      %1405 = vmatmul.mubr.bf16.gmra.mxu0 %v1370
      %v1406 = vpop.f32.mrf.mxu0
      %v1407 = vadd.f32 %v1323, %v1406
      %v1408 = vpop.f32.mrf.mxu0
      %v1409 = vadd.f32 %v1325, %v1408
      %v1410 = vpop.f32.mrf.mxu0
      %v1411 = vpop.f32.mrf.mxu0
      %1412 = vdwg.mxu0
      %1413 = vmatprep.subr.bf16.mxu0 0
      %1414 = vmatpush1.bf16.msra.mxu0 0
      %1415 = vmatprep.subr.bf16.mxu0 0
      %1416 = vmatpush1.bf16.msra.mxu0 0
      %1417 = vmatprep.subr.bf16.mxu0 0
      %1418 = vmatpush1.bf16.msra.mxu0 0
      %1419 = vmatprep.subr.bf16.mxu0 0
      %1420 = vmatpush1.bf16.msra.mxu0 0
      %1421 = vmatprep.subr.bf16.mxu0 0
      %1422 = vmatpush1.bf16.msra.mxu0 0
      %1423 = vmatprep.subr.bf16.mxu0 0
      %1424 = vmatpush1.bf16.msra.mxu0 0
      %1425 = vmatprep.subr.bf16.mxu0 0
      %1426 = vmatpush1.bf16.msra.mxu0 %v528
      %1427 = vmatprep.subr.bf16.mxu0 0
      %1428 = vmatpush1.bf16.msra.mxu0 %v511
      %1429 = vmatprep.subr.bf16.mxu0 0
      %1430 = vmatpush2.bf16.msra.mxu0 0
      %1431 = vmatprep.subr.bf16.mxu0 0
      %1432 = vmatpush2.bf16.msra.mxu0 0
      %1433 = vmatprep.subr.bf16.mxu0 0
      %1434 = vmatpush2.bf16.msra.mxu0 0
      %1435 = vmatprep.subr.bf16.mxu0 0
      %1436 = vmatpush2.bf16.msra.mxu0 0
      %1437 = vmatprep.subr.bf16.mxu0 0
      %1438 = vmatpush2.bf16.msra.mxu0 0
      %1439 = vmatprep.subr.bf16.mxu0 0
      %1440 = vmatpush2.bf16.msra.mxu0 0
      %1441 = vmatprep.subr.bf16.mxu0 0
      %1442 = vmatpush2.bf16.msra.mxu0 0
      %1443 = vmatprep.subr.bf16.mxu0 0
      %1444 = vmatpush2.bf16.msra.mxu0 0
      %1445 = vmatprep.mubr.bf16.mxu0 0
      %1446 = vmatmul.mubr.bf16.gmra.mxu0 %v1370
      %v1447 = vpop.f32.mrf.mxu0
      %v1448 = vadd.f32 %v1364, %v1447
      %v1449 = vpop.f32.mrf.mxu0
      %v1450 = vpop.f32.mrf.mxu0
      %v1451 = vpop.f32.mrf.mxu0
      %1452 = vdwg.mxu0
      %s1453 = scalar_lea.vmem %s219, 24
      %v1454 = vld [vmem:[%s1453] sm:$0xf]
      %v1456 = vsel %vm278, %v1454, 0
      %1458 = vmatprep.subr.bf16.mxu0 0
      %1459 = vmatpush1.bf16.msra.mxu0 0
      %1460 = vmatprep.subr.bf16.mxu0 0
      %1461 = vmatpush1.bf16.msra.mxu0 0
      %1462 = vmatprep.subr.bf16.mxu0 0
      %1463 = vmatpush1.bf16.msra.mxu0 0
      %1464 = vmatprep.subr.bf16.mxu0 0
      %1465 = vmatpush1.bf16.msra.mxu0 0
      %1466 = vmatprep.subr.bf16.mxu0 0
      %1467 = vmatpush1.bf16.msra.mxu0 0
      %1468 = vmatprep.subr.bf16.mxu0 0
      %1469 = vmatpush1.bf16.msra.mxu0 0
      %1470 = vmatprep.subr.bf16.mxu0 0
      %1471 = vmatpush1.bf16.msra.mxu0 0
      %1472 = vmatprep.subr.bf16.mxu0 0
      %1473 = vmatpush1.bf16.msra.mxu0 %v284
      %1474 = vmatprep.subr.bf16.mxu0 0
      %1475 = vmatpush2.bf16.msra.mxu0 0
      %1476 = vmatprep.subr.bf16.mxu0 0
      %1477 = vmatpush2.bf16.msra.mxu0 0
      %1478 = vmatprep.subr.bf16.mxu0 0
      %1479 = vmatpush2.bf16.msra.mxu0 0
      %1480 = vmatprep.subr.bf16.mxu0 0
      %1481 = vmatpush2.bf16.msra.mxu0 0
      %1482 = vmatprep.subr.bf16.mxu0 0
      %1483 = vmatpush2.bf16.msra.mxu0 0
      %1484 = vmatprep.subr.bf16.mxu0 0
      %1485 = vmatpush2.bf16.msra.mxu0 0
      %1486 = vmatprep.subr.bf16.mxu0 0
      %1487 = vmatpush2.bf16.msra.mxu0 0
      %1488 = vmatprep.subr.bf16.mxu0 0
      %1489 = vmatpush2.bf16.msra.mxu0 0
      %1490 = vmatprep.mubr.bf16.mxu0 0
      %1491 = vmatmul.mubr.bf16.gmra.mxu0 %v1456
      %v1492 = vpop.f32.mrf.mxu0
      %v1493 = vadd.f32 %v271, %v1492
      %v1494 = vpop.f32.mrf.mxu0
      %v1495 = vpop.f32.mrf.mxu0
      %v1496 = vpop.f32.mrf.mxu0
      %1497 = vdwg.mxu0
      %v1498 = vmax.f32 %v1493, 0.0
      %v1499 = vpack.c.bf16 %v1498, %v1498
      %v1501 = vsel %vm399, %v1499, 0
      %1503 = vmatprep.subr.bf16.mxu0 0
      %1504 = vmatpush1.bf16.msra.mxu0 0
      %1505 = vmatprep.subr.bf16.mxu0 0
      %1506 = vmatpush1.bf16.msra.mxu0 0
      %1507 = vmatprep.subr.bf16.mxu0 0
      %1508 = vmatpush1.bf16.msra.mxu0 0
      %1509 = vmatprep.subr.bf16.mxu0 0
      %1510 = vmatpush1.bf16.msra.mxu0 0
      %1511 = vmatprep.subr.bf16.mxu0 0
      %1512 = vmatpush1.bf16.msra.mxu0 0
      %1513 = vmatprep.subr.bf16.mxu0 0
      %1514 = vmatpush1.bf16.msra.mxu0 0
      %1515 = vmatprep.subr.bf16.mxu0 %v689
      %1516 = vmatpush1.bf16.msra.mxu0 %v686
      %1517 = vmatprep.subr.bf16.mxu0 %v674
      %1518 = vmatpush1.bf16.msra.mxu0 %v673
      %1519 = vmatprep.subr.bf16.mxu0 0
      %1520 = vmatpush2.bf16.msra.mxu0 0
      %1521 = vmatprep.subr.bf16.mxu0 0
      %1522 = vmatpush2.bf16.msra.mxu0 0
      %1523 = vmatprep.subr.bf16.mxu0 0
      %1524 = vmatpush2.bf16.msra.mxu0 0
      %1525 = vmatprep.subr.bf16.mxu0 0
      %1526 = vmatpush2.bf16.msra.mxu0 0
      %1527 = vmatprep.subr.bf16.mxu0 0
      %1528 = vmatpush2.bf16.msra.mxu0 0
      %1529 = vmatprep.subr.bf16.mxu0 0
      %1530 = vmatpush2.bf16.msra.mxu0 0
      %1531 = vmatprep.subr.bf16.mxu0 0
      %1532 = vmatpush2.bf16.msra.mxu0 0
      %1533 = vmatprep.subr.bf16.mxu0 0
      %1534 = vmatpush2.bf16.msra.mxu0 0
      %1535 = vmatprep.mubr.bf16.mxu0 0
      %1536 = vmatmul.mubr.bf16.gmra.mxu0 %v1501
      %v1537 = vpop.f32.mrf.mxu0
      %v1538 = vadd.f32 0.0, %v1537
      %v1539 = vpop.f32.mrf.mxu0
      %v1540 = vadd.f32 0.0, %v1539
      %v1541 = vpop.f32.mrf.mxu0
      %v1542 = vpop.f32.mrf.mxu0
      %1543 = vdwg.mxu0
      %1544 = vmatprep.subr.bf16.mxu0 0
      %1545 = vmatpush1.bf16.msra.mxu0 0
      %1546 = vmatprep.subr.bf16.mxu0 0
      %1547 = vmatpush1.bf16.msra.mxu0 0
      %1548 = vmatprep.subr.bf16.mxu0 0
      %1549 = vmatpush1.bf16.msra.mxu0 0
      %1550 = vmatprep.subr.bf16.mxu0 0
      %1551 = vmatpush1.bf16.msra.mxu0 0
      %1552 = vmatprep.subr.bf16.mxu0 0
      %1553 = vmatpush1.bf16.msra.mxu0 0
      %1554 = vmatprep.subr.bf16.mxu0 0
      %1555 = vmatpush1.bf16.msra.mxu0 0
      %1556 = vmatprep.subr.bf16.mxu0 0
      %1557 = vmatpush1.bf16.msra.mxu0 %v692
      %1558 = vmatprep.subr.bf16.mxu0 0
      %1559 = vmatpush1.bf16.msra.mxu0 %v675
      %1560 = vmatprep.subr.bf16.mxu0 0
      %1561 = vmatpush2.bf16.msra.mxu0 0
      %1562 = vmatprep.subr.bf16.mxu0 0
      %1563 = vmatpush2.bf16.msra.mxu0 0
      %1564 = vmatprep.subr.bf16.mxu0 0
      %1565 = vmatpush2.bf16.msra.mxu0 0
      %1566 = vmatprep.subr.bf16.mxu0 0
      %1567 = vmatpush2.bf16.msra.mxu0 0
      %1568 = vmatprep.subr.bf16.mxu0 0
      %1569 = vmatpush2.bf16.msra.mxu0 0
      %1570 = vmatprep.subr.bf16.mxu0 0
      %1571 = vmatpush2.bf16.msra.mxu0 0
      %1572 = vmatprep.subr.bf16.mxu0 0
      %1573 = vmatpush2.bf16.msra.mxu0 0
      %1574 = vmatprep.subr.bf16.mxu0 0
      %1575 = vmatpush2.bf16.msra.mxu0 0
      %1576 = vmatprep.mubr.bf16.mxu0 0
      %1577 = vmatmul.mubr.bf16.gmra.mxu0 %v1501
      %v1578 = vpop.f32.mrf.mxu0
      %v1579 = vadd.f32 0.0, %v1578
      %v1580 = vpop.f32.mrf.mxu0
      %v1581 = vpop.f32.mrf.mxu0
      %v1582 = vpop.f32.mrf.mxu0
      %1583 = vdwg.mxu0
      %v1584 = vadd.f32 %v1407, %v1538
      %v1585 = vadd.f32 %v1409, %v1540
      %v1586 = vadd.f32 %v1448, %v1579
      %v1587 = vadd.f32 %v1584, %v254
      %v1588 = vadd.f32 %v1585, %v258
      %v1589 = vadd.f32 %v1586, %v262
      %v1590 = vmax.f32 %v1587, 0.0
      %v1591 = vmax.f32 %v1588, 0.0
      %v1592 = vmax.f32 %v1589, 0.0
      %s1593 = scalar_lea.vmem %s224, 48
      %1594 = vst [vmem:[%s1593] sm:$0x7f] %v1590
      %1595 = vst [vmem:[%s1593 + $0x8] sm:$0x7f] %v1591
      %1596 = vst [vmem:[%s1593 + $0x10] sm:$0x7f] %v1592
      %v1597 = vld [vmem:[%s1453] sm:$0xf]
      %v1599 = vsel %vm278, %v1597, 0
      %1601 = vmatprep.subr.bf16.mxu0 0
      %1602 = vmatpush1.bf16.msra.mxu0 0
      %1603 = vmatprep.subr.bf16.mxu0 0
      %1604 = vmatpush1.bf16.msra.mxu0 0
      %1605 = vmatprep.subr.bf16.mxu0 0
      %1606 = vmatpush1.bf16.msra.mxu0 0
      %1607 = vmatprep.subr.bf16.mxu0 0
      %1608 = vmatpush1.bf16.msra.mxu0 0
      %1609 = vmatprep.subr.bf16.mxu0 0
      %1610 = vmatpush1.bf16.msra.mxu0 0
      %1611 = vmatprep.subr.bf16.mxu0 0
      %1612 = vmatpush1.bf16.msra.mxu0 0
      %1613 = vmatprep.subr.bf16.mxu0 0
      %1614 = vmatpush1.bf16.msra.mxu0 0
      %1615 = vmatprep.subr.bf16.mxu0 0
      %1616 = vmatpush1.bf16.msra.mxu0 %v284
      %1617 = vmatprep.subr.bf16.mxu0 0
      %1618 = vmatpush2.bf16.msra.mxu0 0
      %1619 = vmatprep.subr.bf16.mxu0 0
      %1620 = vmatpush2.bf16.msra.mxu0 0
      %1621 = vmatprep.subr.bf16.mxu0 0
      %1622 = vmatpush2.bf16.msra.mxu0 0
      %1623 = vmatprep.subr.bf16.mxu0 0
      %1624 = vmatpush2.bf16.msra.mxu0 0
      %1625 = vmatprep.subr.bf16.mxu0 0
      %1626 = vmatpush2.bf16.msra.mxu0 0
      %1627 = vmatprep.subr.bf16.mxu0 0
      %1628 = vmatpush2.bf16.msra.mxu0 0
      %1629 = vmatprep.subr.bf16.mxu0 0
      %1630 = vmatpush2.bf16.msra.mxu0 0
      %1631 = vmatprep.subr.bf16.mxu0 0
      %1632 = vmatpush2.bf16.msra.mxu0 0
      %1633 = vmatprep.mubr.bf16.mxu0 0
      %1634 = vmatmul.mubr.bf16.gmra.mxu0 %v1599
      %v1635 = vpop.f32.mrf.mxu0
      %v1636 = vadd.f32 %v271, %v1635
      %v1637 = vpop.f32.mrf.mxu0
      %v1638 = vpop.f32.mrf.mxu0
      %v1639 = vpop.f32.mrf.mxu0
      %1640 = vdwg.mxu0
      %v1641 = vmax.f32 %v1636, 0.0
      %v1642 = vpack.c.bf16 %v1641, %v1641
      %s1643 = scalar_lea.vmem %s219, 28
      %v1644 = vld [vmem:[%s1643] sm:$0xf]
      %v1646 = vsel %vm278, %v1644, 0
      %1648 = vmatprep.subr.bf16.mxu0 0
      %1649 = vmatpush1.bf16.msra.mxu0 0
      %1650 = vmatprep.subr.bf16.mxu0 0
      %1651 = vmatpush1.bf16.msra.mxu0 0
      %1652 = vmatprep.subr.bf16.mxu0 0
      %1653 = vmatpush1.bf16.msra.mxu0 0
      %1654 = vmatprep.subr.bf16.mxu0 0
      %1655 = vmatpush1.bf16.msra.mxu0 0
      %1656 = vmatprep.subr.bf16.mxu0 0
      %1657 = vmatpush1.bf16.msra.mxu0 0
      %1658 = vmatprep.subr.bf16.mxu0 0
      %1659 = vmatpush1.bf16.msra.mxu0 0
      %1660 = vmatprep.subr.bf16.mxu0 0
      %1661 = vmatpush1.bf16.msra.mxu0 0
      %1662 = vmatprep.subr.bf16.mxu0 0
      %1663 = vmatpush1.bf16.msra.mxu0 %v284
      %1664 = vmatprep.subr.bf16.mxu0 0
      %1665 = vmatpush2.bf16.msra.mxu0 0
      %1666 = vmatprep.subr.bf16.mxu0 0
      %1667 = vmatpush2.bf16.msra.mxu0 0
      %1668 = vmatprep.subr.bf16.mxu0 0
      %1669 = vmatpush2.bf16.msra.mxu0 0
      %1670 = vmatprep.subr.bf16.mxu0 0
      %1671 = vmatpush2.bf16.msra.mxu0 0
      %1672 = vmatprep.subr.bf16.mxu0 0
      %1673 = vmatpush2.bf16.msra.mxu0 0
      %1674 = vmatprep.subr.bf16.mxu0 0
      %1675 = vmatpush2.bf16.msra.mxu0 0
      %1676 = vmatprep.subr.bf16.mxu0 0
      %1677 = vmatpush2.bf16.msra.mxu0 0
      %1678 = vmatprep.subr.bf16.mxu0 0
      %1679 = vmatpush2.bf16.msra.mxu0 0
      %1680 = vmatprep.mubr.bf16.mxu0 0
      %1681 = vmatmul.mubr.bf16.gmra.mxu0 %v1646
      %v1682 = vpop.f32.mrf.mxu0
      %v1683 = vadd.f32 %v271, %v1682
      %v1684 = vpop.f32.mrf.mxu0
      %v1685 = vpop.f32.mrf.mxu0
      %v1686 = vpop.f32.mrf.mxu0
      %1687 = vdwg.mxu0
      %v1688 = vmax.f32 %v1683, 0.0
      %v1689 = vpack.c.bf16 %v1688, %v1688
      %v1691 = vsel %vm399, %v1689, 0
      %1693 = vmatprep.subr.bf16.mxu0 0
      %1694 = vmatpush1.bf16.msra.mxu0 0
      %1695 = vmatprep.subr.bf16.mxu0 0
      %1696 = vmatpush1.bf16.msra.mxu0 0
      %1697 = vmatprep.subr.bf16.mxu0 0
      %1698 = vmatpush1.bf16.msra.mxu0 0
      %1699 = vmatprep.subr.bf16.mxu0 0
      %1700 = vmatpush1.bf16.msra.mxu0 0
      %1701 = vmatprep.subr.bf16.mxu0 0
      %1702 = vmatpush1.bf16.msra.mxu0 0
      %1703 = vmatprep.subr.bf16.mxu0 0
      %1704 = vmatpush1.bf16.msra.mxu0 0
      %1705 = vmatprep.subr.bf16.mxu0 %v408
      %1706 = vmatpush1.bf16.msra.mxu0 %v405
      %1707 = vmatprep.subr.bf16.mxu0 %v391
      %1708 = vmatpush1.bf16.msra.mxu0 %v390
      %1709 = vmatprep.subr.bf16.mxu0 0
      %1710 = vmatpush2.bf16.msra.mxu0 0
      %1711 = vmatprep.subr.bf16.mxu0 0
      %1712 = vmatpush2.bf16.msra.mxu0 0
      %1713 = vmatprep.subr.bf16.mxu0 0
      %1714 = vmatpush2.bf16.msra.mxu0 0
      %1715 = vmatprep.subr.bf16.mxu0 0
      %1716 = vmatpush2.bf16.msra.mxu0 0
      %1717 = vmatprep.subr.bf16.mxu0 0
      %1718 = vmatpush2.bf16.msra.mxu0 0
      %1719 = vmatprep.subr.bf16.mxu0 0
      %1720 = vmatpush2.bf16.msra.mxu0 0
      %1721 = vmatprep.subr.bf16.mxu0 0
      %1722 = vmatpush2.bf16.msra.mxu0 0
      %1723 = vmatprep.subr.bf16.mxu0 0
      %1724 = vmatpush2.bf16.msra.mxu0 0
      %1725 = vmatprep.mubr.bf16.mxu0 0
      %1726 = vmatmul.mubr.bf16.gmra.mxu0 %v1691
      %v1727 = vpop.f32.mrf.mxu0
      %v1728 = vadd.f32 0.0, %v1727
      %v1729 = vpop.f32.mrf.mxu0
      %v1730 = vadd.f32 0.0, %v1729
      %v1731 = vpop.f32.mrf.mxu0
      %v1732 = vpop.f32.mrf.mxu0
      %1733 = vdwg.mxu0
      %1734 = vmatprep.subr.bf16.mxu0 0
      %1735 = vmatpush1.bf16.msra.mxu0 0
      %1736 = vmatprep.subr.bf16.mxu0 0
      %1737 = vmatpush1.bf16.msra.mxu0 0
      %1738 = vmatprep.subr.bf16.mxu0 0
      %1739 = vmatpush1.bf16.msra.mxu0 0
      %1740 = vmatprep.subr.bf16.mxu0 0
      %1741 = vmatpush1.bf16.msra.mxu0 0
      %1742 = vmatprep.subr.bf16.mxu0 0
      %1743 = vmatpush1.bf16.msra.mxu0 0
      %1744 = vmatprep.subr.bf16.mxu0 0
      %1745 = vmatpush1.bf16.msra.mxu0 0
      %1746 = vmatprep.subr.bf16.mxu0 0
      %1747 = vmatpush1.bf16.msra.mxu0 %v411
      %1748 = vmatprep.subr.bf16.mxu0 0
      %1749 = vmatpush1.bf16.msra.mxu0 %v392
      %1750 = vmatprep.subr.bf16.mxu0 0
      %1751 = vmatpush2.bf16.msra.mxu0 0
      %1752 = vmatprep.subr.bf16.mxu0 0
      %1753 = vmatpush2.bf16.msra.mxu0 0
      %1754 = vmatprep.subr.bf16.mxu0 0
      %1755 = vmatpush2.bf16.msra.mxu0 0
      %1756 = vmatprep.subr.bf16.mxu0 0
      %1757 = vmatpush2.bf16.msra.mxu0 0
      %1758 = vmatprep.subr.bf16.mxu0 0
      %1759 = vmatpush2.bf16.msra.mxu0 0
      %1760 = vmatprep.subr.bf16.mxu0 0
      %1761 = vmatpush2.bf16.msra.mxu0 0
      %1762 = vmatprep.subr.bf16.mxu0 0
      %1763 = vmatpush2.bf16.msra.mxu0 0
      %1764 = vmatprep.subr.bf16.mxu0 0
      %1765 = vmatpush2.bf16.msra.mxu0 0
      %1766 = vmatprep.mubr.bf16.mxu0 0
      %1767 = vmatmul.mubr.bf16.gmra.mxu0 %v1691
      %v1768 = vpop.f32.mrf.mxu0
      %v1769 = vadd.f32 0.0, %v1768
      %v1770 = vpop.f32.mrf.mxu0
      %v1771 = vpop.f32.mrf.mxu0
      %v1772 = vpop.f32.mrf.mxu0
      %1773 = vdwg.mxu0
      %v1775 = vsel %vm399, %v1642, 0
      %1777 = vmatprep.subr.bf16.mxu0 0
      %1778 = vmatpush1.bf16.msra.mxu0 0
      %1779 = vmatprep.subr.bf16.mxu0 0
      %1780 = vmatpush1.bf16.msra.mxu0 0
      %1781 = vmatprep.subr.bf16.mxu0 0
      %1782 = vmatpush1.bf16.msra.mxu0 0
      %1783 = vmatprep.subr.bf16.mxu0 0
      %1784 = vmatpush1.bf16.msra.mxu0 0
      %1785 = vmatprep.subr.bf16.mxu0 0
      %1786 = vmatpush1.bf16.msra.mxu0 0
      %1787 = vmatprep.subr.bf16.mxu0 0
      %1788 = vmatpush1.bf16.msra.mxu0 0
      %1789 = vmatprep.subr.bf16.mxu0 %v525
      %1790 = vmatpush1.bf16.msra.mxu0 %v522
      %1791 = vmatprep.subr.bf16.mxu0 %v510
      %1792 = vmatpush1.bf16.msra.mxu0 %v509
      %1793 = vmatprep.subr.bf16.mxu0 0
      %1794 = vmatpush2.bf16.msra.mxu0 0
      %1795 = vmatprep.subr.bf16.mxu0 0
      %1796 = vmatpush2.bf16.msra.mxu0 0
      %1797 = vmatprep.subr.bf16.mxu0 0
      %1798 = vmatpush2.bf16.msra.mxu0 0
      %1799 = vmatprep.subr.bf16.mxu0 0
      %1800 = vmatpush2.bf16.msra.mxu0 0
      %1801 = vmatprep.subr.bf16.mxu0 0
      %1802 = vmatpush2.bf16.msra.mxu0 0
      %1803 = vmatprep.subr.bf16.mxu0 0
      %1804 = vmatpush2.bf16.msra.mxu0 0
      %1805 = vmatprep.subr.bf16.mxu0 0
      %1806 = vmatpush2.bf16.msra.mxu0 0
      %1807 = vmatprep.subr.bf16.mxu0 0
      %1808 = vmatpush2.bf16.msra.mxu0 0
      %1809 = vmatprep.mubr.bf16.mxu0 0
      %1810 = vmatmul.mubr.bf16.gmra.mxu0 %v1775
      %v1811 = vpop.f32.mrf.mxu0
      %v1812 = vadd.f32 %v1728, %v1811
      %v1813 = vpop.f32.mrf.mxu0
      %v1814 = vadd.f32 %v1730, %v1813
      %v1815 = vpop.f32.mrf.mxu0
      %v1816 = vpop.f32.mrf.mxu0
      %1817 = vdwg.mxu0
      %1818 = vmatprep.subr.bf16.mxu0 0
      %1819 = vmatpush1.bf16.msra.mxu0 0
      %1820 = vmatprep.subr.bf16.mxu0 0
      %1821 = vmatpush1.bf16.msra.mxu0 0
      %1822 = vmatprep.subr.bf16.mxu0 0
      %1823 = vmatpush1.bf16.msra.mxu0 0
      %1824 = vmatprep.subr.bf16.mxu0 0
      %1825 = vmatpush1.bf16.msra.mxu0 0
      %1826 = vmatprep.subr.bf16.mxu0 0
      %1827 = vmatpush1.bf16.msra.mxu0 0
      %1828 = vmatprep.subr.bf16.mxu0 0
      %1829 = vmatpush1.bf16.msra.mxu0 0
      %1830 = vmatprep.subr.bf16.mxu0 0
      %1831 = vmatpush1.bf16.msra.mxu0 %v528
      %1832 = vmatprep.subr.bf16.mxu0 0
      %1833 = vmatpush1.bf16.msra.mxu0 %v511
      %1834 = vmatprep.subr.bf16.mxu0 0
      %1835 = vmatpush2.bf16.msra.mxu0 0
      %1836 = vmatprep.subr.bf16.mxu0 0
      %1837 = vmatpush2.bf16.msra.mxu0 0
      %1838 = vmatprep.subr.bf16.mxu0 0
      %1839 = vmatpush2.bf16.msra.mxu0 0
      %1840 = vmatprep.subr.bf16.mxu0 0
      %1841 = vmatpush2.bf16.msra.mxu0 0
      %1842 = vmatprep.subr.bf16.mxu0 0
      %1843 = vmatpush2.bf16.msra.mxu0 0
      %1844 = vmatprep.subr.bf16.mxu0 0
      %1845 = vmatpush2.bf16.msra.mxu0 0
      %1846 = vmatprep.subr.bf16.mxu0 0
      %1847 = vmatpush2.bf16.msra.mxu0 0
      %1848 = vmatprep.subr.bf16.mxu0 0
      %1849 = vmatpush2.bf16.msra.mxu0 0
      %1850 = vmatprep.mubr.bf16.mxu0 0
      %1851 = vmatmul.mubr.bf16.gmra.mxu0 %v1775
      %v1852 = vpop.f32.mrf.mxu0
      %v1853 = vadd.f32 %v1769, %v1852
      %v1854 = vpop.f32.mrf.mxu0
      %v1855 = vpop.f32.mrf.mxu0
      %v1856 = vpop.f32.mrf.mxu0
      %1857 = vdwg.mxu0
      %s1858 = scalar_lea.vmem %s219, 32
      %v1859 = vld [vmem:[%s1858] sm:$0xf]
      %v1861 = vsel %vm278, %v1859, 0
      %1863 = vmatprep.subr.bf16.mxu0 0
      %1864 = vmatpush1.bf16.msra.mxu0 0
      %1865 = vmatprep.subr.bf16.mxu0 0
      %1866 = vmatpush1.bf16.msra.mxu0 0
      %1867 = vmatprep.subr.bf16.mxu0 0
      %1868 = vmatpush1.bf16.msra.mxu0 0
      %1869 = vmatprep.subr.bf16.mxu0 0
      %1870 = vmatpush1.bf16.msra.mxu0 0
      %1871 = vmatprep.subr.bf16.mxu0 0
      %1872 = vmatpush1.bf16.msra.mxu0 0
      %1873 = vmatprep.subr.bf16.mxu0 0
      %1874 = vmatpush1.bf16.msra.mxu0 0
      %1875 = vmatprep.subr.bf16.mxu0 0
      %1876 = vmatpush1.bf16.msra.mxu0 0
      %1877 = vmatprep.subr.bf16.mxu0 0
      %1878 = vmatpush1.bf16.msra.mxu0 %v284
      %1879 = vmatprep.subr.bf16.mxu0 0
      %1880 = vmatpush2.bf16.msra.mxu0 0
      %1881 = vmatprep.subr.bf16.mxu0 0
      %1882 = vmatpush2.bf16.msra.mxu0 0
      %1883 = vmatprep.subr.bf16.mxu0 0
      %1884 = vmatpush2.bf16.msra.mxu0 0
      %1885 = vmatprep.subr.bf16.mxu0 0
      %1886 = vmatpush2.bf16.msra.mxu0 0
      %1887 = vmatprep.subr.bf16.mxu0 0
      %1888 = vmatpush2.bf16.msra.mxu0 0
      %1889 = vmatprep.subr.bf16.mxu0 0
      %1890 = vmatpush2.bf16.msra.mxu0 0
      %1891 = vmatprep.subr.bf16.mxu0 0
      %1892 = vmatpush2.bf16.msra.mxu0 0
      %1893 = vmatprep.subr.bf16.mxu0 0
      %1894 = vmatpush2.bf16.msra.mxu0 0
      %1895 = vmatprep.mubr.bf16.mxu0 0
      %1896 = vmatmul.mubr.bf16.gmra.mxu0 %v1861
      %v1897 = vpop.f32.mrf.mxu0
      %v1898 = vadd.f32 %v271, %v1897
      %v1899 = vpop.f32.mrf.mxu0
      %v1900 = vpop.f32.mrf.mxu0
      %v1901 = vpop.f32.mrf.mxu0
      %1902 = vdwg.mxu0
      %v1903 = vmax.f32 %v1898, 0.0
      %v1904 = vpack.c.bf16 %v1903, %v1903
      %v1906 = vsel %vm399, %v1904, 0
      %1908 = vmatprep.subr.bf16.mxu0 0
      %1909 = vmatpush1.bf16.msra.mxu0 0
      %1910 = vmatprep.subr.bf16.mxu0 0
      %1911 = vmatpush1.bf16.msra.mxu0 0
      %1912 = vmatprep.subr.bf16.mxu0 0
      %1913 = vmatpush1.bf16.msra.mxu0 0
      %1914 = vmatprep.subr.bf16.mxu0 0
      %1915 = vmatpush1.bf16.msra.mxu0 0
      %1916 = vmatprep.subr.bf16.mxu0 0
      %1917 = vmatpush1.bf16.msra.mxu0 0
      %1918 = vmatprep.subr.bf16.mxu0 0
      %1919 = vmatpush1.bf16.msra.mxu0 0
      %1920 = vmatprep.subr.bf16.mxu0 %v689
      %1921 = vmatpush1.bf16.msra.mxu0 %v686
      %1922 = vmatprep.subr.bf16.mxu0 %v674
      %1923 = vmatpush1.bf16.msra.mxu0 %v673
      %1924 = vmatprep.subr.bf16.mxu0 0
      %1925 = vmatpush2.bf16.msra.mxu0 0
      %1926 = vmatprep.subr.bf16.mxu0 0
      %1927 = vmatpush2.bf16.msra.mxu0 0
      %1928 = vmatprep.subr.bf16.mxu0 0
      %1929 = vmatpush2.bf16.msra.mxu0 0
      %1930 = vmatprep.subr.bf16.mxu0 0
      %1931 = vmatpush2.bf16.msra.mxu0 0
      %1932 = vmatprep.subr.bf16.mxu0 0
      %1933 = vmatpush2.bf16.msra.mxu0 0
      %1934 = vmatprep.subr.bf16.mxu0 0
      %1935 = vmatpush2.bf16.msra.mxu0 0
      %1936 = vmatprep.subr.bf16.mxu0 0
      %1937 = vmatpush2.bf16.msra.mxu0 0
      %1938 = vmatprep.subr.bf16.mxu0 0
      %1939 = vmatpush2.bf16.msra.mxu0 0
      %1940 = vmatprep.mubr.bf16.mxu0 0
      %1941 = vmatmul.mubr.bf16.gmra.mxu0 %v1906
      %v1942 = vpop.f32.mrf.mxu0
      %v1943 = vadd.f32 0.0, %v1942
      %v1944 = vpop.f32.mrf.mxu0
      %v1945 = vadd.f32 0.0, %v1944
      %v1946 = vpop.f32.mrf.mxu0
      %v1947 = vpop.f32.mrf.mxu0
      %1948 = vdwg.mxu0
      %1949 = vmatprep.subr.bf16.mxu0 0
      %1950 = vmatpush1.bf16.msra.mxu0 0
      %1951 = vmatprep.subr.bf16.mxu0 0
      %1952 = vmatpush1.bf16.msra.mxu0 0
      %1953 = vmatprep.subr.bf16.mxu0 0
      %1954 = vmatpush1.bf16.msra.mxu0 0
      %1955 = vmatprep.subr.bf16.mxu0 0
      %1956 = vmatpush1.bf16.msra.mxu0 0
      %1957 = vmatprep.subr.bf16.mxu0 0
      %1958 = vmatpush1.bf16.msra.mxu0 0
      %1959 = vmatprep.subr.bf16.mxu0 0
      %1960 = vmatpush1.bf16.msra.mxu0 0
      %1961 = vmatprep.subr.bf16.mxu0 0
      %1962 = vmatpush1.bf16.msra.mxu0 %v692
      %1963 = vmatprep.subr.bf16.mxu0 0
      %1964 = vmatpush1.bf16.msra.mxu0 %v675
      %1965 = vmatprep.subr.bf16.mxu0 0
      %1966 = vmatpush2.bf16.msra.mxu0 0
      %1967 = vmatprep.subr.bf16.mxu0 0
      %1968 = vmatpush2.bf16.msra.mxu0 0
      %1969 = vmatprep.subr.bf16.mxu0 0
      %1970 = vmatpush2.bf16.msra.mxu0 0
      %1971 = vmatprep.subr.bf16.mxu0 0
      %1972 = vmatpush2.bf16.msra.mxu0 0
      %1973 = vmatprep.subr.bf16.mxu0 0
      %1974 = vmatpush2.bf16.msra.mxu0 0
      %1975 = vmatprep.subr.bf16.mxu0 0
      %1976 = vmatpush2.bf16.msra.mxu0 0
      %1977 = vmatprep.subr.bf16.mxu0 0
      %1978 = vmatpush2.bf16.msra.mxu0 0
      %1979 = vmatprep.subr.bf16.mxu0 0
      %1980 = vmatpush2.bf16.msra.mxu0 0
      %1981 = vmatprep.mubr.bf16.mxu0 0
      %1982 = vmatmul.mubr.bf16.gmra.mxu0 %v1906
      %v1983 = vpop.f32.mrf.mxu0
      %v1984 = vadd.f32 0.0, %v1983
      %v1985 = vpop.f32.mrf.mxu0
      %v1986 = vpop.f32.mrf.mxu0
      %v1987 = vpop.f32.mrf.mxu0
      %1988 = vdwg.mxu0
      %v1989 = vadd.f32 %v1812, %v1943
      %v1990 = vadd.f32 %v1814, %v1945
      %v1991 = vadd.f32 %v1853, %v1984
      %v1992 = vadd.f32 %v1989, %v254
      %v1993 = vadd.f32 %v1990, %v258
      %v1994 = vadd.f32 %v1991, %v262
      %v1995 = vmax.f32 %v1992, 0.0
      %v1996 = vmax.f32 %v1993, 0.0
      %v1997 = vmax.f32 %v1994, 0.0
      %s1998 = scalar_lea.vmem %s224, 72
      %1999 = vst [vmem:[%s1998] sm:$0x7f] %v1995
      %2000 = vst [vmem:[%s1998 + $0x8] sm:$0x7f] %v1996
      %2001 = vst [vmem:[%s1998 + $0x10] sm:$0x7f] %v1997
      %v2002 = vld [vmem:[%s1858] sm:$0xf]
      %v2004 = vsel %vm278, %v2002, 0
      %2006 = vmatprep.subr.bf16.mxu0 0
      %2007 = vmatpush1.bf16.msra.mxu0 0
      %2008 = vmatprep.subr.bf16.mxu0 0
      %2009 = vmatpush1.bf16.msra.mxu0 0
      %2010 = vmatprep.subr.bf16.mxu0 0
      %2011 = vmatpush1.bf16.msra.mxu0 0
      %2012 = vmatprep.subr.bf16.mxu0 0
      %2013 = vmatpush1.bf16.msra.mxu0 0
      %2014 = vmatprep.subr.bf16.mxu0 0
      %2015 = vmatpush1.bf16.msra.mxu0 0
      %2016 = vmatprep.subr.bf16.mxu0 0
      %2017 = vmatpush1.bf16.msra.mxu0 0
      %2018 = vmatprep.subr.bf16.mxu0 0
      %2019 = vmatpush1.bf16.msra.mxu0 0
      %2020 = vmatprep.subr.bf16.mxu0 0
      %2021 = vmatpush1.bf16.msra.mxu0 %v284
      %2022 = vmatprep.subr.bf16.mxu0 0
      %2023 = vmatpush2.bf16.msra.mxu0 0
      %2024 = vmatprep.subr.bf16.mxu0 0
      %2025 = vmatpush2.bf16.msra.mxu0 0
      %2026 = vmatprep.subr.bf16.mxu0 0
      %2027 = vmatpush2.bf16.msra.mxu0 0
      %2028 = vmatprep.subr.bf16.mxu0 0
      %2029 = vmatpush2.bf16.msra.mxu0 0
      %2030 = vmatprep.subr.bf16.mxu0 0
      %2031 = vmatpush2.bf16.msra.mxu0 0
      %2032 = vmatprep.subr.bf16.mxu0 0
      %2033 = vmatpush2.bf16.msra.mxu0 0
      %2034 = vmatprep.subr.bf16.mxu0 0
      %2035 = vmatpush2.bf16.msra.mxu0 0
      %2036 = vmatprep.subr.bf16.mxu0 0
      %2037 = vmatpush2.bf16.msra.mxu0 0
      %2038 = vmatprep.mubr.bf16.mxu0 0
      %2039 = vmatmul.mubr.bf16.gmra.mxu0 %v2004
      %v2040 = vpop.f32.mrf.mxu0
      %v2041 = vadd.f32 %v271, %v2040
      %v2042 = vpop.f32.mrf.mxu0
      %v2043 = vpop.f32.mrf.mxu0
      %v2044 = vpop.f32.mrf.mxu0
      %2045 = vdwg.mxu0
      %v2046 = vmax.f32 %v2041, 0.0
      %v2047 = vpack.c.bf16 %v2046, %v2046
      %s2048 = scalar_lea.vmem %s219, 36
      %v2049 = vld [vmem:[%s2048] sm:$0xf]
      %v2051 = vsel %vm278, %v2049, 0
      %2053 = vmatprep.subr.bf16.mxu0 0
      %2054 = vmatpush1.bf16.msra.mxu0 0
      %2055 = vmatprep.subr.bf16.mxu0 0
      %2056 = vmatpush1.bf16.msra.mxu0 0
      %2057 = vmatprep.subr.bf16.mxu0 0
      %2058 = vmatpush1.bf16.msra.mxu0 0
      %2059 = vmatprep.subr.bf16.mxu0 0
      %2060 = vmatpush1.bf16.msra.mxu0 0
      %2061 = vmatprep.subr.bf16.mxu0 0
      %2062 = vmatpush1.bf16.msra.mxu0 0
      %2063 = vmatprep.subr.bf16.mxu0 0
      %2064 = vmatpush1.bf16.msra.mxu0 0
      %2065 = vmatprep.subr.bf16.mxu0 0
      %2066 = vmatpush1.bf16.msra.mxu0 0
      %2067 = vmatprep.subr.bf16.mxu0 0
      %2068 = vmatpush1.bf16.msra.mxu0 %v284
      %2069 = vmatprep.subr.bf16.mxu0 0
      %2070 = vmatpush2.bf16.msra.mxu0 0
      %2071 = vmatprep.subr.bf16.mxu0 0
      %2072 = vmatpush2.bf16.msra.mxu0 0
      %2073 = vmatprep.subr.bf16.mxu0 0
      %2074 = vmatpush2.bf16.msra.mxu0 0
      %2075 = vmatprep.subr.bf16.mxu0 0
      %2076 = vmatpush2.bf16.msra.mxu0 0
      %2077 = vmatprep.subr.bf16.mxu0 0
      %2078 = vmatpush2.bf16.msra.mxu0 0
      %2079 = vmatprep.subr.bf16.mxu0 0
      %2080 = vmatpush2.bf16.msra.mxu0 0
      %2081 = vmatprep.subr.bf16.mxu0 0
      %2082 = vmatpush2.bf16.msra.mxu0 0
      %2083 = vmatprep.subr.bf16.mxu0 0
      %2084 = vmatpush2.bf16.msra.mxu0 0
      %2085 = vmatprep.mubr.bf16.mxu0 0
      %2086 = vmatmul.mubr.bf16.gmra.mxu0 %v2051
      %v2087 = vpop.f32.mrf.mxu0
      %v2088 = vadd.f32 %v271, %v2087
      %v2089 = vpop.f32.mrf.mxu0
      %v2090 = vpop.f32.mrf.mxu0
      %v2091 = vpop.f32.mrf.mxu0
      %2092 = vdwg.mxu0
      %v2093 = vmax.f32 %v2088, 0.0
      %v2094 = vpack.c.bf16 %v2093, %v2093
      %v2096 = vsel %vm399, %v2094, 0
      %2098 = vmatprep.subr.bf16.mxu0 0
      %2099 = vmatpush1.bf16.msra.mxu0 0
      %2100 = vmatprep.subr.bf16.mxu0 0
      %2101 = vmatpush1.bf16.msra.mxu0 0
      %2102 = vmatprep.subr.bf16.mxu0 0
      %2103 = vmatpush1.bf16.msra.mxu0 0
      %2104 = vmatprep.subr.bf16.mxu0 0
      %2105 = vmatpush1.bf16.msra.mxu0 0
      %2106 = vmatprep.subr.bf16.mxu0 0
      %2107 = vmatpush1.bf16.msra.mxu0 0
      %2108 = vmatprep.subr.bf16.mxu0 0
      %2109 = vmatpush1.bf16.msra.mxu0 0
      %2110 = vmatprep.subr.bf16.mxu0 %v408
      %2111 = vmatpush1.bf16.msra.mxu0 %v405
      %2112 = vmatprep.subr.bf16.mxu0 %v391
      %2113 = vmatpush1.bf16.msra.mxu0 %v390
      %2114 = vmatprep.subr.bf16.mxu0 0
      %2115 = vmatpush2.bf16.msra.mxu0 0
      %2116 = vmatprep.subr.bf16.mxu0 0
      %2117 = vmatpush2.bf16.msra.mxu0 0
      %2118 = vmatprep.subr.bf16.mxu0 0
      %2119 = vmatpush2.bf16.msra.mxu0 0
      %2120 = vmatprep.subr.bf16.mxu0 0
      %2121 = vmatpush2.bf16.msra.mxu0 0
      %2122 = vmatprep.subr.bf16.mxu0 0
      %2123 = vmatpush2.bf16.msra.mxu0 0
      %2124 = vmatprep.subr.bf16.mxu0 0
      %2125 = vmatpush2.bf16.msra.mxu0 0
      %2126 = vmatprep.subr.bf16.mxu0 0
      %2127 = vmatpush2.bf16.msra.mxu0 0
      %2128 = vmatprep.subr.bf16.mxu0 0
      %2129 = vmatpush2.bf16.msra.mxu0 0
      %2130 = vmatprep.mubr.bf16.mxu0 0
      %2131 = vmatmul.mubr.bf16.gmra.mxu0 %v2096
      %v2132 = vpop.f32.mrf.mxu0
      %v2133 = vadd.f32 0.0, %v2132
      %v2134 = vpop.f32.mrf.mxu0
      %v2135 = vadd.f32 0.0, %v2134
      %v2136 = vpop.f32.mrf.mxu0
      %v2137 = vpop.f32.mrf.mxu0
      %2138 = vdwg.mxu0
      %2139 = vmatprep.subr.bf16.mxu0 0
      %2140 = vmatpush1.bf16.msra.mxu0 0
      %2141 = vmatprep.subr.bf16.mxu0 0
      %2142 = vmatpush1.bf16.msra.mxu0 0
      %2143 = vmatprep.subr.bf16.mxu0 0
      %2144 = vmatpush1.bf16.msra.mxu0 0
      %2145 = vmatprep.subr.bf16.mxu0 0
      %2146 = vmatpush1.bf16.msra.mxu0 0
      %2147 = vmatprep.subr.bf16.mxu0 0
      %2148 = vmatpush1.bf16.msra.mxu0 0
      %2149 = vmatprep.subr.bf16.mxu0 0
      %2150 = vmatpush1.bf16.msra.mxu0 0
      %2151 = vmatprep.subr.bf16.mxu0 0
      %2152 = vmatpush1.bf16.msra.mxu0 %v411
      %2153 = vmatprep.subr.bf16.mxu0 0
      %2154 = vmatpush1.bf16.msra.mxu0 %v392
      %2155 = vmatprep.subr.bf16.mxu0 0
      %2156 = vmatpush2.bf16.msra.mxu0 0
      %2157 = vmatprep.subr.bf16.mxu0 0
      %2158 = vmatpush2.bf16.msra.mxu0 0
      %2159 = vmatprep.subr.bf16.mxu0 0
      %2160 = vmatpush2.bf16.msra.mxu0 0
      %2161 = vmatprep.subr.bf16.mxu0 0
      %2162 = vmatpush2.bf16.msra.mxu0 0
      %2163 = vmatprep.subr.bf16.mxu0 0
      %2164 = vmatpush2.bf16.msra.mxu0 0
      %2165 = vmatprep.subr.bf16.mxu0 0
      %2166 = vmatpush2.bf16.msra.mxu0 0
      %2167 = vmatprep.subr.bf16.mxu0 0
      %2168 = vmatpush2.bf16.msra.mxu0 0
      %2169 = vmatprep.subr.bf16.mxu0 0
      %2170 = vmatpush2.bf16.msra.mxu0 0
      %2171 = vmatprep.mubr.bf16.mxu0 0
      %2172 = vmatmul.mubr.bf16.gmra.mxu0 %v2096
      %v2173 = vpop.f32.mrf.mxu0
      %v2174 = vadd.f32 0.0, %v2173
      %v2175 = vpop.f32.mrf.mxu0
      %v2176 = vpop.f32.mrf.mxu0
      %v2177 = vpop.f32.mrf.mxu0
      %2178 = vdwg.mxu0
      %v2180 = vsel %vm399, %v2047, 0
      %2182 = vmatprep.subr.bf16.mxu0 0
      %2183 = vmatpush1.bf16.msra.mxu0 0
      %2184 = vmatprep.subr.bf16.mxu0 0
      %2185 = vmatpush1.bf16.msra.mxu0 0
      %2186 = vmatprep.subr.bf16.mxu0 0
      %2187 = vmatpush1.bf16.msra.mxu0 0
      %2188 = vmatprep.subr.bf16.mxu0 0
      %2189 = vmatpush1.bf16.msra.mxu0 0
      %2190 = vmatprep.subr.bf16.mxu0 0
      %2191 = vmatpush1.bf16.msra.mxu0 0
      %2192 = vmatprep.subr.bf16.mxu0 0
      %2193 = vmatpush1.bf16.msra.mxu0 0
      %2194 = vmatprep.subr.bf16.mxu0 %v525
      %2195 = vmatpush1.bf16.msra.mxu0 %v522
      %2196 = vmatprep.subr.bf16.mxu0 %v510
      %2197 = vmatpush1.bf16.msra.mxu0 %v509
      %2198 = vmatprep.subr.bf16.mxu0 0
      %2199 = vmatpush2.bf16.msra.mxu0 0
      %2200 = vmatprep.subr.bf16.mxu0 0
      %2201 = vmatpush2.bf16.msra.mxu0 0
      %2202 = vmatprep.subr.bf16.mxu0 0
      %2203 = vmatpush2.bf16.msra.mxu0 0
      %2204 = vmatprep.subr.bf16.mxu0 0
      %2205 = vmatpush2.bf16.msra.mxu0 0
      %2206 = vmatprep.subr.bf16.mxu0 0
      %2207 = vmatpush2.bf16.msra.mxu0 0
      %2208 = vmatprep.subr.bf16.mxu0 0
      %2209 = vmatpush2.bf16.msra.mxu0 0
      %2210 = vmatprep.subr.bf16.mxu0 0
      %2211 = vmatpush2.bf16.msra.mxu0 0
      %2212 = vmatprep.subr.bf16.mxu0 0
      %2213 = vmatpush2.bf16.msra.mxu0 0
      %2214 = vmatprep.mubr.bf16.mxu0 0
      %2215 = vmatmul.mubr.bf16.gmra.mxu0 %v2180
      %v2216 = vpop.f32.mrf.mxu0
      %v2217 = vadd.f32 %v2133, %v2216
      %v2218 = vpop.f32.mrf.mxu0
      %v2219 = vadd.f32 %v2135, %v2218
      %v2220 = vpop.f32.mrf.mxu0
      %v2221 = vpop.f32.mrf.mxu0
      %2222 = vdwg.mxu0
      %2223 = vmatprep.subr.bf16.mxu0 0
      %2224 = vmatpush1.bf16.msra.mxu0 0
      %2225 = vmatprep.subr.bf16.mxu0 0
      %2226 = vmatpush1.bf16.msra.mxu0 0
      %2227 = vmatprep.subr.bf16.mxu0 0
      %2228 = vmatpush1.bf16.msra.mxu0 0
      %2229 = vmatprep.subr.bf16.mxu0 0
      %2230 = vmatpush1.bf16.msra.mxu0 0
      %2231 = vmatprep.subr.bf16.mxu0 0
      %2232 = vmatpush1.bf16.msra.mxu0 0
      %2233 = vmatprep.subr.bf16.mxu0 0
      %2234 = vmatpush1.bf16.msra.mxu0 0
      %2235 = vmatprep.subr.bf16.mxu0 0
      %2236 = vmatpush1.bf16.msra.mxu0 %v528
      %2237 = vmatprep.subr.bf16.mxu0 0
      %2238 = vmatpush1.bf16.msra.mxu0 %v511
      %2239 = vmatprep.subr.bf16.mxu0 0
      %2240 = vmatpush2.bf16.msra.mxu0 0
      %2241 = vmatprep.subr.bf16.mxu0 0
      %2242 = vmatpush2.bf16.msra.mxu0 0
      %2243 = vmatprep.subr.bf16.mxu0 0
      %2244 = vmatpush2.bf16.msra.mxu0 0
      %2245 = vmatprep.subr.bf16.mxu0 0
      %2246 = vmatpush2.bf16.msra.mxu0 0
      %2247 = vmatprep.subr.bf16.mxu0 0
      %2248 = vmatpush2.bf16.msra.mxu0 0
      %2249 = vmatprep.subr.bf16.mxu0 0
      %2250 = vmatpush2.bf16.msra.mxu0 0
      %2251 = vmatprep.subr.bf16.mxu0 0
      %2252 = vmatpush2.bf16.msra.mxu0 0
      %2253 = vmatprep.subr.bf16.mxu0 0
      %2254 = vmatpush2.bf16.msra.mxu0 0
      %2255 = vmatprep.mubr.bf16.mxu0 0
      %2256 = vmatmul.mubr.bf16.gmra.mxu0 %v2180
      %v2257 = vpop.f32.mrf.mxu0
      %v2258 = vadd.f32 %v2174, %v2257
      %v2259 = vpop.f32.mrf.mxu0
      %v2260 = vpop.f32.mrf.mxu0
      %v2261 = vpop.f32.mrf.mxu0
      %2262 = vdwg.mxu0
      %s2263 = scalar_lea.vmem %s219, 40
      %v2264 = vld [vmem:[%s2263] sm:$0xf]
      %v2266 = vsel %vm278, %v2264, 0
      %2268 = vmatprep.subr.bf16.mxu0 0
      %2269 = vmatpush1.bf16.msra.mxu0 0
      %2270 = vmatprep.subr.bf16.mxu0 0
      %2271 = vmatpush1.bf16.msra.mxu0 0
      %2272 = vmatprep.subr.bf16.mxu0 0
      %2273 = vmatpush1.bf16.msra.mxu0 0
      %2274 = vmatprep.subr.bf16.mxu0 0
      %2275 = vmatpush1.bf16.msra.mxu0 0
      %2276 = vmatprep.subr.bf16.mxu0 0
      %2277 = vmatpush1.bf16.msra.mxu0 0
      %2278 = vmatprep.subr.bf16.mxu0 0
      %2279 = vmatpush1.bf16.msra.mxu0 0
      %2280 = vmatprep.subr.bf16.mxu0 0
      %2281 = vmatpush1.bf16.msra.mxu0 0
      %2282 = vmatprep.subr.bf16.mxu0 0
      %2283 = vmatpush1.bf16.msra.mxu0 %v284
      %2284 = vmatprep.subr.bf16.mxu0 0
      %2285 = vmatpush2.bf16.msra.mxu0 0
      %2286 = vmatprep.subr.bf16.mxu0 0
      %2287 = vmatpush2.bf16.msra.mxu0 0
      %2288 = vmatprep.subr.bf16.mxu0 0
      %2289 = vmatpush2.bf16.msra.mxu0 0
      %2290 = vmatprep.subr.bf16.mxu0 0
      %2291 = vmatpush2.bf16.msra.mxu0 0
      %2292 = vmatprep.subr.bf16.mxu0 0
      %2293 = vmatpush2.bf16.msra.mxu0 0
      %2294 = vmatprep.subr.bf16.mxu0 0
      %2295 = vmatpush2.bf16.msra.mxu0 0
      %2296 = vmatprep.subr.bf16.mxu0 0
      %2297 = vmatpush2.bf16.msra.mxu0 0
      %2298 = vmatprep.subr.bf16.mxu0 0
      %2299 = vmatpush2.bf16.msra.mxu0 0
      %2300 = vmatprep.mubr.bf16.mxu0 0
      %2301 = vmatmul.mubr.bf16.gmra.mxu0 %v2266
      %v2302 = vpop.f32.mrf.mxu0
      %v2303 = vadd.f32 %v271, %v2302
      %v2304 = vpop.f32.mrf.mxu0
      %v2305 = vpop.f32.mrf.mxu0
      %v2306 = vpop.f32.mrf.mxu0
      %2307 = vdwg.mxu0
      %v2308 = vmax.f32 %v2303, 0.0
      %v2309 = vpack.c.bf16 %v2308, %v2308
      %v2311 = vsel %vm399, %v2309, 0
      %2313 = vmatprep.subr.bf16.mxu0 0
      %2314 = vmatpush1.bf16.msra.mxu0 0
      %2315 = vmatprep.subr.bf16.mxu0 0
      %2316 = vmatpush1.bf16.msra.mxu0 0
      %2317 = vmatprep.subr.bf16.mxu0 0
      %2318 = vmatpush1.bf16.msra.mxu0 0
      %2319 = vmatprep.subr.bf16.mxu0 0
      %2320 = vmatpush1.bf16.msra.mxu0 0
      %2321 = vmatprep.subr.bf16.mxu0 0
      %2322 = vmatpush1.bf16.msra.mxu0 0
      %2323 = vmatprep.subr.bf16.mxu0 0
      %2324 = vmatpush1.bf16.msra.mxu0 0
      %2325 = vmatprep.subr.bf16.mxu0 %v689
      %2326 = vmatpush1.bf16.msra.mxu0 %v686
      %2327 = vmatprep.subr.bf16.mxu0 %v674
      %2328 = vmatpush1.bf16.msra.mxu0 %v673
      %2329 = vmatprep.subr.bf16.mxu0 0
      %2330 = vmatpush2.bf16.msra.mxu0 0
      %2331 = vmatprep.subr.bf16.mxu0 0
      %2332 = vmatpush2.bf16.msra.mxu0 0
      %2333 = vmatprep.subr.bf16.mxu0 0
      %2334 = vmatpush2.bf16.msra.mxu0 0
      %2335 = vmatprep.subr.bf16.mxu0 0
      %2336 = vmatpush2.bf16.msra.mxu0 0
      %2337 = vmatprep.subr.bf16.mxu0 0
      %2338 = vmatpush2.bf16.msra.mxu0 0
      %2339 = vmatprep.subr.bf16.mxu0 0
      %2340 = vmatpush2.bf16.msra.mxu0 0
      %2341 = vmatprep.subr.bf16.mxu0 0
      %2342 = vmatpush2.bf16.msra.mxu0 0
      %2343 = vmatprep.subr.bf16.mxu0 0
      %2344 = vmatpush2.bf16.msra.mxu0 0
      %2345 = vmatprep.mubr.bf16.mxu0 0
      %2346 = vmatmul.mubr.bf16.gmra.mxu0 %v2311
      %v2347 = vpop.f32.mrf.mxu0
      %v2348 = vadd.f32 0.0, %v2347
      %v2349 = vpop.f32.mrf.mxu0
      %v2350 = vadd.f32 0.0, %v2349
      %v2351 = vpop.f32.mrf.mxu0
      %v2352 = vpop.f32.mrf.mxu0
      %2353 = vdwg.mxu0
      %2354 = vmatprep.subr.bf16.mxu0 0
      %2355 = vmatpush1.bf16.msra.mxu0 0
      %2356 = vmatprep.subr.bf16.mxu0 0
      %2357 = vmatpush1.bf16.msra.mxu0 0
      %2358 = vmatprep.subr.bf16.mxu0 0
      %2359 = vmatpush1.bf16.msra.mxu0 0
      %2360 = vmatprep.subr.bf16.mxu0 0
      %2361 = vmatpush1.bf16.msra.mxu0 0
      %2362 = vmatprep.subr.bf16.mxu0 0
      %2363 = vmatpush1.bf16.msra.mxu0 0
      %2364 = vmatprep.subr.bf16.mxu0 0
      %2365 = vmatpush1.bf16.msra.mxu0 0
      %2366 = vmatprep.subr.bf16.mxu0 0
      %2367 = vmatpush1.bf16.msra.mxu0 %v692
      %2368 = vmatprep.subr.bf16.mxu0 0
      %2369 = vmatpush1.bf16.msra.mxu0 %v675
      %2370 = vmatprep.subr.bf16.mxu0 0
      %2371 = vmatpush2.bf16.msra.mxu0 0
      %2372 = vmatprep.subr.bf16.mxu0 0
      %2373 = vmatpush2.bf16.msra.mxu0 0
      %2374 = vmatprep.subr.bf16.mxu0 0
      %2375 = vmatpush2.bf16.msra.mxu0 0
      %2376 = vmatprep.subr.bf16.mxu0 0
      %2377 = vmatpush2.bf16.msra.mxu0 0
      %2378 = vmatprep.subr.bf16.mxu0 0
      %2379 = vmatpush2.bf16.msra.mxu0 0
      %2380 = vmatprep.subr.bf16.mxu0 0
      %2381 = vmatpush2.bf16.msra.mxu0 0
      %2382 = vmatprep.subr.bf16.mxu0 0
      %2383 = vmatpush2.bf16.msra.mxu0 0
      %2384 = vmatprep.subr.bf16.mxu0 0
      %2385 = vmatpush2.bf16.msra.mxu0 0
      %2386 = vmatprep.mubr.bf16.mxu0 0
      %2387 = vmatmul.mubr.bf16.gmra.mxu0 %v2311
      %v2388 = vpop.f32.mrf.mxu0
      %v2389 = vadd.f32 0.0, %v2388
      %v2390 = vpop.f32.mrf.mxu0
      %v2391 = vpop.f32.mrf.mxu0
      %v2392 = vpop.f32.mrf.mxu0
      %2393 = vdwg.mxu0
      %v2394 = vadd.f32 %v2217, %v2348
      %v2395 = vadd.f32 %v2219, %v2350
      %v2396 = vadd.f32 %v2258, %v2389
      %v2397 = vadd.f32 %v2394, %v254
      %v2398 = vadd.f32 %v2395, %v258
      %v2399 = vadd.f32 %v2396, %v262
      %v2400 = vmax.f32 %v2397, 0.0
      %v2401 = vmax.f32 %v2398, 0.0
      %v2402 = vmax.f32 %v2399, 0.0
      %s2403 = scalar_lea.vmem %s224, 96
      %2404 = vst [vmem:[%s2403] sm:$0x7f] %v2400
      %2405 = vst [vmem:[%s2403 + $0x8] sm:$0x7f] %v2401
      %2406 = vst [vmem:[%s2403 + $0x10] sm:$0x7f] %v2402
      %v2407 = vld [vmem:[%s2263] sm:$0xf]
      %v2409 = vsel %vm278, %v2407, 0
      %2411 = vmatprep.subr.bf16.mxu0 0
      %2412 = vmatpush1.bf16.msra.mxu0 0
      %2413 = vmatprep.subr.bf16.mxu0 0
      %2414 = vmatpush1.bf16.msra.mxu0 0
      %2415 = vmatprep.subr.bf16.mxu0 0
      %2416 = vmatpush1.bf16.msra.mxu0 0
      %2417 = vmatprep.subr.bf16.mxu0 0
      %2418 = vmatpush1.bf16.msra.mxu0 0
      %2419 = vmatprep.subr.bf16.mxu0 0
      %2420 = vmatpush1.bf16.msra.mxu0 0
      %2421 = vmatprep.subr.bf16.mxu0 0
      %2422 = vmatpush1.bf16.msra.mxu0 0
      %2423 = vmatprep.subr.bf16.mxu0 0
      %2424 = vmatpush1.bf16.msra.mxu0 0
      %2425 = vmatprep.subr.bf16.mxu0 0
      %2426 = vmatpush1.bf16.msra.mxu0 %v284
      %2427 = vmatprep.subr.bf16.mxu0 0
      %2428 = vmatpush2.bf16.msra.mxu0 0
      %2429 = vmatprep.subr.bf16.mxu0 0
      %2430 = vmatpush2.bf16.msra.mxu0 0
      %2431 = vmatprep.subr.bf16.mxu0 0
      %2432 = vmatpush2.bf16.msra.mxu0 0
      %2433 = vmatprep.subr.bf16.mxu0 0
      %2434 = vmatpush2.bf16.msra.mxu0 0
      %2435 = vmatprep.subr.bf16.mxu0 0
      %2436 = vmatpush2.bf16.msra.mxu0 0
      %2437 = vmatprep.subr.bf16.mxu0 0
      %2438 = vmatpush2.bf16.msra.mxu0 0
      %2439 = vmatprep.subr.bf16.mxu0 0
      %2440 = vmatpush2.bf16.msra.mxu0 0
      %2441 = vmatprep.subr.bf16.mxu0 0
      %2442 = vmatpush2.bf16.msra.mxu0 0
      %2443 = vmatprep.mubr.bf16.mxu0 0
      %2444 = vmatmul.mubr.bf16.gmra.mxu0 %v2409
      %v2445 = vpop.f32.mrf.mxu0
      %v2446 = vadd.f32 %v271, %v2445
      %v2447 = vpop.f32.mrf.mxu0
      %v2448 = vpop.f32.mrf.mxu0
      %v2449 = vpop.f32.mrf.mxu0
      %2450 = vdwg.mxu0
      %v2451 = vmax.f32 %v2446, 0.0
      %v2452 = vpack.c.bf16 %v2451, %v2451
      %s2453 = scalar_lea.vmem %s219, 44
      %v2454 = vld [vmem:[%s2453] sm:$0xf]
      %v2456 = vsel %vm278, %v2454, 0
      %2458 = vmatprep.subr.bf16.mxu0 0
      %2459 = vmatpush1.bf16.msra.mxu0 0
      %2460 = vmatprep.subr.bf16.mxu0 0
      %2461 = vmatpush1.bf16.msra.mxu0 0
      %2462 = vmatprep.subr.bf16.mxu0 0
      %2463 = vmatpush1.bf16.msra.mxu0 0
      %2464 = vmatprep.subr.bf16.mxu0 0
      %2465 = vmatpush1.bf16.msra.mxu0 0
      %2466 = vmatprep.subr.bf16.mxu0 0
      %2467 = vmatpush1.bf16.msra.mxu0 0
      %2468 = vmatprep.subr.bf16.mxu0 0
      %2469 = vmatpush1.bf16.msra.mxu0 0
      %2470 = vmatprep.subr.bf16.mxu0 0
      %2471 = vmatpush1.bf16.msra.mxu0 0
      %2472 = vmatprep.subr.bf16.mxu0 0
      %2473 = vmatpush1.bf16.msra.mxu0 %v284
      %2474 = vmatprep.subr.bf16.mxu0 0
      %2475 = vmatpush2.bf16.msra.mxu0 0
      %2476 = vmatprep.subr.bf16.mxu0 0
      %2477 = vmatpush2.bf16.msra.mxu0 0
      %2478 = vmatprep.subr.bf16.mxu0 0
      %2479 = vmatpush2.bf16.msra.mxu0 0
      %2480 = vmatprep.subr.bf16.mxu0 0
      %2481 = vmatpush2.bf16.msra.mxu0 0
      %2482 = vmatprep.subr.bf16.mxu0 0
      %2483 = vmatpush2.bf16.msra.mxu0 0
      %2484 = vmatprep.subr.bf16.mxu0 0
      %2485 = vmatpush2.bf16.msra.mxu0 0
      %2486 = vmatprep.subr.bf16.mxu0 0
      %2487 = vmatpush2.bf16.msra.mxu0 0
      %2488 = vmatprep.subr.bf16.mxu0 0
      %2489 = vmatpush2.bf16.msra.mxu0 0
      %2490 = vmatprep.mubr.bf16.mxu0 0
      %2491 = vmatmul.mubr.bf16.gmra.mxu0 %v2456
      %v2492 = vpop.f32.mrf.mxu0
      %v2493 = vadd.f32 %v271, %v2492
      %v2494 = vpop.f32.mrf.mxu0
      %v2495 = vpop.f32.mrf.mxu0
      %v2496 = vpop.f32.mrf.mxu0
      %2497 = vdwg.mxu0
      %v2498 = vmax.f32 %v2493, 0.0
      %v2499 = vpack.c.bf16 %v2498, %v2498
      %v2501 = vsel %vm399, %v2499, 0
      %2503 = vmatprep.subr.bf16.mxu0 0
      %2504 = vmatpush1.bf16.msra.mxu0 0
      %2505 = vmatprep.subr.bf16.mxu0 0
      %2506 = vmatpush1.bf16.msra.mxu0 0
      %2507 = vmatprep.subr.bf16.mxu0 0
      %2508 = vmatpush1.bf16.msra.mxu0 0
      %2509 = vmatprep.subr.bf16.mxu0 0
      %2510 = vmatpush1.bf16.msra.mxu0 0
      %2511 = vmatprep.subr.bf16.mxu0 0
      %2512 = vmatpush1.bf16.msra.mxu0 0
      %2513 = vmatprep.subr.bf16.mxu0 0
      %2514 = vmatpush1.bf16.msra.mxu0 0
      %2515 = vmatprep.subr.bf16.mxu0 %v408
      %2516 = vmatpush1.bf16.msra.mxu0 %v405
      %2517 = vmatprep.subr.bf16.mxu0 %v391
      %2518 = vmatpush1.bf16.msra.mxu0 %v390
      %2519 = vmatprep.subr.bf16.mxu0 0
      %2520 = vmatpush2.bf16.msra.mxu0 0
      %2521 = vmatprep.subr.bf16.mxu0 0
      %2522 = vmatpush2.bf16.msra.mxu0 0
      %2523 = vmatprep.subr.bf16.mxu0 0
      %2524 = vmatpush2.bf16.msra.mxu0 0
      %2525 = vmatprep.subr.bf16.mxu0 0
      %2526 = vmatpush2.bf16.msra.mxu0 0
      %2527 = vmatprep.subr.bf16.mxu0 0
      %2528 = vmatpush2.bf16.msra.mxu0 0
      %2529 = vmatprep.subr.bf16.mxu0 0
      %2530 = vmatpush2.bf16.msra.mxu0 0
      %2531 = vmatprep.subr.bf16.mxu0 0
      %2532 = vmatpush2.bf16.msra.mxu0 0
      %2533 = vmatprep.subr.bf16.mxu0 0
      %2534 = vmatpush2.bf16.msra.mxu0 0
      %2535 = vmatprep.mubr.bf16.mxu0 0
      %2536 = vmatmul.mubr.bf16.gmra.mxu0 %v2501
      %v2537 = vpop.f32.mrf.mxu0
      %v2538 = vadd.f32 0.0, %v2537
      %v2539 = vpop.f32.mrf.mxu0
      %v2540 = vadd.f32 0.0, %v2539
      %v2541 = vpop.f32.mrf.mxu0
      %v2542 = vpop.f32.mrf.mxu0
      %2543 = vdwg.mxu0
      %2544 = vmatprep.subr.bf16.mxu0 0
      %2545 = vmatpush1.bf16.msra.mxu0 0
      %2546 = vmatprep.subr.bf16.mxu0 0
      %2547 = vmatpush1.bf16.msra.mxu0 0
      %2548 = vmatprep.subr.bf16.mxu0 0
      %2549 = vmatpush1.bf16.msra.mxu0 0
      %2550 = vmatprep.subr.bf16.mxu0 0
      %2551 = vmatpush1.bf16.msra.mxu0 0
      %2552 = vmatprep.subr.bf16.mxu0 0
      %2553 = vmatpush1.bf16.msra.mxu0 0
      %2554 = vmatprep.subr.bf16.mxu0 0
      %2555 = vmatpush1.bf16.msra.mxu0 0
      %2556 = vmatprep.subr.bf16.mxu0 0
      %2557 = vmatpush1.bf16.msra.mxu0 %v411
      %2558 = vmatprep.subr.bf16.mxu0 0
      %2559 = vmatpush1.bf16.msra.mxu0 %v392
      %2560 = vmatprep.subr.bf16.mxu0 0
      %2561 = vmatpush2.bf16.msra.mxu0 0
      %2562 = vmatprep.subr.bf16.mxu0 0
      %2563 = vmatpush2.bf16.msra.mxu0 0
      %2564 = vmatprep.subr.bf16.mxu0 0
      %2565 = vmatpush2.bf16.msra.mxu0 0
      %2566 = vmatprep.subr.bf16.mxu0 0
      %2567 = vmatpush2.bf16.msra.mxu0 0
      %2568 = vmatprep.subr.bf16.mxu0 0
      %2569 = vmatpush2.bf16.msra.mxu0 0
      %2570 = vmatprep.subr.bf16.mxu0 0
      %2571 = vmatpush2.bf16.msra.mxu0 0
      %2572 = vmatprep.subr.bf16.mxu0 0
      %2573 = vmatpush2.bf16.msra.mxu0 0
      %2574 = vmatprep.subr.bf16.mxu0 0
      %2575 = vmatpush2.bf16.msra.mxu0 0
      %2576 = vmatprep.mubr.bf16.mxu0 0
      %2577 = vmatmul.mubr.bf16.gmra.mxu0 %v2501
      %v2578 = vpop.f32.mrf.mxu0
      %v2579 = vadd.f32 0.0, %v2578
      %v2580 = vpop.f32.mrf.mxu0
      %v2581 = vpop.f32.mrf.mxu0
      %v2582 = vpop.f32.mrf.mxu0
      %2583 = vdwg.mxu0
      %v2585 = vsel %vm399, %v2452, 0
      %2587 = vmatprep.subr.bf16.mxu0 0
      %2588 = vmatpush1.bf16.msra.mxu0 0
      %2589 = vmatprep.subr.bf16.mxu0 0
      %2590 = vmatpush1.bf16.msra.mxu0 0
      %2591 = vmatprep.subr.bf16.mxu0 0
      %2592 = vmatpush1.bf16.msra.mxu0 0
      %2593 = vmatprep.subr.bf16.mxu0 0
      %2594 = vmatpush1.bf16.msra.mxu0 0
      %2595 = vmatprep.subr.bf16.mxu0 0
      %2596 = vmatpush1.bf16.msra.mxu0 0
      %2597 = vmatprep.subr.bf16.mxu0 0
      %2598 = vmatpush1.bf16.msra.mxu0 0
      %2599 = vmatprep.subr.bf16.mxu0 %v525
      %2600 = vmatpush1.bf16.msra.mxu0 %v522
      %2601 = vmatprep.subr.bf16.mxu0 %v510
      %2602 = vmatpush1.bf16.msra.mxu0 %v509
      %2603 = vmatprep.subr.bf16.mxu0 0
      %2604 = vmatpush2.bf16.msra.mxu0 0
      %2605 = vmatprep.subr.bf16.mxu0 0
      %2606 = vmatpush2.bf16.msra.mxu0 0
      %2607 = vmatprep.subr.bf16.mxu0 0
      %2608 = vmatpush2.bf16.msra.mxu0 0
      %2609 = vmatprep.subr.bf16.mxu0 0
      %2610 = vmatpush2.bf16.msra.mxu0 0
      %2611 = vmatprep.subr.bf16.mxu0 0
      %2612 = vmatpush2.bf16.msra.mxu0 0
      %2613 = vmatprep.subr.bf16.mxu0 0
      %2614 = vmatpush2.bf16.msra.mxu0 0
      %2615 = vmatprep.subr.bf16.mxu0 0
      %2616 = vmatpush2.bf16.msra.mxu0 0
      %2617 = vmatprep.subr.bf16.mxu0 0
      %2618 = vmatpush2.bf16.msra.mxu0 0
      %2619 = vmatprep.mubr.bf16.mxu0 0
      %2620 = vmatmul.mubr.bf16.gmra.mxu0 %v2585
      %v2621 = vpop.f32.mrf.mxu0
      %v2622 = vadd.f32 %v2538, %v2621
      %v2623 = vpop.f32.mrf.mxu0
      %v2624 = vadd.f32 %v2540, %v2623
      %v2625 = vpop.f32.mrf.mxu0
      %v2626 = vpop.f32.mrf.mxu0
      %2627 = vdwg.mxu0
      %2628 = vmatprep.subr.bf16.mxu0 0
      %2629 = vmatpush1.bf16.msra.mxu0 0
      %2630 = vmatprep.subr.bf16.mxu0 0
      %2631 = vmatpush1.bf16.msra.mxu0 0
      %2632 = vmatprep.subr.bf16.mxu0 0
      %2633 = vmatpush1.bf16.msra.mxu0 0
      %2634 = vmatprep.subr.bf16.mxu0 0
      %2635 = vmatpush1.bf16.msra.mxu0 0
      %2636 = vmatprep.subr.bf16.mxu0 0
      %2637 = vmatpush1.bf16.msra.mxu0 0
      %2638 = vmatprep.subr.bf16.mxu0 0
      %2639 = vmatpush1.bf16.msra.mxu0 0
      %2640 = vmatprep.subr.bf16.mxu0 0
      %2641 = vmatpush1.bf16.msra.mxu0 %v528
      %2642 = vmatprep.subr.bf16.mxu0 0
      %2643 = vmatpush1.bf16.msra.mxu0 %v511
      %2644 = vmatprep.subr.bf16.mxu0 0
      %2645 = vmatpush2.bf16.msra.mxu0 0
      %2646 = vmatprep.subr.bf16.mxu0 0
      %2647 = vmatpush2.bf16.msra.mxu0 0
      %2648 = vmatprep.subr.bf16.mxu0 0
      %2649 = vmatpush2.bf16.msra.mxu0 0
      %2650 = vmatprep.subr.bf16.mxu0 0
      %2651 = vmatpush2.bf16.msra.mxu0 0
      %2652 = vmatprep.subr.bf16.mxu0 0
      %2653 = vmatpush2.bf16.msra.mxu0 0
      %2654 = vmatprep.subr.bf16.mxu0 0
      %2655 = vmatpush2.bf16.msra.mxu0 0
      %2656 = vmatprep.subr.bf16.mxu0 0
      %2657 = vmatpush2.bf16.msra.mxu0 0
      %2658 = vmatprep.subr.bf16.mxu0 0
      %2659 = vmatpush2.bf16.msra.mxu0 0
      %2660 = vmatprep.mubr.bf16.mxu0 0
      %2661 = vmatmul.mubr.bf16.gmra.mxu0 %v2585
      %v2662 = vpop.f32.mrf.mxu0
      %v2663 = vadd.f32 %v2579, %v2662
      %v2664 = vpop.f32.mrf.mxu0
      %v2665 = vpop.f32.mrf.mxu0
      %v2666 = vpop.f32.mrf.mxu0
      %2667 = vdwg.mxu0
      %s2668 = scalar_lea.vmem %s219, 48
      %v2669 = vld [vmem:[%s2668] sm:$0xf]
      %v2671 = vsel %vm278, %v2669, 0
      %2673 = vmatprep.subr.bf16.mxu0 0
      %2674 = vmatpush1.bf16.msra.mxu0 0
      %2675 = vmatprep.subr.bf16.mxu0 0
      %2676 = vmatpush1.bf16.msra.mxu0 0
      %2677 = vmatprep.subr.bf16.mxu0 0
      %2678 = vmatpush1.bf16.msra.mxu0 0
      %2679 = vmatprep.subr.bf16.mxu0 0
      %2680 = vmatpush1.bf16.msra.mxu0 0
      %2681 = vmatprep.subr.bf16.mxu0 0
      %2682 = vmatpush1.bf16.msra.mxu0 0
      %2683 = vmatprep.subr.bf16.mxu0 0
      %2684 = vmatpush1.bf16.msra.mxu0 0
      %2685 = vmatprep.subr.bf16.mxu0 0
      %2686 = vmatpush1.bf16.msra.mxu0 0
      %2687 = vmatprep.subr.bf16.mxu0 0
      %2688 = vmatpush1.bf16.msra.mxu0 %v284
      %2689 = vmatprep.subr.bf16.mxu0 0
      %2690 = vmatpush2.bf16.msra.mxu0 0
      %2691 = vmatprep.subr.bf16.mxu0 0
      %2692 = vmatpush2.bf16.msra.mxu0 0
      %2693 = vmatprep.subr.bf16.mxu0 0
      %2694 = vmatpush2.bf16.msra.mxu0 0
      %2695 = vmatprep.subr.bf16.mxu0 0
      %2696 = vmatpush2.bf16.msra.mxu0 0
      %2697 = vmatprep.subr.bf16.mxu0 0
      %2698 = vmatpush2.bf16.msra.mxu0 0
      %2699 = vmatprep.subr.bf16.mxu0 0
      %2700 = vmatpush2.bf16.msra.mxu0 0
      %2701 = vmatprep.subr.bf16.mxu0 0
      %2702 = vmatpush2.bf16.msra.mxu0 0
      %2703 = vmatprep.subr.bf16.mxu0 0
      %2704 = vmatpush2.bf16.msra.mxu0 0
      %2705 = vmatprep.mubr.bf16.mxu0 0
      %2706 = vmatmul.mubr.bf16.gmra.mxu0 %v2671
      %v2707 = vpop.f32.mrf.mxu0
      %v2708 = vadd.f32 %v271, %v2707
      %v2709 = vpop.f32.mrf.mxu0
      %v2710 = vpop.f32.mrf.mxu0
      %v2711 = vpop.f32.mrf.mxu0
      %2712 = vdwg.mxu0
      %v2713 = vmax.f32 %v2708, 0.0
      %v2714 = vpack.c.bf16 %v2713, %v2713
      %v2716 = vsel %vm399, %v2714, 0
      %2718 = vmatprep.subr.bf16.mxu0 0
      %2719 = vmatpush1.bf16.msra.mxu0 0
      %2720 = vmatprep.subr.bf16.mxu0 0
      %2721 = vmatpush1.bf16.msra.mxu0 0
      %2722 = vmatprep.subr.bf16.mxu0 0
      %2723 = vmatpush1.bf16.msra.mxu0 0
      %2724 = vmatprep.subr.bf16.mxu0 0
      %2725 = vmatpush1.bf16.msra.mxu0 0
      %2726 = vmatprep.subr.bf16.mxu0 0
      %2727 = vmatpush1.bf16.msra.mxu0 0
      %2728 = vmatprep.subr.bf16.mxu0 0
      %2729 = vmatpush1.bf16.msra.mxu0 0
      %2730 = vmatprep.subr.bf16.mxu0 %v689
      %2731 = vmatpush1.bf16.msra.mxu0 %v686
      %2732 = vmatprep.subr.bf16.mxu0 %v674
      %2733 = vmatpush1.bf16.msra.mxu0 %v673
      %2734 = vmatprep.subr.bf16.mxu0 0
      %2735 = vmatpush2.bf16.msra.mxu0 0
      %2736 = vmatprep.subr.bf16.mxu0 0
      %2737 = vmatpush2.bf16.msra.mxu0 0
      %2738 = vmatprep.subr.bf16.mxu0 0
      %2739 = vmatpush2.bf16.msra.mxu0 0
      %2740 = vmatprep.subr.bf16.mxu0 0
      %2741 = vmatpush2.bf16.msra.mxu0 0
      %2742 = vmatprep.subr.bf16.mxu0 0
      %2743 = vmatpush2.bf16.msra.mxu0 0
      %2744 = vmatprep.subr.bf16.mxu0 0
      %2745 = vmatpush2.bf16.msra.mxu0 0
      %2746 = vmatprep.subr.bf16.mxu0 0
      %2747 = vmatpush2.bf16.msra.mxu0 0
      %2748 = vmatprep.subr.bf16.mxu0 0
      %2749 = vmatpush2.bf16.msra.mxu0 0
      %2750 = vmatprep.mubr.bf16.mxu0 0
      %2751 = vmatmul.mubr.bf16.gmra.mxu0 %v2716
      %v2752 = vpop.f32.mrf.mxu0
      %v2753 = vadd.f32 0.0, %v2752
      %v2754 = vpop.f32.mrf.mxu0
      %v2755 = vadd.f32 0.0, %v2754
      %v2756 = vpop.f32.mrf.mxu0
      %v2757 = vpop.f32.mrf.mxu0
      %2758 = vdwg.mxu0
      %2759 = vmatprep.subr.bf16.mxu0 0
      %2760 = vmatpush1.bf16.msra.mxu0 0
      %2761 = vmatprep.subr.bf16.mxu0 0
      %2762 = vmatpush1.bf16.msra.mxu0 0
      %2763 = vmatprep.subr.bf16.mxu0 0
      %2764 = vmatpush1.bf16.msra.mxu0 0
      %2765 = vmatprep.subr.bf16.mxu0 0
      %2766 = vmatpush1.bf16.msra.mxu0 0
      %2767 = vmatprep.subr.bf16.mxu0 0
      %2768 = vmatpush1.bf16.msra.mxu0 0
      %2769 = vmatprep.subr.bf16.mxu0 0
      %2770 = vmatpush1.bf16.msra.mxu0 0
      %2771 = vmatprep.subr.bf16.mxu0 0
      %2772 = vmatpush1.bf16.msra.mxu0 %v692
      %2773 = vmatprep.subr.bf16.mxu0 0
      %2774 = vmatpush1.bf16.msra.mxu0 %v675
      %2775 = vmatprep.subr.bf16.mxu0 0
      %2776 = vmatpush2.bf16.msra.mxu0 0
      %2777 = vmatprep.subr.bf16.mxu0 0
      %2778 = vmatpush2.bf16.msra.mxu0 0
      %2779 = vmatprep.subr.bf16.mxu0 0
      %2780 = vmatpush2.bf16.msra.mxu0 0
      %2781 = vmatprep.subr.bf16.mxu0 0
      %2782 = vmatpush2.bf16.msra.mxu0 0
      %2783 = vmatprep.subr.bf16.mxu0 0
      %2784 = vmatpush2.bf16.msra.mxu0 0
      %2785 = vmatprep.subr.bf16.mxu0 0
      %2786 = vmatpush2.bf16.msra.mxu0 0
      %2787 = vmatprep.subr.bf16.mxu0 0
      %2788 = vmatpush2.bf16.msra.mxu0 0
      %2789 = vmatprep.subr.bf16.mxu0 0
      %2790 = vmatpush2.bf16.msra.mxu0 0
      %2791 = vmatprep.mubr.bf16.mxu0 0
      %2792 = vmatmul.mubr.bf16.gmra.mxu0 %v2716
      %v2793 = vpop.f32.mrf.mxu0
      %v2794 = vadd.f32 0.0, %v2793
      %v2795 = vpop.f32.mrf.mxu0
      %v2796 = vpop.f32.mrf.mxu0
      %v2797 = vpop.f32.mrf.mxu0
      %2798 = vdwg.mxu0
      %v2799 = vadd.f32 %v2622, %v2753
      %v2800 = vadd.f32 %v2624, %v2755
      %v2801 = vadd.f32 %v2663, %v2794
      %v2802 = vadd.f32 %v2799, %v254
      %v2803 = vadd.f32 %v2800, %v258
      %v2804 = vadd.f32 %v2801, %v262
      %v2805 = vmax.f32 %v2802, 0.0
      %v2806 = vmax.f32 %v2803, 0.0
      %v2807 = vmax.f32 %v2804, 0.0
      %s2808 = scalar_lea.vmem %s224, 120
      %2809 = vst [vmem:[%s2808] sm:$0x7f] %v2805
      %2810 = vst [vmem:[%s2808 + $0x8] sm:$0x7f] %v2806
      %2811 = vst [vmem:[%s2808 + $0x10] sm:$0x7f] %v2807
      %v2812 = vld [vmem:[%s2668] sm:$0xf]
      %v2814 = vsel %vm278, %v2812, 0
      %2816 = vmatprep.subr.bf16.mxu0 0
      %2817 = vmatpush1.bf16.msra.mxu0 0
      %2818 = vmatprep.subr.bf16.mxu0 0
      %2819 = vmatpush1.bf16.msra.mxu0 0
      %2820 = vmatprep.subr.bf16.mxu0 0
      %2821 = vmatpush1.bf16.msra.mxu0 0
      %2822 = vmatprep.subr.bf16.mxu0 0
      %2823 = vmatpush1.bf16.msra.mxu0 0
      %2824 = vmatprep.subr.bf16.mxu0 0
      %2825 = vmatpush1.bf16.msra.mxu0 0
      %2826 = vmatprep.subr.bf16.mxu0 0
      %2827 = vmatpush1.bf16.msra.mxu0 0
      %2828 = vmatprep.subr.bf16.mxu0 0
      %2829 = vmatpush1.bf16.msra.mxu0 0
      %2830 = vmatprep.subr.bf16.mxu0 0
      %2831 = vmatpush1.bf16.msra.mxu0 %v284
      %2832 = vmatprep.subr.bf16.mxu0 0
      %2833 = vmatpush2.bf16.msra.mxu0 0
      %2834 = vmatprep.subr.bf16.mxu0 0
      %2835 = vmatpush2.bf16.msra.mxu0 0
      %2836 = vmatprep.subr.bf16.mxu0 0
      %2837 = vmatpush2.bf16.msra.mxu0 0
      %2838 = vmatprep.subr.bf16.mxu0 0
      %2839 = vmatpush2.bf16.msra.mxu0 0
      %2840 = vmatprep.subr.bf16.mxu0 0
      %2841 = vmatpush2.bf16.msra.mxu0 0
      %2842 = vmatprep.subr.bf16.mxu0 0
      %2843 = vmatpush2.bf16.msra.mxu0 0
      %2844 = vmatprep.subr.bf16.mxu0 0
      %2845 = vmatpush2.bf16.msra.mxu0 0
      %2846 = vmatprep.subr.bf16.mxu0 0
      %2847 = vmatpush2.bf16.msra.mxu0 0
      %2848 = vmatprep.mubr.bf16.mxu0 0
      %2849 = vmatmul.mubr.bf16.gmra.mxu0 %v2814
      %v2850 = vpop.f32.mrf.mxu0
      %v2851 = vadd.f32 %v271, %v2850
      %v2852 = vpop.f32.mrf.mxu0
      %v2853 = vpop.f32.mrf.mxu0
      %v2854 = vpop.f32.mrf.mxu0
      %2855 = vdwg.mxu0
      %v2856 = vmax.f32 %v2851, 0.0
      %v2857 = vpack.c.bf16 %v2856, %v2856
      %s2858 = scalar_lea.vmem %s219, 52
      %v2859 = vld [vmem:[%s2858] sm:$0xf]
      %v2861 = vsel %vm278, %v2859, 0
      %2863 = vmatprep.subr.bf16.mxu0 0
      %2864 = vmatpush1.bf16.msra.mxu0 0
      %2865 = vmatprep.subr.bf16.mxu0 0
      %2866 = vmatpush1.bf16.msra.mxu0 0
      %2867 = vmatprep.subr.bf16.mxu0 0
      %2868 = vmatpush1.bf16.msra.mxu0 0
      %2869 = vmatprep.subr.bf16.mxu0 0
      %2870 = vmatpush1.bf16.msra.mxu0 0
      %2871 = vmatprep.subr.bf16.mxu0 0
      %2872 = vmatpush1.bf16.msra.mxu0 0
      %2873 = vmatprep.subr.bf16.mxu0 0
      %2874 = vmatpush1.bf16.msra.mxu0 0
      %2875 = vmatprep.subr.bf16.mxu0 0
      %2876 = vmatpush1.bf16.msra.mxu0 0
      %2877 = vmatprep.subr.bf16.mxu0 0
      %2878 = vmatpush1.bf16.msra.mxu0 %v284
      %2879 = vmatprep.subr.bf16.mxu0 0
      %2880 = vmatpush2.bf16.msra.mxu0 0
      %2881 = vmatprep.subr.bf16.mxu0 0
      %2882 = vmatpush2.bf16.msra.mxu0 0
      %2883 = vmatprep.subr.bf16.mxu0 0
      %2884 = vmatpush2.bf16.msra.mxu0 0
      %2885 = vmatprep.subr.bf16.mxu0 0
      %2886 = vmatpush2.bf16.msra.mxu0 0
      %2887 = vmatprep.subr.bf16.mxu0 0
      %2888 = vmatpush2.bf16.msra.mxu0 0
      %2889 = vmatprep.subr.bf16.mxu0 0
      %2890 = vmatpush2.bf16.msra.mxu0 0
      %2891 = vmatprep.subr.bf16.mxu0 0
      %2892 = vmatpush2.bf16.msra.mxu0 0
      %2893 = vmatprep.subr.bf16.mxu0 0
      %2894 = vmatpush2.bf16.msra.mxu0 0
      %2895 = vmatprep.mubr.bf16.mxu0 0
      %2896 = vmatmul.mubr.bf16.gmra.mxu0 %v2861
      %v2897 = vpop.f32.mrf.mxu0
      %v2898 = vadd.f32 %v271, %v2897
      %v2899 = vpop.f32.mrf.mxu0
      %v2900 = vpop.f32.mrf.mxu0
      %v2901 = vpop.f32.mrf.mxu0
      %2902 = vdwg.mxu0
      %v2903 = vmax.f32 %v2898, 0.0
      %v2904 = vpack.c.bf16 %v2903, %v2903
      %v2906 = vsel %vm399, %v2904, 0
      %2908 = vmatprep.subr.bf16.mxu0 0
      %2909 = vmatpush1.bf16.msra.mxu0 0
      %2910 = vmatprep.subr.bf16.mxu0 0
      %2911 = vmatpush1.bf16.msra.mxu0 0
      %2912 = vmatprep.subr.bf16.mxu0 0
      %2913 = vmatpush1.bf16.msra.mxu0 0
      %2914 = vmatprep.subr.bf16.mxu0 0
      %2915 = vmatpush1.bf16.msra.mxu0 0
      %2916 = vmatprep.subr.bf16.mxu0 0
      %2917 = vmatpush1.bf16.msra.mxu0 0
      %2918 = vmatprep.subr.bf16.mxu0 0
      %2919 = vmatpush1.bf16.msra.mxu0 0
      %2920 = vmatprep.subr.bf16.mxu0 %v408
      %2921 = vmatpush1.bf16.msra.mxu0 %v405
      %2922 = vmatprep.subr.bf16.mxu0 %v391
      %2923 = vmatpush1.bf16.msra.mxu0 %v390
      %2924 = vmatprep.subr.bf16.mxu0 0
      %2925 = vmatpush2.bf16.msra.mxu0 0
      %2926 = vmatprep.subr.bf16.mxu0 0
      %2927 = vmatpush2.bf16.msra.mxu0 0
      %2928 = vmatprep.subr.bf16.mxu0 0
      %2929 = vmatpush2.bf16.msra.mxu0 0
      %2930 = vmatprep.subr.bf16.mxu0 0
      %2931 = vmatpush2.bf16.msra.mxu0 0
      %2932 = vmatprep.subr.bf16.mxu0 0
      %2933 = vmatpush2.bf16.msra.mxu0 0
      %2934 = vmatprep.subr.bf16.mxu0 0
      %2935 = vmatpush2.bf16.msra.mxu0 0
      %2936 = vmatprep.subr.bf16.mxu0 0
      %2937 = vmatpush2.bf16.msra.mxu0 0
      %2938 = vmatprep.subr.bf16.mxu0 0
      %2939 = vmatpush2.bf16.msra.mxu0 0
      %2940 = vmatprep.mubr.bf16.mxu0 0
      %2941 = vmatmul.mubr.bf16.gmra.mxu0 %v2906
      %v2942 = vpop.f32.mrf.mxu0
      %v2943 = vadd.f32 0.0, %v2942
      %v2944 = vpop.f32.mrf.mxu0
      %v2945 = vadd.f32 0.0, %v2944
      %v2946 = vpop.f32.mrf.mxu0
      %v2947 = vpop.f32.mrf.mxu0
      %2948 = vdwg.mxu0
      %2949 = vmatprep.subr.bf16.mxu0 0
      %2950 = vmatpush1.bf16.msra.mxu0 0
      %2951 = vmatprep.subr.bf16.mxu0 0
      %2952 = vmatpush1.bf16.msra.mxu0 0
      %2953 = vmatprep.subr.bf16.mxu0 0
      %2954 = vmatpush1.bf16.msra.mxu0 0
      %2955 = vmatprep.subr.bf16.mxu0 0
      %2956 = vmatpush1.bf16.msra.mxu0 0
      %2957 = vmatprep.subr.bf16.mxu0 0
      %2958 = vmatpush1.bf16.msra.mxu0 0
      %2959 = vmatprep.subr.bf16.mxu0 0
      %2960 = vmatpush1.bf16.msra.mxu0 0
      %2961 = vmatprep.subr.bf16.mxu0 0
      %2962 = vmatpush1.bf16.msra.mxu0 %v411
      %2963 = vmatprep.subr.bf16.mxu0 0
      %2964 = vmatpush1.bf16.msra.mxu0 %v392
      %2965 = vmatprep.subr.bf16.mxu0 0
      %2966 = vmatpush2.bf16.msra.mxu0 0
      %2967 = vmatprep.subr.bf16.mxu0 0
      %2968 = vmatpush2.bf16.msra.mxu0 0
      %2969 = vmatprep.subr.bf16.mxu0 0
      %2970 = vmatpush2.bf16.msra.mxu0 0
      %2971 = vmatprep.subr.bf16.mxu0 0
      %2972 = vmatpush2.bf16.msra.mxu0 0
      %2973 = vmatprep.subr.bf16.mxu0 0
      %2974 = vmatpush2.bf16.msra.mxu0 0
      %2975 = vmatprep.subr.bf16.mxu0 0
      %2976 = vmatpush2.bf16.msra.mxu0 0
      %2977 = vmatprep.subr.bf16.mxu0 0
      %2978 = vmatpush2.bf16.msra.mxu0 0
      %2979 = vmatprep.subr.bf16.mxu0 0
      %2980 = vmatpush2.bf16.msra.mxu0 0
      %2981 = vmatprep.mubr.bf16.mxu0 0
      %2982 = vmatmul.mubr.bf16.gmra.mxu0 %v2906
      %v2983 = vpop.f32.mrf.mxu0
      %v2984 = vadd.f32 0.0, %v2983
      %v2985 = vpop.f32.mrf.mxu0
      %v2986 = vpop.f32.mrf.mxu0
      %v2987 = vpop.f32.mrf.mxu0
      %2988 = vdwg.mxu0
      %v2990 = vsel %vm399, %v2857, 0
      %2992 = vmatprep.subr.bf16.mxu0 0
      %2993 = vmatpush1.bf16.msra.mxu0 0
      %2994 = vmatprep.subr.bf16.mxu0 0
      %2995 = vmatpush1.bf16.msra.mxu0 0
      %2996 = vmatprep.subr.bf16.mxu0 0
      %2997 = vmatpush1.bf16.msra.mxu0 0
      %2998 = vmatprep.subr.bf16.mxu0 0
      %2999 = vmatpush1.bf16.msra.mxu0 0
      %3000 = vmatprep.subr.bf16.mxu0 0
      %3001 = vmatpush1.bf16.msra.mxu0 0
      %3002 = vmatprep.subr.bf16.mxu0 0
      %3003 = vmatpush1.bf16.msra.mxu0 0
      %3004 = vmatprep.subr.bf16.mxu0 %v525
      %3005 = vmatpush1.bf16.msra.mxu0 %v522
      %3006 = vmatprep.subr.bf16.mxu0 %v510
      %3007 = vmatpush1.bf16.msra.mxu0 %v509
      %3008 = vmatprep.subr.bf16.mxu0 0
      %3009 = vmatpush2.bf16.msra.mxu0 0
      %3010 = vmatprep.subr.bf16.mxu0 0
      %3011 = vmatpush2.bf16.msra.mxu0 0
      %3012 = vmatprep.subr.bf16.mxu0 0
      %3013 = vmatpush2.bf16.msra.mxu0 0
      %3014 = vmatprep.subr.bf16.mxu0 0
      %3015 = vmatpush2.bf16.msra.mxu0 0
      %3016 = vmatprep.subr.bf16.mxu0 0
      %3017 = vmatpush2.bf16.msra.mxu0 0
      %3018 = vmatprep.subr.bf16.mxu0 0
      %3019 = vmatpush2.bf16.msra.mxu0 0
      %3020 = vmatprep.subr.bf16.mxu0 0
      %3021 = vmatpush2.bf16.msra.mxu0 0
      %3022 = vmatprep.subr.bf16.mxu0 0
      %3023 = vmatpush2.bf16.msra.mxu0 0
      %3024 = vmatprep.mubr.bf16.mxu0 0
      %3025 = vmatmul.mubr.bf16.gmra.mxu0 %v2990
      %v3026 = vpop.f32.mrf.mxu0
      %v3027 = vadd.f32 %v2943, %v3026
      %v3028 = vpop.f32.mrf.mxu0
      %v3029 = vadd.f32 %v2945, %v3028
      %v3030 = vpop.f32.mrf.mxu0
      %v3031 = vpop.f32.mrf.mxu0
      %3032 = vdwg.mxu0
      %3033 = vmatprep.subr.bf16.mxu0 0
      %3034 = vmatpush1.bf16.msra.mxu0 0
      %3035 = vmatprep.subr.bf16.mxu0 0
      %3036 = vmatpush1.bf16.msra.mxu0 0
      %3037 = vmatprep.subr.bf16.mxu0 0
      %3038 = vmatpush1.bf16.msra.mxu0 0
      %3039 = vmatprep.subr.bf16.mxu0 0
      %3040 = vmatpush1.bf16.msra.mxu0 0
      %3041 = vmatprep.subr.bf16.mxu0 0
      %3042 = vmatpush1.bf16.msra.mxu0 0
      %3043 = vmatprep.subr.bf16.mxu0 0
      %3044 = vmatpush1.bf16.msra.mxu0 0
      %3045 = vmatprep.subr.bf16.mxu0 0
      %3046 = vmatpush1.bf16.msra.mxu0 %v528
      %3047 = vmatprep.subr.bf16.mxu0 0
      %3048 = vmatpush1.bf16.msra.mxu0 %v511
      %3049 = vmatprep.subr.bf16.mxu0 0
      %3050 = vmatpush2.bf16.msra.mxu0 0
      %3051 = vmatprep.subr.bf16.mxu0 0
      %3052 = vmatpush2.bf16.msra.mxu0 0
      %3053 = vmatprep.subr.bf16.mxu0 0
      %3054 = vmatpush2.bf16.msra.mxu0 0
      %3055 = vmatprep.subr.bf16.mxu0 0
      %3056 = vmatpush2.bf16.msra.mxu0 0
      %3057 = vmatprep.subr.bf16.mxu0 0
      %3058 = vmatpush2.bf16.msra.mxu0 0
      %3059 = vmatprep.subr.bf16.mxu0 0
      %3060 = vmatpush2.bf16.msra.mxu0 0
      %3061 = vmatprep.subr.bf16.mxu0 0
      %3062 = vmatpush2.bf16.msra.mxu0 0
      %3063 = vmatprep.subr.bf16.mxu0 0
      %3064 = vmatpush2.bf16.msra.mxu0 0
      %3065 = vmatprep.mubr.bf16.mxu0 0
      %3066 = vmatmul.mubr.bf16.gmra.mxu0 %v2990
      %v3067 = vpop.f32.mrf.mxu0
      %v3068 = vadd.f32 %v2984, %v3067
      %v3069 = vpop.f32.mrf.mxu0
      %v3070 = vpop.f32.mrf.mxu0
      %v3071 = vpop.f32.mrf.mxu0
      %3072 = vdwg.mxu0
      %s3073 = scalar_lea.vmem %s219, 56
      %v3074 = vld [vmem:[%s3073] sm:$0xf]
      %v3076 = vsel %vm278, %v3074, 0
      %3078 = vmatprep.subr.bf16.mxu0 0
      %3079 = vmatpush1.bf16.msra.mxu0 0
      %3080 = vmatprep.subr.bf16.mxu0 0
      %3081 = vmatpush1.bf16.msra.mxu0 0
      %3082 = vmatprep.subr.bf16.mxu0 0
      %3083 = vmatpush1.bf16.msra.mxu0 0
      %3084 = vmatprep.subr.bf16.mxu0 0
      %3085 = vmatpush1.bf16.msra.mxu0 0
      %3086 = vmatprep.subr.bf16.mxu0 0
      %3087 = vmatpush1.bf16.msra.mxu0 0
      %3088 = vmatprep.subr.bf16.mxu0 0
      %3089 = vmatpush1.bf16.msra.mxu0 0
      %3090 = vmatprep.subr.bf16.mxu0 0
      %3091 = vmatpush1.bf16.msra.mxu0 0
      %3092 = vmatprep.subr.bf16.mxu0 0
      %3093 = vmatpush1.bf16.msra.mxu0 %v284
      %3094 = vmatprep.subr.bf16.mxu0 0
      %3095 = vmatpush2.bf16.msra.mxu0 0
      %3096 = vmatprep.subr.bf16.mxu0 0
      %3097 = vmatpush2.bf16.msra.mxu0 0
      %3098 = vmatprep.subr.bf16.mxu0 0
      %3099 = vmatpush2.bf16.msra.mxu0 0
      %3100 = vmatprep.subr.bf16.mxu0 0
      %3101 = vmatpush2.bf16.msra.mxu0 0
      %3102 = vmatprep.subr.bf16.mxu0 0
      %3103 = vmatpush2.bf16.msra.mxu0 0
      %3104 = vmatprep.subr.bf16.mxu0 0
      %3105 = vmatpush2.bf16.msra.mxu0 0
      %3106 = vmatprep.subr.bf16.mxu0 0
      %3107 = vmatpush2.bf16.msra.mxu0 0
      %3108 = vmatprep.subr.bf16.mxu0 0
      %3109 = vmatpush2.bf16.msra.mxu0 0
      %3110 = vmatprep.mubr.bf16.mxu0 0
      %3111 = vmatmul.mubr.bf16.gmra.mxu0 %v3076
      %v3112 = vpop.f32.mrf.mxu0
      %v3113 = vadd.f32 %v271, %v3112
      %v3114 = vpop.f32.mrf.mxu0
      %v3115 = vpop.f32.mrf.mxu0
      %v3116 = vpop.f32.mrf.mxu0
      %3117 = vdwg.mxu0
      %v3118 = vmax.f32 %v3113, 0.0
      %v3119 = vpack.c.bf16 %v3118, %v3118
      %v3121 = vsel %vm399, %v3119, 0
      %3123 = vmatprep.subr.bf16.mxu0 0
      %3124 = vmatpush1.bf16.msra.mxu0 0
      %3125 = vmatprep.subr.bf16.mxu0 0
      %3126 = vmatpush1.bf16.msra.mxu0 0
      %3127 = vmatprep.subr.bf16.mxu0 0
      %3128 = vmatpush1.bf16.msra.mxu0 0
      %3129 = vmatprep.subr.bf16.mxu0 0
      %3130 = vmatpush1.bf16.msra.mxu0 0
      %3131 = vmatprep.subr.bf16.mxu0 0
      %3132 = vmatpush1.bf16.msra.mxu0 0
      %3133 = vmatprep.subr.bf16.mxu0 0
      %3134 = vmatpush1.bf16.msra.mxu0 0
      %3135 = vmatprep.subr.bf16.mxu0 %v689
      %3136 = vmatpush1.bf16.msra.mxu0 %v686
      %3137 = vmatprep.subr.bf16.mxu0 %v674
      %3138 = vmatpush1.bf16.msra.mxu0 %v673
      %3139 = vmatprep.subr.bf16.mxu0 0
      %3140 = vmatpush2.bf16.msra.mxu0 0
      %3141 = vmatprep.subr.bf16.mxu0 0
      %3142 = vmatpush2.bf16.msra.mxu0 0
      %3143 = vmatprep.subr.bf16.mxu0 0
      %3144 = vmatpush2.bf16.msra.mxu0 0
      %3145 = vmatprep.subr.bf16.mxu0 0
      %3146 = vmatpush2.bf16.msra.mxu0 0
      %3147 = vmatprep.subr.bf16.mxu0 0
      %3148 = vmatpush2.bf16.msra.mxu0 0
      %3149 = vmatprep.subr.bf16.mxu0 0
      %3150 = vmatpush2.bf16.msra.mxu0 0
      %3151 = vmatprep.subr.bf16.mxu0 0
      %3152 = vmatpush2.bf16.msra.mxu0 0
      %3153 = vmatprep.subr.bf16.mxu0 0
      %3154 = vmatpush2.bf16.msra.mxu0 0
      %3155 = vmatprep.mubr.bf16.mxu0 0
      %3156 = vmatmul.mubr.bf16.gmra.mxu0 %v3121
      %v3157 = vpop.f32.mrf.mxu0
      %v3158 = vadd.f32 0.0, %v3157
      %v3159 = vpop.f32.mrf.mxu0
      %v3160 = vadd.f32 0.0, %v3159
      %v3161 = vpop.f32.mrf.mxu0
      %v3162 = vpop.f32.mrf.mxu0
      %3163 = vdwg.mxu0
      %3164 = vmatprep.subr.bf16.mxu0 0
      %3165 = vmatpush1.bf16.msra.mxu0 0
      %3166 = vmatprep.subr.bf16.mxu0 0
      %3167 = vmatpush1.bf16.msra.mxu0 0
      %3168 = vmatprep.subr.bf16.mxu0 0
      %3169 = vmatpush1.bf16.msra.mxu0 0
      %3170 = vmatprep.subr.bf16.mxu0 0
      %3171 = vmatpush1.bf16.msra.mxu0 0
      %3172 = vmatprep.subr.bf16.mxu0 0
      %3173 = vmatpush1.bf16.msra.mxu0 0
      %3174 = vmatprep.subr.bf16.mxu0 0
      %3175 = vmatpush1.bf16.msra.mxu0 0
      %3176 = vmatprep.subr.bf16.mxu0 0
      %3177 = vmatpush1.bf16.msra.mxu0 %v692
      %3178 = vmatprep.subr.bf16.mxu0 0
      %3179 = vmatpush1.bf16.msra.mxu0 %v675
      %3180 = vmatprep.subr.bf16.mxu0 0
      %3181 = vmatpush2.bf16.msra.mxu0 0
      %3182 = vmatprep.subr.bf16.mxu0 0
      %3183 = vmatpush2.bf16.msra.mxu0 0
      %3184 = vmatprep.subr.bf16.mxu0 0
      %3185 = vmatpush2.bf16.msra.mxu0 0
      %3186 = vmatprep.subr.bf16.mxu0 0
      %3187 = vmatpush2.bf16.msra.mxu0 0
      %3188 = vmatprep.subr.bf16.mxu0 0
      %3189 = vmatpush2.bf16.msra.mxu0 0
      %3190 = vmatprep.subr.bf16.mxu0 0
      %3191 = vmatpush2.bf16.msra.mxu0 0
      %3192 = vmatprep.subr.bf16.mxu0 0
      %3193 = vmatpush2.bf16.msra.mxu0 0
      %3194 = vmatprep.subr.bf16.mxu0 0
      %3195 = vmatpush2.bf16.msra.mxu0 0
      %3196 = vmatprep.mubr.bf16.mxu0 0
      %3197 = vmatmul.mubr.bf16.gmra.mxu0 %v3121
      %v3198 = vpop.f32.mrf.mxu0
      %v3199 = vadd.f32 0.0, %v3198
      %v3200 = vpop.f32.mrf.mxu0
      %v3201 = vpop.f32.mrf.mxu0
      %v3202 = vpop.f32.mrf.mxu0
      %3203 = vdwg.mxu0
      %v3204 = vadd.f32 %v3027, %v3158
      %v3205 = vadd.f32 %v3029, %v3160
      %v3206 = vadd.f32 %v3068, %v3199
      %v3207 = vadd.f32 %v3204, %v254
      %v3208 = vadd.f32 %v3205, %v258
      %v3209 = vadd.f32 %v3206, %v262
      %v3210 = vmax.f32 %v3207, 0.0
      %v3211 = vmax.f32 %v3208, 0.0
      %v3212 = vmax.f32 %v3209, 0.0
      %s3213 = scalar_lea.vmem %s224, 144
      %3214 = vst [vmem:[%s3213] sm:$0x7f] %v3210
      %3215 = vst [vmem:[%s3213 + $0x8] sm:$0x7f] %v3211
      %3216 = vst [vmem:[%s3213 + $0x10] sm:$0x7f] %v3212
      %p3217 = scmp.lt.s32.totalorder %s16, 1
      %s3218 = scalar_select %p3217, %s16, 1
      %s3219 = smul.addr %s3218, 21
      %s3220 = smul.addr %s3219, 8
      %s3221 = scalar_lea.vmem %s5, %s3220
      // Predicated region
      $region41: #{_inception_red_forward.5} parent=39 // pred_check
        %p3222 = pneg %p144
      $region42: #{_inception_red_forward.5} parent=39 // pred_check_branch
        %3224 = sbr.rel (%p3222) target = $region44
      $region43: #{_inception_red_forward.5} parent=39 // pred_region
        _
      $region44: #{_inception_red_forward.5} parent=39 // pred_fallthru
        _
    $region40: #{_inception_red_forward.5} parent=5 // pred_fallthru
      _
    %p3225 = scmp.le.s32.totalorder 2, %s11
    // Predicated region
    $region45: #{_inception_red_forward.5} parent=5 // pred_check
      %p3226 = pneg %p3225
    $region46: #{_inception_red_forward.5} parent=5 // pred_check_branch
      %3228 = sbr.rel (%p3226) target = $region48
    $region47: #{_inception_red_forward.5} parent=5 // pred_region
      %s3229 = ssub.s32 %s11, 2
      // Predicated region
      $region49: #{_inception_red_forward.5} parent=47 // pred_check
        %p3230 = pneg %p150
      $region50: #{_inception_red_forward.5} parent=47 // pred_check_branch
        %3232 = sbr.rel (%p3230) target = $region52
      $region51: #{_inception_red_forward.5} parent=47 // pred_region
        %p3233 = scmp.lt.s32.totalorder %s17, 1
        %s3234 = scalar_select %p3233, %s17, 1
        %s3235 = smul.addr %s3234, 21
        %s3236 = smul.addr %s3235, 8
        %s3237 = scalar_lea.vmem %s5, %s3236
      $region52: #{_inception_red_forward.5} parent=47 // pred_fallthru
        _
    $region48: #{_inception_red_forward.5} parent=5 // pred_fallthru
      _
  $region6: #{_inception_red_forward.5} parent=0 // loop_footer
    %s15 = sadd.s32 1, %s11
  $region7: #{_inception_red_forward.5} parent=0 // loop_footer_branch
    %10 = sbr.rel target = $region3
  $region8: #{_inception_red_forward.5} parent=0 // loop_exit
    _

// kernel: _inception_red_forward.4
$region0: #{_inception_red_forward.4}
  #allocation0 [shape = 'u32[]', space=smem, size = 0x4, offset = 0x4, fixed_abs, tag = 'smem constant byte address 0x4 - core index']
  #allocation1 [shape = 'u32[144,128]{1,0:T(1,128)}', space=vmem, size = 0x12000, scoped, tag = 'internal scratch']
  %s0 = inlined_call_operand.vmem [shape: bf16[2,16,7,768], index: 0, kind: input, shape index: {}]
  %s1 = inlined_call_operand.vmem [shape: bf16[3,768,256], index: 1, kind: input, shape index: {}]
  %s2 = inlined_call_operand.vmem [shape: f32[1,256], index: 2, kind: input, shape index: {}]
  %s3 = inlined_call_operand.vmem [shape: f32[2,7,7,256], index: 3, kind: output, shape index: {}]
  %s4 = sld [smem:[#allocation0]]
  $region45: #{_inception_red_forward.4} parent=0
    _
  %s6 = ssub.s32 1, %s4
  %s7 = scalar_select 0, %s6, %s4
  loop: start=0, step=1, limit=4
  $region2: #{_inception_red_forward.4} parent=0 // loop_pre_header
    _
  $region3: #{_inception_red_forward.4} parent=0 // loop_header
    %s9 = sphi 0, %s13
    %p10 = scmp.ge.s32.totalorder %s9, 4
    %s19 = sphi 0, %s21
    %s22 = sphi 0, %s19
    %s23 = sphi 0, %s22
    %s39 = sphi 0, %s23
    %s43 = sphi 0, %s43
    %s45 = sphi 0, %s43
    %s46 = sphi 0, %s45
    %s60 = sphi 0, %s46
    %s64 = sphi 0, %s64
    %s66 = sphi 0, %s64
    %s67 = sphi 0, %s66
    %s81 = sphi 0, %s67
    %s87 = sphi 0, %s89
    %s90 = sphi 0, %s87
    %s91 = sphi 0, %s90
    %s107 = sphi 0, %s91
  $region4: #{_inception_red_forward.4} parent=0 // loop_header_branch
    %12 = sbr.rel (%p10) target = $region8
  $region5: #{_inception_red_forward.4} parent=0 // loop_body
    %s14 = ssub.s32 %s9, 1
    %s15 = ssub.s32 %s9, 2
    %s16 = sadd.s32 %s9, 1
    %s17 = ssub.s32 %s9, %s16
    %p18 = scmp.eq.s32.totalorder %s17, 0
    %s20 = sadd.s32 %s19, 1
    %s21 = scalar_select %p18, %s19, %s20
    %p24 = pneg %p18
    %p25 = scmp.eq.s32.totalorder %s9, 1
    %p26 = por %p24, %p25
    %p27 = scmp.ne.s32.totalorder %s19, %s22
    %p28 = scmp.eq.s32.totalorder %s9, 0
    %p29 = por %p27, %p28
    %p30 = scmp.ne.s32.totalorder %s19, %s22
    %p31 = scmp.eq.s32.totalorder %s14, 1
    %p32 = por %p30, %p31
    %p33 = scmp.ne.s32.totalorder %s22, %s23
    %p34 = scmp.eq.s32.totalorder %s14, 0
    %p35 = por %p33, %p34
    %p36 = scmp.ne.s32.totalorder %s22, %s23
    %p37 = scmp.eq.s32.totalorder %s15, 1
    %p38 = por %p36, %p37
    %p40 = scmp.ne.s32.totalorder %s23, %s39
    %p41 = scmp.eq.s32.totalorder %s15, 0
    %p42 = por %p40, %p41
    %s44 = sadd.s32 %s43, 1
    %p47 = scmp.eq.s32.totalorder %s9, 1
    %p48 = scmp.ne.s32.totalorder %s43, %s45
    %p49 = scmp.eq.s32.totalorder %s9, 0
    %p50 = por %p48, %p49
    %p51 = scmp.ne.s32.totalorder %s43, %s45
    %p52 = scmp.eq.s32.totalorder %s14, 1
    %p53 = por %p51, %p52
    %p54 = scmp.ne.s32.totalorder %s45, %s46
    %p55 = scmp.eq.s32.totalorder %s14, 0
    %p56 = por %p54, %p55
    %p57 = scmp.ne.s32.totalorder %s45, %s46
    %p58 = scmp.eq.s32.totalorder %s15, 1
    %p59 = por %p57, %p58
    %p61 = scmp.ne.s32.totalorder %s46, %s60
    %p62 = scmp.eq.s32.totalorder %s15, 0
    %p63 = por %p61, %p62
    %s65 = sadd.s32 %s64, 1
    %p68 = scmp.eq.s32.totalorder %s9, 1
    %p69 = scmp.ne.s32.totalorder %s64, %s66
    %p70 = scmp.eq.s32.totalorder %s9, 0
    %p71 = por %p69, %p70
    %p72 = scmp.ne.s32.totalorder %s64, %s66
    %p73 = scmp.eq.s32.totalorder %s14, 1
    %p74 = por %p72, %p73
    %p75 = scmp.ne.s32.totalorder %s66, %s67
    %p76 = scmp.eq.s32.totalorder %s14, 0
    %p77 = por %p75, %p76
    %p78 = scmp.ne.s32.totalorder %s66, %s67
    %p79 = scmp.eq.s32.totalorder %s15, 1
    %p80 = por %p78, %p79
    %p82 = scmp.ne.s32.totalorder %s67, %s81
    %p83 = scmp.eq.s32.totalorder %s15, 0
    %p84 = por %p82, %p83
    %s85 = ssub.s32 %s9, %s16
    %p86 = scmp.eq.s32.totalorder %s85, 0
    %s88 = sadd.s32 %s87, 1
    %s89 = scalar_select %p86, %s87, %s88
    %p92 = pneg %p86
    %p93 = scmp.eq.s32.totalorder %s9, 1
    %p94 = por %p92, %p93
    %p95 = scmp.ne.s32.totalorder %s87, %s90
    %p96 = scmp.eq.s32.totalorder %s9, 0
    %p97 = por %p95, %p96
    %p98 = scmp.ne.s32.totalorder %s87, %s90
    %p99 = scmp.eq.s32.totalorder %s14, 1
    %p100 = por %p98, %p99
    %p101 = scmp.ne.s32.totalorder %s90, %s91
    %p102 = scmp.eq.s32.totalorder %s14, 0
    %p103 = por %p101, %p102
    %p104 = scmp.ne.s32.totalorder %s90, %s91
    %p105 = scmp.eq.s32.totalorder %s15, 1
    %p106 = por %p104, %p105
    %p108 = scmp.ne.s32.totalorder %s91, %s107
    %p109 = scmp.eq.s32.totalorder %s15, 0
    %p110 = por %p108, %p109
    %p111 = scmp.le.s32.totalorder 1, %s9
    %p112 = scmp.lt.s32.totalorder %s9, 3
    %p113 = pnand %p111, %p112
    %p114 = pneg %p113
    // Predicated region
    $region9: #{_inception_red_forward.4} parent=5 // pred_check
      _
    $region10: #{_inception_red_forward.4} parent=5 // pred_check_branch
      %116 = sbr.rel (%p113) target = $region12
    $region11: #{_inception_red_forward.4} parent=5 // pred_region
      %s117 = ssub.s32 %s9, 1
      // Predicated region
      $region13: #{_inception_red_forward.4} parent=11 // pred_check
        %p118 = pneg %p56
      $region14: #{_inception_red_forward.4} parent=11 // pred_check_branch
        %120 = sbr.rel (%p118) target = $region16
      $region15: #{_inception_red_forward.4} parent=11 // pred_region
        _
      $region16: #{_inception_red_forward.4} parent=11 // pred_fallthru
        _
      // Predicated region
      $region17: #{_inception_red_forward.4} parent=11 // pred_check
        %p121 = pneg %p77
      $region18: #{_inception_red_forward.4} parent=11 // pred_check_branch
        %123 = sbr.rel (%p121) target = $region20
      $region19: #{_inception_red_forward.4} parent=11 // pred_region
        _
      $region20: #{_inception_red_forward.4} parent=11 // pred_fallthru
        _
    $region12: #{_inception_red_forward.4} parent=5 // pred_fallthru
      _
    %p124 = scmp.lt.s32.totalorder %s9, 2
    // Predicated region
    $region21: #{_inception_red_forward.4} parent=5 // pred_check
      %p125 = pneg %p124
    $region22: #{_inception_red_forward.4} parent=5 // pred_check_branch
      %127 = sbr.rel (%p125) target = $region24
    $region23: #{_inception_red_forward.4} parent=5 // pred_region
      // Predicated region
      $region25: #{_inception_red_forward.4} parent=23 // pred_check
        %p128 = pneg %p29
      $region26: #{_inception_red_forward.4} parent=23 // pred_check_branch
        %130 = sbr.rel (%p128) target = $region28
      $region27: #{_inception_red_forward.4} parent=23 // pred_region
        %p131 = scmp.lt.s32.totalorder %s9, 1
        %s132 = scalar_select %p131, %s9, 1
        %s133 = smul.addr %s132, 96
        %s134 = smul.addr %s133, 4
        %s135 = scalar_lea.vmem %s0, %s134
      $region28: #{_inception_red_forward.4} parent=23 // pred_fallthru
        _
    $region24: #{_inception_red_forward.4} parent=5 // pred_fallthru
      _
    %p136 = scmp.le.s32.totalorder 1, %s9
    %p137 = scmp.lt.s32.totalorder %s9, 3
    %p138 = pnand %p136, %p137
    %p139 = pneg %p138
    // Predicated region
    $region29: #{_inception_red_forward.4} parent=5 // pred_check
      _
    $region30: #{_inception_red_forward.4} parent=5 // pred_check_branch
      %141 = sbr.rel (%p138) target = $region32
    $region31: #{_inception_red_forward.4} parent=5 // pred_region
      %s142 = ssub.s32 %s9, 1
      %p143 = scmp.lt.s32.totalorder %s14, 1
      %s144 = scalar_select %p143, %s14, 1
      %s145 = smul.addr %s144, 96
      %s146 = smul.addr %s145, 4
      %s147 = scalar_lea.vmem %s0, %s146
      %p148 = pneg %p35
      %p149 = pneg %p32
      %p150 = pneg %p56
      %p151 = pneg %p53
      %p152 = pneg %p77
      %p153 = pneg %p74
      %p154 = pneg %p103
      %p155 = pneg %p100
      %p156 = scmp.lt.s32.totalorder %s14, 1
      %s157 = scalar_select %p156, %s14, 1
      %s158 = smul.addr %s157, 14
      %s159 = smul.addr %s158, 8
      %s160 = scalar_lea.vmem %s3, %s159
      %p161 = scmp.lt.s32.totalorder %s14, 1
      %s162 = scalar_select %p161, %s14, 1
      %s163 = smul.addr %s162, 96
      %s164 = smul.addr %s163, 4
      %s165 = scalar_lea.vmem %s0, %s164
      %p166 = scmp.lt.s32.totalorder %s14, 1
      %s167 = scalar_select %p166, %s14, 1
      %s168 = smul.addr %s167, 14
      %s169 = smul.addr %s168, 8
      %s170 = scalar_lea.vmem %s3, %s169
      %v171 = vld [vmem:[%s1] sm:$0xff]
      %v172 = vld [vmem:[%s1 + $0x8] sm:$0xff]
      %v173 = vld [vmem:[%s1 + $0x10] sm:$0xff]
      %v174 = vld [vmem:[%s1 + $0x18] sm:$0xff]
      %v175 = vld [vmem:[%s1 + $0x20] sm:$0xff]
      %v176 = vld [vmem:[%s1 + $0x28] sm:$0xff]
      %v177 = vld [vmem:[%s1 + $0x30] sm:$0xff]
      %v178 = vld [vmem:[%s1 + $0x38] sm:$0xff]
      %v179 = vld [vmem:[%s1 + $0x40] sm:$0xff]
      %v180 = vld [vmem:[%s1 + $0x48] sm:$0xff]
      %v181 = vld [vmem:[%s1 + $0x50] sm:$0xff]
      %v182 = vld [vmem:[%s1 + $0x58] sm:$0xff]
      %v183 = vld [vmem:[%s1 + $0x60] sm:$0xff]
      %v184 = vld [vmem:[%s1 + $0x68] sm:$0xff]
      %v185 = vld [vmem:[%s1 + $0x70] sm:$0xff]
      %v186 = vld [vmem:[%s1 + $0x78] sm:$0xff]
      %v187 = vld [vmem:[%s1 + $0x80] sm:$0xff]
      %v188 = vld [vmem:[%s1 + $0x88] sm:$0xff]
      %v189 = vld [vmem:[%s1 + $0x90] sm:$0xff]
      %v190 = vld [vmem:[%s1 + $0x98] sm:$0xff]
      %v191 = vld [vmem:[%s1 + $0xa0] sm:$0xff]
      %v192 = vld [vmem:[%s1 + $0xa8] sm:$0xff]
      %v193 = vld [vmem:[%s1 + $0xb0] sm:$0xff]
      %v194 = vld [vmem:[%s1 + $0xb8] sm:$0xff]
      %v195 = vld [vmem:[%s1 + $0xc0] sm:$0xff]
      %v196 = vld [vmem:[%s1 + $0xc8] sm:$0xff]
      %v197 = vld [vmem:[%s1 + $0xd0] sm:$0xff]
      %v198 = vld [vmem:[%s1 + $0xd8] sm:$0xff]
      %v199 = vld [vmem:[%s1 + $0xe0] sm:$0xff]
      %v200 = vld [vmem:[%s1 + $0xe8] sm:$0xff]
      %v201 = vld [vmem:[%s1 + $0xf0] sm:$0xff]
      %v202 = vld [vmem:[%s1 + $0xf8] sm:$0xff]
      %v203 = vld [vmem:[%s1 + $0x100] sm:$0xff]
      %v204 = vld [vmem:[%s1 + $0x108] sm:$0xff]
      %v205 = vld [vmem:[%s1 + $0x110] sm:$0xff]
      %v206 = vld [vmem:[%s1 + $0x118] sm:$0xff]
      %v207 = vld [vmem:[%s1 + $0x120] sm:$0xff]
      %v208 = vld [vmem:[%s1 + $0x128] sm:$0xff]
      %v209 = vld [vmem:[%s1 + $0x130] sm:$0xff]
      %v210 = vld [vmem:[%s1 + $0x138] sm:$0xff]
      %v211 = vld [vmem:[%s1 + $0x140] sm:$0xff]
      %v212 = vld [vmem:[%s1 + $0x148] sm:$0xff]
      %v213 = vld [vmem:[%s1 + $0x150] sm:$0xff]
      %v214 = vld [vmem:[%s1 + $0x158] sm:$0xff]
      %v215 = vld [vmem:[%s1 + $0x160] sm:$0xff]
      %v216 = vld [vmem:[%s1 + $0x168] sm:$0xff]
      %v217 = vld [vmem:[%s1 + $0x170] sm:$0xff]
      %v218 = vld [vmem:[%s1 + $0x178] sm:$0xff]
      %v219 = vld [vmem:[%s1 + $0x180] sm:$0xff]
      %v220 = vld [vmem:[%s1 + $0x188] sm:$0xff]
      %v221 = vld [vmem:[%s1 + $0x190] sm:$0xff]
      %v222 = vld [vmem:[%s1 + $0x198] sm:$0xff]
      %v223 = vld [vmem:[%s1 + $0x1a0] sm:$0xff]
      %v224 = vld [vmem:[%s1 + $0x1a8] sm:$0xff]
      %v225 = vld [vmem:[%s1 + $0x1b0] sm:$0xff]
      %v226 = vld [vmem:[%s1 + $0x1b8] sm:$0xff]
      %v227 = vld [vmem:[%s1 + $0x1c0] sm:$0xff]
      %v228 = vld [vmem:[%s1 + $0x1c8] sm:$0xff]
      %v229 = vld [vmem:[%s1 + $0x1d0] sm:$0xff]
      %v230 = vld [vmem:[%s1 + $0x1d8] sm:$0xff]
      %v231 = vld [vmem:[%s1 + $0x1e0] sm:$0xff]
      %v232 = vld [vmem:[%s1 + $0x1e8] sm:$0xff]
      %v233 = vld [vmem:[%s1 + $0x1f0] sm:$0xff]
      %v234 = vld [vmem:[%s1 + $0x1f8] sm:$0xff]
      %v235 = vld [vmem:[%s1 + $0x200] sm:$0xff]
      %v236 = vld [vmem:[%s1 + $0x208] sm:$0xff]
      %v237 = vld [vmem:[%s1 + $0x210] sm:$0xff]
      %v238 = vld [vmem:[%s1 + $0x218] sm:$0xff]
      %v239 = vld [vmem:[%s1 + $0x220] sm:$0xff]
      %v240 = vld [vmem:[%s1 + $0x228] sm:$0xff]
      %v241 = vld [vmem:[%s1 + $0x230] sm:$0xff]
      %v242 = vld [vmem:[%s1 + $0x238] sm:$0xff]
      %v243 = vld [vmem:[%s1 + $0x240] sm:$0xff]
      %v244 = vld [vmem:[%s1 + $0x248] sm:$0xff]
      %v245 = vld [vmem:[%s1 + $0x250] sm:$0xff]
      %v246 = vld [vmem:[%s1 + $0x258] sm:$0xff]
      %v247 = vld [vmem:[%s1 + $0x260] sm:$0xff]
      %v248 = vld [vmem:[%s1 + $0x268] sm:$0xff]
      %v249 = vld [vmem:[%s1 + $0x270] sm:$0xff]
      %v250 = vld [vmem:[%s1 + $0x278] sm:$0xff]
      %v251 = vld [vmem:[%s1 + $0x280] sm:$0xff]
      %v252 = vld [vmem:[%s1 + $0x288] sm:$0xff]
      %v253 = vld [vmem:[%s1 + $0x290] sm:$0xff]
      %v254 = vld [vmem:[%s1 + $0x298] sm:$0xff]
      %v255 = vld [vmem:[%s1 + $0x2a0] sm:$0xff]
      %v256 = vld [vmem:[%s1 + $0x2a8] sm:$0xff]
      %v257 = vld [vmem:[%s1 + $0x2b0] sm:$0xff]
      %v258 = vld [vmem:[%s1 + $0x2b8] sm:$0xff]
      %v259 = vld [vmem:[%s1 + $0x2c0] sm:$0xff]
      %v260 = vld [vmem:[%s1 + $0x2c8] sm:$0xff]
      %v261 = vld [vmem:[%s1 + $0x2d0] sm:$0xff]
      %v262 = vld [vmem:[%s1 + $0x2d8] sm:$0xff]
      %v263 = vld [vmem:[%s1 + $0x2e0] sm:$0xff]
      %v264 = vld [vmem:[%s1 + $0x2e8] sm:$0xff]
      %v265 = vld [vmem:[%s1 + $0x2f0] sm:$0xff]
      %v266 = vld [vmem:[%s1 + $0x2f8] sm:$0xff]
      %s267 = scalar_lea.vmem %s1, 768
      %v268 = vld [vmem:[%s267] sm:$0xff]
      %v269 = vld [vmem:[%s267 + $0x8] sm:$0xff]
      %v270 = vld [vmem:[%s267 + $0x10] sm:$0xff]
      %v271 = vld [vmem:[%s267 + $0x18] sm:$0xff]
      %v272 = vld [vmem:[%s267 + $0x20] sm:$0xff]
      %v273 = vld [vmem:[%s267 + $0x28] sm:$0xff]
      %v274 = vld [vmem:[%s267 + $0x30] sm:$0xff]
      %v275 = vld [vmem:[%s267 + $0x38] sm:$0xff]
      %v276 = vld [vmem:[%s267 + $0x40] sm:$0xff]
      %v277 = vld [vmem:[%s267 + $0x48] sm:$0xff]
      %v278 = vld [vmem:[%s267 + $0x50] sm:$0xff]
      %v279 = vld [vmem:[%s267 + $0x58] sm:$0xff]
      %v280 = vld [vmem:[%s267 + $0x60] sm:$0xff]
      %v281 = vld [vmem:[%s267 + $0x68] sm:$0xff]
      %v282 = vld [vmem:[%s267 + $0x70] sm:$0xff]
      %v283 = vld [vmem:[%s267 + $0x78] sm:$0xff]
      %v284 = vld [vmem:[%s267 + $0x80] sm:$0xff]
      %v285 = vld [vmem:[%s267 + $0x88] sm:$0xff]
      %v286 = vld [vmem:[%s267 + $0x90] sm:$0xff]
      %v287 = vld [vmem:[%s267 + $0x98] sm:$0xff]
      %v288 = vld [vmem:[%s267 + $0xa0] sm:$0xff]
      %v289 = vld [vmem:[%s267 + $0xa8] sm:$0xff]
      %v290 = vld [vmem:[%s267 + $0xb0] sm:$0xff]
      %v291 = vld [vmem:[%s267 + $0xb8] sm:$0xff]
      %v292 = vld [vmem:[%s267 + $0xc0] sm:$0xff]
      %v293 = vld [vmem:[%s267 + $0xc8] sm:$0xff]
      %v294 = vld [vmem:[%s267 + $0xd0] sm:$0xff]
      %v295 = vld [vmem:[%s267 + $0xd8] sm:$0xff]
      %v296 = vld [vmem:[%s267 + $0xe0] sm:$0xff]
      %v297 = vld [vmem:[%s267 + $0xe8] sm:$0xff]
      %v298 = vld [vmem:[%s267 + $0xf0] sm:$0xff]
      %v299 = vld [vmem:[%s267 + $0xf8] sm:$0xff]
      %v300 = vld [vmem:[%s267 + $0x100] sm:$0xff]
      %v301 = vld [vmem:[%s267 + $0x108] sm:$0xff]
      %v302 = vld [vmem:[%s267 + $0x110] sm:$0xff]
      %v303 = vld [vmem:[%s267 + $0x118] sm:$0xff]
      %v304 = vld [vmem:[%s267 + $0x120] sm:$0xff]
      %v305 = vld [vmem:[%s267 + $0x128] sm:$0xff]
      %v306 = vld [vmem:[%s267 + $0x130] sm:$0xff]
      %v307 = vld [vmem:[%s267 + $0x138] sm:$0xff]
      %v308 = vld [vmem:[%s267 + $0x140] sm:$0xff]
      %v309 = vld [vmem:[%s267 + $0x148] sm:$0xff]
      %v310 = vld [vmem:[%s267 + $0x150] sm:$0xff]
      %v311 = vld [vmem:[%s267 + $0x158] sm:$0xff]
      %v312 = vld [vmem:[%s267 + $0x160] sm:$0xff]
      %v313 = vld [vmem:[%s267 + $0x168] sm:$0xff]
      %v314 = vld [vmem:[%s267 + $0x170] sm:$0xff]
      %v315 = vld [vmem:[%s267 + $0x178] sm:$0xff]
      %v316 = vld [vmem:[%s267 + $0x180] sm:$0xff]
      %v317 = vld [vmem:[%s267 + $0x188] sm:$0xff]
      %v318 = vld [vmem:[%s267 + $0x190] sm:$0xff]
      %v319 = vld [vmem:[%s267 + $0x198] sm:$0xff]
      %v320 = vld [vmem:[%s267 + $0x1a0] sm:$0xff]
      %v321 = vld [vmem:[%s267 + $0x1a8] sm:$0xff]
      %v322 = vld [vmem:[%s267 + $0x1b0] sm:$0xff]
      %v323 = vld [vmem:[%s267 + $0x1b8] sm:$0xff]
      %v324 = vld [vmem:[%s267 + $0x1c0] sm:$0xff]
      %v325 = vld [vmem:[%s267 + $0x1c8] sm:$0xff]
      %v326 = vld [vmem:[%s267 + $0x1d0] sm:$0xff]
      %v327 = vld [vmem:[%s267 + $0x1d8] sm:$0xff]
      %v328 = vld [vmem:[%s267 + $0x1e0] sm:$0xff]
      %v329 = vld [vmem:[%s267 + $0x1e8] sm:$0xff]
      %v330 = vld [vmem:[%s267 + $0x1f0] sm:$0xff]
      %v331 = vld [vmem:[%s267 + $0x1f8] sm:$0xff]
      %v332 = vld [vmem:[%s267 + $0x200] sm:$0xff]
      %v333 = vld [vmem:[%s267 + $0x208] sm:$0xff]
      %v334 = vld [vmem:[%s267 + $0x210] sm:$0xff]
      %v335 = vld [vmem:[%s267 + $0x218] sm:$0xff]
      %v336 = vld [vmem:[%s267 + $0x220] sm:$0xff]
      %v337 = vld [vmem:[%s267 + $0x228] sm:$0xff]
      %v338 = vld [vmem:[%s267 + $0x230] sm:$0xff]
      %v339 = vld [vmem:[%s267 + $0x238] sm:$0xff]
      %v340 = vld [vmem:[%s267 + $0x240] sm:$0xff]
      %v341 = vld [vmem:[%s267 + $0x248] sm:$0xff]
      %v342 = vld [vmem:[%s267 + $0x250] sm:$0xff]
      %v343 = vld [vmem:[%s267 + $0x258] sm:$0xff]
      %v344 = vld [vmem:[%s267 + $0x260] sm:$0xff]
      %v345 = vld [vmem:[%s267 + $0x268] sm:$0xff]
      %v346 = vld [vmem:[%s267 + $0x270] sm:$0xff]
      %v347 = vld [vmem:[%s267 + $0x278] sm:$0xff]
      %v348 = vld [vmem:[%s267 + $0x280] sm:$0xff]
      %v349 = vld [vmem:[%s267 + $0x288] sm:$0xff]
      %v350 = vld [vmem:[%s267 + $0x290] sm:$0xff]
      %v351 = vld [vmem:[%s267 + $0x298] sm:$0xff]
      %v352 = vld [vmem:[%s267 + $0x2a0] sm:$0xff]
      %v353 = vld [vmem:[%s267 + $0x2a8] sm:$0xff]
      %v354 = vld [vmem:[%s267 + $0x2b0] sm:$0xff]
      %v355 = vld [vmem:[%s267 + $0x2b8] sm:$0xff]
      %v356 = vld [vmem:[%s267 + $0x2c0] sm:$0xff]
      %v357 = vld [vmem:[%s267 + $0x2c8] sm:$0xff]
      %v358 = vld [vmem:[%s267 + $0x2d0] sm:$0xff]
      %v359 = vld [vmem:[%s267 + $0x2d8] sm:$0xff]
      %v360 = vld [vmem:[%s267 + $0x2e0] sm:$0xff]
      %v361 = vld [vmem:[%s267 + $0x2e8] sm:$0xff]
      %v362 = vld [vmem:[%s267 + $0x2f0] sm:$0xff]
      %v363 = vld [vmem:[%s267 + $0x2f8] sm:$0xff]
      %s364 = scalar_lea.vmem %s1, 1536
      %v365 = vld [vmem:[%s364] sm:$0xff]
      %v366 = vld [vmem:[%s364 + $0x8] sm:$0xff]
      %v367 = vld [vmem:[%s364 + $0x10] sm:$0xff]
      %v368 = vld [vmem:[%s364 + $0x18] sm:$0xff]
      %v369 = vld [vmem:[%s364 + $0x20] sm:$0xff]
      %v370 = vld [vmem:[%s364 + $0x28] sm:$0xff]
      %v371 = vld [vmem:[%s364 + $0x30] sm:$0xff]
      %v372 = vld [vmem:[%s364 + $0x38] sm:$0xff]
      %v373 = vld [vmem:[%s364 + $0x40] sm:$0xff]
      %v374 = vld [vmem:[%s364 + $0x48] sm:$0xff]
      %v375 = vld [vmem:[%s364 + $0x50] sm:$0xff]
      %v376 = vld [vmem:[%s364 + $0x58] sm:$0xff]
      %v377 = vld [vmem:[%s364 + $0x60] sm:$0xff]
      %v378 = vld [vmem:[%s364 + $0x68] sm:$0xff]
      %v379 = vld [vmem:[%s364 + $0x70] sm:$0xff]
      %v380 = vld [vmem:[%s364 + $0x78] sm:$0xff]
      %v381 = vld [vmem:[%s364 + $0x80] sm:$0xff]
      %v382 = vld [vmem:[%s364 + $0x88] sm:$0xff]
      %v383 = vld [vmem:[%s364 + $0x90] sm:$0xff]
      %v384 = vld [vmem:[%s364 + $0x98] sm:$0xff]
      %v385 = vld [vmem:[%s364 + $0xa0] sm:$0xff]
      %v386 = vld [vmem:[%s364 + $0xa8] sm:$0xff]
      %v387 = vld [vmem:[%s364 + $0xb0] sm:$0xff]
      %v388 = vld [vmem:[%s364 + $0xb8] sm:$0xff]
      %v389 = vld [vmem:[%s364 + $0xc0] sm:$0xff]
      %v390 = vld [vmem:[%s364 + $0xc8] sm:$0xff]
      %v391 = vld [vmem:[%s364 + $0xd0] sm:$0xff]
      %v392 = vld [vmem:[%s364 + $0xd8] sm:$0xff]
      %v393 = vld [vmem:[%s364 + $0xe0] sm:$0xff]
      %v394 = vld [vmem:[%s364 + $0xe8] sm:$0xff]
      %v395 = vld [vmem:[%s364 + $0xf0] sm:$0xff]
      %v396 = vld [vmem:[%s364 + $0xf8] sm:$0xff]
      %v397 = vld [vmem:[%s364 + $0x100] sm:$0xff]
      %v398 = vld [vmem:[%s364 + $0x108] sm:$0xff]
      %v399 = vld [vmem:[%s364 + $0x110] sm:$0xff]
      %v400 = vld [vmem:[%s364 + $0x118] sm:$0xff]
      %v401 = vld [vmem:[%s364 + $0x120] sm:$0xff]
      %v402 = vld [vmem:[%s364 + $0x128] sm:$0xff]
      %v403 = vld [vmem:[%s364 + $0x130] sm:$0xff]
      %v404 = vld [vmem:[%s364 + $0x138] sm:$0xff]
      %v405 = vld [vmem:[%s364 + $0x140] sm:$0xff]
      %v406 = vld [vmem:[%s364 + $0x148] sm:$0xff]
      %v407 = vld [vmem:[%s364 + $0x150] sm:$0xff]
      %v408 = vld [vmem:[%s364 + $0x158] sm:$0xff]
      %v409 = vld [vmem:[%s364 + $0x160] sm:$0xff]
      %v410 = vld [vmem:[%s364 + $0x168] sm:$0xff]
      %v411 = vld [vmem:[%s364 + $0x170] sm:$0xff]
      %v412 = vld [vmem:[%s364 + $0x178] sm:$0xff]
      %v413 = vld [vmem:[%s364 + $0x180] sm:$0xff]
      %v414 = vld [vmem:[%s364 + $0x188] sm:$0xff]
      %v415 = vld [vmem:[%s364 + $0x190] sm:$0xff]
      %v416 = vld [vmem:[%s364 + $0x198] sm:$0xff]
      %v417 = vld [vmem:[%s364 + $0x1a0] sm:$0xff]
      %v418 = vld [vmem:[%s364 + $0x1a8] sm:$0xff]
      %v419 = vld [vmem:[%s364 + $0x1b0] sm:$0xff]
      %v420 = vld [vmem:[%s364 + $0x1b8] sm:$0xff]
      %v421 = vld [vmem:[%s364 + $0x1c0] sm:$0xff]
      %v422 = vld [vmem:[%s364 + $0x1c8] sm:$0xff]
      %v423 = vld [vmem:[%s364 + $0x1d0] sm:$0xff]
      %v424 = vld [vmem:[%s364 + $0x1d8] sm:$0xff]
      %v425 = vld [vmem:[%s364 + $0x1e0] sm:$0xff]
      %v426 = vld [vmem:[%s364 + $0x1e8] sm:$0xff]
      %v427 = vld [vmem:[%s364 + $0x1f0] sm:$0xff]
      %v428 = vld [vmem:[%s364 + $0x1f8] sm:$0xff]
      %v429 = vld [vmem:[%s364 + $0x200] sm:$0xff]
      %v430 = vld [vmem:[%s364 + $0x208] sm:$0xff]
      %v431 = vld [vmem:[%s364 + $0x210] sm:$0xff]
      %v432 = vld [vmem:[%s364 + $0x218] sm:$0xff]
      %v433 = vld [vmem:[%s364 + $0x220] sm:$0xff]
      %v434 = vld [vmem:[%s364 + $0x228] sm:$0xff]
      %v435 = vld [vmem:[%s364 + $0x230] sm:$0xff]
      %v436 = vld [vmem:[%s364 + $0x238] sm:$0xff]
      %v437 = vld [vmem:[%s364 + $0x240] sm:$0xff]
      %v438 = vld [vmem:[%s364 + $0x248] sm:$0xff]
      %v439 = vld [vmem:[%s364 + $0x250] sm:$0xff]
      %v440 = vld [vmem:[%s364 + $0x258] sm:$0xff]
      %v441 = vld [vmem:[%s364 + $0x260] sm:$0xff]
      %v442 = vld [vmem:[%s364 + $0x268] sm:$0xff]
      %v443 = vld [vmem:[%s364 + $0x270] sm:$0xff]
      %v444 = vld [vmem:[%s364 + $0x278] sm:$0xff]
      %v445 = vld [vmem:[%s364 + $0x280] sm:$0xff]
      %v446 = vld [vmem:[%s364 + $0x288] sm:$0xff]
      %v447 = vld [vmem:[%s364 + $0x290] sm:$0xff]
      %v448 = vld [vmem:[%s364 + $0x298] sm:$0xff]
      %v449 = vld [vmem:[%s364 + $0x2a0] sm:$0xff]
      %v450 = vld [vmem:[%s364 + $0x2a8] sm:$0xff]
      %v451 = vld [vmem:[%s364 + $0x2b0] sm:$0xff]
      %v452 = vld [vmem:[%s364 + $0x2b8] sm:$0xff]
      %v453 = vld [vmem:[%s364 + $0x2c0] sm:$0xff]
      %v454 = vld [vmem:[%s364 + $0x2c8] sm:$0xff]
      %v455 = vld [vmem:[%s364 + $0x2d0] sm:$0xff]
      %v456 = vld [vmem:[%s364 + $0x2d8] sm:$0xff]
      %v457 = vld [vmem:[%s364 + $0x2e0] sm:$0xff]
      %v458 = vld [vmem:[%s364 + $0x2e8] sm:$0xff]
      %v459 = vld [vmem:[%s364 + $0x2f0] sm:$0xff]
      %v460 = vld [vmem:[%s364 + $0x2f8] sm:$0xff]
      %v461 = vld [vmem:[%s2] sm:$0x3]
      %v463 = vlaneseq
      %v464 = vshrl.u32 %v463, 7
      %v465 = vsub.s32 0, %v464
      %v466 = vrot.slane %v461, %v465
      %v467 = vlaneseq
      %v468 = vshrl.u32 %v467, 7
      %v469 = vsub.s32 1, %v468
      %v470 = vrot.slane %v461, %v469
      %v473 = vld [vmem:[%s165] sm:$0xff]
      %v474 = vld [vmem:[%s165 + $0x8] sm:$0xff]
      %v475 = vld [vmem:[%s165 + $0x10] sm:$0xff]
      %s476 = scalar_lea.vmem %s165, 24
      %v477 = vld [vmem:[%s476] sm:$0xff]
      %v478 = vld [vmem:[%s476 + $0x8] sm:$0xff]
      %v479 = vld [vmem:[%s476 + $0x10] sm:$0xff]
      %v483 = vunpack.c.l.b16 %v477
      %v484 = vunpack.c.h.b16 %v477
      %v485 = vunpack.c.l.b16 %v478
      %v486 = vunpack.c.h.b16 %v478
      %v487 = vunpack.c.l.b16 %v479
      %v488 = vunpack.c.h.b16 %v479
      %v489 = vpack.c.b16 %v483, %v483
      %v490 = vpack.c.b16 %v484, %v484
      %v491 = vpack.c.b16 %v485, %v485
      %v492 = vpack.c.b16 %v486, %v486
      %v493 = vpack.c.b16 %v487, %v487
      %v494 = vpack.c.b16 %v488, %v488
      %v597 = vunpack.c.l.b16 %v268
      %v598 = vunpack.c.h.b16 %v268
      %v599 = vunpack.c.l.b16 %v269
      %v600 = vunpack.c.h.b16 %v269
      %v601 = vunpack.c.l.b16 %v270
      %v602 = vunpack.c.h.b16 %v270
      %v603 = vunpack.c.l.b16 %v271
      %v604 = vunpack.c.h.b16 %v271
      %v605 = vunpack.c.l.b16 %v272
      %v606 = vunpack.c.h.b16 %v272
      %v607 = vunpack.c.l.b16 %v273
      %v608 = vunpack.c.h.b16 %v273
      %v609 = vunpack.c.l.b16 %v274
      %v610 = vunpack.c.h.b16 %v274
      %v611 = vunpack.c.l.b16 %v275
      %v612 = vunpack.c.h.b16 %v275
      %v613 = vunpack.c.l.b16 %v276
      %v614 = vunpack.c.h.b16 %v276
      %v615 = vunpack.c.l.b16 %v277
      %v616 = vunpack.c.h.b16 %v277
      %v617 = vunpack.c.l.b16 %v278
      %v618 = vunpack.c.h.b16 %v278
      %v619 = vunpack.c.l.b16 %v279
      %v620 = vunpack.c.h.b16 %v279
      %v621 = vunpack.c.l.b16 %v280
      %v622 = vunpack.c.h.b16 %v280
      %v623 = vunpack.c.l.b16 %v281
      %v624 = vunpack.c.h.b16 %v281
      %v625 = vunpack.c.l.b16 %v282
      %v626 = vunpack.c.h.b16 %v282
      %v627 = vunpack.c.l.b16 %v283
      %v628 = vunpack.c.h.b16 %v283
      %v629 = vunpack.c.l.b16 %v284
      %v630 = vunpack.c.h.b16 %v284
      %v631 = vunpack.c.l.b16 %v285
      %v632 = vunpack.c.h.b16 %v285
      %v633 = vunpack.c.l.b16 %v286
      %v634 = vunpack.c.h.b16 %v286
      %v635 = vunpack.c.l.b16 %v287
      %v636 = vunpack.c.h.b16 %v287
      %v637 = vunpack.c.l.b16 %v288
      %v638 = vunpack.c.h.b16 %v288
      %v639 = vunpack.c.l.b16 %v289
      %v640 = vunpack.c.h.b16 %v289
      %v641 = vunpack.c.l.b16 %v290
      %v642 = vunpack.c.h.b16 %v290
      %v643 = vunpack.c.l.b16 %v291
      %v644 = vunpack.c.h.b16 %v291
      %v645 = vunpack.c.l.b16 %v292
      %v646 = vunpack.c.h.b16 %v292
      %v647 = vunpack.c.l.b16 %v293
      %v648 = vunpack.c.h.b16 %v293
      %v649 = vunpack.c.l.b16 %v294
      %v650 = vunpack.c.h.b16 %v294
      %v651 = vunpack.c.l.b16 %v295
      %v652 = vunpack.c.h.b16 %v295
      %v653 = vunpack.c.l.b16 %v296
      %v654 = vunpack.c.h.b16 %v296
      %v655 = vunpack.c.l.b16 %v297
      %v656 = vunpack.c.h.b16 %v297
      %v657 = vunpack.c.l.b16 %v298
      %v658 = vunpack.c.h.b16 %v298
      %v659 = vunpack.c.l.b16 %v299
      %v660 = vunpack.c.h.b16 %v299
      %v661 = vunpack.c.l.b16 %v300
      %v662 = vunpack.c.h.b16 %v300
      %v663 = vunpack.c.l.b16 %v301
      %v664 = vunpack.c.h.b16 %v301
      %v665 = vunpack.c.l.b16 %v302
      %v666 = vunpack.c.h.b16 %v302
      %v667 = vunpack.c.l.b16 %v303
      %v668 = vunpack.c.h.b16 %v303
      %v669 = vunpack.c.l.b16 %v304
      %v670 = vunpack.c.h.b16 %v304
      %v671 = vunpack.c.l.b16 %v305
      %v672 = vunpack.c.h.b16 %v305
      %v673 = vunpack.c.l.b16 %v306
      %v674 = vunpack.c.h.b16 %v306
      %v675 = vunpack.c.l.b16 %v307
      %v676 = vunpack.c.h.b16 %v307
      %v677 = vunpack.c.l.b16 %v308
      %v678 = vunpack.c.h.b16 %v308
      %v679 = vunpack.c.l.b16 %v309
      %v680 = vunpack.c.h.b16 %v309
      %v681 = vunpack.c.l.b16 %v310
      %v682 = vunpack.c.h.b16 %v310
      %v683 = vunpack.c.l.b16 %v311
      %v684 = vunpack.c.h.b16 %v311
      %v685 = vunpack.c.l.b16 %v312
      %v686 = vunpack.c.h.b16 %v312
      %v687 = vunpack.c.l.b16 %v313
      %v688 = vunpack.c.h.b16 %v313
      %v689 = vunpack.c.l.b16 %v314
      %v690 = vunpack.c.h.b16 %v314
      %v691 = vunpack.c.l.b16 %v315
      %v692 = vunpack.c.h.b16 %v315
      %v693 = vunpack.c.l.b16 %v316
      %v694 = vunpack.c.h.b16 %v316
      %v695 = vunpack.c.l.b16 %v317
      %v696 = vunpack.c.h.b16 %v317
      %v697 = vunpack.c.l.b16 %v318
      %v698 = vunpack.c.h.b16 %v318
      %v699 = vunpack.c.l.b16 %v319
      %v700 = vunpack.c.h.b16 %v319
      %v701 = vunpack.c.l.b16 %v320
      %v702 = vunpack.c.h.b16 %v320
      %v703 = vunpack.c.l.b16 %v321
      %v704 = vunpack.c.h.b16 %v321
      %v705 = vunpack.c.l.b16 %v322
      %v706 = vunpack.c.h.b16 %v322
      %v707 = vunpack.c.l.b16 %v323
      %v708 = vunpack.c.h.b16 %v323
      %v709 = vunpack.c.l.b16 %v324
      %v710 = vunpack.c.h.b16 %v324
      %v711 = vunpack.c.l.b16 %v325
      %v712 = vunpack.c.h.b16 %v325
      %v713 = vunpack.c.l.b16 %v326
      %v714 = vunpack.c.h.b16 %v326
      %v715 = vunpack.c.l.b16 %v327
      %v716 = vunpack.c.h.b16 %v327
      %v717 = vunpack.c.l.b16 %v328
      %v718 = vunpack.c.h.b16 %v328
      %v719 = vunpack.c.l.b16 %v329
      %v720 = vunpack.c.h.b16 %v329
      %v721 = vunpack.c.l.b16 %v330
      %v722 = vunpack.c.h.b16 %v330
      %v723 = vunpack.c.l.b16 %v331
      %v724 = vunpack.c.h.b16 %v331
      %v725 = vunpack.c.l.b16 %v332
      %v726 = vunpack.c.h.b16 %v332
      %v727 = vunpack.c.l.b16 %v333
      %v728 = vunpack.c.h.b16 %v333
      %v729 = vunpack.c.l.b16 %v334
      %v730 = vunpack.c.h.b16 %v334
      %v731 = vunpack.c.l.b16 %v335
      %v732 = vunpack.c.h.b16 %v335
      %v733 = vunpack.c.l.b16 %v336
      %v734 = vunpack.c.h.b16 %v336
      %v735 = vunpack.c.l.b16 %v337
      %v736 = vunpack.c.h.b16 %v337
      %v737 = vunpack.c.l.b16 %v338
      %v738 = vunpack.c.h.b16 %v338
      %v739 = vunpack.c.l.b16 %v339
      %v740 = vunpack.c.h.b16 %v339
      %v741 = vunpack.c.l.b16 %v340
      %v742 = vunpack.c.h.b16 %v340
      %v743 = vunpack.c.l.b16 %v341
      %v744 = vunpack.c.h.b16 %v341
      %v745 = vunpack.c.l.b16 %v342
      %v746 = vunpack.c.h.b16 %v342
      %v747 = vunpack.c.l.b16 %v343
      %v748 = vunpack.c.h.b16 %v343
      %v749 = vunpack.c.l.b16 %v344
      %v750 = vunpack.c.h.b16 %v344
      %v751 = vunpack.c.l.b16 %v345
      %v752 = vunpack.c.h.b16 %v345
      %v753 = vunpack.c.l.b16 %v346
      %v754 = vunpack.c.h.b16 %v346
      %v755 = vunpack.c.l.b16 %v347
      %v756 = vunpack.c.h.b16 %v347
      %v757 = vunpack.c.l.b16 %v348
      %v758 = vunpack.c.h.b16 %v348
      %v759 = vunpack.c.l.b16 %v349
      %v760 = vunpack.c.h.b16 %v349
      %v761 = vunpack.c.l.b16 %v350
      %v762 = vunpack.c.h.b16 %v350
      %v763 = vunpack.c.l.b16 %v351
      %v764 = vunpack.c.h.b16 %v351
      %v765 = vunpack.c.l.b16 %v352
      %v766 = vunpack.c.h.b16 %v352
      %v767 = vunpack.c.l.b16 %v353
      %v768 = vunpack.c.h.b16 %v353
      %v769 = vunpack.c.l.b16 %v354
      %v770 = vunpack.c.h.b16 %v354
      %v771 = vunpack.c.l.b16 %v355
      %v772 = vunpack.c.h.b16 %v355
      %v773 = vunpack.c.l.b16 %v356
      %v774 = vunpack.c.h.b16 %v356
      %v775 = vunpack.c.l.b16 %v357
      %v776 = vunpack.c.h.b16 %v357
      %v777 = vunpack.c.l.b16 %v358
      %v778 = vunpack.c.h.b16 %v358
      %v779 = vunpack.c.l.b16 %v359
      %v780 = vunpack.c.h.b16 %v359
      %v781 = vunpack.c.l.b16 %v360
      %v782 = vunpack.c.h.b16 %v360
      %v783 = vunpack.c.l.b16 %v361
      %v784 = vunpack.c.h.b16 %v361
      %v785 = vunpack.c.l.b16 %v362
      %v786 = vunpack.c.h.b16 %v362
      %v787 = vunpack.c.l.b16 %v363
      %v788 = vunpack.c.h.b16 %v363
      %v789 = vpack.c.b16 %v599, %v597
      %v790 = vpack.c.b16 %v600, %v598
      %v791 = vpack.c.b16 %v603, %v601
      %v792 = vpack.c.b16 %v604, %v602
      %v793 = vpack.c.b16 %v607, %v605
      %v794 = vpack.c.b16 %v608, %v606
      %v795 = vpack.c.b16 %v611, %v609
      %v796 = vpack.c.b16 %v612, %v610
      %v797 = vpack.c.b16 %v615, %v613
      %v798 = vpack.c.b16 %v616, %v614
      %v799 = vpack.c.b16 %v619, %v617
      %v800 = vpack.c.b16 %v620, %v618
      %v801 = vpack.c.b16 %v623, %v621
      %v802 = vpack.c.b16 %v624, %v622
      %v803 = vpack.c.b16 %v627, %v625
      %v804 = vpack.c.b16 %v628, %v626
      %v805 = vpack.c.b16 %v631, %v629
      %v806 = vpack.c.b16 %v632, %v630
      %v807 = vpack.c.b16 %v635, %v633
      %v808 = vpack.c.b16 %v636, %v634
      %v809 = vpack.c.b16 %v639, %v637
      %v810 = vpack.c.b16 %v640, %v638
      %v811 = vpack.c.b16 %v643, %v641
      %v812 = vpack.c.b16 %v644, %v642
      %v813 = vpack.c.b16 %v647, %v645
      %v814 = vpack.c.b16 %v648, %v646
      %v815 = vpack.c.b16 %v651, %v649
      %v816 = vpack.c.b16 %v652, %v650
      %v817 = vpack.c.b16 %v655, %v653
      %v818 = vpack.c.b16 %v656, %v654
      %v819 = vpack.c.b16 %v659, %v657
      %v820 = vpack.c.b16 %v660, %v658
      %v821 = vpack.c.b16 %v663, %v661
      %v822 = vpack.c.b16 %v664, %v662
      %v823 = vpack.c.b16 %v667, %v665
      %v824 = vpack.c.b16 %v668, %v666
      %v825 = vpack.c.b16 %v671, %v669
      %v826 = vpack.c.b16 %v672, %v670
      %v827 = vpack.c.b16 %v675, %v673
      %v828 = vpack.c.b16 %v676, %v674
      %v829 = vpack.c.b16 %v679, %v677
      %v830 = vpack.c.b16 %v680, %v678
      %v831 = vpack.c.b16 %v683, %v681
      %v832 = vpack.c.b16 %v684, %v682
      %v833 = vpack.c.b16 %v687, %v685
      %v834 = vpack.c.b16 %v688, %v686
      %v835 = vpack.c.b16 %v691, %v689
      %v836 = vpack.c.b16 %v692, %v690
      %v837 = vpack.c.b16 %v695, %v693
      %v838 = vpack.c.b16 %v696, %v694
      %v839 = vpack.c.b16 %v699, %v697
      %v840 = vpack.c.b16 %v700, %v698
      %v841 = vpack.c.b16 %v703, %v701
      %v842 = vpack.c.b16 %v704, %v702
      %v843 = vpack.c.b16 %v707, %v705
      %v844 = vpack.c.b16 %v708, %v706
      %v845 = vpack.c.b16 %v711, %v709
      %v846 = vpack.c.b16 %v712, %v710
      %v847 = vpack.c.b16 %v715, %v713
      %v848 = vpack.c.b16 %v716, %v714
      %v849 = vpack.c.b16 %v719, %v717
      %v850 = vpack.c.b16 %v720, %v718
      %v851 = vpack.c.b16 %v723, %v721
      %v852 = vpack.c.b16 %v724, %v722
      %v853 = vpack.c.b16 %v727, %v725
      %v854 = vpack.c.b16 %v728, %v726
      %v855 = vpack.c.b16 %v731, %v729
      %v856 = vpack.c.b16 %v732, %v730
      %v857 = vpack.c.b16 %v735, %v733
      %v858 = vpack.c.b16 %v736, %v734
      %v859 = vpack.c.b16 %v739, %v737
      %v860 = vpack.c.b16 %v740, %v738
      %v861 = vpack.c.b16 %v743, %v741
      %v862 = vpack.c.b16 %v744, %v742
      %v863 = vpack.c.b16 %v747, %v745
      %v864 = vpack.c.b16 %v748, %v746
      %v865 = vpack.c.b16 %v751, %v749
      %v866 = vpack.c.b16 %v752, %v750
      %v867 = vpack.c.b16 %v755, %v753
      %v868 = vpack.c.b16 %v756, %v754
      %v869 = vpack.c.b16 %v759, %v757
      %v870 = vpack.c.b16 %v760, %v758
      %v871 = vpack.c.b16 %v763, %v761
      %v872 = vpack.c.b16 %v764, %v762
      %v873 = vpack.c.b16 %v767, %v765
      %v874 = vpack.c.b16 %v768, %v766
      %v875 = vpack.c.b16 %v771, %v769
      %v876 = vpack.c.b16 %v772, %v770
      %v877 = vpack.c.b16 %v775, %v773
      %v878 = vpack.c.b16 %v776, %v774
      %v879 = vpack.c.b16 %v779, %v777
      %v880 = vpack.c.b16 %v780, %v778
      %v881 = vpack.c.b16 %v783, %v781
      %v882 = vpack.c.b16 %v784, %v782
      %v883 = vpack.c.b16 %v787, %v785
      %v884 = vpack.c.b16 %v788, %v786
      %981 = vmatprep.subr.bf16.mxu0 %v804
      %982 = vmatpush1.bf16.msra.mxu0 %v803
      %983 = vmatprep.subr.bf16.mxu0 %v802
      %984 = vmatpush1.bf16.msra.mxu0 %v801
      %985 = vmatprep.subr.bf16.mxu0 %v800
      %986 = vmatpush1.bf16.msra.mxu0 %v799
      %987 = vmatprep.subr.bf16.mxu0 %v798
      %988 = vmatpush1.bf16.msra.mxu0 %v797
      %989 = vmatprep.subr.bf16.mxu0 %v796
      %990 = vmatpush1.bf16.msra.mxu0 %v795
      %991 = vmatprep.subr.bf16.mxu0 %v794
      %992 = vmatpush1.bf16.msra.mxu0 %v793
      %993 = vmatprep.subr.bf16.mxu0 %v792
      %994 = vmatpush1.bf16.msra.mxu0 %v791
      %995 = vmatprep.subr.bf16.mxu0 %v790
      %996 = vmatpush1.bf16.msra.mxu0 %v789
      %997 = vmatprep.subr.bf16.mxu0 %v820
      %998 = vmatpush2.bf16.msra.mxu0 %v819
      %999 = vmatprep.subr.bf16.mxu0 %v818
      %1000 = vmatpush2.bf16.msra.mxu0 %v817
      %1001 = vmatprep.subr.bf16.mxu0 %v816
      %1002 = vmatpush2.bf16.msra.mxu0 %v815
      %1003 = vmatprep.subr.bf16.mxu0 %v814
      %1004 = vmatpush2.bf16.msra.mxu0 %v813
      %1005 = vmatprep.subr.bf16.mxu0 %v812
      %1006 = vmatpush2.bf16.msra.mxu0 %v811
      %1007 = vmatprep.subr.bf16.mxu0 %v810
      %1008 = vmatpush2.bf16.msra.mxu0 %v809
      %1009 = vmatprep.subr.bf16.mxu0 %v808
      %1010 = vmatpush2.bf16.msra.mxu0 %v807
      %1011 = vmatprep.subr.bf16.mxu0 %v806
      %1012 = vmatpush2.bf16.msra.mxu0 %v805
      %1013 = vmatprep.mubr.bf16.mxu0 %v490
      %1014 = vmatmul.mubr.bf16.gmra.mxu0 %v489
      %v1015 = vpop.f32.mrf.mxu0
      %v1016 = vadd.f32 0.0, %v1015
      %v1017 = vpop.f32.mrf.mxu0
      %v1018 = vadd.f32 0.0, %v1017
      %v1019 = vpop.f32.mrf.mxu0
      %v1020 = vpop.f32.mrf.mxu0
      %1021 = vdwg.mxu0
      %1022 = vmatprep.subr.bf16.mxu0 %v836
      %1023 = vmatpush1.bf16.msra.mxu0 %v835
      %1024 = vmatprep.subr.bf16.mxu0 %v834
      %1025 = vmatpush1.bf16.msra.mxu0 %v833
      %1026 = vmatprep.subr.bf16.mxu0 %v832
      %1027 = vmatpush1.bf16.msra.mxu0 %v831
      %1028 = vmatprep.subr.bf16.mxu0 %v830
      %1029 = vmatpush1.bf16.msra.mxu0 %v829
      %1030 = vmatprep.subr.bf16.mxu0 %v828
      %1031 = vmatpush1.bf16.msra.mxu0 %v827
      %1032 = vmatprep.subr.bf16.mxu0 %v826
      %1033 = vmatpush1.bf16.msra.mxu0 %v825
      %1034 = vmatprep.subr.bf16.mxu0 %v824
      %1035 = vmatpush1.bf16.msra.mxu0 %v823
      %1036 = vmatprep.subr.bf16.mxu0 %v822
      %1037 = vmatpush1.bf16.msra.mxu0 %v821
      %1038 = vmatprep.subr.bf16.mxu0 %v852
      %1039 = vmatpush2.bf16.msra.mxu0 %v851
      %1040 = vmatprep.subr.bf16.mxu0 %v850
      %1041 = vmatpush2.bf16.msra.mxu0 %v849
      %1042 = vmatprep.subr.bf16.mxu0 %v848
      %1043 = vmatpush2.bf16.msra.mxu0 %v847
      %1044 = vmatprep.subr.bf16.mxu0 %v846
      %1045 = vmatpush2.bf16.msra.mxu0 %v845
      %1046 = vmatprep.subr.bf16.mxu0 %v844
      %1047 = vmatpush2.bf16.msra.mxu0 %v843
      %1048 = vmatprep.subr.bf16.mxu0 %v842
      %1049 = vmatpush2.bf16.msra.mxu0 %v841
      %1050 = vmatprep.subr.bf16.mxu0 %v840
      %1051 = vmatpush2.bf16.msra.mxu0 %v839
      %1052 = vmatprep.subr.bf16.mxu0 %v838
      %1053 = vmatpush2.bf16.msra.mxu0 %v837
      %1054 = vmatprep.mubr.bf16.mxu0 %v492
      %1055 = vmatmul.mubr.bf16.gmra.mxu0 %v491
      %v1056 = vpop.f32.mrf.mxu0
      %v1057 = vadd.f32 %v1016, %v1056
      %v1058 = vpop.f32.mrf.mxu0
      %v1059 = vadd.f32 %v1018, %v1058
      %v1060 = vpop.f32.mrf.mxu0
      %v1061 = vpop.f32.mrf.mxu0
      %1062 = vdwg.mxu0
      %1063 = vmatprep.subr.bf16.mxu0 %v868
      %1064 = vmatpush1.bf16.msra.mxu0 %v867
      %1065 = vmatprep.subr.bf16.mxu0 %v866
      %1066 = vmatpush1.bf16.msra.mxu0 %v865
      %1067 = vmatprep.subr.bf16.mxu0 %v864
      %1068 = vmatpush1.bf16.msra.mxu0 %v863
      %1069 = vmatprep.subr.bf16.mxu0 %v862
      %1070 = vmatpush1.bf16.msra.mxu0 %v861
      %1071 = vmatprep.subr.bf16.mxu0 %v860
      %1072 = vmatpush1.bf16.msra.mxu0 %v859
      %1073 = vmatprep.subr.bf16.mxu0 %v858
      %1074 = vmatpush1.bf16.msra.mxu0 %v857
      %1075 = vmatprep.subr.bf16.mxu0 %v856
      %1076 = vmatpush1.bf16.msra.mxu0 %v855
      %1077 = vmatprep.subr.bf16.mxu0 %v854
      %1078 = vmatpush1.bf16.msra.mxu0 %v853
      %1079 = vmatprep.subr.bf16.mxu0 %v884
      %1080 = vmatpush2.bf16.msra.mxu0 %v883
      %1081 = vmatprep.subr.bf16.mxu0 %v882
      %1082 = vmatpush2.bf16.msra.mxu0 %v881
      %1083 = vmatprep.subr.bf16.mxu0 %v880
      %1084 = vmatpush2.bf16.msra.mxu0 %v879
      %1085 = vmatprep.subr.bf16.mxu0 %v878
      %1086 = vmatpush2.bf16.msra.mxu0 %v877
      %1087 = vmatprep.subr.bf16.mxu0 %v876
      %1088 = vmatpush2.bf16.msra.mxu0 %v875
      %1089 = vmatprep.subr.bf16.mxu0 %v874
      %1090 = vmatpush2.bf16.msra.mxu0 %v873
      %1091 = vmatprep.subr.bf16.mxu0 %v872
      %1092 = vmatpush2.bf16.msra.mxu0 %v871
      %1093 = vmatprep.subr.bf16.mxu0 %v870
      %1094 = vmatpush2.bf16.msra.mxu0 %v869
      %1095 = vmatprep.mubr.bf16.mxu0 %v494
      %1096 = vmatmul.mubr.bf16.gmra.mxu0 %v493
      %v1097 = vpop.f32.mrf.mxu0
      %v1098 = vadd.f32 %v1057, %v1097
      %v1099 = vpop.f32.mrf.mxu0
      %v1100 = vadd.f32 %v1059, %v1099
      %v1101 = vpop.f32.mrf.mxu0
      %v1102 = vpop.f32.mrf.mxu0
      %1103 = vdwg.mxu0
      %v1107 = vunpack.c.l.b16 %v473
      %v1108 = vunpack.c.h.b16 %v473
      %v1109 = vunpack.c.l.b16 %v474
      %v1110 = vunpack.c.h.b16 %v474
      %v1111 = vunpack.c.l.b16 %v475
      %v1112 = vunpack.c.h.b16 %v475
      %v1113 = vpack.c.b16 %v1107, %v1107
      %v1114 = vpack.c.b16 %v1108, %v1108
      %v1115 = vpack.c.b16 %v1109, %v1109
      %v1116 = vpack.c.b16 %v1110, %v1110
      %v1117 = vpack.c.b16 %v1111, %v1111
      %v1118 = vpack.c.b16 %v1112, %v1112
      %v1221 = vunpack.c.l.b16 %v171
      %v1222 = vunpack.c.h.b16 %v171
      %v1223 = vunpack.c.l.b16 %v172
      %v1224 = vunpack.c.h.b16 %v172
      %v1225 = vunpack.c.l.b16 %v173
      %v1226 = vunpack.c.h.b16 %v173
      %v1227 = vunpack.c.l.b16 %v174
      %v1228 = vunpack.c.h.b16 %v174
      %v1229 = vunpack.c.l.b16 %v175
      %v1230 = vunpack.c.h.b16 %v175
      %v1231 = vunpack.c.l.b16 %v176
      %v1232 = vunpack.c.h.b16 %v176
      %v1233 = vunpack.c.l.b16 %v177
      %v1234 = vunpack.c.h.b16 %v177
      %v1235 = vunpack.c.l.b16 %v178
      %v1236 = vunpack.c.h.b16 %v178
      %v1237 = vunpack.c.l.b16 %v179
      %v1238 = vunpack.c.h.b16 %v179
      %v1239 = vunpack.c.l.b16 %v180
      %v1240 = vunpack.c.h.b16 %v180
      %v1241 = vunpack.c.l.b16 %v181
      %v1242 = vunpack.c.h.b16 %v181
      %v1243 = vunpack.c.l.b16 %v182
      %v1244 = vunpack.c.h.b16 %v182
      %v1245 = vunpack.c.l.b16 %v183
      %v1246 = vunpack.c.h.b16 %v183
      %v1247 = vunpack.c.l.b16 %v184
      %v1248 = vunpack.c.h.b16 %v184
      %v1249 = vunpack.c.l.b16 %v185
      %v1250 = vunpack.c.h.b16 %v185
      %v1251 = vunpack.c.l.b16 %v186
      %v1252 = vunpack.c.h.b16 %v186
      %v1253 = vunpack.c.l.b16 %v187
      %v1254 = vunpack.c.h.b16 %v187
      %v1255 = vunpack.c.l.b16 %v188
      %v1256 = vunpack.c.h.b16 %v188
      %v1257 = vunpack.c.l.b16 %v189
      %v1258 = vunpack.c.h.b16 %v189
      %v1259 = vunpack.c.l.b16 %v190
      %v1260 = vunpack.c.h.b16 %v190
      %v1261 = vunpack.c.l.b16 %v191
      %v1262 = vunpack.c.h.b16 %v191
      %v1263 = vunpack.c.l.b16 %v192
      %v1264 = vunpack.c.h.b16 %v192
      %v1265 = vunpack.c.l.b16 %v193
      %v1266 = vunpack.c.h.b16 %v193
      %v1267 = vunpack.c.l.b16 %v194
      %v1268 = vunpack.c.h.b16 %v194
      %v1269 = vunpack.c.l.b16 %v195
      %v1270 = vunpack.c.h.b16 %v195
      %v1271 = vunpack.c.l.b16 %v196
      %v1272 = vunpack.c.h.b16 %v196
      %v1273 = vunpack.c.l.b16 %v197
      %v1274 = vunpack.c.h.b16 %v197
      %v1275 = vunpack.c.l.b16 %v198
      %v1276 = vunpack.c.h.b16 %v198
      %v1277 = vunpack.c.l.b16 %v199
      %v1278 = vunpack.c.h.b16 %v199
      %v1279 = vunpack.c.l.b16 %v200
      %v1280 = vunpack.c.h.b16 %v200
      %v1281 = vunpack.c.l.b16 %v201
      %v1282 = vunpack.c.h.b16 %v201
      %v1283 = vunpack.c.l.b16 %v202
      %v1284 = vunpack.c.h.b16 %v202
      %v1285 = vunpack.c.l.b16 %v203
      %v1286 = vunpack.c.h.b16 %v203
      %v1287 = vunpack.c.l.b16 %v204
      %v1288 = vunpack.c.h.b16 %v204
      %v1289 = vunpack.c.l.b16 %v205
      %v1290 = vunpack.c.h.b16 %v205
      %v1291 = vunpack.c.l.b16 %v206
      %v1292 = vunpack.c.h.b16 %v206
      %v1293 = vunpack.c.l.b16 %v207
      %v1294 = vunpack.c.h.b16 %v207
      %v1295 = vunpack.c.l.b16 %v208
      %v1296 = vunpack.c.h.b16 %v208
      %v1297 = vunpack.c.l.b16 %v209
      %v1298 = vunpack.c.h.b16 %v209
      %v1299 = vunpack.c.l.b16 %v210
      %v1300 = vunpack.c.h.b16 %v210
      %v1301 = vunpack.c.l.b16 %v211
      %v1302 = vunpack.c.h.b16 %v211
      %v1303 = vunpack.c.l.b16 %v212
      %v1304 = vunpack.c.h.b16 %v212
      %v1305 = vunpack.c.l.b16 %v213
      %v1306 = vunpack.c.h.b16 %v213
      %v1307 = vunpack.c.l.b16 %v214
      %v1308 = vunpack.c.h.b16 %v214
      %v1309 = vunpack.c.l.b16 %v215
      %v1310 = vunpack.c.h.b16 %v215
      %v1311 = vunpack.c.l.b16 %v216
      %v1312 = vunpack.c.h.b16 %v216
      %v1313 = vunpack.c.l.b16 %v217
      %v1314 = vunpack.c.h.b16 %v217
      %v1315 = vunpack.c.l.b16 %v218
      %v1316 = vunpack.c.h.b16 %v218
      %v1317 = vunpack.c.l.b16 %v219
      %v1318 = vunpack.c.h.b16 %v219
      %v1319 = vunpack.c.l.b16 %v220
      %v1320 = vunpack.c.h.b16 %v220
      %v1321 = vunpack.c.l.b16 %v221
      %v1322 = vunpack.c.h.b16 %v221
      %v1323 = vunpack.c.l.b16 %v222
      %v1324 = vunpack.c.h.b16 %v222
      %v1325 = vunpack.c.l.b16 %v223
      %v1326 = vunpack.c.h.b16 %v223
      %v1327 = vunpack.c.l.b16 %v224
      %v1328 = vunpack.c.h.b16 %v224
      %v1329 = vunpack.c.l.b16 %v225
      %v1330 = vunpack.c.h.b16 %v225
      %v1331 = vunpack.c.l.b16 %v226
      %v1332 = vunpack.c.h.b16 %v226
      %v1333 = vunpack.c.l.b16 %v227
      %v1334 = vunpack.c.h.b16 %v227
      %v1335 = vunpack.c.l.b16 %v228
      %v1336 = vunpack.c.h.b16 %v228
      %v1337 = vunpack.c.l.b16 %v229
      %v1338 = vunpack.c.h.b16 %v229
      %v1339 = vunpack.c.l.b16 %v230
      %v1340 = vunpack.c.h.b16 %v230
      %v1341 = vunpack.c.l.b16 %v231
      %v1342 = vunpack.c.h.b16 %v231
      %v1343 = vunpack.c.l.b16 %v232
      %v1344 = vunpack.c.h.b16 %v232
      %v1345 = vunpack.c.l.b16 %v233
      %v1346 = vunpack.c.h.b16 %v233
      %v1347 = vunpack.c.l.b16 %v234
      %v1348 = vunpack.c.h.b16 %v234
      %v1349 = vunpack.c.l.b16 %v235
      %v1350 = vunpack.c.h.b16 %v235
      %v1351 = vunpack.c.l.b16 %v236
      %v1352 = vunpack.c.h.b16 %v236
      %v1353 = vunpack.c.l.b16 %v237
      %v1354 = vunpack.c.h.b16 %v237
      %v1355 = vunpack.c.l.b16 %v238
      %v1356 = vunpack.c.h.b16 %v238
      %v1357 = vunpack.c.l.b16 %v239
      %v1358 = vunpack.c.h.b16 %v239
      %v1359 = vunpack.c.l.b16 %v240
      %v1360 = vunpack.c.h.b16 %v240
      %v1361 = vunpack.c.l.b16 %v241
      %v1362 = vunpack.c.h.b16 %v241
      %v1363 = vunpack.c.l.b16 %v242
      %v1364 = vunpack.c.h.b16 %v242
      %v1365 = vunpack.c.l.b16 %v243
      %v1366 = vunpack.c.h.b16 %v243
      %v1367 = vunpack.c.l.b16 %v244
      %v1368 = vunpack.c.h.b16 %v244
      %v1369 = vunpack.c.l.b16 %v245
      %v1370 = vunpack.c.h.b16 %v245
      %v1371 = vunpack.c.l.b16 %v246
      %v1372 = vunpack.c.h.b16 %v246
      %v1373 = vunpack.c.l.b16 %v247
      %v1374 = vunpack.c.h.b16 %v247
      %v1375 = vunpack.c.l.b16 %v248
      %v1376 = vunpack.c.h.b16 %v248
      %v1377 = vunpack.c.l.b16 %v249
      %v1378 = vunpack.c.h.b16 %v249
      %v1379 = vunpack.c.l.b16 %v250
      %v1380 = vunpack.c.h.b16 %v250
      %v1381 = vunpack.c.l.b16 %v251
      %v1382 = vunpack.c.h.b16 %v251
      %v1383 = vunpack.c.l.b16 %v252
      %v1384 = vunpack.c.h.b16 %v252
      %v1385 = vunpack.c.l.b16 %v253
      %v1386 = vunpack.c.h.b16 %v253
      %v1387 = vunpack.c.l.b16 %v254
      %v1388 = vunpack.c.h.b16 %v254
      %v1389 = vunpack.c.l.b16 %v255
      %v1390 = vunpack.c.h.b16 %v255
      %v1391 = vunpack.c.l.b16 %v256
      %v1392 = vunpack.c.h.b16 %v256
      %v1393 = vunpack.c.l.b16 %v257
      %v1394 = vunpack.c.h.b16 %v257
      %v1395 = vunpack.c.l.b16 %v258
      %v1396 = vunpack.c.h.b16 %v258
      %v1397 = vunpack.c.l.b16 %v259
      %v1398 = vunpack.c.h.b16 %v259
      %v1399 = vunpack.c.l.b16 %v260
      %v1400 = vunpack.c.h.b16 %v260
      %v1401 = vunpack.c.l.b16 %v261
      %v1402 = vunpack.c.h.b16 %v261
      %v1403 = vunpack.c.l.b16 %v262
      %v1404 = vunpack.c.h.b16 %v262
      %v1405 = vunpack.c.l.b16 %v263
      %v1406 = vunpack.c.h.b16 %v263
      %v1407 = vunpack.c.l.b16 %v264
      %v1408 = vunpack.c.h.b16 %v264
      %v1409 = vunpack.c.l.b16 %v265
      %v1410 = vunpack.c.h.b16 %v265
      %v1411 = vunpack.c.l.b16 %v266
      %v1412 = vunpack.c.h.b16 %v266
      %v1413 = vpack.c.b16 %v1223, %v1221
      %v1414 = vpack.c.b16 %v1224, %v1222
      %v1415 = vpack.c.b16 %v1227, %v1225
      %v1416 = vpack.c.b16 %v1228, %v1226
      %v1417 = vpack.c.b16 %v1231, %v1229
      %v1418 = vpack.c.b16 %v1232, %v1230
      %v1419 = vpack.c.b16 %v1235, %v1233
      %v1420 = vpack.c.b16 %v1236, %v1234
      %v1421 = vpack.c.b16 %v1239, %v1237
      %v1422 = vpack.c.b16 %v1240, %v1238
      %v1423 = vpack.c.b16 %v1243, %v1241
      %v1424 = vpack.c.b16 %v1244, %v1242
      %v1425 = vpack.c.b16 %v1247, %v1245
      %v1426 = vpack.c.b16 %v1248, %v1246
      %v1427 = vpack.c.b16 %v1251, %v1249
      %v1428 = vpack.c.b16 %v1252, %v1250
      %v1429 = vpack.c.b16 %v1255, %v1253
      %v1430 = vpack.c.b16 %v1256, %v1254
      %v1431 = vpack.c.b16 %v1259, %v1257
      %v1432 = vpack.c.b16 %v1260, %v1258
      %v1433 = vpack.c.b16 %v1263, %v1261
      %v1434 = vpack.c.b16 %v1264, %v1262
      %v1435 = vpack.c.b16 %v1267, %v1265
      %v1436 = vpack.c.b16 %v1268, %v1266
      %v1437 = vpack.c.b16 %v1271, %v1269
      %v1438 = vpack.c.b16 %v1272, %v1270
      %v1439 = vpack.c.b16 %v1275, %v1273
      %v1440 = vpack.c.b16 %v1276, %v1274
      %v1441 = vpack.c.b16 %v1279, %v1277
      %v1442 = vpack.c.b16 %v1280, %v1278
      %v1443 = vpack.c.b16 %v1283, %v1281
      %v1444 = vpack.c.b16 %v1284, %v1282
      %v1445 = vpack.c.b16 %v1287, %v1285
      %v1446 = vpack.c.b16 %v1288, %v1286
      %v1447 = vpack.c.b16 %v1291, %v1289
      %v1448 = vpack.c.b16 %v1292, %v1290
      %v1449 = vpack.c.b16 %v1295, %v1293
      %v1450 = vpack.c.b16 %v1296, %v1294
      %v1451 = vpack.c.b16 %v1299, %v1297
      %v1452 = vpack.c.b16 %v1300, %v1298
      %v1453 = vpack.c.b16 %v1303, %v1301
      %v1454 = vpack.c.b16 %v1304, %v1302
      %v1455 = vpack.c.b16 %v1307, %v1305
      %v1456 = vpack.c.b16 %v1308, %v1306
      %v1457 = vpack.c.b16 %v1311, %v1309
      %v1458 = vpack.c.b16 %v1312, %v1310
      %v1459 = vpack.c.b16 %v1315, %v1313
      %v1460 = vpack.c.b16 %v1316, %v1314
      %v1461 = vpack.c.b16 %v1319, %v1317
      %v1462 = vpack.c.b16 %v1320, %v1318
      %v1463 = vpack.c.b16 %v1323, %v1321
      %v1464 = vpack.c.b16 %v1324, %v1322
      %v1465 = vpack.c.b16 %v1327, %v1325
      %v1466 = vpack.c.b16 %v1328, %v1326
      %v1467 = vpack.c.b16 %v1331, %v1329
      %v1468 = vpack.c.b16 %v1332, %v1330
      %v1469 = vpack.c.b16 %v1335, %v1333
      %v1470 = vpack.c.b16 %v1336, %v1334
      %v1471 = vpack.c.b16 %v1339, %v1337
      %v1472 = vpack.c.b16 %v1340, %v1338
      %v1473 = vpack.c.b16 %v1343, %v1341
      %v1474 = vpack.c.b16 %v1344, %v1342
      %v1475 = vpack.c.b16 %v1347, %v1345
      %v1476 = vpack.c.b16 %v1348, %v1346
      %v1477 = vpack.c.b16 %v1351, %v1349
      %v1478 = vpack.c.b16 %v1352, %v1350
      %v1479 = vpack.c.b16 %v1355, %v1353
      %v1480 = vpack.c.b16 %v1356, %v1354
      %v1481 = vpack.c.b16 %v1359, %v1357
      %v1482 = vpack.c.b16 %v1360, %v1358
      %v1483 = vpack.c.b16 %v1363, %v1361
      %v1484 = vpack.c.b16 %v1364, %v1362
      %v1485 = vpack.c.b16 %v1367, %v1365
      %v1486 = vpack.c.b16 %v1368, %v1366
      %v1487 = vpack.c.b16 %v1371, %v1369
      %v1488 = vpack.c.b16 %v1372, %v1370
      %v1489 = vpack.c.b16 %v1375, %v1373
      %v1490 = vpack.c.b16 %v1376, %v1374
      %v1491 = vpack.c.b16 %v1379, %v1377
      %v1492 = vpack.c.b16 %v1380, %v1378
      %v1493 = vpack.c.b16 %v1383, %v1381
      %v1494 = vpack.c.b16 %v1384, %v1382
      %v1495 = vpack.c.b16 %v1387, %v1385
      %v1496 = vpack.c.b16 %v1388, %v1386
      %v1497 = vpack.c.b16 %v1391, %v1389
      %v1498 = vpack.c.b16 %v1392, %v1390
      %v1499 = vpack.c.b16 %v1395, %v1393
      %v1500 = vpack.c.b16 %v1396, %v1394
      %v1501 = vpack.c.b16 %v1399, %v1397
      %v1502 = vpack.c.b16 %v1400, %v1398
      %v1503 = vpack.c.b16 %v1403, %v1401
      %v1504 = vpack.c.b16 %v1404, %v1402
      %v1505 = vpack.c.b16 %v1407, %v1405
      %v1506 = vpack.c.b16 %v1408, %v1406
      %v1507 = vpack.c.b16 %v1411, %v1409
      %v1508 = vpack.c.b16 %v1412, %v1410
      %1605 = vmatprep.subr.bf16.mxu0 %v1428
      %1606 = vmatpush1.bf16.msra.mxu0 %v1427
      %1607 = vmatprep.subr.bf16.mxu0 %v1426
      %1608 = vmatpush1.bf16.msra.mxu0 %v1425
      %1609 = vmatprep.subr.bf16.mxu0 %v1424
      %1610 = vmatpush1.bf16.msra.mxu0 %v1423
      %1611 = vmatprep.subr.bf16.mxu0 %v1422
      %1612 = vmatpush1.bf16.msra.mxu0 %v1421
      %1613 = vmatprep.subr.bf16.mxu0 %v1420
      %1614 = vmatpush1.bf16.msra.mxu0 %v1419
      %1615 = vmatprep.subr.bf16.mxu0 %v1418
      %1616 = vmatpush1.bf16.msra.mxu0 %v1417
      %1617 = vmatprep.subr.bf16.mxu0 %v1416
      %1618 = vmatpush1.bf16.msra.mxu0 %v1415
      %1619 = vmatprep.subr.bf16.mxu0 %v1414
      %1620 = vmatpush1.bf16.msra.mxu0 %v1413
      %1621 = vmatprep.subr.bf16.mxu0 %v1444
      %1622 = vmatpush2.bf16.msra.mxu0 %v1443
      %1623 = vmatprep.subr.bf16.mxu0 %v1442
      %1624 = vmatpush2.bf16.msra.mxu0 %v1441
      %1625 = vmatprep.subr.bf16.mxu0 %v1440
      %1626 = vmatpush2.bf16.msra.mxu0 %v1439
      %1627 = vmatprep.subr.bf16.mxu0 %v1438
      %1628 = vmatpush2.bf16.msra.mxu0 %v1437
      %1629 = vmatprep.subr.bf16.mxu0 %v1436
      %1630 = vmatpush2.bf16.msra.mxu0 %v1435
      %1631 = vmatprep.subr.bf16.mxu0 %v1434
      %1632 = vmatpush2.bf16.msra.mxu0 %v1433
      %1633 = vmatprep.subr.bf16.mxu0 %v1432
      %1634 = vmatpush2.bf16.msra.mxu0 %v1431
      %1635 = vmatprep.subr.bf16.mxu0 %v1430
      %1636 = vmatpush2.bf16.msra.mxu0 %v1429
      %1637 = vmatprep.mubr.bf16.mxu0 %v1114
      %1638 = vmatmul.mubr.bf16.gmra.mxu0 %v1113
      %v1639 = vpop.f32.mrf.mxu0
      %v1640 = vadd.f32 %v1098, %v1639
      %v1641 = vpop.f32.mrf.mxu0
      %v1642 = vadd.f32 %v1100, %v1641
      %v1643 = vpop.f32.mrf.mxu0
      %v1644 = vpop.f32.mrf.mxu0
      %1645 = vdwg.mxu0
      %1646 = vmatprep.subr.bf16.mxu0 %v1460
      %1647 = vmatpush1.bf16.msra.mxu0 %v1459
      %1648 = vmatprep.subr.bf16.mxu0 %v1458
      %1649 = vmatpush1.bf16.msra.mxu0 %v1457
      %1650 = vmatprep.subr.bf16.mxu0 %v1456
      %1651 = vmatpush1.bf16.msra.mxu0 %v1455
      %1652 = vmatprep.subr.bf16.mxu0 %v1454
      %1653 = vmatpush1.bf16.msra.mxu0 %v1453
      %1654 = vmatprep.subr.bf16.mxu0 %v1452
      %1655 = vmatpush1.bf16.msra.mxu0 %v1451
      %1656 = vmatprep.subr.bf16.mxu0 %v1450
      %1657 = vmatpush1.bf16.msra.mxu0 %v1449
      %1658 = vmatprep.subr.bf16.mxu0 %v1448
      %1659 = vmatpush1.bf16.msra.mxu0 %v1447
      %1660 = vmatprep.subr.bf16.mxu0 %v1446
      %1661 = vmatpush1.bf16.msra.mxu0 %v1445
      %1662 = vmatprep.subr.bf16.mxu0 %v1476
      %1663 = vmatpush2.bf16.msra.mxu0 %v1475
      %1664 = vmatprep.subr.bf16.mxu0 %v1474
      %1665 = vmatpush2.bf16.msra.mxu0 %v1473
      %1666 = vmatprep.subr.bf16.mxu0 %v1472
      %1667 = vmatpush2.bf16.msra.mxu0 %v1471
      %1668 = vmatprep.subr.bf16.mxu0 %v1470
      %1669 = vmatpush2.bf16.msra.mxu0 %v1469
      %1670 = vmatprep.subr.bf16.mxu0 %v1468
      %1671 = vmatpush2.bf16.msra.mxu0 %v1467
      %1672 = vmatprep.subr.bf16.mxu0 %v1466
      %1673 = vmatpush2.bf16.msra.mxu0 %v1465
      %1674 = vmatprep.subr.bf16.mxu0 %v1464
      %1675 = vmatpush2.bf16.msra.mxu0 %v1463
      %1676 = vmatprep.subr.bf16.mxu0 %v1462
      %1677 = vmatpush2.bf16.msra.mxu0 %v1461
      %1678 = vmatprep.mubr.bf16.mxu0 %v1116
      %1679 = vmatmul.mubr.bf16.gmra.mxu0 %v1115
      %v1680 = vpop.f32.mrf.mxu0
      %v1681 = vadd.f32 %v1640, %v1680
      %v1682 = vpop.f32.mrf.mxu0
      %v1683 = vadd.f32 %v1642, %v1682
      %v1684 = vpop.f32.mrf.mxu0
      %v1685 = vpop.f32.mrf.mxu0
      %1686 = vdwg.mxu0
      %1687 = vmatprep.subr.bf16.mxu0 %v1492
      %1688 = vmatpush1.bf16.msra.mxu0 %v1491
      %1689 = vmatprep.subr.bf16.mxu0 %v1490
      %1690 = vmatpush1.bf16.msra.mxu0 %v1489
      %1691 = vmatprep.subr.bf16.mxu0 %v1488
      %1692 = vmatpush1.bf16.msra.mxu0 %v1487
      %1693 = vmatprep.subr.bf16.mxu0 %v1486
      %1694 = vmatpush1.bf16.msra.mxu0 %v1485
      %1695 = vmatprep.subr.bf16.mxu0 %v1484
      %1696 = vmatpush1.bf16.msra.mxu0 %v1483
      %1697 = vmatprep.subr.bf16.mxu0 %v1482
      %1698 = vmatpush1.bf16.msra.mxu0 %v1481
      %1699 = vmatprep.subr.bf16.mxu0 %v1480
      %1700 = vmatpush1.bf16.msra.mxu0 %v1479
      %1701 = vmatprep.subr.bf16.mxu0 %v1478
      %1702 = vmatpush1.bf16.msra.mxu0 %v1477
      %1703 = vmatprep.subr.bf16.mxu0 %v1508
      %1704 = vmatpush2.bf16.msra.mxu0 %v1507
      %1705 = vmatprep.subr.bf16.mxu0 %v1506
      %1706 = vmatpush2.bf16.msra.mxu0 %v1505
      %1707 = vmatprep.subr.bf16.mxu0 %v1504
      %1708 = vmatpush2.bf16.msra.mxu0 %v1503
      %1709 = vmatprep.subr.bf16.mxu0 %v1502
      %1710 = vmatpush2.bf16.msra.mxu0 %v1501
      %1711 = vmatprep.subr.bf16.mxu0 %v1500
      %1712 = vmatpush2.bf16.msra.mxu0 %v1499
      %1713 = vmatprep.subr.bf16.mxu0 %v1498
      %1714 = vmatpush2.bf16.msra.mxu0 %v1497
      %1715 = vmatprep.subr.bf16.mxu0 %v1496
      %1716 = vmatpush2.bf16.msra.mxu0 %v1495
      %1717 = vmatprep.subr.bf16.mxu0 %v1494
      %1718 = vmatpush2.bf16.msra.mxu0 %v1493
      %1719 = vmatprep.mubr.bf16.mxu0 %v1118
      %1720 = vmatmul.mubr.bf16.gmra.mxu0 %v1117
      %v1721 = vpop.f32.mrf.mxu0
      %v1722 = vadd.f32 %v1681, %v1721
      %v1723 = vpop.f32.mrf.mxu0
      %v1724 = vadd.f32 %v1683, %v1723
      %v1725 = vpop.f32.mrf.mxu0
      %v1726 = vpop.f32.mrf.mxu0
      %1727 = vdwg.mxu0
      %s1728 = scalar_lea.vmem %s165, 48
      %v1729 = vld [vmem:[%s1728] sm:$0xff]
      %v1730 = vld [vmem:[%s1728 + $0x8] sm:$0xff]
      %v1731 = vld [vmem:[%s1728 + $0x10] sm:$0xff]
      %v1735 = vunpack.c.l.b16 %v1729
      %v1736 = vunpack.c.h.b16 %v1729
      %v1737 = vunpack.c.l.b16 %v1730
      %v1738 = vunpack.c.h.b16 %v1730
      %v1739 = vunpack.c.l.b16 %v1731
      %v1740 = vunpack.c.h.b16 %v1731
      %v1741 = vpack.c.b16 %v1735, %v1735
      %v1742 = vpack.c.b16 %v1736, %v1736
      %v1743 = vpack.c.b16 %v1737, %v1737
      %v1744 = vpack.c.b16 %v1738, %v1738
      %v1745 = vpack.c.b16 %v1739, %v1739
      %v1746 = vpack.c.b16 %v1740, %v1740
      %v1849 = vunpack.c.l.b16 %v365
      %v1850 = vunpack.c.h.b16 %v365
      %v1851 = vunpack.c.l.b16 %v366
      %v1852 = vunpack.c.h.b16 %v366
      %v1853 = vunpack.c.l.b16 %v367
      %v1854 = vunpack.c.h.b16 %v367
      %v1855 = vunpack.c.l.b16 %v368
      %v1856 = vunpack.c.h.b16 %v368
      %v1857 = vunpack.c.l.b16 %v369
      %v1858 = vunpack.c.h.b16 %v369
      %v1859 = vunpack.c.l.b16 %v370
      %v1860 = vunpack.c.h.b16 %v370
      %v1861 = vunpack.c.l.b16 %v371
      %v1862 = vunpack.c.h.b16 %v371
      %v1863 = vunpack.c.l.b16 %v372
      %v1864 = vunpack.c.h.b16 %v372
      %v1865 = vunpack.c.l.b16 %v373
      %v1866 = vunpack.c.h.b16 %v373
      %v1867 = vunpack.c.l.b16 %v374
      %v1868 = vunpack.c.h.b16 %v374
      %v1869 = vunpack.c.l.b16 %v375
      %v1870 = vunpack.c.h.b16 %v375
      %v1871 = vunpack.c.l.b16 %v376
      %v1872 = vunpack.c.h.b16 %v376
      %v1873 = vunpack.c.l.b16 %v377
      %v1874 = vunpack.c.h.b16 %v377
      %v1875 = vunpack.c.l.b16 %v378
      %v1876 = vunpack.c.h.b16 %v378
      %v1877 = vunpack.c.l.b16 %v379
      %v1878 = vunpack.c.h.b16 %v379
      %v1879 = vunpack.c.l.b16 %v380
      %v1880 = vunpack.c.h.b16 %v380
      %v1881 = vunpack.c.l.b16 %v381
      %v1882 = vunpack.c.h.b16 %v381
      %v1883 = vunpack.c.l.b16 %v382
      %v1884 = vunpack.c.h.b16 %v382
      %v1885 = vunpack.c.l.b16 %v383
      %v1886 = vunpack.c.h.b16 %v383
      %v1887 = vunpack.c.l.b16 %v384
      %v1888 = vunpack.c.h.b16 %v384
      %v1889 = vunpack.c.l.b16 %v385
      %v1890 = vunpack.c.h.b16 %v385
      %v1891 = vunpack.c.l.b16 %v386
      %v1892 = vunpack.c.h.b16 %v386
      %v1893 = vunpack.c.l.b16 %v387
      %v1894 = vunpack.c.h.b16 %v387
      %v1895 = vunpack.c.l.b16 %v388
      %v1896 = vunpack.c.h.b16 %v388
      %v1897 = vunpack.c.l.b16 %v389
      %v1898 = vunpack.c.h.b16 %v389
      %v1899 = vunpack.c.l.b16 %v390
      %v1900 = vunpack.c.h.b16 %v390
      %v1901 = vunpack.c.l.b16 %v391
      %v1902 = vunpack.c.h.b16 %v391
      %v1903 = vunpack.c.l.b16 %v392
      %v1904 = vunpack.c.h.b16 %v392
      %v1905 = vunpack.c.l.b16 %v393
      %v1906 = vunpack.c.h.b16 %v393
      %v1907 = vunpack.c.l.b16 %v394
      %v1908 = vunpack.c.h.b16 %v394
      %v1909 = vunpack.c.l.b16 %v395
      %v1910 = vunpack.c.h.b16 %v395
      %v1911 = vunpack.c.l.b16 %v396
      %v1912 = vunpack.c.h.b16 %v396
      %v1913 = vunpack.c.l.b16 %v397
      %v1914 = vunpack.c.h.b16 %v397
      %v1915 = vunpack.c.l.b16 %v398
      %v1916 = vunpack.c.h.b16 %v398
      %v1917 = vunpack.c.l.b16 %v399
      %v1918 = vunpack.c.h.b16 %v399
      %v1919 = vunpack.c.l.b16 %v400
      %v1920 = vunpack.c.h.b16 %v400
      %v1921 = vunpack.c.l.b16 %v401
      %v1922 = vunpack.c.h.b16 %v401
      %v1923 = vunpack.c.l.b16 %v402
      %v1924 = vunpack.c.h.b16 %v402
      %v1925 = vunpack.c.l.b16 %v403
      %v1926 = vunpack.c.h.b16 %v403
      %v1927 = vunpack.c.l.b16 %v404
      %v1928 = vunpack.c.h.b16 %v404
      %v1929 = vunpack.c.l.b16 %v405
      %v1930 = vunpack.c.h.b16 %v405
      %v1931 = vunpack.c.l.b16 %v406
      %v1932 = vunpack.c.h.b16 %v406
      %v1933 = vunpack.c.l.b16 %v407
      %v1934 = vunpack.c.h.b16 %v407
      %v1935 = vunpack.c.l.b16 %v408
      %v1936 = vunpack.c.h.b16 %v408
      %v1937 = vunpack.c.l.b16 %v409
      %v1938 = vunpack.c.h.b16 %v409
      %v1939 = vunpack.c.l.b16 %v410
      %v1940 = vunpack.c.h.b16 %v410
      %v1941 = vunpack.c.l.b16 %v411
      %v1942 = vunpack.c.h.b16 %v411
      %v1943 = vunpack.c.l.b16 %v412
      %v1944 = vunpack.c.h.b16 %v412
      %v1945 = vunpack.c.l.b16 %v413
      %v1946 = vunpack.c.h.b16 %v413
      %v1947 = vunpack.c.l.b16 %v414
      %v1948 = vunpack.c.h.b16 %v414
      %v1949 = vunpack.c.l.b16 %v415
      %v1950 = vunpack.c.h.b16 %v415
      %v1951 = vunpack.c.l.b16 %v416
      %v1952 = vunpack.c.h.b16 %v416
      %v1953 = vunpack.c.l.b16 %v417
      %v1954 = vunpack.c.h.b16 %v417
      %v1955 = vunpack.c.l.b16 %v418
      %v1956 = vunpack.c.h.b16 %v418
      %v1957 = vunpack.c.l.b16 %v419
      %v1958 = vunpack.c.h.b16 %v419
      %v1959 = vunpack.c.l.b16 %v420
      %v1960 = vunpack.c.h.b16 %v420
      %v1961 = vunpack.c.l.b16 %v421
      %v1962 = vunpack.c.h.b16 %v421
      %v1963 = vunpack.c.l.b16 %v422
      %v1964 = vunpack.c.h.b16 %v422
      %v1965 = vunpack.c.l.b16 %v423
      %v1966 = vunpack.c.h.b16 %v423
      %v1967 = vunpack.c.l.b16 %v424
      %v1968 = vunpack.c.h.b16 %v424
      %v1969 = vunpack.c.l.b16 %v425
      %v1970 = vunpack.c.h.b16 %v425
      %v1971 = vunpack.c.l.b16 %v426
      %v1972 = vunpack.c.h.b16 %v426
      %v1973 = vunpack.c.l.b16 %v427
      %v1974 = vunpack.c.h.b16 %v427
      %v1975 = vunpack.c.l.b16 %v428
      %v1976 = vunpack.c.h.b16 %v428
      %v1977 = vunpack.c.l.b16 %v429
      %v1978 = vunpack.c.h.b16 %v429
      %v1979 = vunpack.c.l.b16 %v430
      %v1980 = vunpack.c.h.b16 %v430
      %v1981 = vunpack.c.l.b16 %v431
      %v1982 = vunpack.c.h.b16 %v431
      %v1983 = vunpack.c.l.b16 %v432
      %v1984 = vunpack.c.h.b16 %v432
      %v1985 = vunpack.c.l.b16 %v433
      %v1986 = vunpack.c.h.b16 %v433
      %v1987 = vunpack.c.l.b16 %v434
      %v1988 = vunpack.c.h.b16 %v434
      %v1989 = vunpack.c.l.b16 %v435
      %v1990 = vunpack.c.h.b16 %v435
      %v1991 = vunpack.c.l.b16 %v436
      %v1992 = vunpack.c.h.b16 %v436
      %v1993 = vunpack.c.l.b16 %v437
      %v1994 = vunpack.c.h.b16 %v437
      %v1995 = vunpack.c.l.b16 %v438
      %v1996 = vunpack.c.h.b16 %v438
      %v1997 = vunpack.c.l.b16 %v439
      %v1998 = vunpack.c.h.b16 %v439
      %v1999 = vunpack.c.l.b16 %v440
      %v2000 = vunpack.c.h.b16 %v440
      %v2001 = vunpack.c.l.b16 %v441
      %v2002 = vunpack.c.h.b16 %v441
      %v2003 = vunpack.c.l.b16 %v442
      %v2004 = vunpack.c.h.b16 %v442
      %v2005 = vunpack.c.l.b16 %v443
      %v2006 = vunpack.c.h.b16 %v443
      %v2007 = vunpack.c.l.b16 %v444
      %v2008 = vunpack.c.h.b16 %v444
      %v2009 = vunpack.c.l.b16 %v445
      %v2010 = vunpack.c.h.b16 %v445
      %v2011 = vunpack.c.l.b16 %v446
      %v2012 = vunpack.c.h.b16 %v446
      %v2013 = vunpack.c.l.b16 %v447
      %v2014 = vunpack.c.h.b16 %v447
      %v2015 = vunpack.c.l.b16 %v448
      %v2016 = vunpack.c.h.b16 %v448
      %v2017 = vunpack.c.l.b16 %v449
      %v2018 = vunpack.c.h.b16 %v449
      %v2019 = vunpack.c.l.b16 %v450
      %v2020 = vunpack.c.h.b16 %v450
      %v2021 = vunpack.c.l.b16 %v451
      %v2022 = vunpack.c.h.b16 %v451
      %v2023 = vunpack.c.l.b16 %v452
      %v2024 = vunpack.c.h.b16 %v452
      %v2025 = vunpack.c.l.b16 %v453
      %v2026 = vunpack.c.h.b16 %v453
      %v2027 = vunpack.c.l.b16 %v454
      %v2028 = vunpack.c.h.b16 %v454
      %v2029 = vunpack.c.l.b16 %v455
      %v2030 = vunpack.c.h.b16 %v455
      %v2031 = vunpack.c.l.b16 %v456
      %v2032 = vunpack.c.h.b16 %v456
      %v2033 = vunpack.c.l.b16 %v457
      %v2034 = vunpack.c.h.b16 %v457
      %v2035 = vunpack.c.l.b16 %v458
      %v2036 = vunpack.c.h.b16 %v458
      %v2037 = vunpack.c.l.b16 %v459
      %v2038 = vunpack.c.h.b16 %v459
      %v2039 = vunpack.c.l.b16 %v460
      %v2040 = vunpack.c.h.b16 %v460
      %v2041 = vpack.c.b16 %v1851, %v1849
      %v2042 = vpack.c.b16 %v1852, %v1850
      %v2043 = vpack.c.b16 %v1855, %v1853
      %v2044 = vpack.c.b16 %v1856, %v1854
      %v2045 = vpack.c.b16 %v1859, %v1857
      %v2046 = vpack.c.b16 %v1860, %v1858
      %v2047 = vpack.c.b16 %v1863, %v1861
      %v2048 = vpack.c.b16 %v1864, %v1862
      %v2049 = vpack.c.b16 %v1867, %v1865
      %v2050 = vpack.c.b16 %v1868, %v1866
      %v2051 = vpack.c.b16 %v1871, %v1869
      %v2052 = vpack.c.b16 %v1872, %v1870
      %v2053 = vpack.c.b16 %v1875, %v1873
      %v2054 = vpack.c.b16 %v1876, %v1874
      %v2055 = vpack.c.b16 %v1879, %v1877
      %v2056 = vpack.c.b16 %v1880, %v1878
      %v2057 = vpack.c.b16 %v1883, %v1881
      %v2058 = vpack.c.b16 %v1884, %v1882
      %v2059 = vpack.c.b16 %v1887, %v1885
      %v2060 = vpack.c.b16 %v1888, %v1886
      %v2061 = vpack.c.b16 %v1891, %v1889
      %v2062 = vpack.c.b16 %v1892, %v1890
      %v2063 = vpack.c.b16 %v1895, %v1893
      %v2064 = vpack.c.b16 %v1896, %v1894
      %v2065 = vpack.c.b16 %v1899, %v1897
      %v2066 = vpack.c.b16 %v1900, %v1898
      %v2067 = vpack.c.b16 %v1903, %v1901
      %v2068 = vpack.c.b16 %v1904, %v1902
      %v2069 = vpack.c.b16 %v1907, %v1905
      %v2070 = vpack.c.b16 %v1908, %v1906
      %v2071 = vpack.c.b16 %v1911, %v1909
      %v2072 = vpack.c.b16 %v1912, %v1910
      %v2073 = vpack.c.b16 %v1915, %v1913
      %v2074 = vpack.c.b16 %v1916, %v1914
      %v2075 = vpack.c.b16 %v1919, %v1917
      %v2076 = vpack.c.b16 %v1920, %v1918
      %v2077 = vpack.c.b16 %v1923, %v1921
      %v2078 = vpack.c.b16 %v1924, %v1922
      %v2079 = vpack.c.b16 %v1927, %v1925
      %v2080 = vpack.c.b16 %v1928, %v1926
      %v2081 = vpack.c.b16 %v1931, %v1929
      %v2082 = vpack.c.b16 %v1932, %v1930
      %v2083 = vpack.c.b16 %v1935, %v1933
      %v2084 = vpack.c.b16 %v1936, %v1934
      %v2085 = vpack.c.b16 %v1939, %v1937
      %v2086 = vpack.c.b16 %v1940, %v1938
      %v2087 = vpack.c.b16 %v1943, %v1941
      %v2088 = vpack.c.b16 %v1944, %v1942
      %v2089 = vpack.c.b16 %v1947, %v1945
      %v2090 = vpack.c.b16 %v1948, %v1946
      %v2091 = vpack.c.b16 %v1951, %v1949
      %v2092 = vpack.c.b16 %v1952, %v1950
      %v2093 = vpack.c.b16 %v1955, %v1953
      %v2094 = vpack.c.b16 %v1956, %v1954
      %v2095 = vpack.c.b16 %v1959, %v1957
      %v2096 = vpack.c.b16 %v1960, %v1958
      %v2097 = vpack.c.b16 %v1963, %v1961
      %v2098 = vpack.c.b16 %v1964, %v1962
      %v2099 = vpack.c.b16 %v1967, %v1965
      %v2100 = vpack.c.b16 %v1968, %v1966
      %v2101 = vpack.c.b16 %v1971, %v1969
      %v2102 = vpack.c.b16 %v1972, %v1970
      %v2103 = vpack.c.b16 %v1975, %v1973
      %v2104 = vpack.c.b16 %v1976, %v1974
      %v2105 = vpack.c.b16 %v1979, %v1977
      %v2106 = vpack.c.b16 %v1980, %v1978
      %v2107 = vpack.c.b16 %v1983, %v1981
      %v2108 = vpack.c.b16 %v1984, %v1982
      %v2109 = vpack.c.b16 %v1987, %v1985
      %v2110 = vpack.c.b16 %v1988, %v1986
      %v2111 = vpack.c.b16 %v1991, %v1989
      %v2112 = vpack.c.b16 %v1992, %v1990
      %v2113 = vpack.c.b16 %v1995, %v1993
      %v2114 = vpack.c.b16 %v1996, %v1994
      %v2115 = vpack.c.b16 %v1999, %v1997
      %v2116 = vpack.c.b16 %v2000, %v1998
      %v2117 = vpack.c.b16 %v2003, %v2001
      %v2118 = vpack.c.b16 %v2004, %v2002
      %v2119 = vpack.c.b16 %v2007, %v2005
      %v2120 = vpack.c.b16 %v2008, %v2006
      %v2121 = vpack.c.b16 %v2011, %v2009
      %v2122 = vpack.c.b16 %v2012, %v2010
      %v2123 = vpack.c.b16 %v2015, %v2013
      %v2124 = vpack.c.b16 %v2016, %v2014
      %v2125 = vpack.c.b16 %v2019, %v2017
      %v2126 = vpack.c.b16 %v2020, %v2018
      %v2127 = vpack.c.b16 %v2023, %v2021
      %v2128 = vpack.c.b16 %v2024, %v2022
      %v2129 = vpack.c.b16 %v2027, %v2025
      %v2130 = vpack.c.b16 %v2028, %v2026
      %v2131 = vpack.c.b16 %v2031, %v2029
      %v2132 = vpack.c.b16 %v2032, %v2030
      %v2133 = vpack.c.b16 %v2035, %v2033
      %v2134 = vpack.c.b16 %v2036, %v2034
      %v2135 = vpack.c.b16 %v2039, %v2037
      %v2136 = vpack.c.b16 %v2040, %v2038
      %2233 = vmatprep.subr.bf16.mxu0 %v2056
      %2234 = vmatpush1.bf16.msra.mxu0 %v2055
      %2235 = vmatprep.subr.bf16.mxu0 %v2054
      %2236 = vmatpush1.bf16.msra.mxu0 %v2053
      %2237 = vmatprep.subr.bf16.mxu0 %v2052
      %2238 = vmatpush1.bf16.msra.mxu0 %v2051
      %2239 = vmatprep.subr.bf16.mxu0 %v2050
      %2240 = vmatpush1.bf16.msra.mxu0 %v2049
      %2241 = vmatprep.subr.bf16.mxu0 %v2048
      %2242 = vmatpush1.bf16.msra.mxu0 %v2047
      %2243 = vmatprep.subr.bf16.mxu0 %v2046
      %2244 = vmatpush1.bf16.msra.mxu0 %v2045
      %2245 = vmatprep.subr.bf16.mxu0 %v2044
      %2246 = vmatpush1.bf16.msra.mxu0 %v2043
      %2247 = vmatprep.subr.bf16.mxu0 %v2042
      %2248 = vmatpush1.bf16.msra.mxu0 %v2041
      %2249 = vmatprep.subr.bf16.mxu0 %v2072
      %2250 = vmatpush2.bf16.msra.mxu0 %v2071
      %2251 = vmatprep.subr.bf16.mxu0 %v2070
      %2252 = vmatpush2.bf16.msra.mxu0 %v2069
      %2253 = vmatprep.subr.bf16.mxu0 %v2068
      %2254 = vmatpush2.bf16.msra.mxu0 %v2067
      %2255 = vmatprep.subr.bf16.mxu0 %v2066
      %2256 = vmatpush2.bf16.msra.mxu0 %v2065
      %2257 = vmatprep.subr.bf16.mxu0 %v2064
      %2258 = vmatpush2.bf16.msra.mxu0 %v2063
      %2259 = vmatprep.subr.bf16.mxu0 %v2062
      %2260 = vmatpush2.bf16.msra.mxu0 %v2061
      %2261 = vmatprep.subr.bf16.mxu0 %v2060
      %2262 = vmatpush2.bf16.msra.mxu0 %v2059
      %2263 = vmatprep.subr.bf16.mxu0 %v2058
      %2264 = vmatpush2.bf16.msra.mxu0 %v2057
      %2265 = vmatprep.mubr.bf16.mxu0 %v1742
      %2266 = vmatmul.mubr.bf16.gmra.mxu0 %v1741
      %v2267 = vpop.f32.mrf.mxu0
      %v2268 = vadd.f32 0.0, %v2267
      %v2269 = vpop.f32.mrf.mxu0
      %v2270 = vadd.f32 0.0, %v2269
      %v2271 = vpop.f32.mrf.mxu0
      %v2272 = vpop.f32.mrf.mxu0
      %2273 = vdwg.mxu0
      %2274 = vmatprep.subr.bf16.mxu0 %v2088
      %2275 = vmatpush1.bf16.msra.mxu0 %v2087
      %2276 = vmatprep.subr.bf16.mxu0 %v2086
      %2277 = vmatpush1.bf16.msra.mxu0 %v2085
      %2278 = vmatprep.subr.bf16.mxu0 %v2084
      %2279 = vmatpush1.bf16.msra.mxu0 %v2083
      %2280 = vmatprep.subr.bf16.mxu0 %v2082
      %2281 = vmatpush1.bf16.msra.mxu0 %v2081
      %2282 = vmatprep.subr.bf16.mxu0 %v2080
      %2283 = vmatpush1.bf16.msra.mxu0 %v2079
      %2284 = vmatprep.subr.bf16.mxu0 %v2078
      %2285 = vmatpush1.bf16.msra.mxu0 %v2077
      %2286 = vmatprep.subr.bf16.mxu0 %v2076
      %2287 = vmatpush1.bf16.msra.mxu0 %v2075
      %2288 = vmatprep.subr.bf16.mxu0 %v2074
      %2289 = vmatpush1.bf16.msra.mxu0 %v2073
      %2290 = vmatprep.subr.bf16.mxu0 %v2104
      %2291 = vmatpush2.bf16.msra.mxu0 %v2103
      %2292 = vmatprep.subr.bf16.mxu0 %v2102
      %2293 = vmatpush2.bf16.msra.mxu0 %v2101
      %2294 = vmatprep.subr.bf16.mxu0 %v2100
      %2295 = vmatpush2.bf16.msra.mxu0 %v2099
      %2296 = vmatprep.subr.bf16.mxu0 %v2098
      %2297 = vmatpush2.bf16.msra.mxu0 %v2097
      %2298 = vmatprep.subr.bf16.mxu0 %v2096
      %2299 = vmatpush2.bf16.msra.mxu0 %v2095
      %2300 = vmatprep.subr.bf16.mxu0 %v2094
      %2301 = vmatpush2.bf16.msra.mxu0 %v2093
      %2302 = vmatprep.subr.bf16.mxu0 %v2092
      %2303 = vmatpush2.bf16.msra.mxu0 %v2091
      %2304 = vmatprep.subr.bf16.mxu0 %v2090
      %2305 = vmatpush2.bf16.msra.mxu0 %v2089
      %2306 = vmatprep.mubr.bf16.mxu0 %v1744
      %2307 = vmatmul.mubr.bf16.gmra.mxu0 %v1743
      %v2308 = vpop.f32.mrf.mxu0
      %v2309 = vadd.f32 %v2268, %v2308
      %v2310 = vpop.f32.mrf.mxu0
      %v2311 = vadd.f32 %v2270, %v2310
      %v2312 = vpop.f32.mrf.mxu0
      %v2313 = vpop.f32.mrf.mxu0
      %2314 = vdwg.mxu0
      %2315 = vmatprep.subr.bf16.mxu0 %v2120
      %2316 = vmatpush1.bf16.msra.mxu0 %v2119
      %2317 = vmatprep.subr.bf16.mxu0 %v2118
      %2318 = vmatpush1.bf16.msra.mxu0 %v2117
      %2319 = vmatprep.subr.bf16.mxu0 %v2116
      %2320 = vmatpush1.bf16.msra.mxu0 %v2115
      %2321 = vmatprep.subr.bf16.mxu0 %v2114
      %2322 = vmatpush1.bf16.msra.mxu0 %v2113
      %2323 = vmatprep.subr.bf16.mxu0 %v2112
      %2324 = vmatpush1.bf16.msra.mxu0 %v2111
      %2325 = vmatprep.subr.bf16.mxu0 %v2110
      %2326 = vmatpush1.bf16.msra.mxu0 %v2109
      %2327 = vmatprep.subr.bf16.mxu0 %v2108
      %2328 = vmatpush1.bf16.msra.mxu0 %v2107
      %2329 = vmatprep.subr.bf16.mxu0 %v2106
      %2330 = vmatpush1.bf16.msra.mxu0 %v2105
      %2331 = vmatprep.subr.bf16.mxu0 %v2136
      %2332 = vmatpush2.bf16.msra.mxu0 %v2135
      %2333 = vmatprep.subr.bf16.mxu0 %v2134
      %2334 = vmatpush2.bf16.msra.mxu0 %v2133
      %2335 = vmatprep.subr.bf16.mxu0 %v2132
      %2336 = vmatpush2.bf16.msra.mxu0 %v2131
      %2337 = vmatprep.subr.bf16.mxu0 %v2130
      %2338 = vmatpush2.bf16.msra.mxu0 %v2129
      %2339 = vmatprep.subr.bf16.mxu0 %v2128
      %2340 = vmatpush2.bf16.msra.mxu0 %v2127
      %2341 = vmatprep.subr.bf16.mxu0 %v2126
      %2342 = vmatpush2.bf16.msra.mxu0 %v2125
      %2343 = vmatprep.subr.bf16.mxu0 %v2124
      %2344 = vmatpush2.bf16.msra.mxu0 %v2123
      %2345 = vmatprep.subr.bf16.mxu0 %v2122
      %2346 = vmatpush2.bf16.msra.mxu0 %v2121
      %2347 = vmatprep.mubr.bf16.mxu0 %v1746
      %2348 = vmatmul.mubr.bf16.gmra.mxu0 %v1745
      %v2349 = vpop.f32.mrf.mxu0
      %v2350 = vadd.f32 %v2309, %v2349
      %v2351 = vpop.f32.mrf.mxu0
      %v2352 = vadd.f32 %v2311, %v2351
      %v2353 = vpop.f32.mrf.mxu0
      %v2354 = vpop.f32.mrf.mxu0
      %2355 = vdwg.mxu0
      %v2356 = vadd.f32 %v1722, %v2350
      %v2357 = vadd.f32 %v1724, %v2352
      %v2358 = vadd.f32 %v2356, %v466
      %v2359 = vadd.f32 %v2357, %v470
      %v2360 = vmax.f32 %v2358, 0.0
      %v2361 = vmax.f32 %v2359, 0.0
      %2362 = vst [vmem:[%s170] sm:$0x7f] %v2360
      %2363 = vst [vmem:[%s170 + $0x8] sm:$0x7f] %v2361
      %v2364 = vld [vmem:[%s1728] sm:$0xff]
      %v2365 = vld [vmem:[%s1728 + $0x8] sm:$0xff]
      %v2366 = vld [vmem:[%s1728 + $0x10] sm:$0xff]
      %s2367 = scalar_lea.vmem %s165, 72
      %v2368 = vld [vmem:[%s2367] sm:$0xff]
      %v2369 = vld [vmem:[%s2367 + $0x8] sm:$0xff]
      %v2370 = vld [vmem:[%s2367 + $0x10] sm:$0xff]
      %v2374 = vunpack.c.l.b16 %v2368
      %v2375 = vunpack.c.h.b16 %v2368
      %v2376 = vunpack.c.l.b16 %v2369
      %v2377 = vunpack.c.h.b16 %v2369
      %v2378 = vunpack.c.l.b16 %v2370
      %v2379 = vunpack.c.h.b16 %v2370
      %v2380 = vpack.c.b16 %v2374, %v2374
      %v2381 = vpack.c.b16 %v2375, %v2375
      %v2382 = vpack.c.b16 %v2376, %v2376
      %v2383 = vpack.c.b16 %v2377, %v2377
      %v2384 = vpack.c.b16 %v2378, %v2378
      %v2385 = vpack.c.b16 %v2379, %v2379
      %2392 = vmatprep.subr.bf16.mxu0 %v804
      %2393 = vmatpush1.bf16.msra.mxu0 %v803
      %2394 = vmatprep.subr.bf16.mxu0 %v802
      %2395 = vmatpush1.bf16.msra.mxu0 %v801
      %2396 = vmatprep.subr.bf16.mxu0 %v800
      %2397 = vmatpush1.bf16.msra.mxu0 %v799
      %2398 = vmatprep.subr.bf16.mxu0 %v798
      %2399 = vmatpush1.bf16.msra.mxu0 %v797
      %2400 = vmatprep.subr.bf16.mxu0 %v796
      %2401 = vmatpush1.bf16.msra.mxu0 %v795
      %2402 = vmatprep.subr.bf16.mxu0 %v794
      %2403 = vmatpush1.bf16.msra.mxu0 %v793
      %2404 = vmatprep.subr.bf16.mxu0 %v792
      %2405 = vmatpush1.bf16.msra.mxu0 %v791
      %2406 = vmatprep.subr.bf16.mxu0 %v790
      %2407 = vmatpush1.bf16.msra.mxu0 %v789
      %2408 = vmatprep.subr.bf16.mxu0 %v820
      %2409 = vmatpush2.bf16.msra.mxu0 %v819
      %2410 = vmatprep.subr.bf16.mxu0 %v818
      %2411 = vmatpush2.bf16.msra.mxu0 %v817
      %2412 = vmatprep.subr.bf16.mxu0 %v816
      %2413 = vmatpush2.bf16.msra.mxu0 %v815
      %2414 = vmatprep.subr.bf16.mxu0 %v814
      %2415 = vmatpush2.bf16.msra.mxu0 %v813
      %2416 = vmatprep.subr.bf16.mxu0 %v812
      %2417 = vmatpush2.bf16.msra.mxu0 %v811
      %2418 = vmatprep.subr.bf16.mxu0 %v810
      %2419 = vmatpush2.bf16.msra.mxu0 %v809
      %2420 = vmatprep.subr.bf16.mxu0 %v808
      %2421 = vmatpush2.bf16.msra.mxu0 %v807
      %2422 = vmatprep.subr.bf16.mxu0 %v806
      %2423 = vmatpush2.bf16.msra.mxu0 %v805
      %2424 = vmatprep.mubr.bf16.mxu0 %v2381
      %2425 = vmatmul.mubr.bf16.gmra.mxu0 %v2380
      %v2426 = vpop.f32.mrf.mxu0
      %v2427 = vadd.f32 0.0, %v2426
      %v2428 = vpop.f32.mrf.mxu0
      %v2429 = vadd.f32 0.0, %v2428
      %v2430 = vpop.f32.mrf.mxu0
      %v2431 = vpop.f32.mrf.mxu0
      %2432 = vdwg.mxu0
      %2433 = vmatprep.subr.bf16.mxu0 %v836
      %2434 = vmatpush1.bf16.msra.mxu0 %v835
      %2435 = vmatprep.subr.bf16.mxu0 %v834
      %2436 = vmatpush1.bf16.msra.mxu0 %v833
      %2437 = vmatprep.subr.bf16.mxu0 %v832
      %2438 = vmatpush1.bf16.msra.mxu0 %v831
      %2439 = vmatprep.subr.bf16.mxu0 %v830
      %2440 = vmatpush1.bf16.msra.mxu0 %v829
      %2441 = vmatprep.subr.bf16.mxu0 %v828
      %2442 = vmatpush1.bf16.msra.mxu0 %v827
      %2443 = vmatprep.subr.bf16.mxu0 %v826
      %2444 = vmatpush1.bf16.msra.mxu0 %v825
      %2445 = vmatprep.subr.bf16.mxu0 %v824
      %2446 = vmatpush1.bf16.msra.mxu0 %v823
      %2447 = vmatprep.subr.bf16.mxu0 %v822
      %2448 = vmatpush1.bf16.msra.mxu0 %v821
      %2449 = vmatprep.subr.bf16.mxu0 %v852
      %2450 = vmatpush2.bf16.msra.mxu0 %v851
      %2451 = vmatprep.subr.bf16.mxu0 %v850
      %2452 = vmatpush2.bf16.msra.mxu0 %v849
      %2453 = vmatprep.subr.bf16.mxu0 %v848
      %2454 = vmatpush2.bf16.msra.mxu0 %v847
      %2455 = vmatprep.subr.bf16.mxu0 %v846
      %2456 = vmatpush2.bf16.msra.mxu0 %v845
      %2457 = vmatprep.subr.bf16.mxu0 %v844
      %2458 = vmatpush2.bf16.msra.mxu0 %v843
      %2459 = vmatprep.subr.bf16.mxu0 %v842
      %2460 = vmatpush2.bf16.msra.mxu0 %v841
      %2461 = vmatprep.subr.bf16.mxu0 %v840
      %2462 = vmatpush2.bf16.msra.mxu0 %v839
      %2463 = vmatprep.subr.bf16.mxu0 %v838
      %2464 = vmatpush2.bf16.msra.mxu0 %v837
      %2465 = vmatprep.mubr.bf16.mxu0 %v2383
      %2466 = vmatmul.mubr.bf16.gmra.mxu0 %v2382
      %v2467 = vpop.f32.mrf.mxu0
      %v2468 = vadd.f32 %v2427, %v2467
      %v2469 = vpop.f32.mrf.mxu0
      %v2470 = vadd.f32 %v2429, %v2469
      %v2471 = vpop.f32.mrf.mxu0
      %v2472 = vpop.f32.mrf.mxu0
      %2473 = vdwg.mxu0
      %2474 = vmatprep.subr.bf16.mxu0 %v868
      %2475 = vmatpush1.bf16.msra.mxu0 %v867
      %2476 = vmatprep.subr.bf16.mxu0 %v866
      %2477 = vmatpush1.bf16.msra.mxu0 %v865
      %2478 = vmatprep.subr.bf16.mxu0 %v864
      %2479 = vmatpush1.bf16.msra.mxu0 %v863
      %2480 = vmatprep.subr.bf16.mxu0 %v862
      %2481 = vmatpush1.bf16.msra.mxu0 %v861
      %2482 = vmatprep.subr.bf16.mxu0 %v860
      %2483 = vmatpush1.bf16.msra.mxu0 %v859
      %2484 = vmatprep.subr.bf16.mxu0 %v858
      %2485 = vmatpush1.bf16.msra.mxu0 %v857
      %2486 = vmatprep.subr.bf16.mxu0 %v856
      %2487 = vmatpush1.bf16.msra.mxu0 %v855
      %2488 = vmatprep.subr.bf16.mxu0 %v854
      %2489 = vmatpush1.bf16.msra.mxu0 %v853
      %2490 = vmatprep.subr.bf16.mxu0 %v884
      %2491 = vmatpush2.bf16.msra.mxu0 %v883
      %2492 = vmatprep.subr.bf16.mxu0 %v882
      %2493 = vmatpush2.bf16.msra.mxu0 %v881
      %2494 = vmatprep.subr.bf16.mxu0 %v880
      %2495 = vmatpush2.bf16.msra.mxu0 %v879
      %2496 = vmatprep.subr.bf16.mxu0 %v878
      %2497 = vmatpush2.bf16.msra.mxu0 %v877
      %2498 = vmatprep.subr.bf16.mxu0 %v876
      %2499 = vmatpush2.bf16.msra.mxu0 %v875
      %2500 = vmatprep.subr.bf16.mxu0 %v874
      %2501 = vmatpush2.bf16.msra.mxu0 %v873
      %2502 = vmatprep.subr.bf16.mxu0 %v872
      %2503 = vmatpush2.bf16.msra.mxu0 %v871
      %2504 = vmatprep.subr.bf16.mxu0 %v870
      %2505 = vmatpush2.bf16.msra.mxu0 %v869
      %2506 = vmatprep.mubr.bf16.mxu0 %v2385
      %2507 = vmatmul.mubr.bf16.gmra.mxu0 %v2384
      %v2508 = vpop.f32.mrf.mxu0
      %v2509 = vadd.f32 %v2468, %v2508
      %v2510 = vpop.f32.mrf.mxu0
      %v2511 = vadd.f32 %v2470, %v2510
      %v2512 = vpop.f32.mrf.mxu0
      %v2513 = vpop.f32.mrf.mxu0
      %2514 = vdwg.mxu0
      %v2518 = vunpack.c.l.b16 %v2364
      %v2519 = vunpack.c.h.b16 %v2364
      %v2520 = vunpack.c.l.b16 %v2365
      %v2521 = vunpack.c.h.b16 %v2365
      %v2522 = vunpack.c.l.b16 %v2366
      %v2523 = vunpack.c.h.b16 %v2366
      %v2524 = vpack.c.b16 %v2518, %v2518
      %v2525 = vpack.c.b16 %v2519, %v2519
      %v2526 = vpack.c.b16 %v2520, %v2520
      %v2527 = vpack.c.b16 %v2521, %v2521
      %v2528 = vpack.c.b16 %v2522, %v2522
      %v2529 = vpack.c.b16 %v2523, %v2523
      %2536 = vmatprep.subr.bf16.mxu0 %v1428
      %2537 = vmatpush1.bf16.msra.mxu0 %v1427
      %2538 = vmatprep.subr.bf16.mxu0 %v1426
      %2539 = vmatpush1.bf16.msra.mxu0 %v1425
      %2540 = vmatprep.subr.bf16.mxu0 %v1424
      %2541 = vmatpush1.bf16.msra.mxu0 %v1423
      %2542 = vmatprep.subr.bf16.mxu0 %v1422
      %2543 = vmatpush1.bf16.msra.mxu0 %v1421
      %2544 = vmatprep.subr.bf16.mxu0 %v1420
      %2545 = vmatpush1.bf16.msra.mxu0 %v1419
      %2546 = vmatprep.subr.bf16.mxu0 %v1418
      %2547 = vmatpush1.bf16.msra.mxu0 %v1417
      %2548 = vmatprep.subr.bf16.mxu0 %v1416
      %2549 = vmatpush1.bf16.msra.mxu0 %v1415
      %2550 = vmatprep.subr.bf16.mxu0 %v1414
      %2551 = vmatpush1.bf16.msra.mxu0 %v1413
      %2552 = vmatprep.subr.bf16.mxu0 %v1444
      %2553 = vmatpush2.bf16.msra.mxu0 %v1443
      %2554 = vmatprep.subr.bf16.mxu0 %v1442
      %2555 = vmatpush2.bf16.msra.mxu0 %v1441
      %2556 = vmatprep.subr.bf16.mxu0 %v1440
      %2557 = vmatpush2.bf16.msra.mxu0 %v1439
      %2558 = vmatprep.subr.bf16.mxu0 %v1438
      %2559 = vmatpush2.bf16.msra.mxu0 %v1437
      %2560 = vmatprep.subr.bf16.mxu0 %v1436
      %2561 = vmatpush2.bf16.msra.mxu0 %v1435
      %2562 = vmatprep.subr.bf16.mxu0 %v1434
      %2563 = vmatpush2.bf16.msra.mxu0 %v1433
      %2564 = vmatprep.subr.bf16.mxu0 %v1432
      %2565 = vmatpush2.bf16.msra.mxu0 %v1431
      %2566 = vmatprep.subr.bf16.mxu0 %v1430
      %2567 = vmatpush2.bf16.msra.mxu0 %v1429
      %2568 = vmatprep.mubr.bf16.mxu0 %v2525
      %2569 = vmatmul.mubr.bf16.gmra.mxu0 %v2524
      %v2570 = vpop.f32.mrf.mxu0
      %v2571 = vadd.f32 %v2509, %v2570
      %v2572 = vpop.f32.mrf.mxu0
      %v2573 = vadd.f32 %v2511, %v2572
      %v2574 = vpop.f32.mrf.mxu0
      %v2575 = vpop.f32.mrf.mxu0
      %2576 = vdwg.mxu0
      %2577 = vmatprep.subr.bf16.mxu0 %v1460
      %2578 = vmatpush1.bf16.msra.mxu0 %v1459
      %2579 = vmatprep.subr.bf16.mxu0 %v1458
      %2580 = vmatpush1.bf16.msra.mxu0 %v1457
      %2581 = vmatprep.subr.bf16.mxu0 %v1456
      %2582 = vmatpush1.bf16.msra.mxu0 %v1455
      %2583 = vmatprep.subr.bf16.mxu0 %v1454
      %2584 = vmatpush1.bf16.msra.mxu0 %v1453
      %2585 = vmatprep.subr.bf16.mxu0 %v1452
      %2586 = vmatpush1.bf16.msra.mxu0 %v1451
      %2587 = vmatprep.subr.bf16.mxu0 %v1450
      %2588 = vmatpush1.bf16.msra.mxu0 %v1449
      %2589 = vmatprep.subr.bf16.mxu0 %v1448
      %2590 = vmatpush1.bf16.msra.mxu0 %v1447
      %2591 = vmatprep.subr.bf16.mxu0 %v1446
      %2592 = vmatpush1.bf16.msra.mxu0 %v1445
      %2593 = vmatprep.subr.bf16.mxu0 %v1476
      %2594 = vmatpush2.bf16.msra.mxu0 %v1475
      %2595 = vmatprep.subr.bf16.mxu0 %v1474
      %2596 = vmatpush2.bf16.msra.mxu0 %v1473
      %2597 = vmatprep.subr.bf16.mxu0 %v1472
      %2598 = vmatpush2.bf16.msra.mxu0 %v1471
      %2599 = vmatprep.subr.bf16.mxu0 %v1470
      %2600 = vmatpush2.bf16.msra.mxu0 %v1469
      %2601 = vmatprep.subr.bf16.mxu0 %v1468
      %2602 = vmatpush2.bf16.msra.mxu0 %v1467
      %2603 = vmatprep.subr.bf16.mxu0 %v1466
      %2604 = vmatpush2.bf16.msra.mxu0 %v1465
      %2605 = vmatprep.subr.bf16.mxu0 %v1464
      %2606 = vmatpush2.bf16.msra.mxu0 %v1463
      %2607 = vmatprep.subr.bf16.mxu0 %v1462
      %2608 = vmatpush2.bf16.msra.mxu0 %v1461
      %2609 = vmatprep.mubr.bf16.mxu0 %v2527
      %2610 = vmatmul.mubr.bf16.gmra.mxu0 %v2526
      %v2611 = vpop.f32.mrf.mxu0
      %v2612 = vadd.f32 %v2571, %v2611
      %v2613 = vpop.f32.mrf.mxu0
      %v2614 = vadd.f32 %v2573, %v2613
      %v2615 = vpop.f32.mrf.mxu0
      %v2616 = vpop.f32.mrf.mxu0
      %2617 = vdwg.mxu0
      %2618 = vmatprep.subr.bf16.mxu0 %v1492
      %2619 = vmatpush1.bf16.msra.mxu0 %v1491
      %2620 = vmatprep.subr.bf16.mxu0 %v1490
      %2621 = vmatpush1.bf16.msra.mxu0 %v1489
      %2622 = vmatprep.subr.bf16.mxu0 %v1488
      %2623 = vmatpush1.bf16.msra.mxu0 %v1487
      %2624 = vmatprep.subr.bf16.mxu0 %v1486
      %2625 = vmatpush1.bf16.msra.mxu0 %v1485
      %2626 = vmatprep.subr.bf16.mxu0 %v1484
      %2627 = vmatpush1.bf16.msra.mxu0 %v1483
      %2628 = vmatprep.subr.bf16.mxu0 %v1482
      %2629 = vmatpush1.bf16.msra.mxu0 %v1481
      %2630 = vmatprep.subr.bf16.mxu0 %v1480
      %2631 = vmatpush1.bf16.msra.mxu0 %v1479
      %2632 = vmatprep.subr.bf16.mxu0 %v1478
      %2633 = vmatpush1.bf16.msra.mxu0 %v1477
      %2634 = vmatprep.subr.bf16.mxu0 %v1508
      %2635 = vmatpush2.bf16.msra.mxu0 %v1507
      %2636 = vmatprep.subr.bf16.mxu0 %v1506
      %2637 = vmatpush2.bf16.msra.mxu0 %v1505
      %2638 = vmatprep.subr.bf16.mxu0 %v1504
      %2639 = vmatpush2.bf16.msra.mxu0 %v1503
      %2640 = vmatprep.subr.bf16.mxu0 %v1502
      %2641 = vmatpush2.bf16.msra.mxu0 %v1501
      %2642 = vmatprep.subr.bf16.mxu0 %v1500
      %2643 = vmatpush2.bf16.msra.mxu0 %v1499
      %2644 = vmatprep.subr.bf16.mxu0 %v1498
      %2645 = vmatpush2.bf16.msra.mxu0 %v1497
      %2646 = vmatprep.subr.bf16.mxu0 %v1496
      %2647 = vmatpush2.bf16.msra.mxu0 %v1495
      %2648 = vmatprep.subr.bf16.mxu0 %v1494
      %2649 = vmatpush2.bf16.msra.mxu0 %v1493
      %2650 = vmatprep.mubr.bf16.mxu0 %v2529
      %2651 = vmatmul.mubr.bf16.gmra.mxu0 %v2528
      %v2652 = vpop.f32.mrf.mxu0
      %v2653 = vadd.f32 %v2612, %v2652
      %v2654 = vpop.f32.mrf.mxu0
      %v2655 = vadd.f32 %v2614, %v2654
      %v2656 = vpop.f32.mrf.mxu0
      %v2657 = vpop.f32.mrf.mxu0
      %2658 = vdwg.mxu0
      %s2659 = scalar_lea.vmem %s165, 96
      %v2660 = vld [vmem:[%s2659] sm:$0xff]
      %v2661 = vld [vmem:[%s2659 + $0x8] sm:$0xff]
      %v2662 = vld [vmem:[%s2659 + $0x10] sm:$0xff]
      %v2666 = vunpack.c.l.b16 %v2660
      %v2667 = vunpack.c.h.b16 %v2660
      %v2668 = vunpack.c.l.b16 %v2661
      %v2669 = vunpack.c.h.b16 %v2661
      %v2670 = vunpack.c.l.b16 %v2662
      %v2671 = vunpack.c.h.b16 %v2662
      %v2672 = vpack.c.b16 %v2666, %v2666
      %v2673 = vpack.c.b16 %v2667, %v2667
      %v2674 = vpack.c.b16 %v2668, %v2668
      %v2675 = vpack.c.b16 %v2669, %v2669
      %v2676 = vpack.c.b16 %v2670, %v2670
      %v2677 = vpack.c.b16 %v2671, %v2671
      %2684 = vmatprep.subr.bf16.mxu0 %v2056
      %2685 = vmatpush1.bf16.msra.mxu0 %v2055
      %2686 = vmatprep.subr.bf16.mxu0 %v2054
      %2687 = vmatpush1.bf16.msra.mxu0 %v2053
      %2688 = vmatprep.subr.bf16.mxu0 %v2052
      %2689 = vmatpush1.bf16.msra.mxu0 %v2051
      %2690 = vmatprep.subr.bf16.mxu0 %v2050
      %2691 = vmatpush1.bf16.msra.mxu0 %v2049
      %2692 = vmatprep.subr.bf16.mxu0 %v2048
      %2693 = vmatpush1.bf16.msra.mxu0 %v2047
      %2694 = vmatprep.subr.bf16.mxu0 %v2046
      %2695 = vmatpush1.bf16.msra.mxu0 %v2045
      %2696 = vmatprep.subr.bf16.mxu0 %v2044
      %2697 = vmatpush1.bf16.msra.mxu0 %v2043
      %2698 = vmatprep.subr.bf16.mxu0 %v2042
      %2699 = vmatpush1.bf16.msra.mxu0 %v2041
      %2700 = vmatprep.subr.bf16.mxu0 %v2072
      %2701 = vmatpush2.bf16.msra.mxu0 %v2071
      %2702 = vmatprep.subr.bf16.mxu0 %v2070
      %2703 = vmatpush2.bf16.msra.mxu0 %v2069
      %2704 = vmatprep.subr.bf16.mxu0 %v2068
      %2705 = vmatpush2.bf16.msra.mxu0 %v2067
      %2706 = vmatprep.subr.bf16.mxu0 %v2066
      %2707 = vmatpush2.bf16.msra.mxu0 %v2065
      %2708 = vmatprep.subr.bf16.mxu0 %v2064
      %2709 = vmatpush2.bf16.msra.mxu0 %v2063
      %2710 = vmatprep.subr.bf16.mxu0 %v2062
      %2711 = vmatpush2.bf16.msra.mxu0 %v2061
      %2712 = vmatprep.subr.bf16.mxu0 %v2060
      %2713 = vmatpush2.bf16.msra.mxu0 %v2059
      %2714 = vmatprep.subr.bf16.mxu0 %v2058
      %2715 = vmatpush2.bf16.msra.mxu0 %v2057
      %2716 = vmatprep.mubr.bf16.mxu0 %v2673
      %2717 = vmatmul.mubr.bf16.gmra.mxu0 %v2672
      %v2718 = vpop.f32.mrf.mxu0
      %v2719 = vadd.f32 0.0, %v2718
      %v2720 = vpop.f32.mrf.mxu0
      %v2721 = vadd.f32 0.0, %v2720
      %v2722 = vpop.f32.mrf.mxu0
      %v2723 = vpop.f32.mrf.mxu0
      %2724 = vdwg.mxu0
      %2725 = vmatprep.subr.bf16.mxu0 %v2088
      %2726 = vmatpush1.bf16.msra.mxu0 %v2087
      %2727 = vmatprep.subr.bf16.mxu0 %v2086
      %2728 = vmatpush1.bf16.msra.mxu0 %v2085
      %2729 = vmatprep.subr.bf16.mxu0 %v2084
      %2730 = vmatpush1.bf16.msra.mxu0 %v2083
      %2731 = vmatprep.subr.bf16.mxu0 %v2082
      %2732 = vmatpush1.bf16.msra.mxu0 %v2081
      %2733 = vmatprep.subr.bf16.mxu0 %v2080
      %2734 = vmatpush1.bf16.msra.mxu0 %v2079
      %2735 = vmatprep.subr.bf16.mxu0 %v2078
      %2736 = vmatpush1.bf16.msra.mxu0 %v2077
      %2737 = vmatprep.subr.bf16.mxu0 %v2076
      %2738 = vmatpush1.bf16.msra.mxu0 %v2075
      %2739 = vmatprep.subr.bf16.mxu0 %v2074
      %2740 = vmatpush1.bf16.msra.mxu0 %v2073
      %2741 = vmatprep.subr.bf16.mxu0 %v2104
      %2742 = vmatpush2.bf16.msra.mxu0 %v2103
      %2743 = vmatprep.subr.bf16.mxu0 %v2102
      %2744 = vmatpush2.bf16.msra.mxu0 %v2101
      %2745 = vmatprep.subr.bf16.mxu0 %v2100
      %2746 = vmatpush2.bf16.msra.mxu0 %v2099
      %2747 = vmatprep.subr.bf16.mxu0 %v2098
      %2748 = vmatpush2.bf16.msra.mxu0 %v2097
      %2749 = vmatprep.subr.bf16.mxu0 %v2096
      %2750 = vmatpush2.bf16.msra.mxu0 %v2095
      %2751 = vmatprep.subr.bf16.mxu0 %v2094
      %2752 = vmatpush2.bf16.msra.mxu0 %v2093
      %2753 = vmatprep.subr.bf16.mxu0 %v2092
      %2754 = vmatpush2.bf16.msra.mxu0 %v2091
      %2755 = vmatprep.subr.bf16.mxu0 %v2090
      %2756 = vmatpush2.bf16.msra.mxu0 %v2089
      %2757 = vmatprep.mubr.bf16.mxu0 %v2675
      %2758 = vmatmul.mubr.bf16.gmra.mxu0 %v2674
      %v2759 = vpop.f32.mrf.mxu0
      %v2760 = vadd.f32 %v2719, %v2759
      %v2761 = vpop.f32.mrf.mxu0
      %v2762 = vadd.f32 %v2721, %v2761
      %v2763 = vpop.f32.mrf.mxu0
      %v2764 = vpop.f32.mrf.mxu0
      %2765 = vdwg.mxu0
      %2766 = vmatprep.subr.bf16.mxu0 %v2120
      %2767 = vmatpush1.bf16.msra.mxu0 %v2119
      %2768 = vmatprep.subr.bf16.mxu0 %v2118
      %2769 = vmatpush1.bf16.msra.mxu0 %v2117
      %2770 = vmatprep.subr.bf16.mxu0 %v2116
      %2771 = vmatpush1.bf16.msra.mxu0 %v2115
      %2772 = vmatprep.subr.bf16.mxu0 %v2114
      %2773 = vmatpush1.bf16.msra.mxu0 %v2113
      %2774 = vmatprep.subr.bf16.mxu0 %v2112
      %2775 = vmatpush1.bf16.msra.mxu0 %v2111
      %2776 = vmatprep.subr.bf16.mxu0 %v2110
      %2777 = vmatpush1.bf16.msra.mxu0 %v2109
      %2778 = vmatprep.subr.bf16.mxu0 %v2108
      %2779 = vmatpush1.bf16.msra.mxu0 %v2107
      %2780 = vmatprep.subr.bf16.mxu0 %v2106
      %2781 = vmatpush1.bf16.msra.mxu0 %v2105
      %2782 = vmatprep.subr.bf16.mxu0 %v2136
      %2783 = vmatpush2.bf16.msra.mxu0 %v2135
      %2784 = vmatprep.subr.bf16.mxu0 %v2134
      %2785 = vmatpush2.bf16.msra.mxu0 %v2133
      %2786 = vmatprep.subr.bf16.mxu0 %v2132
      %2787 = vmatpush2.bf16.msra.mxu0 %v2131
      %2788 = vmatprep.subr.bf16.mxu0 %v2130
      %2789 = vmatpush2.bf16.msra.mxu0 %v2129
      %2790 = vmatprep.subr.bf16.mxu0 %v2128
      %2791 = vmatpush2.bf16.msra.mxu0 %v2127
      %2792 = vmatprep.subr.bf16.mxu0 %v2126
      %2793 = vmatpush2.bf16.msra.mxu0 %v2125
      %2794 = vmatprep.subr.bf16.mxu0 %v2124
      %2795 = vmatpush2.bf16.msra.mxu0 %v2123
      %2796 = vmatprep.subr.bf16.mxu0 %v2122
      %2797 = vmatpush2.bf16.msra.mxu0 %v2121
      %2798 = vmatprep.mubr.bf16.mxu0 %v2677
      %2799 = vmatmul.mubr.bf16.gmra.mxu0 %v2676
      %v2800 = vpop.f32.mrf.mxu0
      %v2801 = vadd.f32 %v2760, %v2800
      %v2802 = vpop.f32.mrf.mxu0
      %v2803 = vadd.f32 %v2762, %v2802
      %v2804 = vpop.f32.mrf.mxu0
      %v2805 = vpop.f32.mrf.mxu0
      %2806 = vdwg.mxu0
      %v2807 = vadd.f32 %v2653, %v2801
      %v2808 = vadd.f32 %v2655, %v2803
      %v2809 = vadd.f32 %v2807, %v466
      %v2810 = vadd.f32 %v2808, %v470
      %v2811 = vmax.f32 %v2809, 0.0
      %v2812 = vmax.f32 %v2810, 0.0
      %s2813 = scalar_lea.vmem %s170, 16
      %2814 = vst [vmem:[%s2813] sm:$0x7f] %v2811
      %2815 = vst [vmem:[%s2813 + $0x8] sm:$0x7f] %v2812
      %v2816 = vld [vmem:[%s2659] sm:$0xff]
      %v2817 = vld [vmem:[%s2659 + $0x8] sm:$0xff]
      %v2818 = vld [vmem:[%s2659 + $0x10] sm:$0xff]
      %s2819 = scalar_lea.vmem %s165, 120
      %v2820 = vld [vmem:[%s2819] sm:$0xff]
      %v2821 = vld [vmem:[%s2819 + $0x8] sm:$0xff]
      %v2822 = vld [vmem:[%s2819 + $0x10] sm:$0xff]
      %v2826 = vunpack.c.l.b16 %v2820
      %v2827 = vunpack.c.h.b16 %v2820
      %v2828 = vunpack.c.l.b16 %v2821
      %v2829 = vunpack.c.h.b16 %v2821
      %v2830 = vunpack.c.l.b16 %v2822
      %v2831 = vunpack.c.h.b16 %v2822
      %v2832 = vpack.c.b16 %v2826, %v2826
      %v2833 = vpack.c.b16 %v2827, %v2827
      %v2834 = vpack.c.b16 %v2828, %v2828
      %v2835 = vpack.c.b16 %v2829, %v2829
      %v2836 = vpack.c.b16 %v2830, %v2830
      %v2837 = vpack.c.b16 %v2831, %v2831
      %2844 = vmatprep.subr.bf16.mxu0 %v804
      %2845 = vmatpush1.bf16.msra.mxu0 %v803
      %2846 = vmatprep.subr.bf16.mxu0 %v802
      %2847 = vmatpush1.bf16.msra.mxu0 %v801
      %2848 = vmatprep.subr.bf16.mxu0 %v800
      %2849 = vmatpush1.bf16.msra.mxu0 %v799
      %2850 = vmatprep.subr.bf16.mxu0 %v798
      %2851 = vmatpush1.bf16.msra.mxu0 %v797
      %2852 = vmatprep.subr.bf16.mxu0 %v796
      %2853 = vmatpush1.bf16.msra.mxu0 %v795
      %2854 = vmatprep.subr.bf16.mxu0 %v794
      %2855 = vmatpush1.bf16.msra.mxu0 %v793
      %2856 = vmatprep.subr.bf16.mxu0 %v792
      %2857 = vmatpush1.bf16.msra.mxu0 %v791
      %2858 = vmatprep.subr.bf16.mxu0 %v790
      %2859 = vmatpush1.bf16.msra.mxu0 %v789
      %2860 = vmatprep.subr.bf16.mxu0 %v820
      %2861 = vmatpush2.bf16.msra.mxu0 %v819
      %2862 = vmatprep.subr.bf16.mxu0 %v818
      %2863 = vmatpush2.bf16.msra.mxu0 %v817
      %2864 = vmatprep.subr.bf16.mxu0 %v816
      %2865 = vmatpush2.bf16.msra.mxu0 %v815
      %2866 = vmatprep.subr.bf16.mxu0 %v814
      %2867 = vmatpush2.bf16.msra.mxu0 %v813
      %2868 = vmatprep.subr.bf16.mxu0 %v812
      %2869 = vmatpush2.bf16.msra.mxu0 %v811
      %2870 = vmatprep.subr.bf16.mxu0 %v810
      %2871 = vmatpush2.bf16.msra.mxu0 %v809
      %2872 = vmatprep.subr.bf16.mxu0 %v808
      %2873 = vmatpush2.bf16.msra.mxu0 %v807
      %2874 = vmatprep.subr.bf16.mxu0 %v806
      %2875 = vmatpush2.bf16.msra.mxu0 %v805
      %2876 = vmatprep.mubr.bf16.mxu0 %v2833
      %2877 = vmatmul.mubr.bf16.gmra.mxu0 %v2832
      %v2878 = vpop.f32.mrf.mxu0
      %v2879 = vadd.f32 0.0, %v2878
      %v2880 = vpop.f32.mrf.mxu0
      %v2881 = vadd.f32 0.0, %v2880
      %v2882 = vpop.f32.mrf.mxu0
      %v2883 = vpop.f32.mrf.mxu0
      %2884 = vdwg.mxu0
      %2885 = vmatprep.subr.bf16.mxu0 %v836
      %2886 = vmatpush1.bf16.msra.mxu0 %v835
      %2887 = vmatprep.subr.bf16.mxu0 %v834
      %2888 = vmatpush1.bf16.msra.mxu0 %v833
      %2889 = vmatprep.subr.bf16.mxu0 %v832
      %2890 = vmatpush1.bf16.msra.mxu0 %v831
      %2891 = vmatprep.subr.bf16.mxu0 %v830
      %2892 = vmatpush1.bf16.msra.mxu0 %v829
      %2893 = vmatprep.subr.bf16.mxu0 %v828
      %2894 = vmatpush1.bf16.msra.mxu0 %v827
      %2895 = vmatprep.subr.bf16.mxu0 %v826
      %2896 = vmatpush1.bf16.msra.mxu0 %v825
      %2897 = vmatprep.subr.bf16.mxu0 %v824
      %2898 = vmatpush1.bf16.msra.mxu0 %v823
      %2899 = vmatprep.subr.bf16.mxu0 %v822
      %2900 = vmatpush1.bf16.msra.mxu0 %v821
      %2901 = vmatprep.subr.bf16.mxu0 %v852
      %2902 = vmatpush2.bf16.msra.mxu0 %v851
      %2903 = vmatprep.subr.bf16.mxu0 %v850
      %2904 = vmatpush2.bf16.msra.mxu0 %v849
      %2905 = vmatprep.subr.bf16.mxu0 %v848
      %2906 = vmatpush2.bf16.msra.mxu0 %v847
      %2907 = vmatprep.subr.bf16.mxu0 %v846
      %2908 = vmatpush2.bf16.msra.mxu0 %v845
      %2909 = vmatprep.subr.bf16.mxu0 %v844
      %2910 = vmatpush2.bf16.msra.mxu0 %v843
      %2911 = vmatprep.subr.bf16.mxu0 %v842
      %2912 = vmatpush2.bf16.msra.mxu0 %v841
      %2913 = vmatprep.subr.bf16.mxu0 %v840
      %2914 = vmatpush2.bf16.msra.mxu0 %v839
      %2915 = vmatprep.subr.bf16.mxu0 %v838
      %2916 = vmatpush2.bf16.msra.mxu0 %v837
      %2917 = vmatprep.mubr.bf16.mxu0 %v2835
      %2918 = vmatmul.mubr.bf16.gmra.mxu0 %v2834
      %v2919 = vpop.f32.mrf.mxu0
      %v2920 = vadd.f32 %v2879, %v2919
      %v2921 = vpop.f32.mrf.mxu0
      %v2922 = vadd.f32 %v2881, %v2921
      %v2923 = vpop.f32.mrf.mxu0
      %v2924 = vpop.f32.mrf.mxu0
      %2925 = vdwg.mxu0
      %2926 = vmatprep.subr.bf16.mxu0 %v868
      %2927 = vmatpush1.bf16.msra.mxu0 %v867
      %2928 = vmatprep.subr.bf16.mxu0 %v866
      %2929 = vmatpush1.bf16.msra.mxu0 %v865
      %2930 = vmatprep.subr.bf16.mxu0 %v864
      %2931 = vmatpush1.bf16.msra.mxu0 %v863
      %2932 = vmatprep.subr.bf16.mxu0 %v862
      %2933 = vmatpush1.bf16.msra.mxu0 %v861
      %2934 = vmatprep.subr.bf16.mxu0 %v860
      %2935 = vmatpush1.bf16.msra.mxu0 %v859
      %2936 = vmatprep.subr.bf16.mxu0 %v858
      %2937 = vmatpush1.bf16.msra.mxu0 %v857
      %2938 = vmatprep.subr.bf16.mxu0 %v856
      %2939 = vmatpush1.bf16.msra.mxu0 %v855
      %2940 = vmatprep.subr.bf16.mxu0 %v854
      %2941 = vmatpush1.bf16.msra.mxu0 %v853
      %2942 = vmatprep.subr.bf16.mxu0 %v884
      %2943 = vmatpush2.bf16.msra.mxu0 %v883
      %2944 = vmatprep.subr.bf16.mxu0 %v882
      %2945 = vmatpush2.bf16.msra.mxu0 %v881
      %2946 = vmatprep.subr.bf16.mxu0 %v880
      %2947 = vmatpush2.bf16.msra.mxu0 %v879
      %2948 = vmatprep.subr.bf16.mxu0 %v878
      %2949 = vmatpush2.bf16.msra.mxu0 %v877
      %2950 = vmatprep.subr.bf16.mxu0 %v876
      %2951 = vmatpush2.bf16.msra.mxu0 %v875
      %2952 = vmatprep.subr.bf16.mxu0 %v874
      %2953 = vmatpush2.bf16.msra.mxu0 %v873
      %2954 = vmatprep.subr.bf16.mxu0 %v872
      %2955 = vmatpush2.bf16.msra.mxu0 %v871
      %2956 = vmatprep.subr.bf16.mxu0 %v870
      %2957 = vmatpush2.bf16.msra.mxu0 %v869
      %2958 = vmatprep.mubr.bf16.mxu0 %v2837
      %2959 = vmatmul.mubr.bf16.gmra.mxu0 %v2836
      %v2960 = vpop.f32.mrf.mxu0
      %v2961 = vadd.f32 %v2920, %v2960
      %v2962 = vpop.f32.mrf.mxu0
      %v2963 = vadd.f32 %v2922, %v2962
      %v2964 = vpop.f32.mrf.mxu0
      %v2965 = vpop.f32.mrf.mxu0
      %2966 = vdwg.mxu0
      %v2970 = vunpack.c.l.b16 %v2816
      %v2971 = vunpack.c.h.b16 %v2816
      %v2972 = vunpack.c.l.b16 %v2817
      %v2973 = vunpack.c.h.b16 %v2817
      %v2974 = vunpack.c.l.b16 %v2818
      %v2975 = vunpack.c.h.b16 %v2818
      %v2976 = vpack.c.b16 %v2970, %v2970
      %v2977 = vpack.c.b16 %v2971, %v2971
      %v2978 = vpack.c.b16 %v2972, %v2972
      %v2979 = vpack.c.b16 %v2973, %v2973
      %v2980 = vpack.c.b16 %v2974, %v2974
      %v2981 = vpack.c.b16 %v2975, %v2975
      %2988 = vmatprep.subr.bf16.mxu0 %v1428
      %2989 = vmatpush1.bf16.msra.mxu0 %v1427
      %2990 = vmatprep.subr.bf16.mxu0 %v1426
      %2991 = vmatpush1.bf16.msra.mxu0 %v1425
      %2992 = vmatprep.subr.bf16.mxu0 %v1424
      %2993 = vmatpush1.bf16.msra.mxu0 %v1423
      %2994 = vmatprep.subr.bf16.mxu0 %v1422
      %2995 = vmatpush1.bf16.msra.mxu0 %v1421
      %2996 = vmatprep.subr.bf16.mxu0 %v1420
      %2997 = vmatpush1.bf16.msra.mxu0 %v1419
      %2998 = vmatprep.subr.bf16.mxu0 %v1418
      %2999 = vmatpush1.bf16.msra.mxu0 %v1417
      %3000 = vmatprep.subr.bf16.mxu0 %v1416
      %3001 = vmatpush1.bf16.msra.mxu0 %v1415
      %3002 = vmatprep.subr.bf16.mxu0 %v1414
      %3003 = vmatpush1.bf16.msra.mxu0 %v1413
      %3004 = vmatprep.subr.bf16.mxu0 %v1444
      %3005 = vmatpush2.bf16.msra.mxu0 %v1443
      %3006 = vmatprep.subr.bf16.mxu0 %v1442
      %3007 = vmatpush2.bf16.msra.mxu0 %v1441
      %3008 = vmatprep.subr.bf16.mxu0 %v1440
      %3009 = vmatpush2.bf16.msra.mxu0 %v1439
      %3010 = vmatprep.subr.bf16.mxu0 %v1438
      %3011 = vmatpush2.bf16.msra.mxu0 %v1437
      %3012 = vmatprep.subr.bf16.mxu0 %v1436
      %3013 = vmatpush2.bf16.msra.mxu0 %v1435
      %3014 = vmatprep.subr.bf16.mxu0 %v1434
      %3015 = vmatpush2.bf16.msra.mxu0 %v1433
      %3016 = vmatprep.subr.bf16.mxu0 %v1432
      %3017 = vmatpush2.bf16.msra.mxu0 %v1431
      %3018 = vmatprep.subr.bf16.mxu0 %v1430
      %3019 = vmatpush2.bf16.msra.mxu0 %v1429
      %3020 = vmatprep.mubr.bf16.mxu0 %v2977
      %3021 = vmatmul.mubr.bf16.gmra.mxu0 %v2976
      %v3022 = vpop.f32.mrf.mxu0
      %v3023 = vadd.f32 %v2961, %v3022
      %v3024 = vpop.f32.mrf.mxu0
      %v3025 = vadd.f32 %v2963, %v3024
      %v3026 = vpop.f32.mrf.mxu0
      %v3027 = vpop.f32.mrf.mxu0
      %3028 = vdwg.mxu0
      %3029 = vmatprep.subr.bf16.mxu0 %v1460
      %3030 = vmatpush1.bf16.msra.mxu0 %v1459
      %3031 = vmatprep.subr.bf16.mxu0 %v1458
      %3032 = vmatpush1.bf16.msra.mxu0 %v1457
      %3033 = vmatprep.subr.bf16.mxu0 %v1456
      %3034 = vmatpush1.bf16.msra.mxu0 %v1455
      %3035 = vmatprep.subr.bf16.mxu0 %v1454
      %3036 = vmatpush1.bf16.msra.mxu0 %v1453
      %3037 = vmatprep.subr.bf16.mxu0 %v1452
      %3038 = vmatpush1.bf16.msra.mxu0 %v1451
      %3039 = vmatprep.subr.bf16.mxu0 %v1450
      %3040 = vmatpush1.bf16.msra.mxu0 %v1449
      %3041 = vmatprep.subr.bf16.mxu0 %v1448
      %3042 = vmatpush1.bf16.msra.mxu0 %v1447
      %3043 = vmatprep.subr.bf16.mxu0 %v1446
      %3044 = vmatpush1.bf16.msra.mxu0 %v1445
      %3045 = vmatprep.subr.bf16.mxu0 %v1476
      %3046 = vmatpush2.bf16.msra.mxu0 %v1475
      %3047 = vmatprep.subr.bf16.mxu0 %v1474
      %3048 = vmatpush2.bf16.msra.mxu0 %v1473
      %3049 = vmatprep.subr.bf16.mxu0 %v1472
      %3050 = vmatpush2.bf16.msra.mxu0 %v1471
      %3051 = vmatprep.subr.bf16.mxu0 %v1470
      %3052 = vmatpush2.bf16.msra.mxu0 %v1469
      %3053 = vmatprep.subr.bf16.mxu0 %v1468
      %3054 = vmatpush2.bf16.msra.mxu0 %v1467
      %3055 = vmatprep.subr.bf16.mxu0 %v1466
      %3056 = vmatpush2.bf16.msra.mxu0 %v1465
      %3057 = vmatprep.subr.bf16.mxu0 %v1464
      %3058 = vmatpush2.bf16.msra.mxu0 %v1463
      %3059 = vmatprep.subr.bf16.mxu0 %v1462
      %3060 = vmatpush2.bf16.msra.mxu0 %v1461
      %3061 = vmatprep.mubr.bf16.mxu0 %v2979
      %3062 = vmatmul.mubr.bf16.gmra.mxu0 %v2978
      %v3063 = vpop.f32.mrf.mxu0
      %v3064 = vadd.f32 %v3023, %v3063
      %v3065 = vpop.f32.mrf.mxu0
      %v3066 = vadd.f32 %v3025, %v3065
      %v3067 = vpop.f32.mrf.mxu0
      %v3068 = vpop.f32.mrf.mxu0
      %3069 = vdwg.mxu0
      %3070 = vmatprep.subr.bf16.mxu0 %v1492
      %3071 = vmatpush1.bf16.msra.mxu0 %v1491
      %3072 = vmatprep.subr.bf16.mxu0 %v1490
      %3073 = vmatpush1.bf16.msra.mxu0 %v1489
      %3074 = vmatprep.subr.bf16.mxu0 %v1488
      %3075 = vmatpush1.bf16.msra.mxu0 %v1487
      %3076 = vmatprep.subr.bf16.mxu0 %v1486
      %3077 = vmatpush1.bf16.msra.mxu0 %v1485
      %3078 = vmatprep.subr.bf16.mxu0 %v1484
      %3079 = vmatpush1.bf16.msra.mxu0 %v1483
      %3080 = vmatprep.subr.bf16.mxu0 %v1482
      %3081 = vmatpush1.bf16.msra.mxu0 %v1481
      %3082 = vmatprep.subr.bf16.mxu0 %v1480
      %3083 = vmatpush1.bf16.msra.mxu0 %v1479
      %3084 = vmatprep.subr.bf16.mxu0 %v1478
      %3085 = vmatpush1.bf16.msra.mxu0 %v1477
      %3086 = vmatprep.subr.bf16.mxu0 %v1508
      %3087 = vmatpush2.bf16.msra.mxu0 %v1507
      %3088 = vmatprep.subr.bf16.mxu0 %v1506
      %3089 = vmatpush2.bf16.msra.mxu0 %v1505
      %3090 = vmatprep.subr.bf16.mxu0 %v1504
      %3091 = vmatpush2.bf16.msra.mxu0 %v1503
      %3092 = vmatprep.subr.bf16.mxu0 %v1502
      %3093 = vmatpush2.bf16.msra.mxu0 %v1501
      %3094 = vmatprep.subr.bf16.mxu0 %v1500
      %3095 = vmatpush2.bf16.msra.mxu0 %v1499
      %3096 = vmatprep.subr.bf16.mxu0 %v1498
      %3097 = vmatpush2.bf16.msra.mxu0 %v1497
      %3098 = vmatprep.subr.bf16.mxu0 %v1496
      %3099 = vmatpush2.bf16.msra.mxu0 %v1495
      %3100 = vmatprep.subr.bf16.mxu0 %v1494
      %3101 = vmatpush2.bf16.msra.mxu0 %v1493
      %3102 = vmatprep.mubr.bf16.mxu0 %v2981
      %3103 = vmatmul.mubr.bf16.gmra.mxu0 %v2980
      %v3104 = vpop.f32.mrf.mxu0
      %v3105 = vadd.f32 %v3064, %v3104
      %v3106 = vpop.f32.mrf.mxu0
      %v3107 = vadd.f32 %v3066, %v3106
      %v3108 = vpop.f32.mrf.mxu0
      %v3109 = vpop.f32.mrf.mxu0
      %3110 = vdwg.mxu0
      %s3111 = scalar_lea.vmem %s165, 144
      %v3112 = vld [vmem:[%s3111] sm:$0xff]
      %v3113 = vld [vmem:[%s3111 + $0x8] sm:$0xff]
      %v3114 = vld [vmem:[%s3111 + $0x10] sm:$0xff]
      %v3118 = vunpack.c.l.b16 %v3112
      %v3119 = vunpack.c.h.b16 %v3112
      %v3120 = vunpack.c.l.b16 %v3113
      %v3121 = vunpack.c.h.b16 %v3113
      %v3122 = vunpack.c.l.b16 %v3114
      %v3123 = vunpack.c.h.b16 %v3114
      %v3124 = vpack.c.b16 %v3118, %v3118
      %v3125 = vpack.c.b16 %v3119, %v3119
      %v3126 = vpack.c.b16 %v3120, %v3120
      %v3127 = vpack.c.b16 %v3121, %v3121
      %v3128 = vpack.c.b16 %v3122, %v3122
      %v3129 = vpack.c.b16 %v3123, %v3123
      %3136 = vmatprep.subr.bf16.mxu0 %v2056
      %3137 = vmatpush1.bf16.msra.mxu0 %v2055
      %3138 = vmatprep.subr.bf16.mxu0 %v2054
      %3139 = vmatpush1.bf16.msra.mxu0 %v2053
      %3140 = vmatprep.subr.bf16.mxu0 %v2052
      %3141 = vmatpush1.bf16.msra.mxu0 %v2051
      %3142 = vmatprep.subr.bf16.mxu0 %v2050
      %3143 = vmatpush1.bf16.msra.mxu0 %v2049
      %3144 = vmatprep.subr.bf16.mxu0 %v2048
      %3145 = vmatpush1.bf16.msra.mxu0 %v2047
      %3146 = vmatprep.subr.bf16.mxu0 %v2046
      %3147 = vmatpush1.bf16.msra.mxu0 %v2045
      %3148 = vmatprep.subr.bf16.mxu0 %v2044
      %3149 = vmatpush1.bf16.msra.mxu0 %v2043
      %3150 = vmatprep.subr.bf16.mxu0 %v2042
      %3151 = vmatpush1.bf16.msra.mxu0 %v2041
      %3152 = vmatprep.subr.bf16.mxu0 %v2072
      %3153 = vmatpush2.bf16.msra.mxu0 %v2071
      %3154 = vmatprep.subr.bf16.mxu0 %v2070
      %3155 = vmatpush2.bf16.msra.mxu0 %v2069
      %3156 = vmatprep.subr.bf16.mxu0 %v2068
      %3157 = vmatpush2.bf16.msra.mxu0 %v2067
      %3158 = vmatprep.subr.bf16.mxu0 %v2066
      %3159 = vmatpush2.bf16.msra.mxu0 %v2065
      %3160 = vmatprep.subr.bf16.mxu0 %v2064
      %3161 = vmatpush2.bf16.msra.mxu0 %v2063
      %3162 = vmatprep.subr.bf16.mxu0 %v2062
      %3163 = vmatpush2.bf16.msra.mxu0 %v2061
      %3164 = vmatprep.subr.bf16.mxu0 %v2060
      %3165 = vmatpush2.bf16.msra.mxu0 %v2059
      %3166 = vmatprep.subr.bf16.mxu0 %v2058
      %3167 = vmatpush2.bf16.msra.mxu0 %v2057
      %3168 = vmatprep.mubr.bf16.mxu0 %v3125
      %3169 = vmatmul.mubr.bf16.gmra.mxu0 %v3124
      %v3170 = vpop.f32.mrf.mxu0
      %v3171 = vadd.f32 0.0, %v3170
      %v3172 = vpop.f32.mrf.mxu0
      %v3173 = vadd.f32 0.0, %v3172
      %v3174 = vpop.f32.mrf.mxu0
      %v3175 = vpop.f32.mrf.mxu0
      %3176 = vdwg.mxu0
      %3177 = vmatprep.subr.bf16.mxu0 %v2088
      %3178 = vmatpush1.bf16.msra.mxu0 %v2087
      %3179 = vmatprep.subr.bf16.mxu0 %v2086
      %3180 = vmatpush1.bf16.msra.mxu0 %v2085
      %3181 = vmatprep.subr.bf16.mxu0 %v2084
      %3182 = vmatpush1.bf16.msra.mxu0 %v2083
      %3183 = vmatprep.subr.bf16.mxu0 %v2082
      %3184 = vmatpush1.bf16.msra.mxu0 %v2081
      %3185 = vmatprep.subr.bf16.mxu0 %v2080
      %3186 = vmatpush1.bf16.msra.mxu0 %v2079
      %3187 = vmatprep.subr.bf16.mxu0 %v2078
      %3188 = vmatpush1.bf16.msra.mxu0 %v2077
      %3189 = vmatprep.subr.bf16.mxu0 %v2076
      %3190 = vmatpush1.bf16.msra.mxu0 %v2075
      %3191 = vmatprep.subr.bf16.mxu0 %v2074
      %3192 = vmatpush1.bf16.msra.mxu0 %v2073
      %3193 = vmatprep.subr.bf16.mxu0 %v2104
      %3194 = vmatpush2.bf16.msra.mxu0 %v2103
      %3195 = vmatprep.subr.bf16.mxu0 %v2102
      %3196 = vmatpush2.bf16.msra.mxu0 %v2101
      %3197 = vmatprep.subr.bf16.mxu0 %v2100
      %3198 = vmatpush2.bf16.msra.mxu0 %v2099
      %3199 = vmatprep.subr.bf16.mxu0 %v2098
      %3200 = vmatpush2.bf16.msra.mxu0 %v2097
      %3201 = vmatprep.subr.bf16.mxu0 %v2096
      %3202 = vmatpush2.bf16.msra.mxu0 %v2095
      %3203 = vmatprep.subr.bf16.mxu0 %v2094
      %3204 = vmatpush2.bf16.msra.mxu0 %v2093
      %3205 = vmatprep.subr.bf16.mxu0 %v2092
      %3206 = vmatpush2.bf16.msra.mxu0 %v2091
      %3207 = vmatprep.subr.bf16.mxu0 %v2090
      %3208 = vmatpush2.bf16.msra.mxu0 %v2089
      %3209 = vmatprep.mubr.bf16.mxu0 %v3127
      %3210 = vmatmul.mubr.bf16.gmra.mxu0 %v3126
      %v3211 = vpop.f32.mrf.mxu0
      %v3212 = vadd.f32 %v3171, %v3211
      %v3213 = vpop.f32.mrf.mxu0
      %v3214 = vadd.f32 %v3173, %v3213
      %v3215 = vpop.f32.mrf.mxu0
      %v3216 = vpop.f32.mrf.mxu0
      %3217 = vdwg.mxu0
      %3218 = vmatprep.subr.bf16.mxu0 %v2120
      %3219 = vmatpush1.bf16.msra.mxu0 %v2119
      %3220 = vmatprep.subr.bf16.mxu0 %v2118
      %3221 = vmatpush1.bf16.msra.mxu0 %v2117
      %3222 = vmatprep.subr.bf16.mxu0 %v2116
      %3223 = vmatpush1.bf16.msra.mxu0 %v2115
      %3224 = vmatprep.subr.bf16.mxu0 %v2114
      %3225 = vmatpush1.bf16.msra.mxu0 %v2113
      %3226 = vmatprep.subr.bf16.mxu0 %v2112
      %3227 = vmatpush1.bf16.msra.mxu0 %v2111
      %3228 = vmatprep.subr.bf16.mxu0 %v2110
      %3229 = vmatpush1.bf16.msra.mxu0 %v2109
      %3230 = vmatprep.subr.bf16.mxu0 %v2108
      %3231 = vmatpush1.bf16.msra.mxu0 %v2107
      %3232 = vmatprep.subr.bf16.mxu0 %v2106
      %3233 = vmatpush1.bf16.msra.mxu0 %v2105
      %3234 = vmatprep.subr.bf16.mxu0 %v2136
      %3235 = vmatpush2.bf16.msra.mxu0 %v2135
      %3236 = vmatprep.subr.bf16.mxu0 %v2134
      %3237 = vmatpush2.bf16.msra.mxu0 %v2133
      %3238 = vmatprep.subr.bf16.mxu0 %v2132
      %3239 = vmatpush2.bf16.msra.mxu0 %v2131
      %3240 = vmatprep.subr.bf16.mxu0 %v2130
      %3241 = vmatpush2.bf16.msra.mxu0 %v2129
      %3242 = vmatprep.subr.bf16.mxu0 %v2128
      %3243 = vmatpush2.bf16.msra.mxu0 %v2127
      %3244 = vmatprep.subr.bf16.mxu0 %v2126
      %3245 = vmatpush2.bf16.msra.mxu0 %v2125
      %3246 = vmatprep.subr.bf16.mxu0 %v2124
      %3247 = vmatpush2.bf16.msra.mxu0 %v2123
      %3248 = vmatprep.subr.bf16.mxu0 %v2122
      %3249 = vmatpush2.bf16.msra.mxu0 %v2121
      %3250 = vmatprep.mubr.bf16.mxu0 %v3129
      %3251 = vmatmul.mubr.bf16.gmra.mxu0 %v3128
      %v3252 = vpop.f32.mrf.mxu0
      %v3253 = vadd.f32 %v3212, %v3252
      %v3254 = vpop.f32.mrf.mxu0
      %v3255 = vadd.f32 %v3214, %v3254
      %v3256 = vpop.f32.mrf.mxu0
      %v3257 = vpop.f32.mrf.mxu0
      %3258 = vdwg.mxu0
      %v3259 = vadd.f32 %v3105, %v3253
      %v3260 = vadd.f32 %v3107, %v3255
      %v3261 = vadd.f32 %v3259, %v466
      %v3262 = vadd.f32 %v3260, %v470
      %v3263 = vmax.f32 %v3261, 0.0
      %v3264 = vmax.f32 %v3262, 0.0
      %s3265 = scalar_lea.vmem %s170, 32
      %3266 = vst [vmem:[%s3265] sm:$0x7f] %v3263
      %3267 = vst [vmem:[%s3265 + $0x8] sm:$0x7f] %v3264
      %v3268 = vld [vmem:[%s3111] sm:$0xff]
      %v3269 = vld [vmem:[%s3111 + $0x8] sm:$0xff]
      %v3270 = vld [vmem:[%s3111 + $0x10] sm:$0xff]
      %s3271 = scalar_lea.vmem %s165, 168
      %v3272 = vld [vmem:[%s3271] sm:$0xff]
      %v3273 = vld [vmem:[%s3271 + $0x8] sm:$0xff]
      %v3274 = vld [vmem:[%s3271 + $0x10] sm:$0xff]
      %v3278 = vunpack.c.l.b16 %v3272
      %v3279 = vunpack.c.h.b16 %v3272
      %v3280 = vunpack.c.l.b16 %v3273
      %v3281 = vunpack.c.h.b16 %v3273
      %v3282 = vunpack.c.l.b16 %v3274
      %v3283 = vunpack.c.h.b16 %v3274
      %v3284 = vpack.c.b16 %v3278, %v3278
      %v3285 = vpack.c.b16 %v3279, %v3279
      %v3286 = vpack.c.b16 %v3280, %v3280
      %v3287 = vpack.c.b16 %v3281, %v3281
      %v3288 = vpack.c.b16 %v3282, %v3282
      %v3289 = vpack.c.b16 %v3283, %v3283
      %3296 = vmatprep.subr.bf16.mxu0 %v804
      %3297 = vmatpush1.bf16.msra.mxu0 %v803
      %3298 = vmatprep.subr.bf16.mxu0 %v802
      %3299 = vmatpush1.bf16.msra.mxu0 %v801
      %3300 = vmatprep.subr.bf16.mxu0 %v800
      %3301 = vmatpush1.bf16.msra.mxu0 %v799
      %3302 = vmatprep.subr.bf16.mxu0 %v798
      %3303 = vmatpush1.bf16.msra.mxu0 %v797
      %3304 = vmatprep.subr.bf16.mxu0 %v796
      %3305 = vmatpush1.bf16.msra.mxu0 %v795
      %3306 = vmatprep.subr.bf16.mxu0 %v794
      %3307 = vmatpush1.bf16.msra.mxu0 %v793
      %3308 = vmatprep.subr.bf16.mxu0 %v792
      %3309 = vmatpush1.bf16.msra.mxu0 %v791
      %3310 = vmatprep.subr.bf16.mxu0 %v790
      %3311 = vmatpush1.bf16.msra.mxu0 %v789
      %3312 = vmatprep.subr.bf16.mxu0 %v820
      %3313 = vmatpush2.bf16.msra.mxu0 %v819
      %3314 = vmatprep.subr.bf16.mxu0 %v818
      %3315 = vmatpush2.bf16.msra.mxu0 %v817
      %3316 = vmatprep.subr.bf16.mxu0 %v816
      %3317 = vmatpush2.bf16.msra.mxu0 %v815
      %3318 = vmatprep.subr.bf16.mxu0 %v814
      %3319 = vmatpush2.bf16.msra.mxu0 %v813
      %3320 = vmatprep.subr.bf16.mxu0 %v812
      %3321 = vmatpush2.bf16.msra.mxu0 %v811
      %3322 = vmatprep.subr.bf16.mxu0 %v810
      %3323 = vmatpush2.bf16.msra.mxu0 %v809
      %3324 = vmatprep.subr.bf16.mxu0 %v808
      %3325 = vmatpush2.bf16.msra.mxu0 %v807
      %3326 = vmatprep.subr.bf16.mxu0 %v806
      %3327 = vmatpush2.bf16.msra.mxu0 %v805
      %3328 = vmatprep.mubr.bf16.mxu0 %v3285
      %3329 = vmatmul.mubr.bf16.gmra.mxu0 %v3284
      %v3330 = vpop.f32.mrf.mxu0
      %v3331 = vadd.f32 0.0, %v3330
      %v3332 = vpop.f32.mrf.mxu0
      %v3333 = vadd.f32 0.0, %v3332
      %v3334 = vpop.f32.mrf.mxu0
      %v3335 = vpop.f32.mrf.mxu0
      %3336 = vdwg.mxu0
      %3337 = vmatprep.subr.bf16.mxu0 %v836
      %3338 = vmatpush1.bf16.msra.mxu0 %v835
      %3339 = vmatprep.subr.bf16.mxu0 %v834
      %3340 = vmatpush1.bf16.msra.mxu0 %v833
      %3341 = vmatprep.subr.bf16.mxu0 %v832
      %3342 = vmatpush1.bf16.msra.mxu0 %v831
      %3343 = vmatprep.subr.bf16.mxu0 %v830
      %3344 = vmatpush1.bf16.msra.mxu0 %v829
      %3345 = vmatprep.subr.bf16.mxu0 %v828
      %3346 = vmatpush1.bf16.msra.mxu0 %v827
      %3347 = vmatprep.subr.bf16.mxu0 %v826
      %3348 = vmatpush1.bf16.msra.mxu0 %v825
      %3349 = vmatprep.subr.bf16.mxu0 %v824
      %3350 = vmatpush1.bf16.msra.mxu0 %v823
      %3351 = vmatprep.subr.bf16.mxu0 %v822
      %3352 = vmatpush1.bf16.msra.mxu0 %v821
      %3353 = vmatprep.subr.bf16.mxu0 %v852
      %3354 = vmatpush2.bf16.msra.mxu0 %v851
      %3355 = vmatprep.subr.bf16.mxu0 %v850
      %3356 = vmatpush2.bf16.msra.mxu0 %v849
      %3357 = vmatprep.subr.bf16.mxu0 %v848
      %3358 = vmatpush2.bf16.msra.mxu0 %v847
      %3359 = vmatprep.subr.bf16.mxu0 %v846
      %3360 = vmatpush2.bf16.msra.mxu0 %v845
      %3361 = vmatprep.subr.bf16.mxu0 %v844
      %3362 = vmatpush2.bf16.msra.mxu0 %v843
      %3363 = vmatprep.subr.bf16.mxu0 %v842
      %3364 = vmatpush2.bf16.msra.mxu0 %v841
      %3365 = vmatprep.subr.bf16.mxu0 %v840
      %3366 = vmatpush2.bf16.msra.mxu0 %v839
      %3367 = vmatprep.subr.bf16.mxu0 %v838
      %3368 = vmatpush2.bf16.msra.mxu0 %v837
      %3369 = vmatprep.mubr.bf16.mxu0 %v3287
      %3370 = vmatmul.mubr.bf16.gmra.mxu0 %v3286
      %v3371 = vpop.f32.mrf.mxu0
      %v3372 = vadd.f32 %v3331, %v3371
      %v3373 = vpop.f32.mrf.mxu0
      %v3374 = vadd.f32 %v3333, %v3373
      %v3375 = vpop.f32.mrf.mxu0
      %v3376 = vpop.f32.mrf.mxu0
      %3377 = vdwg.mxu0
      %3378 = vmatprep.subr.bf16.mxu0 %v868
      %3379 = vmatpush1.bf16.msra.mxu0 %v867
      %3380 = vmatprep.subr.bf16.mxu0 %v866
      %3381 = vmatpush1.bf16.msra.mxu0 %v865
      %3382 = vmatprep.subr.bf16.mxu0 %v864
      %3383 = vmatpush1.bf16.msra.mxu0 %v863
      %3384 = vmatprep.subr.bf16.mxu0 %v862
      %3385 = vmatpush1.bf16.msra.mxu0 %v861
      %3386 = vmatprep.subr.bf16.mxu0 %v860
      %3387 = vmatpush1.bf16.msra.mxu0 %v859
      %3388 = vmatprep.subr.bf16.mxu0 %v858
      %3389 = vmatpush1.bf16.msra.mxu0 %v857
      %3390 = vmatprep.subr.bf16.mxu0 %v856
      %3391 = vmatpush1.bf16.msra.mxu0 %v855
      %3392 = vmatprep.subr.bf16.mxu0 %v854
      %3393 = vmatpush1.bf16.msra.mxu0 %v853
      %3394 = vmatprep.subr.bf16.mxu0 %v884
      %3395 = vmatpush2.bf16.msra.mxu0 %v883
      %3396 = vmatprep.subr.bf16.mxu0 %v882
      %3397 = vmatpush2.bf16.msra.mxu0 %v881
      %3398 = vmatprep.subr.bf16.mxu0 %v880
      %3399 = vmatpush2.bf16.msra.mxu0 %v879
      %3400 = vmatprep.subr.bf16.mxu0 %v878
      %3401 = vmatpush2.bf16.msra.mxu0 %v877
      %3402 = vmatprep.subr.bf16.mxu0 %v876
      %3403 = vmatpush2.bf16.msra.mxu0 %v875
      %3404 = vmatprep.subr.bf16.mxu0 %v874
      %3405 = vmatpush2.bf16.msra.mxu0 %v873
      %3406 = vmatprep.subr.bf16.mxu0 %v872
      %3407 = vmatpush2.bf16.msra.mxu0 %v871
      %3408 = vmatprep.subr.bf16.mxu0 %v870
      %3409 = vmatpush2.bf16.msra.mxu0 %v869
      %3410 = vmatprep.mubr.bf16.mxu0 %v3289
      %3411 = vmatmul.mubr.bf16.gmra.mxu0 %v3288
      %v3412 = vpop.f32.mrf.mxu0
      %v3413 = vadd.f32 %v3372, %v3412
      %v3414 = vpop.f32.mrf.mxu0
      %v3415 = vadd.f32 %v3374, %v3414
      %v3416 = vpop.f32.mrf.mxu0
      %v3417 = vpop.f32.mrf.mxu0
      %3418 = vdwg.mxu0
      %v3422 = vunpack.c.l.b16 %v3268
      %v3423 = vunpack.c.h.b16 %v3268
      %v3424 = vunpack.c.l.b16 %v3269
      %v3425 = vunpack.c.h.b16 %v3269
      %v3426 = vunpack.c.l.b16 %v3270
      %v3427 = vunpack.c.h.b16 %v3270
      %v3428 = vpack.c.b16 %v3422, %v3422
      %v3429 = vpack.c.b16 %v3423, %v3423
      %v3430 = vpack.c.b16 %v3424, %v3424
      %v3431 = vpack.c.b16 %v3425, %v3425
      %v3432 = vpack.c.b16 %v3426, %v3426
      %v3433 = vpack.c.b16 %v3427, %v3427
      %3440 = vmatprep.subr.bf16.mxu0 %v1428
      %3441 = vmatpush1.bf16.msra.mxu0 %v1427
      %3442 = vmatprep.subr.bf16.mxu0 %v1426
      %3443 = vmatpush1.bf16.msra.mxu0 %v1425
      %3444 = vmatprep.subr.bf16.mxu0 %v1424
      %3445 = vmatpush1.bf16.msra.mxu0 %v1423
      %3446 = vmatprep.subr.bf16.mxu0 %v1422
      %3447 = vmatpush1.bf16.msra.mxu0 %v1421
      %3448 = vmatprep.subr.bf16.mxu0 %v1420
      %3449 = vmatpush1.bf16.msra.mxu0 %v1419
      %3450 = vmatprep.subr.bf16.mxu0 %v1418
      %3451 = vmatpush1.bf16.msra.mxu0 %v1417
      %3452 = vmatprep.subr.bf16.mxu0 %v1416
      %3453 = vmatpush1.bf16.msra.mxu0 %v1415
      %3454 = vmatprep.subr.bf16.mxu0 %v1414
      %3455 = vmatpush1.bf16.msra.mxu0 %v1413
      %3456 = vmatprep.subr.bf16.mxu0 %v1444
      %3457 = vmatpush2.bf16.msra.mxu0 %v1443
      %3458 = vmatprep.subr.bf16.mxu0 %v1442
      %3459 = vmatpush2.bf16.msra.mxu0 %v1441
      %3460 = vmatprep.subr.bf16.mxu0 %v1440
      %3461 = vmatpush2.bf16.msra.mxu0 %v1439
      %3462 = vmatprep.subr.bf16.mxu0 %v1438
      %3463 = vmatpush2.bf16.msra.mxu0 %v1437
      %3464 = vmatprep.subr.bf16.mxu0 %v1436
      %3465 = vmatpush2.bf16.msra.mxu0 %v1435
      %3466 = vmatprep.subr.bf16.mxu0 %v1434
      %3467 = vmatpush2.bf16.msra.mxu0 %v1433
      %3468 = vmatprep.subr.bf16.mxu0 %v1432
      %3469 = vmatpush2.bf16.msra.mxu0 %v1431
      %3470 = vmatprep.subr.bf16.mxu0 %v1430
      %3471 = vmatpush2.bf16.msra.mxu0 %v1429
      %3472 = vmatprep.mubr.bf16.mxu0 %v3429
      %3473 = vmatmul.mubr.bf16.gmra.mxu0 %v3428
      %v3474 = vpop.f32.mrf.mxu0
      %v3475 = vadd.f32 %v3413, %v3474
      %v3476 = vpop.f32.mrf.mxu0
      %v3477 = vadd.f32 %v3415, %v3476
      %v3478 = vpop.f32.mrf.mxu0
      %v3479 = vpop.f32.mrf.mxu0
      %3480 = vdwg.mxu0
      %3481 = vmatprep.subr.bf16.mxu0 %v1460
      %3482 = vmatpush1.bf16.msra.mxu0 %v1459
      %3483 = vmatprep.subr.bf16.mxu0 %v1458
      %3484 = vmatpush1.bf16.msra.mxu0 %v1457
      %3485 = vmatprep.subr.bf16.mxu0 %v1456
      %3486 = vmatpush1.bf16.msra.mxu0 %v1455
      %3487 = vmatprep.subr.bf16.mxu0 %v1454
      %3488 = vmatpush1.bf16.msra.mxu0 %v1453
      %3489 = vmatprep.subr.bf16.mxu0 %v1452
      %3490 = vmatpush1.bf16.msra.mxu0 %v1451
      %3491 = vmatprep.subr.bf16.mxu0 %v1450
      %3492 = vmatpush1.bf16.msra.mxu0 %v1449
      %3493 = vmatprep.subr.bf16.mxu0 %v1448
      %3494 = vmatpush1.bf16.msra.mxu0 %v1447
      %3495 = vmatprep.subr.bf16.mxu0 %v1446
      %3496 = vmatpush1.bf16.msra.mxu0 %v1445
      %3497 = vmatprep.subr.bf16.mxu0 %v1476
      %3498 = vmatpush2.bf16.msra.mxu0 %v1475
      %3499 = vmatprep.subr.bf16.mxu0 %v1474
      %3500 = vmatpush2.bf16.msra.mxu0 %v1473
      %3501 = vmatprep.subr.bf16.mxu0 %v1472
      %3502 = vmatpush2.bf16.msra.mxu0 %v1471
      %3503 = vmatprep.subr.bf16.mxu0 %v1470
      %3504 = vmatpush2.bf16.msra.mxu0 %v1469
      %3505 = vmatprep.subr.bf16.mxu0 %v1468
      %3506 = vmatpush2.bf16.msra.mxu0 %v1467
      %3507 = vmatprep.subr.bf16.mxu0 %v1466
      %3508 = vmatpush2.bf16.msra.mxu0 %v1465
      %3509 = vmatprep.subr.bf16.mxu0 %v1464
      %3510 = vmatpush2.bf16.msra.mxu0 %v1463
      %3511 = vmatprep.subr.bf16.mxu0 %v1462
      %3512 = vmatpush2.bf16.msra.mxu0 %v1461
      %3513 = vmatprep.mubr.bf16.mxu0 %v3431
      %3514 = vmatmul.mubr.bf16.gmra.mxu0 %v3430
      %v3515 = vpop.f32.mrf.mxu0
      %v3516 = vadd.f32 %v3475, %v3515
      %v3517 = vpop.f32.mrf.mxu0
      %v3518 = vadd.f32 %v3477, %v3517
      %v3519 = vpop.f32.mrf.mxu0
      %v3520 = vpop.f32.mrf.mxu0
      %3521 = vdwg.mxu0
      %3522 = vmatprep.subr.bf16.mxu0 %v1492
      %3523 = vmatpush1.bf16.msra.mxu0 %v1491
      %3524 = vmatprep.subr.bf16.mxu0 %v1490
      %3525 = vmatpush1.bf16.msra.mxu0 %v1489
      %3526 = vmatprep.subr.bf16.mxu0 %v1488
      %3527 = vmatpush1.bf16.msra.mxu0 %v1487
      %3528 = vmatprep.subr.bf16.mxu0 %v1486
      %3529 = vmatpush1.bf16.msra.mxu0 %v1485
      %3530 = vmatprep.subr.bf16.mxu0 %v1484
      %3531 = vmatpush1.bf16.msra.mxu0 %v1483
      %3532 = vmatprep.subr.bf16.mxu0 %v1482
      %3533 = vmatpush1.bf16.msra.mxu0 %v1481
      %3534 = vmatprep.subr.bf16.mxu0 %v1480
      %3535 = vmatpush1.bf16.msra.mxu0 %v1479
      %3536 = vmatprep.subr.bf16.mxu0 %v1478
      %3537 = vmatpush1.bf16.msra.mxu0 %v1477
      %3538 = vmatprep.subr.bf16.mxu0 %v1508
      %3539 = vmatpush2.bf16.msra.mxu0 %v1507
      %3540 = vmatprep.subr.bf16.mxu0 %v1506
      %3541 = vmatpush2.bf16.msra.mxu0 %v1505
      %3542 = vmatprep.subr.bf16.mxu0 %v1504
      %3543 = vmatpush2.bf16.msra.mxu0 %v1503
      %3544 = vmatprep.subr.bf16.mxu0 %v1502
      %3545 = vmatpush2.bf16.msra.mxu0 %v1501
      %3546 = vmatprep.subr.bf16.mxu0 %v1500
      %3547 = vmatpush2.bf16.msra.mxu0 %v1499
      %3548 = vmatprep.subr.bf16.mxu0 %v1498
      %3549 = vmatpush2.bf16.msra.mxu0 %v1497
      %3550 = vmatprep.subr.bf16.mxu0 %v1496
      %3551 = vmatpush2.bf16.msra.mxu0 %v1495
      %3552 = vmatprep.subr.bf16.mxu0 %v1494
      %3553 = vmatpush2.bf16.msra.mxu0 %v1493
      %3554 = vmatprep.mubr.bf16.mxu0 %v3433
      %3555 = vmatmul.mubr.bf16.gmra.mxu0 %v3432
      %v3556 = vpop.f32.mrf.mxu0
      %v3557 = vadd.f32 %v3516, %v3556
      %v3558 = vpop.f32.mrf.mxu0
      %v3559 = vadd.f32 %v3518, %v3558
      %v3560 = vpop.f32.mrf.mxu0
      %v3561 = vpop.f32.mrf.mxu0
      %3562 = vdwg.mxu0
      %s3563 = scalar_lea.vmem %s165, 192
      %v3564 = vld [vmem:[%s3563] sm:$0xff]
      %v3565 = vld [vmem:[%s3563 + $0x8] sm:$0xff]
      %v3566 = vld [vmem:[%s3563 + $0x10] sm:$0xff]
      %v3570 = vunpack.c.l.b16 %v3564
      %v3571 = vunpack.c.h.b16 %v3564
      %v3572 = vunpack.c.l.b16 %v3565
      %v3573 = vunpack.c.h.b16 %v3565
      %v3574 = vunpack.c.l.b16 %v3566
      %v3575 = vunpack.c.h.b16 %v3566
      %v3576 = vpack.c.b16 %v3570, %v3570
      %v3577 = vpack.c.b16 %v3571, %v3571
      %v3578 = vpack.c.b16 %v3572, %v3572
      %v3579 = vpack.c.b16 %v3573, %v3573
      %v3580 = vpack.c.b16 %v3574, %v3574
      %v3581 = vpack.c.b16 %v3575, %v3575
      %3588 = vmatprep.subr.bf16.mxu0 %v2056
      %3589 = vmatpush1.bf16.msra.mxu0 %v2055
      %3590 = vmatprep.subr.bf16.mxu0 %v2054
      %3591 = vmatpush1.bf16.msra.mxu0 %v2053
      %3592 = vmatprep.subr.bf16.mxu0 %v2052
      %3593 = vmatpush1.bf16.msra.mxu0 %v2051
      %3594 = vmatprep.subr.bf16.mxu0 %v2050
      %3595 = vmatpush1.bf16.msra.mxu0 %v2049
      %3596 = vmatprep.subr.bf16.mxu0 %v2048
      %3597 = vmatpush1.bf16.msra.mxu0 %v2047
      %3598 = vmatprep.subr.bf16.mxu0 %v2046
      %3599 = vmatpush1.bf16.msra.mxu0 %v2045
      %3600 = vmatprep.subr.bf16.mxu0 %v2044
      %3601 = vmatpush1.bf16.msra.mxu0 %v2043
      %3602 = vmatprep.subr.bf16.mxu0 %v2042
      %3603 = vmatpush1.bf16.msra.mxu0 %v2041
      %3604 = vmatprep.subr.bf16.mxu0 %v2072
      %3605 = vmatpush2.bf16.msra.mxu0 %v2071
      %3606 = vmatprep.subr.bf16.mxu0 %v2070
      %3607 = vmatpush2.bf16.msra.mxu0 %v2069
      %3608 = vmatprep.subr.bf16.mxu0 %v2068
      %3609 = vmatpush2.bf16.msra.mxu0 %v2067
      %3610 = vmatprep.subr.bf16.mxu0 %v2066
      %3611 = vmatpush2.bf16.msra.mxu0 %v2065
      %3612 = vmatprep.subr.bf16.mxu0 %v2064
      %3613 = vmatpush2.bf16.msra.mxu0 %v2063
      %3614 = vmatprep.subr.bf16.mxu0 %v2062
      %3615 = vmatpush2.bf16.msra.mxu0 %v2061
      %3616 = vmatprep.subr.bf16.mxu0 %v2060
      %3617 = vmatpush2.bf16.msra.mxu0 %v2059
      %3618 = vmatprep.subr.bf16.mxu0 %v2058
      %3619 = vmatpush2.bf16.msra.mxu0 %v2057
      %3620 = vmatprep.mubr.bf16.mxu0 %v3577
      %3621 = vmatmul.mubr.bf16.gmra.mxu0 %v3576
      %v3622 = vpop.f32.mrf.mxu0
      %v3623 = vadd.f32 0.0, %v3622
      %v3624 = vpop.f32.mrf.mxu0
      %v3625 = vadd.f32 0.0, %v3624
      %v3626 = vpop.f32.mrf.mxu0
      %v3627 = vpop.f32.mrf.mxu0
      %3628 = vdwg.mxu0
      %3629 = vmatprep.subr.bf16.mxu0 %v2088
      %3630 = vmatpush1.bf16.msra.mxu0 %v2087
      %3631 = vmatprep.subr.bf16.mxu0 %v2086
      %3632 = vmatpush1.bf16.msra.mxu0 %v2085
      %3633 = vmatprep.subr.bf16.mxu0 %v2084
      %3634 = vmatpush1.bf16.msra.mxu0 %v2083
      %3635 = vmatprep.subr.bf16.mxu0 %v2082
      %3636 = vmatpush1.bf16.msra.mxu0 %v2081
      %3637 = vmatprep.subr.bf16.mxu0 %v2080
      %3638 = vmatpush1.bf16.msra.mxu0 %v2079
      %3639 = vmatprep.subr.bf16.mxu0 %v2078
      %3640 = vmatpush1.bf16.msra.mxu0 %v2077
      %3641 = vmatprep.subr.bf16.mxu0 %v2076
      %3642 = vmatpush1.bf16.msra.mxu0 %v2075
      %3643 = vmatprep.subr.bf16.mxu0 %v2074
      %3644 = vmatpush1.bf16.msra.mxu0 %v2073
      %3645 = vmatprep.subr.bf16.mxu0 %v2104
      %3646 = vmatpush2.bf16.msra.mxu0 %v2103
      %3647 = vmatprep.subr.bf16.mxu0 %v2102
      %3648 = vmatpush2.bf16.msra.mxu0 %v2101
      %3649 = vmatprep.subr.bf16.mxu0 %v2100
      %3650 = vmatpush2.bf16.msra.mxu0 %v2099
      %3651 = vmatprep.subr.bf16.mxu0 %v2098
      %3652 = vmatpush2.bf16.msra.mxu0 %v2097
      %3653 = vmatprep.subr.bf16.mxu0 %v2096
      %3654 = vmatpush2.bf16.msra.mxu0 %v2095
      %3655 = vmatprep.subr.bf16.mxu0 %v2094
      %3656 = vmatpush2.bf16.msra.mxu0 %v2093
      %3657 = vmatprep.subr.bf16.mxu0 %v2092
      %3658 = vmatpush2.bf16.msra.mxu0 %v2091
      %3659 = vmatprep.subr.bf16.mxu0 %v2090
      %3660 = vmatpush2.bf16.msra.mxu0 %v2089
      %3661 = vmatprep.mubr.bf16.mxu0 %v3579
      %3662 = vmatmul.mubr.bf16.gmra.mxu0 %v3578
      %v3663 = vpop.f32.mrf.mxu0
      %v3664 = vadd.f32 %v3623, %v3663
      %v3665 = vpop.f32.mrf.mxu0
      %v3666 = vadd.f32 %v3625, %v3665
      %v3667 = vpop.f32.mrf.mxu0
      %v3668 = vpop.f32.mrf.mxu0
      %3669 = vdwg.mxu0
      %3670 = vmatprep.subr.bf16.mxu0 %v2120
      %3671 = vmatpush1.bf16.msra.mxu0 %v2119
      %3672 = vmatprep.subr.bf16.mxu0 %v2118
      %3673 = vmatpush1.bf16.msra.mxu0 %v2117
      %3674 = vmatprep.subr.bf16.mxu0 %v2116
      %3675 = vmatpush1.bf16.msra.mxu0 %v2115
      %3676 = vmatprep.subr.bf16.mxu0 %v2114
      %3677 = vmatpush1.bf16.msra.mxu0 %v2113
      %3678 = vmatprep.subr.bf16.mxu0 %v2112
      %3679 = vmatpush1.bf16.msra.mxu0 %v2111
      %3680 = vmatprep.subr.bf16.mxu0 %v2110
      %3681 = vmatpush1.bf16.msra.mxu0 %v2109
      %3682 = vmatprep.subr.bf16.mxu0 %v2108
      %3683 = vmatpush1.bf16.msra.mxu0 %v2107
      %3684 = vmatprep.subr.bf16.mxu0 %v2106
      %3685 = vmatpush1.bf16.msra.mxu0 %v2105
      %3686 = vmatprep.subr.bf16.mxu0 %v2136
      %3687 = vmatpush2.bf16.msra.mxu0 %v2135
      %3688 = vmatprep.subr.bf16.mxu0 %v2134
      %3689 = vmatpush2.bf16.msra.mxu0 %v2133
      %3690 = vmatprep.subr.bf16.mxu0 %v2132
      %3691 = vmatpush2.bf16.msra.mxu0 %v2131
      %3692 = vmatprep.subr.bf16.mxu0 %v2130
      %3693 = vmatpush2.bf16.msra.mxu0 %v2129
      %3694 = vmatprep.subr.bf16.mxu0 %v2128
      %3695 = vmatpush2.bf16.msra.mxu0 %v2127
      %3696 = vmatprep.subr.bf16.mxu0 %v2126
      %3697 = vmatpush2.bf16.msra.mxu0 %v2125
      %3698 = vmatprep.subr.bf16.mxu0 %v2124
      %3699 = vmatpush2.bf16.msra.mxu0 %v2123
      %3700 = vmatprep.subr.bf16.mxu0 %v2122
      %3701 = vmatpush2.bf16.msra.mxu0 %v2121
      %3702 = vmatprep.mubr.bf16.mxu0 %v3581
      %3703 = vmatmul.mubr.bf16.gmra.mxu0 %v3580
      %v3704 = vpop.f32.mrf.mxu0
      %v3705 = vadd.f32 %v3664, %v3704
      %v3706 = vpop.f32.mrf.mxu0
      %v3707 = vadd.f32 %v3666, %v3706
      %v3708 = vpop.f32.mrf.mxu0
      %v3709 = vpop.f32.mrf.mxu0
      %3710 = vdwg.mxu0
      %v3711 = vadd.f32 %v3557, %v3705
      %v3712 = vadd.f32 %v3559, %v3707
      %v3713 = vadd.f32 %v3711, %v466
      %v3714 = vadd.f32 %v3712, %v470
      %v3715 = vmax.f32 %v3713, 0.0
      %v3716 = vmax.f32 %v3714, 0.0
      %s3717 = scalar_lea.vmem %s170, 48
      %3718 = vst [vmem:[%s3717] sm:$0x7f] %v3715
      %3719 = vst [vmem:[%s3717 + $0x8] sm:$0x7f] %v3716
      %v3720 = vld [vmem:[%s3563] sm:$0xff]
      %v3721 = vld [vmem:[%s3563 + $0x8] sm:$0xff]
      %v3722 = vld [vmem:[%s3563 + $0x10] sm:$0xff]
      %s3723 = scalar_lea.vmem %s165, 216
      %v3724 = vld [vmem:[%s3723] sm:$0xff]
      %v3725 = vld [vmem:[%s3723 + $0x8] sm:$0xff]
      %v3726 = vld [vmem:[%s3723 + $0x10] sm:$0xff]
      %v3730 = vunpack.c.l.b16 %v3724
      %v3731 = vunpack.c.h.b16 %v3724
      %v3732 = vunpack.c.l.b16 %v3725
      %v3733 = vunpack.c.h.b16 %v3725
      %v3734 = vunpack.c.l.b16 %v3726
      %v3735 = vunpack.c.h.b16 %v3726
      %v3736 = vpack.c.b16 %v3730, %v3730
      %v3737 = vpack.c.b16 %v3731, %v3731
      %v3738 = vpack.c.b16 %v3732, %v3732
      %v3739 = vpack.c.b16 %v3733, %v3733
      %v3740 = vpack.c.b16 %v3734, %v3734
      %v3741 = vpack.c.b16 %v3735, %v3735
      %3748 = vmatprep.subr.bf16.mxu0 %v804
      %3749 = vmatpush1.bf16.msra.mxu0 %v803
      %3750 = vmatprep.subr.bf16.mxu0 %v802
      %3751 = vmatpush1.bf16.msra.mxu0 %v801
      %3752 = vmatprep.subr.bf16.mxu0 %v800
      %3753 = vmatpush1.bf16.msra.mxu0 %v799
      %3754 = vmatprep.subr.bf16.mxu0 %v798
      %3755 = vmatpush1.bf16.msra.mxu0 %v797
      %3756 = vmatprep.subr.bf16.mxu0 %v796
      %3757 = vmatpush1.bf16.msra.mxu0 %v795
      %3758 = vmatprep.subr.bf16.mxu0 %v794
      %3759 = vmatpush1.bf16.msra.mxu0 %v793
      %3760 = vmatprep.subr.bf16.mxu0 %v792
      %3761 = vmatpush1.bf16.msra.mxu0 %v791
      %3762 = vmatprep.subr.bf16.mxu0 %v790
      %3763 = vmatpush1.bf16.msra.mxu0 %v789
      %3764 = vmatprep.subr.bf16.mxu0 %v820
      %3765 = vmatpush2.bf16.msra.mxu0 %v819
      %3766 = vmatprep.subr.bf16.mxu0 %v818
      %3767 = vmatpush2.bf16.msra.mxu0 %v817
      %3768 = vmatprep.subr.bf16.mxu0 %v816
      %3769 = vmatpush2.bf16.msra.mxu0 %v815
      %3770 = vmatprep.subr.bf16.mxu0 %v814
      %3771 = vmatpush2.bf16.msra.mxu0 %v813
      %3772 = vmatprep.subr.bf16.mxu0 %v812
      %3773 = vmatpush2.bf16.msra.mxu0 %v811
      %3774 = vmatprep.subr.bf16.mxu0 %v810
      %3775 = vmatpush2.bf16.msra.mxu0 %v809
      %3776 = vmatprep.subr.bf16.mxu0 %v808
      %3777 = vmatpush2.bf16.msra.mxu0 %v807
      %3778 = vmatprep.subr.bf16.mxu0 %v806
      %3779 = vmatpush2.bf16.msra.mxu0 %v805
      %3780 = vmatprep.mubr.bf16.mxu0 %v3737
      %3781 = vmatmul.mubr.bf16.gmra.mxu0 %v3736
      %v3782 = vpop.f32.mrf.mxu0
      %v3783 = vadd.f32 0.0, %v3782
      %v3784 = vpop.f32.mrf.mxu0
      %v3785 = vadd.f32 0.0, %v3784
      %v3786 = vpop.f32.mrf.mxu0
      %v3787 = vpop.f32.mrf.mxu0
      %3788 = vdwg.mxu0
      %3789 = vmatprep.subr.bf16.mxu0 %v836
      %3790 = vmatpush1.bf16.msra.mxu0 %v835
      %3791 = vmatprep.subr.bf16.mxu0 %v834
      %3792 = vmatpush1.bf16.msra.mxu0 %v833
      %3793 = vmatprep.subr.bf16.mxu0 %v832
      %3794 = vmatpush1.bf16.msra.mxu0 %v831
      %3795 = vmatprep.subr.bf16.mxu0 %v830
      %3796 = vmatpush1.bf16.msra.mxu0 %v829
      %3797 = vmatprep.subr.bf16.mxu0 %v828
      %3798 = vmatpush1.bf16.msra.mxu0 %v827
      %3799 = vmatprep.subr.bf16.mxu0 %v826
      %3800 = vmatpush1.bf16.msra.mxu0 %v825
      %3801 = vmatprep.subr.bf16.mxu0 %v824
      %3802 = vmatpush1.bf16.msra.mxu0 %v823
      %3803 = vmatprep.subr.bf16.mxu0 %v822
      %3804 = vmatpush1.bf16.msra.mxu0 %v821
      %3805 = vmatprep.subr.bf16.mxu0 %v852
      %3806 = vmatpush2.bf16.msra.mxu0 %v851
      %3807 = vmatprep.subr.bf16.mxu0 %v850
      %3808 = vmatpush2.bf16.msra.mxu0 %v849
      %3809 = vmatprep.subr.bf16.mxu0 %v848
      %3810 = vmatpush2.bf16.msra.mxu0 %v847
      %3811 = vmatprep.subr.bf16.mxu0 %v846
      %3812 = vmatpush2.bf16.msra.mxu0 %v845
      %3813 = vmatprep.subr.bf16.mxu0 %v844
      %3814 = vmatpush2.bf16.msra.mxu0 %v843
      %3815 = vmatprep.subr.bf16.mxu0 %v842
      %3816 = vmatpush2.bf16.msra.mxu0 %v841
      %3817 = vmatprep.subr.bf16.mxu0 %v840
      %3818 = vmatpush2.bf16.msra.mxu0 %v839
      %3819 = vmatprep.subr.bf16.mxu0 %v838
      %3820 = vmatpush2.bf16.msra.mxu0 %v837
      %3821 = vmatprep.mubr.bf16.mxu0 %v3739
      %3822 = vmatmul.mubr.bf16.gmra.mxu0 %v3738
      %v3823 = vpop.f32.mrf.mxu0
      %v3824 = vadd.f32 %v3783, %v3823
      %v3825 = vpop.f32.mrf.mxu0
      %v3826 = vadd.f32 %v3785, %v3825
      %v3827 = vpop.f32.mrf.mxu0
      %v3828 = vpop.f32.mrf.mxu0
      %3829 = vdwg.mxu0
      %3830 = vmatprep.subr.bf16.mxu0 %v868
      %3831 = vmatpush1.bf16.msra.mxu0 %v867
      %3832 = vmatprep.subr.bf16.mxu0 %v866
      %3833 = vmatpush1.bf16.msra.mxu0 %v865
      %3834 = vmatprep.subr.bf16.mxu0 %v864
      %3835 = vmatpush1.bf16.msra.mxu0 %v863
      %3836 = vmatprep.subr.bf16.mxu0 %v862
      %3837 = vmatpush1.bf16.msra.mxu0 %v861
      %3838 = vmatprep.subr.bf16.mxu0 %v860
      %3839 = vmatpush1.bf16.msra.mxu0 %v859
      %3840 = vmatprep.subr.bf16.mxu0 %v858
      %3841 = vmatpush1.bf16.msra.mxu0 %v857
      %3842 = vmatprep.subr.bf16.mxu0 %v856
      %3843 = vmatpush1.bf16.msra.mxu0 %v855
      %3844 = vmatprep.subr.bf16.mxu0 %v854
      %3845 = vmatpush1.bf16.msra.mxu0 %v853
      %3846 = vmatprep.subr.bf16.mxu0 %v884
      %3847 = vmatpush2.bf16.msra.mxu0 %v883
      %3848 = vmatprep.subr.bf16.mxu0 %v882
      %3849 = vmatpush2.bf16.msra.mxu0 %v881
      %3850 = vmatprep.subr.bf16.mxu0 %v880
      %3851 = vmatpush2.bf16.msra.mxu0 %v879
      %3852 = vmatprep.subr.bf16.mxu0 %v878
      %3853 = vmatpush2.bf16.msra.mxu0 %v877
      %3854 = vmatprep.subr.bf16.mxu0 %v876
      %3855 = vmatpush2.bf16.msra.mxu0 %v875
      %3856 = vmatprep.subr.bf16.mxu0 %v874
      %3857 = vmatpush2.bf16.msra.mxu0 %v873
      %3858 = vmatprep.subr.bf16.mxu0 %v872
      %3859 = vmatpush2.bf16.msra.mxu0 %v871
      %3860 = vmatprep.subr.bf16.mxu0 %v870
      %3861 = vmatpush2.bf16.msra.mxu0 %v869
      %3862 = vmatprep.mubr.bf16.mxu0 %v3741
      %3863 = vmatmul.mubr.bf16.gmra.mxu0 %v3740
      %v3864 = vpop.f32.mrf.mxu0
      %v3865 = vadd.f32 %v3824, %v3864
      %v3866 = vpop.f32.mrf.mxu0
      %v3867 = vadd.f32 %v3826, %v3866
      %v3868 = vpop.f32.mrf.mxu0
      %v3869 = vpop.f32.mrf.mxu0
      %3870 = vdwg.mxu0
      %v3874 = vunpack.c.l.b16 %v3720
      %v3875 = vunpack.c.h.b16 %v3720
      %v3876 = vunpack.c.l.b16 %v3721
      %v3877 = vunpack.c.h.b16 %v3721
      %v3878 = vunpack.c.l.b16 %v3722
      %v3879 = vunpack.c.h.b16 %v3722
      %v3880 = vpack.c.b16 %v3874, %v3874
      %v3881 = vpack.c.b16 %v3875, %v3875
      %v3882 = vpack.c.b16 %v3876, %v3876
      %v3883 = vpack.c.b16 %v3877, %v3877
      %v3884 = vpack.c.b16 %v3878, %v3878
      %v3885 = vpack.c.b16 %v3879, %v3879
      %3892 = vmatprep.subr.bf16.mxu0 %v1428
      %3893 = vmatpush1.bf16.msra.mxu0 %v1427
      %3894 = vmatprep.subr.bf16.mxu0 %v1426
      %3895 = vmatpush1.bf16.msra.mxu0 %v1425
      %3896 = vmatprep.subr.bf16.mxu0 %v1424
      %3897 = vmatpush1.bf16.msra.mxu0 %v1423
      %3898 = vmatprep.subr.bf16.mxu0 %v1422
      %3899 = vmatpush1.bf16.msra.mxu0 %v1421
      %3900 = vmatprep.subr.bf16.mxu0 %v1420
      %3901 = vmatpush1.bf16.msra.mxu0 %v1419
      %3902 = vmatprep.subr.bf16.mxu0 %v1418
      %3903 = vmatpush1.bf16.msra.mxu0 %v1417
      %3904 = vmatprep.subr.bf16.mxu0 %v1416
      %3905 = vmatpush1.bf16.msra.mxu0 %v1415
      %3906 = vmatprep.subr.bf16.mxu0 %v1414
      %3907 = vmatpush1.bf16.msra.mxu0 %v1413
      %3908 = vmatprep.subr.bf16.mxu0 %v1444
      %3909 = vmatpush2.bf16.msra.mxu0 %v1443
      %3910 = vmatprep.subr.bf16.mxu0 %v1442
      %3911 = vmatpush2.bf16.msra.mxu0 %v1441
      %3912 = vmatprep.subr.bf16.mxu0 %v1440
      %3913 = vmatpush2.bf16.msra.mxu0 %v1439
      %3914 = vmatprep.subr.bf16.mxu0 %v1438
      %3915 = vmatpush2.bf16.msra.mxu0 %v1437
      %3916 = vmatprep.subr.bf16.mxu0 %v1436
      %3917 = vmatpush2.bf16.msra.mxu0 %v1435
      %3918 = vmatprep.subr.bf16.mxu0 %v1434
      %3919 = vmatpush2.bf16.msra.mxu0 %v1433
      %3920 = vmatprep.subr.bf16.mxu0 %v1432
      %3921 = vmatpush2.bf16.msra.mxu0 %v1431
      %3922 = vmatprep.subr.bf16.mxu0 %v1430
      %3923 = vmatpush2.bf16.msra.mxu0 %v1429
      %3924 = vmatprep.mubr.bf16.mxu0 %v3881
      %3925 = vmatmul.mubr.bf16.gmra.mxu0 %v3880
      %v3926 = vpop.f32.mrf.mxu0
      %v3927 = vadd.f32 %v3865, %v3926
      %v3928 = vpop.f32.mrf.mxu0
      %v3929 = vadd.f32 %v3867, %v3928
      %v3930 = vpop.f32.mrf.mxu0
      %v3931 = vpop.f32.mrf.mxu0
      %3932 = vdwg.mxu0
      %3933 = vmatprep.subr.bf16.mxu0 %v1460
      %3934 = vmatpush1.bf16.msra.mxu0 %v1459
      %3935 = vmatprep.subr.bf16.mxu0 %v1458
      %3936 = vmatpush1.bf16.msra.mxu0 %v1457
      %3937 = vmatprep.subr.bf16.mxu0 %v1456
      %3938 = vmatpush1.bf16.msra.mxu0 %v1455
      %3939 = vmatprep.subr.bf16.mxu0 %v1454
      %3940 = vmatpush1.bf16.msra.mxu0 %v1453
      %3941 = vmatprep.subr.bf16.mxu0 %v1452
      %3942 = vmatpush1.bf16.msra.mxu0 %v1451
      %3943 = vmatprep.subr.bf16.mxu0 %v1450
      %3944 = vmatpush1.bf16.msra.mxu0 %v1449
      %3945 = vmatprep.subr.bf16.mxu0 %v1448
      %3946 = vmatpush1.bf16.msra.mxu0 %v1447
      %3947 = vmatprep.subr.bf16.mxu0 %v1446
      %3948 = vmatpush1.bf16.msra.mxu0 %v1445
      %3949 = vmatprep.subr.bf16.mxu0 %v1476
      %3950 = vmatpush2.bf16.msra.mxu0 %v1475
      %3951 = vmatprep.subr.bf16.mxu0 %v1474
      %3952 = vmatpush2.bf16.msra.mxu0 %v1473
      %3953 = vmatprep.subr.bf16.mxu0 %v1472
      %3954 = vmatpush2.bf16.msra.mxu0 %v1471
      %3955 = vmatprep.subr.bf16.mxu0 %v1470
      %3956 = vmatpush2.bf16.msra.mxu0 %v1469
      %3957 = vmatprep.subr.bf16.mxu0 %v1468
      %3958 = vmatpush2.bf16.msra.mxu0 %v1467
      %3959 = vmatprep.subr.bf16.mxu0 %v1466
      %3960 = vmatpush2.bf16.msra.mxu0 %v1465
      %3961 = vmatprep.subr.bf16.mxu0 %v1464
      %3962 = vmatpush2.bf16.msra.mxu0 %v1463
      %3963 = vmatprep.subr.bf16.mxu0 %v1462
      %3964 = vmatpush2.bf16.msra.mxu0 %v1461
      %3965 = vmatprep.mubr.bf16.mxu0 %v3883
      %3966 = vmatmul.mubr.bf16.gmra.mxu0 %v3882
      %v3967 = vpop.f32.mrf.mxu0
      %v3968 = vadd.f32 %v3927, %v3967
      %v3969 = vpop.f32.mrf.mxu0
      %v3970 = vadd.f32 %v3929, %v3969
      %v3971 = vpop.f32.mrf.mxu0
      %v3972 = vpop.f32.mrf.mxu0
      %3973 = vdwg.mxu0
      %3974 = vmatprep.subr.bf16.mxu0 %v1492
      %3975 = vmatpush1.bf16.msra.mxu0 %v1491
      %3976 = vmatprep.subr.bf16.mxu0 %v1490
      %3977 = vmatpush1.bf16.msra.mxu0 %v1489
      %3978 = vmatprep.subr.bf16.mxu0 %v1488
      %3979 = vmatpush1.bf16.msra.mxu0 %v1487
      %3980 = vmatprep.subr.bf16.mxu0 %v1486
      %3981 = vmatpush1.bf16.msra.mxu0 %v1485
      %3982 = vmatprep.subr.bf16.mxu0 %v1484
      %3983 = vmatpush1.bf16.msra.mxu0 %v1483
      %3984 = vmatprep.subr.bf16.mxu0 %v1482
      %3985 = vmatpush1.bf16.msra.mxu0 %v1481
      %3986 = vmatprep.subr.bf16.mxu0 %v1480
      %3987 = vmatpush1.bf16.msra.mxu0 %v1479
      %3988 = vmatprep.subr.bf16.mxu0 %v1478
      %3989 = vmatpush1.bf16.msra.mxu0 %v1477
      %3990 = vmatprep.subr.bf16.mxu0 %v1508
      %3991 = vmatpush2.bf16.msra.mxu0 %v1507
      %3992 = vmatprep.subr.bf16.mxu0 %v1506
      %3993 = vmatpush2.bf16.msra.mxu0 %v1505
      %3994 = vmatprep.subr.bf16.mxu0 %v1504
      %3995 = vmatpush2.bf16.msra.mxu0 %v1503
      %3996 = vmatprep.subr.bf16.mxu0 %v1502
      %3997 = vmatpush2.bf16.msra.mxu0 %v1501
      %3998 = vmatprep.subr.bf16.mxu0 %v1500
      %3999 = vmatpush2.bf16.msra.mxu0 %v1499
      %4000 = vmatprep.subr.bf16.mxu0 %v1498
      %4001 = vmatpush2.bf16.msra.mxu0 %v1497
      %4002 = vmatprep.subr.bf16.mxu0 %v1496
      %4003 = vmatpush2.bf16.msra.mxu0 %v1495
      %4004 = vmatprep.subr.bf16.mxu0 %v1494
      %4005 = vmatpush2.bf16.msra.mxu0 %v1493
      %4006 = vmatprep.mubr.bf16.mxu0 %v3885
      %4007 = vmatmul.mubr.bf16.gmra.mxu0 %v3884
      %v4008 = vpop.f32.mrf.mxu0
      %v4009 = vadd.f32 %v3968, %v4008
      %v4010 = vpop.f32.mrf.mxu0
      %v4011 = vadd.f32 %v3970, %v4010
      %v4012 = vpop.f32.mrf.mxu0
      %v4013 = vpop.f32.mrf.mxu0
      %4014 = vdwg.mxu0
      %s4015 = scalar_lea.vmem %s165, 240
      %v4016 = vld [vmem:[%s4015] sm:$0xff]
      %v4017 = vld [vmem:[%s4015 + $0x8] sm:$0xff]
      %v4018 = vld [vmem:[%s4015 + $0x10] sm:$0xff]
      %v4022 = vunpack.c.l.b16 %v4016
      %v4023 = vunpack.c.h.b16 %v4016
      %v4024 = vunpack.c.l.b16 %v4017
      %v4025 = vunpack.c.h.b16 %v4017
      %v4026 = vunpack.c.l.b16 %v4018
      %v4027 = vunpack.c.h.b16 %v4018
      %v4028 = vpack.c.b16 %v4022, %v4022
      %v4029 = vpack.c.b16 %v4023, %v4023
      %v4030 = vpack.c.b16 %v4024, %v4024
      %v4031 = vpack.c.b16 %v4025, %v4025
      %v4032 = vpack.c.b16 %v4026, %v4026
      %v4033 = vpack.c.b16 %v4027, %v4027
      %4040 = vmatprep.subr.bf16.mxu0 %v2056
      %4041 = vmatpush1.bf16.msra.mxu0 %v2055
      %4042 = vmatprep.subr.bf16.mxu0 %v2054
      %4043 = vmatpush1.bf16.msra.mxu0 %v2053
      %4044 = vmatprep.subr.bf16.mxu0 %v2052
      %4045 = vmatpush1.bf16.msra.mxu0 %v2051
      %4046 = vmatprep.subr.bf16.mxu0 %v2050
      %4047 = vmatpush1.bf16.msra.mxu0 %v2049
      %4048 = vmatprep.subr.bf16.mxu0 %v2048
      %4049 = vmatpush1.bf16.msra.mxu0 %v2047
      %4050 = vmatprep.subr.bf16.mxu0 %v2046
      %4051 = vmatpush1.bf16.msra.mxu0 %v2045
      %4052 = vmatprep.subr.bf16.mxu0 %v2044
      %4053 = vmatpush1.bf16.msra.mxu0 %v2043
      %4054 = vmatprep.subr.bf16.mxu0 %v2042
      %4055 = vmatpush1.bf16.msra.mxu0 %v2041
      %4056 = vmatprep.subr.bf16.mxu0 %v2072
      %4057 = vmatpush2.bf16.msra.mxu0 %v2071
      %4058 = vmatprep.subr.bf16.mxu0 %v2070
      %4059 = vmatpush2.bf16.msra.mxu0 %v2069
      %4060 = vmatprep.subr.bf16.mxu0 %v2068
      %4061 = vmatpush2.bf16.msra.mxu0 %v2067
      %4062 = vmatprep.subr.bf16.mxu0 %v2066
      %4063 = vmatpush2.bf16.msra.mxu0 %v2065
      %4064 = vmatprep.subr.bf16.mxu0 %v2064
      %4065 = vmatpush2.bf16.msra.mxu0 %v2063
      %4066 = vmatprep.subr.bf16.mxu0 %v2062
      %4067 = vmatpush2.bf16.msra.mxu0 %v2061
      %4068 = vmatprep.subr.bf16.mxu0 %v2060
      %4069 = vmatpush2.bf16.msra.mxu0 %v2059
      %4070 = vmatprep.subr.bf16.mxu0 %v2058
      %4071 = vmatpush2.bf16.msra.mxu0 %v2057
      %4072 = vmatprep.mubr.bf16.mxu0 %v4029
      %4073 = vmatmul.mubr.bf16.gmra.mxu0 %v4028
      %v4074 = vpop.f32.mrf.mxu0
      %v4075 = vadd.f32 0.0, %v4074
      %v4076 = vpop.f32.mrf.mxu0
      %v4077 = vadd.f32 0.0, %v4076
      %v4078 = vpop.f32.mrf.mxu0
      %v4079 = vpop.f32.mrf.mxu0
      %4080 = vdwg.mxu0
      %4081 = vmatprep.subr.bf16.mxu0 %v2088
      %4082 = vmatpush1.bf16.msra.mxu0 %v2087
      %4083 = vmatprep.subr.bf16.mxu0 %v2086
      %4084 = vmatpush1.bf16.msra.mxu0 %v2085
      %4085 = vmatprep.subr.bf16.mxu0 %v2084
      %4086 = vmatpush1.bf16.msra.mxu0 %v2083
      %4087 = vmatprep.subr.bf16.mxu0 %v2082
      %4088 = vmatpush1.bf16.msra.mxu0 %v2081
      %4089 = vmatprep.subr.bf16.mxu0 %v2080
      %4090 = vmatpush1.bf16.msra.mxu0 %v2079
      %4091 = vmatprep.subr.bf16.mxu0 %v2078
      %4092 = vmatpush1.bf16.msra.mxu0 %v2077
      %4093 = vmatprep.subr.bf16.mxu0 %v2076
      %4094 = vmatpush1.bf16.msra.mxu0 %v2075
      %4095 = vmatprep.subr.bf16.mxu0 %v2074
      %4096 = vmatpush1.bf16.msra.mxu0 %v2073
      %4097 = vmatprep.subr.bf16.mxu0 %v2104
      %4098 = vmatpush2.bf16.msra.mxu0 %v2103
      %4099 = vmatprep.subr.bf16.mxu0 %v2102
      %4100 = vmatpush2.bf16.msra.mxu0 %v2101
      %4101 = vmatprep.subr.bf16.mxu0 %v2100
      %4102 = vmatpush2.bf16.msra.mxu0 %v2099
      %4103 = vmatprep.subr.bf16.mxu0 %v2098
      %4104 = vmatpush2.bf16.msra.mxu0 %v2097
      %4105 = vmatprep.subr.bf16.mxu0 %v2096
      %4106 = vmatpush2.bf16.msra.mxu0 %v2095
      %4107 = vmatprep.subr.bf16.mxu0 %v2094
      %4108 = vmatpush2.bf16.msra.mxu0 %v2093
      %4109 = vmatprep.subr.bf16.mxu0 %v2092
      %4110 = vmatpush2.bf16.msra.mxu0 %v2091
      %4111 = vmatprep.subr.bf16.mxu0 %v2090
      %4112 = vmatpush2.bf16.msra.mxu0 %v2089
      %4113 = vmatprep.mubr.bf16.mxu0 %v4031
      %4114 = vmatmul.mubr.bf16.gmra.mxu0 %v4030
      %v4115 = vpop.f32.mrf.mxu0
      %v4116 = vadd.f32 %v4075, %v4115
      %v4117 = vpop.f32.mrf.mxu0
      %v4118 = vadd.f32 %v4077, %v4117
      %v4119 = vpop.f32.mrf.mxu0
      %v4120 = vpop.f32.mrf.mxu0
      %4121 = vdwg.mxu0
      %4122 = vmatprep.subr.bf16.mxu0 %v2120
      %4123 = vmatpush1.bf16.msra.mxu0 %v2119
      %4124 = vmatprep.subr.bf16.mxu0 %v2118
      %4125 = vmatpush1.bf16.msra.mxu0 %v2117
      %4126 = vmatprep.subr.bf16.mxu0 %v2116
      %4127 = vmatpush1.bf16.msra.mxu0 %v2115
      %4128 = vmatprep.subr.bf16.mxu0 %v2114
      %4129 = vmatpush1.bf16.msra.mxu0 %v2113
      %4130 = vmatprep.subr.bf16.mxu0 %v2112
      %4131 = vmatpush1.bf16.msra.mxu0 %v2111
      %4132 = vmatprep.subr.bf16.mxu0 %v2110
      %4133 = vmatpush1.bf16.msra.mxu0 %v2109
      %4134 = vmatprep.subr.bf16.mxu0 %v2108
      %4135 = vmatpush1.bf16.msra.mxu0 %v2107
      %4136 = vmatprep.subr.bf16.mxu0 %v2106
      %4137 = vmatpush1.bf16.msra.mxu0 %v2105
      %4138 = vmatprep.subr.bf16.mxu0 %v2136
      %4139 = vmatpush2.bf16.msra.mxu0 %v2135
      %4140 = vmatprep.subr.bf16.mxu0 %v2134
      %4141 = vmatpush2.bf16.msra.mxu0 %v2133
      %4142 = vmatprep.subr.bf16.mxu0 %v2132
      %4143 = vmatpush2.bf16.msra.mxu0 %v2131
      %4144 = vmatprep.subr.bf16.mxu0 %v2130
      %4145 = vmatpush2.bf16.msra.mxu0 %v2129
      %4146 = vmatprep.subr.bf16.mxu0 %v2128
      %4147 = vmatpush2.bf16.msra.mxu0 %v2127
      %4148 = vmatprep.subr.bf16.mxu0 %v2126
      %4149 = vmatpush2.bf16.msra.mxu0 %v2125
      %4150 = vmatprep.subr.bf16.mxu0 %v2124
      %4151 = vmatpush2.bf16.msra.mxu0 %v2123
      %4152 = vmatprep.subr.bf16.mxu0 %v2122
      %4153 = vmatpush2.bf16.msra.mxu0 %v2121
      %4154 = vmatprep.mubr.bf16.mxu0 %v4033
      %4155 = vmatmul.mubr.bf16.gmra.mxu0 %v4032
      %v4156 = vpop.f32.mrf.mxu0
      %v4157 = vadd.f32 %v4116, %v4156
      %v4158 = vpop.f32.mrf.mxu0
      %v4159 = vadd.f32 %v4118, %v4158
      %v4160 = vpop.f32.mrf.mxu0
      %v4161 = vpop.f32.mrf.mxu0
      %4162 = vdwg.mxu0
      %v4163 = vadd.f32 %v4009, %v4157
      %v4164 = vadd.f32 %v4011, %v4159
      %v4165 = vadd.f32 %v4163, %v466
      %v4166 = vadd.f32 %v4164, %v470
      %v4167 = vmax.f32 %v4165, 0.0
      %v4168 = vmax.f32 %v4166, 0.0
      %s4169 = scalar_lea.vmem %s170, 64
      %4170 = vst [vmem:[%s4169] sm:$0x7f] %v4167
      %4171 = vst [vmem:[%s4169 + $0x8] sm:$0x7f] %v4168
      %v4172 = vld [vmem:[%s4015] sm:$0xff]
      %v4173 = vld [vmem:[%s4015 + $0x8] sm:$0xff]
      %v4174 = vld [vmem:[%s4015 + $0x10] sm:$0xff]
      %s4175 = scalar_lea.vmem %s165, 264
      %v4176 = vld [vmem:[%s4175] sm:$0xff]
      %v4177 = vld [vmem:[%s4175 + $0x8] sm:$0xff]
      %v4178 = vld [vmem:[%s4175 + $0x10] sm:$0xff]
      %v4182 = vunpack.c.l.b16 %v4176
      %v4183 = vunpack.c.h.b16 %v4176
      %v4184 = vunpack.c.l.b16 %v4177
      %v4185 = vunpack.c.h.b16 %v4177
      %v4186 = vunpack.c.l.b16 %v4178
      %v4187 = vunpack.c.h.b16 %v4178
      %v4188 = vpack.c.b16 %v4182, %v4182
      %v4189 = vpack.c.b16 %v4183, %v4183
      %v4190 = vpack.c.b16 %v4184, %v4184
      %v4191 = vpack.c.b16 %v4185, %v4185
      %v4192 = vpack.c.b16 %v4186, %v4186
      %v4193 = vpack.c.b16 %v4187, %v4187
      %4200 = vmatprep.subr.bf16.mxu0 %v804
      %4201 = vmatpush1.bf16.msra.mxu0 %v803
      %4202 = vmatprep.subr.bf16.mxu0 %v802
      %4203 = vmatpush1.bf16.msra.mxu0 %v801
      %4204 = vmatprep.subr.bf16.mxu0 %v800
      %4205 = vmatpush1.bf16.msra.mxu0 %v799
      %4206 = vmatprep.subr.bf16.mxu0 %v798
      %4207 = vmatpush1.bf16.msra.mxu0 %v797
      %4208 = vmatprep.subr.bf16.mxu0 %v796
      %4209 = vmatpush1.bf16.msra.mxu0 %v795
      %4210 = vmatprep.subr.bf16.mxu0 %v794
      %4211 = vmatpush1.bf16.msra.mxu0 %v793
      %4212 = vmatprep.subr.bf16.mxu0 %v792
      %4213 = vmatpush1.bf16.msra.mxu0 %v791
      %4214 = vmatprep.subr.bf16.mxu0 %v790
      %4215 = vmatpush1.bf16.msra.mxu0 %v789
      %4216 = vmatprep.subr.bf16.mxu0 %v820
      %4217 = vmatpush2.bf16.msra.mxu0 %v819
      %4218 = vmatprep.subr.bf16.mxu0 %v818
      %4219 = vmatpush2.bf16.msra.mxu0 %v817
      %4220 = vmatprep.subr.bf16.mxu0 %v816
      %4221 = vmatpush2.bf16.msra.mxu0 %v815
      %4222 = vmatprep.subr.bf16.mxu0 %v814
      %4223 = vmatpush2.bf16.msra.mxu0 %v813
      %4224 = vmatprep.subr.bf16.mxu0 %v812
      %4225 = vmatpush2.bf16.msra.mxu0 %v811
      %4226 = vmatprep.subr.bf16.mxu0 %v810
      %4227 = vmatpush2.bf16.msra.mxu0 %v809
      %4228 = vmatprep.subr.bf16.mxu0 %v808
      %4229 = vmatpush2.bf16.msra.mxu0 %v807
      %4230 = vmatprep.subr.bf16.mxu0 %v806
      %4231 = vmatpush2.bf16.msra.mxu0 %v805
      %4232 = vmatprep.mubr.bf16.mxu0 %v4189
      %4233 = vmatmul.mubr.bf16.gmra.mxu0 %v4188
      %v4234 = vpop.f32.mrf.mxu0
      %v4235 = vadd.f32 0.0, %v4234
      %v4236 = vpop.f32.mrf.mxu0
      %v4237 = vadd.f32 0.0, %v4236
      %v4238 = vpop.f32.mrf.mxu0
      %v4239 = vpop.f32.mrf.mxu0
      %4240 = vdwg.mxu0
      %4241 = vmatprep.subr.bf16.mxu0 %v836
      %4242 = vmatpush1.bf16.msra.mxu0 %v835
      %4243 = vmatprep.subr.bf16.mxu0 %v834
      %4244 = vmatpush1.bf16.msra.mxu0 %v833
      %4245 = vmatprep.subr.bf16.mxu0 %v832
      %4246 = vmatpush1.bf16.msra.mxu0 %v831
      %4247 = vmatprep.subr.bf16.mxu0 %v830
      %4248 = vmatpush1.bf16.msra.mxu0 %v829
      %4249 = vmatprep.subr.bf16.mxu0 %v828
      %4250 = vmatpush1.bf16.msra.mxu0 %v827
      %4251 = vmatprep.subr.bf16.mxu0 %v826
      %4252 = vmatpush1.bf16.msra.mxu0 %v825
      %4253 = vmatprep.subr.bf16.mxu0 %v824
      %4254 = vmatpush1.bf16.msra.mxu0 %v823
      %4255 = vmatprep.subr.bf16.mxu0 %v822
      %4256 = vmatpush1.bf16.msra.mxu0 %v821
      %4257 = vmatprep.subr.bf16.mxu0 %v852
      %4258 = vmatpush2.bf16.msra.mxu0 %v851
      %4259 = vmatprep.subr.bf16.mxu0 %v850
      %4260 = vmatpush2.bf16.msra.mxu0 %v849
      %4261 = vmatprep.subr.bf16.mxu0 %v848
      %4262 = vmatpush2.bf16.msra.mxu0 %v847
      %4263 = vmatprep.subr.bf16.mxu0 %v846
      %4264 = vmatpush2.bf16.msra.mxu0 %v845
      %4265 = vmatprep.subr.bf16.mxu0 %v844
      %4266 = vmatpush2.bf16.msra.mxu0 %v843
      %4267 = vmatprep.subr.bf16.mxu0 %v842
      %4268 = vmatpush2.bf16.msra.mxu0 %v841
      %4269 = vmatprep.subr.bf16.mxu0 %v840
      %4270 = vmatpush2.bf16.msra.mxu0 %v839
      %4271 = vmatprep.subr.bf16.mxu0 %v838
      %4272 = vmatpush2.bf16.msra.mxu0 %v837
      %4273 = vmatprep.mubr.bf16.mxu0 %v4191
      %4274 = vmatmul.mubr.bf16.gmra.mxu0 %v4190
      %v4275 = vpop.f32.mrf.mxu0
      %v4276 = vadd.f32 %v4235, %v4275
      %v4277 = vpop.f32.mrf.mxu0
      %v4278 = vadd.f32 %v4237, %v4277
      %v4279 = vpop.f32.mrf.mxu0
      %v4280 = vpop.f32.mrf.mxu0
      %4281 = vdwg.mxu0
      %4282 = vmatprep.subr.bf16.mxu0 %v868
      %4283 = vmatpush1.bf16.msra.mxu0 %v867
      %4284 = vmatprep.subr.bf16.mxu0 %v866
      %4285 = vmatpush1.bf16.msra.mxu0 %v865
      %4286 = vmatprep.subr.bf16.mxu0 %v864
      %4287 = vmatpush1.bf16.msra.mxu0 %v863
      %4288 = vmatprep.subr.bf16.mxu0 %v862
      %4289 = vmatpush1.bf16.msra.mxu0 %v861
      %4290 = vmatprep.subr.bf16.mxu0 %v860
      %4291 = vmatpush1.bf16.msra.mxu0 %v859
      %4292 = vmatprep.subr.bf16.mxu0 %v858
      %4293 = vmatpush1.bf16.msra.mxu0 %v857
      %4294 = vmatprep.subr.bf16.mxu0 %v856
      %4295 = vmatpush1.bf16.msra.mxu0 %v855
      %4296 = vmatprep.subr.bf16.mxu0 %v854
      %4297 = vmatpush1.bf16.msra.mxu0 %v853
      %4298 = vmatprep.subr.bf16.mxu0 %v884
      %4299 = vmatpush2.bf16.msra.mxu0 %v883
      %4300 = vmatprep.subr.bf16.mxu0 %v882
      %4301 = vmatpush2.bf16.msra.mxu0 %v881
      %4302 = vmatprep.subr.bf16.mxu0 %v880
      %4303 = vmatpush2.bf16.msra.mxu0 %v879
      %4304 = vmatprep.subr.bf16.mxu0 %v878
      %4305 = vmatpush2.bf16.msra.mxu0 %v877
      %4306 = vmatprep.subr.bf16.mxu0 %v876
      %4307 = vmatpush2.bf16.msra.mxu0 %v875
      %4308 = vmatprep.subr.bf16.mxu0 %v874
      %4309 = vmatpush2.bf16.msra.mxu0 %v873
      %4310 = vmatprep.subr.bf16.mxu0 %v872
      %4311 = vmatpush2.bf16.msra.mxu0 %v871
      %4312 = vmatprep.subr.bf16.mxu0 %v870
      %4313 = vmatpush2.bf16.msra.mxu0 %v869
      %4314 = vmatprep.mubr.bf16.mxu0 %v4193
      %4315 = vmatmul.mubr.bf16.gmra.mxu0 %v4192
      %v4316 = vpop.f32.mrf.mxu0
      %v4317 = vadd.f32 %v4276, %v4316
      %v4318 = vpop.f32.mrf.mxu0
      %v4319 = vadd.f32 %v4278, %v4318
      %v4320 = vpop.f32.mrf.mxu0
      %v4321 = vpop.f32.mrf.mxu0
      %4322 = vdwg.mxu0
      %v4326 = vunpack.c.l.b16 %v4172
      %v4327 = vunpack.c.h.b16 %v4172
      %v4328 = vunpack.c.l.b16 %v4173
      %v4329 = vunpack.c.h.b16 %v4173
      %v4330 = vunpack.c.l.b16 %v4174
      %v4331 = vunpack.c.h.b16 %v4174
      %v4332 = vpack.c.b16 %v4326, %v4326
      %v4333 = vpack.c.b16 %v4327, %v4327
      %v4334 = vpack.c.b16 %v4328, %v4328
      %v4335 = vpack.c.b16 %v4329, %v4329
      %v4336 = vpack.c.b16 %v4330, %v4330
      %v4337 = vpack.c.b16 %v4331, %v4331
      %4344 = vmatprep.subr.bf16.mxu0 %v1428
      %4345 = vmatpush1.bf16.msra.mxu0 %v1427
      %4346 = vmatprep.subr.bf16.mxu0 %v1426
      %4347 = vmatpush1.bf16.msra.mxu0 %v1425
      %4348 = vmatprep.subr.bf16.mxu0 %v1424
      %4349 = vmatpush1.bf16.msra.mxu0 %v1423
      %4350 = vmatprep.subr.bf16.mxu0 %v1422
      %4351 = vmatpush1.bf16.msra.mxu0 %v1421
      %4352 = vmatprep.subr.bf16.mxu0 %v1420
      %4353 = vmatpush1.bf16.msra.mxu0 %v1419
      %4354 = vmatprep.subr.bf16.mxu0 %v1418
      %4355 = vmatpush1.bf16.msra.mxu0 %v1417
      %4356 = vmatprep.subr.bf16.mxu0 %v1416
      %4357 = vmatpush1.bf16.msra.mxu0 %v1415
      %4358 = vmatprep.subr.bf16.mxu0 %v1414
      %4359 = vmatpush1.bf16.msra.mxu0 %v1413
      %4360 = vmatprep.subr.bf16.mxu0 %v1444
      %4361 = vmatpush2.bf16.msra.mxu0 %v1443
      %4362 = vmatprep.subr.bf16.mxu0 %v1442
      %4363 = vmatpush2.bf16.msra.mxu0 %v1441
      %4364 = vmatprep.subr.bf16.mxu0 %v1440
      %4365 = vmatpush2.bf16.msra.mxu0 %v1439
      %4366 = vmatprep.subr.bf16.mxu0 %v1438
      %4367 = vmatpush2.bf16.msra.mxu0 %v1437
      %4368 = vmatprep.subr.bf16.mxu0 %v1436
      %4369 = vmatpush2.bf16.msra.mxu0 %v1435
      %4370 = vmatprep.subr.bf16.mxu0 %v1434
      %4371 = vmatpush2.bf16.msra.mxu0 %v1433
      %4372 = vmatprep.subr.bf16.mxu0 %v1432
      %4373 = vmatpush2.bf16.msra.mxu0 %v1431
      %4374 = vmatprep.subr.bf16.mxu0 %v1430
      %4375 = vmatpush2.bf16.msra.mxu0 %v1429
      %4376 = vmatprep.mubr.bf16.mxu0 %v4333
      %4377 = vmatmul.mubr.bf16.gmra.mxu0 %v4332
      %v4378 = vpop.f32.mrf.mxu0
      %v4379 = vadd.f32 %v4317, %v4378
      %v4380 = vpop.f32.mrf.mxu0
      %v4381 = vadd.f32 %v4319, %v4380
      %v4382 = vpop.f32.mrf.mxu0
      %v4383 = vpop.f32.mrf.mxu0
      %4384 = vdwg.mxu0
      %4385 = vmatprep.subr.bf16.mxu0 %v1460
      %4386 = vmatpush1.bf16.msra.mxu0 %v1459
      %4387 = vmatprep.subr.bf16.mxu0 %v1458
      %4388 = vmatpush1.bf16.msra.mxu0 %v1457
      %4389 = vmatprep.subr.bf16.mxu0 %v1456
      %4390 = vmatpush1.bf16.msra.mxu0 %v1455
      %4391 = vmatprep.subr.bf16.mxu0 %v1454
      %4392 = vmatpush1.bf16.msra.mxu0 %v1453
      %4393 = vmatprep.subr.bf16.mxu0 %v1452
      %4394 = vmatpush1.bf16.msra.mxu0 %v1451
      %4395 = vmatprep.subr.bf16.mxu0 %v1450
      %4396 = vmatpush1.bf16.msra.mxu0 %v1449
      %4397 = vmatprep.subr.bf16.mxu0 %v1448
      %4398 = vmatpush1.bf16.msra.mxu0 %v1447
      %4399 = vmatprep.subr.bf16.mxu0 %v1446
      %4400 = vmatpush1.bf16.msra.mxu0 %v1445
      %4401 = vmatprep.subr.bf16.mxu0 %v1476
      %4402 = vmatpush2.bf16.msra.mxu0 %v1475
      %4403 = vmatprep.subr.bf16.mxu0 %v1474
      %4404 = vmatpush2.bf16.msra.mxu0 %v1473
      %4405 = vmatprep.subr.bf16.mxu0 %v1472
      %4406 = vmatpush2.bf16.msra.mxu0 %v1471
      %4407 = vmatprep.subr.bf16.mxu0 %v1470
      %4408 = vmatpush2.bf16.msra.mxu0 %v1469
      %4409 = vmatprep.subr.bf16.mxu0 %v1468
      %4410 = vmatpush2.bf16.msra.mxu0 %v1467
      %4411 = vmatprep.subr.bf16.mxu0 %v1466
      %4412 = vmatpush2.bf16.msra.mxu0 %v1465
      %4413 = vmatprep.subr.bf16.mxu0 %v1464
      %4414 = vmatpush2.bf16.msra.mxu0 %v1463
      %4415 = vmatprep.subr.bf16.mxu0 %v1462
      %4416 = vmatpush2.bf16.msra.mxu0 %v1461
      %4417 = vmatprep.mubr.bf16.mxu0 %v4335
      %4418 = vmatmul.mubr.bf16.gmra.mxu0 %v4334
      %v4419 = vpop.f32.mrf.mxu0
      %v4420 = vadd.f32 %v4379, %v4419
      %v4421 = vpop.f32.mrf.mxu0
      %v4422 = vadd.f32 %v4381, %v4421
      %v4423 = vpop.f32.mrf.mxu0
      %v4424 = vpop.f32.mrf.mxu0
      %4425 = vdwg.mxu0
      %4426 = vmatprep.subr.bf16.mxu0 %v1492
      %4427 = vmatpush1.bf16.msra.mxu0 %v1491
      %4428 = vmatprep.subr.bf16.mxu0 %v1490
      %4429 = vmatpush1.bf16.msra.mxu0 %v1489
      %4430 = vmatprep.subr.bf16.mxu0 %v1488
      %4431 = vmatpush1.bf16.msra.mxu0 %v1487
      %4432 = vmatprep.subr.bf16.mxu0 %v1486
      %4433 = vmatpush1.bf16.msra.mxu0 %v1485
      %4434 = vmatprep.subr.bf16.mxu0 %v1484
      %4435 = vmatpush1.bf16.msra.mxu0 %v1483
      %4436 = vmatprep.subr.bf16.mxu0 %v1482
      %4437 = vmatpush1.bf16.msra.mxu0 %v1481
      %4438 = vmatprep.subr.bf16.mxu0 %v1480
      %4439 = vmatpush1.bf16.msra.mxu0 %v1479
      %4440 = vmatprep.subr.bf16.mxu0 %v1478
      %4441 = vmatpush1.bf16.msra.mxu0 %v1477
      %4442 = vmatprep.subr.bf16.mxu0 %v1508
      %4443 = vmatpush2.bf16.msra.mxu0 %v1507
      %4444 = vmatprep.subr.bf16.mxu0 %v1506
      %4445 = vmatpush2.bf16.msra.mxu0 %v1505
      %4446 = vmatprep.subr.bf16.mxu0 %v1504
      %4447 = vmatpush2.bf16.msra.mxu0 %v1503
      %4448 = vmatprep.subr.bf16.mxu0 %v1502
      %4449 = vmatpush2.bf16.msra.mxu0 %v1501
      %4450 = vmatprep.subr.bf16.mxu0 %v1500
      %4451 = vmatpush2.bf16.msra.mxu0 %v1499
      %4452 = vmatprep.subr.bf16.mxu0 %v1498
      %4453 = vmatpush2.bf16.msra.mxu0 %v1497
      %4454 = vmatprep.subr.bf16.mxu0 %v1496
      %4455 = vmatpush2.bf16.msra.mxu0 %v1495
      %4456 = vmatprep.subr.bf16.mxu0 %v1494
      %4457 = vmatpush2.bf16.msra.mxu0 %v1493
      %4458 = vmatprep.mubr.bf16.mxu0 %v4337
      %4459 = vmatmul.mubr.bf16.gmra.mxu0 %v4336
      %v4460 = vpop.f32.mrf.mxu0
      %v4461 = vadd.f32 %v4420, %v4460
      %v4462 = vpop.f32.mrf.mxu0
      %v4463 = vadd.f32 %v4422, %v4462
      %v4464 = vpop.f32.mrf.mxu0
      %v4465 = vpop.f32.mrf.mxu0
      %4466 = vdwg.mxu0
      %s4467 = scalar_lea.vmem %s165, 288
      %v4468 = vld [vmem:[%s4467] sm:$0xff]
      %v4469 = vld [vmem:[%s4467 + $0x8] sm:$0xff]
      %v4470 = vld [vmem:[%s4467 + $0x10] sm:$0xff]
      %v4474 = vunpack.c.l.b16 %v4468
      %v4475 = vunpack.c.h.b16 %v4468
      %v4476 = vunpack.c.l.b16 %v4469
      %v4477 = vunpack.c.h.b16 %v4469
      %v4478 = vunpack.c.l.b16 %v4470
      %v4479 = vunpack.c.h.b16 %v4470
      %v4480 = vpack.c.b16 %v4474, %v4474
      %v4481 = vpack.c.b16 %v4475, %v4475
      %v4482 = vpack.c.b16 %v4476, %v4476
      %v4483 = vpack.c.b16 %v4477, %v4477
      %v4484 = vpack.c.b16 %v4478, %v4478
      %v4485 = vpack.c.b16 %v4479, %v4479
      %4492 = vmatprep.subr.bf16.mxu0 %v2056
      %4493 = vmatpush1.bf16.msra.mxu0 %v2055
      %4494 = vmatprep.subr.bf16.mxu0 %v2054
      %4495 = vmatpush1.bf16.msra.mxu0 %v2053
      %4496 = vmatprep.subr.bf16.mxu0 %v2052
      %4497 = vmatpush1.bf16.msra.mxu0 %v2051
      %4498 = vmatprep.subr.bf16.mxu0 %v2050
      %4499 = vmatpush1.bf16.msra.mxu0 %v2049
      %4500 = vmatprep.subr.bf16.mxu0 %v2048
      %4501 = vmatpush1.bf16.msra.mxu0 %v2047
      %4502 = vmatprep.subr.bf16.mxu0 %v2046
      %4503 = vmatpush1.bf16.msra.mxu0 %v2045
      %4504 = vmatprep.subr.bf16.mxu0 %v2044
      %4505 = vmatpush1.bf16.msra.mxu0 %v2043
      %4506 = vmatprep.subr.bf16.mxu0 %v2042
      %4507 = vmatpush1.bf16.msra.mxu0 %v2041
      %4508 = vmatprep.subr.bf16.mxu0 %v2072
      %4509 = vmatpush2.bf16.msra.mxu0 %v2071
      %4510 = vmatprep.subr.bf16.mxu0 %v2070
      %4511 = vmatpush2.bf16.msra.mxu0 %v2069
      %4512 = vmatprep.subr.bf16.mxu0 %v2068
      %4513 = vmatpush2.bf16.msra.mxu0 %v2067
      %4514 = vmatprep.subr.bf16.mxu0 %v2066
      %4515 = vmatpush2.bf16.msra.mxu0 %v2065
      %4516 = vmatprep.subr.bf16.mxu0 %v2064
      %4517 = vmatpush2.bf16.msra.mxu0 %v2063
      %4518 = vmatprep.subr.bf16.mxu0 %v2062
      %4519 = vmatpush2.bf16.msra.mxu0 %v2061
      %4520 = vmatprep.subr.bf16.mxu0 %v2060
      %4521 = vmatpush2.bf16.msra.mxu0 %v2059
      %4522 = vmatprep.subr.bf16.mxu0 %v2058
      %4523 = vmatpush2.bf16.msra.mxu0 %v2057
      %4524 = vmatprep.mubr.bf16.mxu0 %v4481
      %4525 = vmatmul.mubr.bf16.gmra.mxu0 %v4480
      %v4526 = vpop.f32.mrf.mxu0
      %v4527 = vadd.f32 0.0, %v4526
      %v4528 = vpop.f32.mrf.mxu0
      %v4529 = vadd.f32 0.0, %v4528
      %v4530 = vpop.f32.mrf.mxu0
      %v4531 = vpop.f32.mrf.mxu0
      %4532 = vdwg.mxu0
      %4533 = vmatprep.subr.bf16.mxu0 %v2088
      %4534 = vmatpush1.bf16.msra.mxu0 %v2087
      %4535 = vmatprep.subr.bf16.mxu0 %v2086
      %4536 = vmatpush1.bf16.msra.mxu0 %v2085
      %4537 = vmatprep.subr.bf16.mxu0 %v2084
      %4538 = vmatpush1.bf16.msra.mxu0 %v2083
      %4539 = vmatprep.subr.bf16.mxu0 %v2082
      %4540 = vmatpush1.bf16.msra.mxu0 %v2081
      %4541 = vmatprep.subr.bf16.mxu0 %v2080
      %4542 = vmatpush1.bf16.msra.mxu0 %v2079
      %4543 = vmatprep.subr.bf16.mxu0 %v2078
      %4544 = vmatpush1.bf16.msra.mxu0 %v2077
      %4545 = vmatprep.subr.bf16.mxu0 %v2076
      %4546 = vmatpush1.bf16.msra.mxu0 %v2075
      %4547 = vmatprep.subr.bf16.mxu0 %v2074
      %4548 = vmatpush1.bf16.msra.mxu0 %v2073
      %4549 = vmatprep.subr.bf16.mxu0 %v2104
      %4550 = vmatpush2.bf16.msra.mxu0 %v2103
      %4551 = vmatprep.subr.bf16.mxu0 %v2102
      %4552 = vmatpush2.bf16.msra.mxu0 %v2101
      %4553 = vmatprep.subr.bf16.mxu0 %v2100
      %4554 = vmatpush2.bf16.msra.mxu0 %v2099
      %4555 = vmatprep.subr.bf16.mxu0 %v2098
      %4556 = vmatpush2.bf16.msra.mxu0 %v2097
      %4557 = vmatprep.subr.bf16.mxu0 %v2096
      %4558 = vmatpush2.bf16.msra.mxu0 %v2095
      %4559 = vmatprep.subr.bf16.mxu0 %v2094
      %4560 = vmatpush2.bf16.msra.mxu0 %v2093
      %4561 = vmatprep.subr.bf16.mxu0 %v2092
      %4562 = vmatpush2.bf16.msra.mxu0 %v2091
      %4563 = vmatprep.subr.bf16.mxu0 %v2090
      %4564 = vmatpush2.bf16.msra.mxu0 %v2089
      %4565 = vmatprep.mubr.bf16.mxu0 %v4483
      %4566 = vmatmul.mubr.bf16.gmra.mxu0 %v4482
      %v4567 = vpop.f32.mrf.mxu0
      %v4568 = vadd.f32 %v4527, %v4567
      %v4569 = vpop.f32.mrf.mxu0
      %v4570 = vadd.f32 %v4529, %v4569
      %v4571 = vpop.f32.mrf.mxu0
      %v4572 = vpop.f32.mrf.mxu0
      %4573 = vdwg.mxu0
      %4574 = vmatprep.subr.bf16.mxu0 %v2120
      %4575 = vmatpush1.bf16.msra.mxu0 %v2119
      %4576 = vmatprep.subr.bf16.mxu0 %v2118
      %4577 = vmatpush1.bf16.msra.mxu0 %v2117
      %4578 = vmatprep.subr.bf16.mxu0 %v2116
      %4579 = vmatpush1.bf16.msra.mxu0 %v2115
      %4580 = vmatprep.subr.bf16.mxu0 %v2114
      %4581 = vmatpush1.bf16.msra.mxu0 %v2113
      %4582 = vmatprep.subr.bf16.mxu0 %v2112
      %4583 = vmatpush1.bf16.msra.mxu0 %v2111
      %4584 = vmatprep.subr.bf16.mxu0 %v2110
      %4585 = vmatpush1.bf16.msra.mxu0 %v2109
      %4586 = vmatprep.subr.bf16.mxu0 %v2108
      %4587 = vmatpush1.bf16.msra.mxu0 %v2107
      %4588 = vmatprep.subr.bf16.mxu0 %v2106
      %4589 = vmatpush1.bf16.msra.mxu0 %v2105
      %4590 = vmatprep.subr.bf16.mxu0 %v2136
      %4591 = vmatpush2.bf16.msra.mxu0 %v2135
      %4592 = vmatprep.subr.bf16.mxu0 %v2134
      %4593 = vmatpush2.bf16.msra.mxu0 %v2133
      %4594 = vmatprep.subr.bf16.mxu0 %v2132
      %4595 = vmatpush2.bf16.msra.mxu0 %v2131
      %4596 = vmatprep.subr.bf16.mxu0 %v2130
      %4597 = vmatpush2.bf16.msra.mxu0 %v2129
      %4598 = vmatprep.subr.bf16.mxu0 %v2128
      %4599 = vmatpush2.bf16.msra.mxu0 %v2127
      %4600 = vmatprep.subr.bf16.mxu0 %v2126
      %4601 = vmatpush2.bf16.msra.mxu0 %v2125
      %4602 = vmatprep.subr.bf16.mxu0 %v2124
      %4603 = vmatpush2.bf16.msra.mxu0 %v2123
      %4604 = vmatprep.subr.bf16.mxu0 %v2122
      %4605 = vmatpush2.bf16.msra.mxu0 %v2121
      %4606 = vmatprep.mubr.bf16.mxu0 %v4485
      %4607 = vmatmul.mubr.bf16.gmra.mxu0 %v4484
      %v4608 = vpop.f32.mrf.mxu0
      %v4609 = vadd.f32 %v4568, %v4608
      %v4610 = vpop.f32.mrf.mxu0
      %v4611 = vadd.f32 %v4570, %v4610
      %v4612 = vpop.f32.mrf.mxu0
      %v4613 = vpop.f32.mrf.mxu0
      %4614 = vdwg.mxu0
      %v4615 = vadd.f32 %v4461, %v4609
      %v4616 = vadd.f32 %v4463, %v4611
      %v4617 = vadd.f32 %v4615, %v466
      %v4618 = vadd.f32 %v4616, %v470
      %v4619 = vmax.f32 %v4617, 0.0
      %v4620 = vmax.f32 %v4618, 0.0
      %s4621 = scalar_lea.vmem %s170, 80
      %4622 = vst [vmem:[%s4621] sm:$0x7f] %v4619
      %4623 = vst [vmem:[%s4621 + $0x8] sm:$0x7f] %v4620
      %v4624 = vld [vmem:[%s4467] sm:$0xff]
      %v4625 = vld [vmem:[%s4467 + $0x8] sm:$0xff]
      %v4626 = vld [vmem:[%s4467 + $0x10] sm:$0xff]
      %s4627 = scalar_lea.vmem %s165, 312
      %v4628 = vld [vmem:[%s4627] sm:$0xff]
      %v4629 = vld [vmem:[%s4627 + $0x8] sm:$0xff]
      %v4630 = vld [vmem:[%s4627 + $0x10] sm:$0xff]
      %v4634 = vunpack.c.l.b16 %v4628
      %v4635 = vunpack.c.h.b16 %v4628
      %v4636 = vunpack.c.l.b16 %v4629
      %v4637 = vunpack.c.h.b16 %v4629
      %v4638 = vunpack.c.l.b16 %v4630
      %v4639 = vunpack.c.h.b16 %v4630
      %v4640 = vpack.c.b16 %v4634, %v4634
      %v4641 = vpack.c.b16 %v4635, %v4635
      %v4642 = vpack.c.b16 %v4636, %v4636
      %v4643 = vpack.c.b16 %v4637, %v4637
      %v4644 = vpack.c.b16 %v4638, %v4638
      %v4645 = vpack.c.b16 %v4639, %v4639
      %4652 = vmatprep.subr.bf16.mxu0 %v804
      %4653 = vmatpush1.bf16.msra.mxu0 %v803
      %4654 = vmatprep.subr.bf16.mxu0 %v802
      %4655 = vmatpush1.bf16.msra.mxu0 %v801
      %4656 = vmatprep.subr.bf16.mxu0 %v800
      %4657 = vmatpush1.bf16.msra.mxu0 %v799
      %4658 = vmatprep.subr.bf16.mxu0 %v798
      %4659 = vmatpush1.bf16.msra.mxu0 %v797
      %4660 = vmatprep.subr.bf16.mxu0 %v796
      %4661 = vmatpush1.bf16.msra.mxu0 %v795
      %4662 = vmatprep.subr.bf16.mxu0 %v794
      %4663 = vmatpush1.bf16.msra.mxu0 %v793
      %4664 = vmatprep.subr.bf16.mxu0 %v792
      %4665 = vmatpush1.bf16.msra.mxu0 %v791
      %4666 = vmatprep.subr.bf16.mxu0 %v790
      %4667 = vmatpush1.bf16.msra.mxu0 %v789
      %4668 = vmatprep.subr.bf16.mxu0 %v820
      %4669 = vmatpush2.bf16.msra.mxu0 %v819
      %4670 = vmatprep.subr.bf16.mxu0 %v818
      %4671 = vmatpush2.bf16.msra.mxu0 %v817
      %4672 = vmatprep.subr.bf16.mxu0 %v816
      %4673 = vmatpush2.bf16.msra.mxu0 %v815
      %4674 = vmatprep.subr.bf16.mxu0 %v814
      %4675 = vmatpush2.bf16.msra.mxu0 %v813
      %4676 = vmatprep.subr.bf16.mxu0 %v812
      %4677 = vmatpush2.bf16.msra.mxu0 %v811
      %4678 = vmatprep.subr.bf16.mxu0 %v810
      %4679 = vmatpush2.bf16.msra.mxu0 %v809
      %4680 = vmatprep.subr.bf16.mxu0 %v808
      %4681 = vmatpush2.bf16.msra.mxu0 %v807
      %4682 = vmatprep.subr.bf16.mxu0 %v806
      %4683 = vmatpush2.bf16.msra.mxu0 %v805
      %4684 = vmatprep.mubr.bf16.mxu0 %v4641
      %4685 = vmatmul.mubr.bf16.gmra.mxu0 %v4640
      %v4686 = vpop.f32.mrf.mxu0
      %v4687 = vadd.f32 0.0, %v4686
      %v4688 = vpop.f32.mrf.mxu0
      %v4689 = vadd.f32 0.0, %v4688
      %v4690 = vpop.f32.mrf.mxu0
      %v4691 = vpop.f32.mrf.mxu0
      %4692 = vdwg.mxu0
      %4693 = vmatprep.subr.bf16.mxu0 %v836
      %4694 = vmatpush1.bf16.msra.mxu0 %v835
      %4695 = vmatprep.subr.bf16.mxu0 %v834
      %4696 = vmatpush1.bf16.msra.mxu0 %v833
      %4697 = vmatprep.subr.bf16.mxu0 %v832
      %4698 = vmatpush1.bf16.msra.mxu0 %v831
      %4699 = vmatprep.subr.bf16.mxu0 %v830
      %4700 = vmatpush1.bf16.msra.mxu0 %v829
      %4701 = vmatprep.subr.bf16.mxu0 %v828
      %4702 = vmatpush1.bf16.msra.mxu0 %v827
      %4703 = vmatprep.subr.bf16.mxu0 %v826
      %4704 = vmatpush1.bf16.msra.mxu0 %v825
      %4705 = vmatprep.subr.bf16.mxu0 %v824
      %4706 = vmatpush1.bf16.msra.mxu0 %v823
      %4707 = vmatprep.subr.bf16.mxu0 %v822
      %4708 = vmatpush1.bf16.msra.mxu0 %v821
      %4709 = vmatprep.subr.bf16.mxu0 %v852
      %4710 = vmatpush2.bf16.msra.mxu0 %v851
      %4711 = vmatprep.subr.bf16.mxu0 %v850
      %4712 = vmatpush2.bf16.msra.mxu0 %v849
      %4713 = vmatprep.subr.bf16.mxu0 %v848
      %4714 = vmatpush2.bf16.msra.mxu0 %v847
      %4715 = vmatprep.subr.bf16.mxu0 %v846
      %4716 = vmatpush2.bf16.msra.mxu0 %v845
      %4717 = vmatprep.subr.bf16.mxu0 %v844
      %4718 = vmatpush2.bf16.msra.mxu0 %v843
      %4719 = vmatprep.subr.bf16.mxu0 %v842
      %4720 = vmatpush2.bf16.msra.mxu0 %v841
      %4721 = vmatprep.subr.bf16.mxu0 %v840
      %4722 = vmatpush2.bf16.msra.mxu0 %v839
      %4723 = vmatprep.subr.bf16.mxu0 %v838
      %4724 = vmatpush2.bf16.msra.mxu0 %v837
      %4725 = vmatprep.mubr.bf16.mxu0 %v4643
      %4726 = vmatmul.mubr.bf16.gmra.mxu0 %v4642
      %v4727 = vpop.f32.mrf.mxu0
      %v4728 = vadd.f32 %v4687, %v4727
      %v4729 = vpop.f32.mrf.mxu0
      %v4730 = vadd.f32 %v4689, %v4729
      %v4731 = vpop.f32.mrf.mxu0
      %v4732 = vpop.f32.mrf.mxu0
      %4733 = vdwg.mxu0
      %4734 = vmatprep.subr.bf16.mxu0 %v868
      %4735 = vmatpush1.bf16.msra.mxu0 %v867
      %4736 = vmatprep.subr.bf16.mxu0 %v866
      %4737 = vmatpush1.bf16.msra.mxu0 %v865
      %4738 = vmatprep.subr.bf16.mxu0 %v864
      %4739 = vmatpush1.bf16.msra.mxu0 %v863
      %4740 = vmatprep.subr.bf16.mxu0 %v862
      %4741 = vmatpush1.bf16.msra.mxu0 %v861
      %4742 = vmatprep.subr.bf16.mxu0 %v860
      %4743 = vmatpush1.bf16.msra.mxu0 %v859
      %4744 = vmatprep.subr.bf16.mxu0 %v858
      %4745 = vmatpush1.bf16.msra.mxu0 %v857
      %4746 = vmatprep.subr.bf16.mxu0 %v856
      %4747 = vmatpush1.bf16.msra.mxu0 %v855
      %4748 = vmatprep.subr.bf16.mxu0 %v854
      %4749 = vmatpush1.bf16.msra.mxu0 %v853
      %4750 = vmatprep.subr.bf16.mxu0 %v884
      %4751 = vmatpush2.bf16.msra.mxu0 %v883
      %4752 = vmatprep.subr.bf16.mxu0 %v882
      %4753 = vmatpush2.bf16.msra.mxu0 %v881
      %4754 = vmatprep.subr.bf16.mxu0 %v880
      %4755 = vmatpush2.bf16.msra.mxu0 %v879
      %4756 = vmatprep.subr.bf16.mxu0 %v878
      %4757 = vmatpush2.bf16.msra.mxu0 %v877
      %4758 = vmatprep.subr.bf16.mxu0 %v876
      %4759 = vmatpush2.bf16.msra.mxu0 %v875
      %4760 = vmatprep.subr.bf16.mxu0 %v874
      %4761 = vmatpush2.bf16.msra.mxu0 %v873
      %4762 = vmatprep.subr.bf16.mxu0 %v872
      %4763 = vmatpush2.bf16.msra.mxu0 %v871
      %4764 = vmatprep.subr.bf16.mxu0 %v870
      %4765 = vmatpush2.bf16.msra.mxu0 %v869
      %4766 = vmatprep.mubr.bf16.mxu0 %v4645
      %4767 = vmatmul.mubr.bf16.gmra.mxu0 %v4644
      %v4768 = vpop.f32.mrf.mxu0
      %v4769 = vadd.f32 %v4728, %v4768
      %v4770 = vpop.f32.mrf.mxu0
      %v4771 = vadd.f32 %v4730, %v4770
      %v4772 = vpop.f32.mrf.mxu0
      %v4773 = vpop.f32.mrf.mxu0
      %4774 = vdwg.mxu0
      %v4778 = vunpack.c.l.b16 %v4624
      %v4779 = vunpack.c.h.b16 %v4624
      %v4780 = vunpack.c.l.b16 %v4625
      %v4781 = vunpack.c.h.b16 %v4625
      %v4782 = vunpack.c.l.b16 %v4626
      %v4783 = vunpack.c.h.b16 %v4626
      %v4784 = vpack.c.b16 %v4778, %v4778
      %v4785 = vpack.c.b16 %v4779, %v4779
      %v4786 = vpack.c.b16 %v4780, %v4780
      %v4787 = vpack.c.b16 %v4781, %v4781
      %v4788 = vpack.c.b16 %v4782, %v4782
      %v4789 = vpack.c.b16 %v4783, %v4783
      %4796 = vmatprep.subr.bf16.mxu0 %v1428
      %4797 = vmatpush1.bf16.msra.mxu0 %v1427
      %4798 = vmatprep.subr.bf16.mxu0 %v1426
      %4799 = vmatpush1.bf16.msra.mxu0 %v1425
      %4800 = vmatprep.subr.bf16.mxu0 %v1424
      %4801 = vmatpush1.bf16.msra.mxu0 %v1423
      %4802 = vmatprep.subr.bf16.mxu0 %v1422
      %4803 = vmatpush1.bf16.msra.mxu0 %v1421
      %4804 = vmatprep.subr.bf16.mxu0 %v1420
      %4805 = vmatpush1.bf16.msra.mxu0 %v1419
      %4806 = vmatprep.subr.bf16.mxu0 %v1418
      %4807 = vmatpush1.bf16.msra.mxu0 %v1417
      %4808 = vmatprep.subr.bf16.mxu0 %v1416
      %4809 = vmatpush1.bf16.msra.mxu0 %v1415
      %4810 = vmatprep.subr.bf16.mxu0 %v1414
      %4811 = vmatpush1.bf16.msra.mxu0 %v1413
      %4812 = vmatprep.subr.bf16.mxu0 %v1444
      %4813 = vmatpush2.bf16.msra.mxu0 %v1443
      %4814 = vmatprep.subr.bf16.mxu0 %v1442
      %4815 = vmatpush2.bf16.msra.mxu0 %v1441
      %4816 = vmatprep.subr.bf16.mxu0 %v1440
      %4817 = vmatpush2.bf16.msra.mxu0 %v1439
      %4818 = vmatprep.subr.bf16.mxu0 %v1438
      %4819 = vmatpush2.bf16.msra.mxu0 %v1437
      %4820 = vmatprep.subr.bf16.mxu0 %v1436
      %4821 = vmatpush2.bf16.msra.mxu0 %v1435
      %4822 = vmatprep.subr.bf16.mxu0 %v1434
      %4823 = vmatpush2.bf16.msra.mxu0 %v1433
      %4824 = vmatprep.subr.bf16.mxu0 %v1432
      %4825 = vmatpush2.bf16.msra.mxu0 %v1431
      %4826 = vmatprep.subr.bf16.mxu0 %v1430
      %4827 = vmatpush2.bf16.msra.mxu0 %v1429
      %4828 = vmatprep.mubr.bf16.mxu0 %v4785
      %4829 = vmatmul.mubr.bf16.gmra.mxu0 %v4784
      %v4830 = vpop.f32.mrf.mxu0
      %v4831 = vadd.f32 %v4769, %v4830
      %v4832 = vpop.f32.mrf.mxu0
      %v4833 = vadd.f32 %v4771, %v4832
      %v4834 = vpop.f32.mrf.mxu0
      %v4835 = vpop.f32.mrf.mxu0
      %4836 = vdwg.mxu0
      %4837 = vmatprep.subr.bf16.mxu0 %v1460
      %4838 = vmatpush1.bf16.msra.mxu0 %v1459
      %4839 = vmatprep.subr.bf16.mxu0 %v1458
      %4840 = vmatpush1.bf16.msra.mxu0 %v1457
      %4841 = vmatprep.subr.bf16.mxu0 %v1456
      %4842 = vmatpush1.bf16.msra.mxu0 %v1455
      %4843 = vmatprep.subr.bf16.mxu0 %v1454
      %4844 = vmatpush1.bf16.msra.mxu0 %v1453
      %4845 = vmatprep.subr.bf16.mxu0 %v1452
      %4846 = vmatpush1.bf16.msra.mxu0 %v1451
      %4847 = vmatprep.subr.bf16.mxu0 %v1450
      %4848 = vmatpush1.bf16.msra.mxu0 %v1449
      %4849 = vmatprep.subr.bf16.mxu0 %v1448
      %4850 = vmatpush1.bf16.msra.mxu0 %v1447
      %4851 = vmatprep.subr.bf16.mxu0 %v1446
      %4852 = vmatpush1.bf16.msra.mxu0 %v1445
      %4853 = vmatprep.subr.bf16.mxu0 %v1476
      %4854 = vmatpush2.bf16.msra.mxu0 %v1475
      %4855 = vmatprep.subr.bf16.mxu0 %v1474
      %4856 = vmatpush2.bf16.msra.mxu0 %v1473
      %4857 = vmatprep.subr.bf16.mxu0 %v1472
      %4858 = vmatpush2.bf16.msra.mxu0 %v1471
      %4859 = vmatprep.subr.bf16.mxu0 %v1470
      %4860 = vmatpush2.bf16.msra.mxu0 %v1469
      %4861 = vmatprep.subr.bf16.mxu0 %v1468
      %4862 = vmatpush2.bf16.msra.mxu0 %v1467
      %4863 = vmatprep.subr.bf16.mxu0 %v1466
      %4864 = vmatpush2.bf16.msra.mxu0 %v1465
      %4865 = vmatprep.subr.bf16.mxu0 %v1464
      %4866 = vmatpush2.bf16.msra.mxu0 %v1463
      %4867 = vmatprep.subr.bf16.mxu0 %v1462
      %4868 = vmatpush2.bf16.msra.mxu0 %v1461
      %4869 = vmatprep.mubr.bf16.mxu0 %v4787
      %4870 = vmatmul.mubr.bf16.gmra.mxu0 %v4786
      %v4871 = vpop.f32.mrf.mxu0
      %v4872 = vadd.f32 %v4831, %v4871
      %v4873 = vpop.f32.mrf.mxu0
      %v4874 = vadd.f32 %v4833, %v4873
      %v4875 = vpop.f32.mrf.mxu0
      %v4876 = vpop.f32.mrf.mxu0
      %4877 = vdwg.mxu0
      %4878 = vmatprep.subr.bf16.mxu0 %v1492
      %4879 = vmatpush1.bf16.msra.mxu0 %v1491
      %4880 = vmatprep.subr.bf16.mxu0 %v1490
      %4881 = vmatpush1.bf16.msra.mxu0 %v1489
      %4882 = vmatprep.subr.bf16.mxu0 %v1488
      %4883 = vmatpush1.bf16.msra.mxu0 %v1487
      %4884 = vmatprep.subr.bf16.mxu0 %v1486
      %4885 = vmatpush1.bf16.msra.mxu0 %v1485
      %4886 = vmatprep.subr.bf16.mxu0 %v1484
      %4887 = vmatpush1.bf16.msra.mxu0 %v1483
      %4888 = vmatprep.subr.bf16.mxu0 %v1482
      %4889 = vmatpush1.bf16.msra.mxu0 %v1481
      %4890 = vmatprep.subr.bf16.mxu0 %v1480
      %4891 = vmatpush1.bf16.msra.mxu0 %v1479
      %4892 = vmatprep.subr.bf16.mxu0 %v1478
      %4893 = vmatpush1.bf16.msra.mxu0 %v1477
      %4894 = vmatprep.subr.bf16.mxu0 %v1508
      %4895 = vmatpush2.bf16.msra.mxu0 %v1507
      %4896 = vmatprep.subr.bf16.mxu0 %v1506
      %4897 = vmatpush2.bf16.msra.mxu0 %v1505
      %4898 = vmatprep.subr.bf16.mxu0 %v1504
      %4899 = vmatpush2.bf16.msra.mxu0 %v1503
      %4900 = vmatprep.subr.bf16.mxu0 %v1502
      %4901 = vmatpush2.bf16.msra.mxu0 %v1501
      %4902 = vmatprep.subr.bf16.mxu0 %v1500
      %4903 = vmatpush2.bf16.msra.mxu0 %v1499
      %4904 = vmatprep.subr.bf16.mxu0 %v1498
      %4905 = vmatpush2.bf16.msra.mxu0 %v1497
      %4906 = vmatprep.subr.bf16.mxu0 %v1496
      %4907 = vmatpush2.bf16.msra.mxu0 %v1495
      %4908 = vmatprep.subr.bf16.mxu0 %v1494
      %4909 = vmatpush2.bf16.msra.mxu0 %v1493
      %4910 = vmatprep.mubr.bf16.mxu0 %v4789
      %4911 = vmatmul.mubr.bf16.gmra.mxu0 %v4788
      %v4912 = vpop.f32.mrf.mxu0
      %v4913 = vadd.f32 %v4872, %v4912
      %v4914 = vpop.f32.mrf.mxu0
      %v4915 = vadd.f32 %v4874, %v4914
      %v4916 = vpop.f32.mrf.mxu0
      %v4917 = vpop.f32.mrf.mxu0
      %4918 = vdwg.mxu0
      %s4919 = scalar_lea.vmem %s165, 336
      %v4920 = vld [vmem:[%s4919] sm:$0xff]
      %v4921 = vld [vmem:[%s4919 + $0x8] sm:$0xff]
      %v4922 = vld [vmem:[%s4919 + $0x10] sm:$0xff]
      %v4926 = vunpack.c.l.b16 %v4920
      %v4927 = vunpack.c.h.b16 %v4920
      %v4928 = vunpack.c.l.b16 %v4921
      %v4929 = vunpack.c.h.b16 %v4921
      %v4930 = vunpack.c.l.b16 %v4922
      %v4931 = vunpack.c.h.b16 %v4922
      %v4932 = vpack.c.b16 %v4926, %v4926
      %v4933 = vpack.c.b16 %v4927, %v4927
      %v4934 = vpack.c.b16 %v4928, %v4928
      %v4935 = vpack.c.b16 %v4929, %v4929
      %v4936 = vpack.c.b16 %v4930, %v4930
      %v4937 = vpack.c.b16 %v4931, %v4931
      %4944 = vmatprep.subr.bf16.mxu0 %v2056
      %4945 = vmatpush1.bf16.msra.mxu0 %v2055
      %4946 = vmatprep.subr.bf16.mxu0 %v2054
      %4947 = vmatpush1.bf16.msra.mxu0 %v2053
      %4948 = vmatprep.subr.bf16.mxu0 %v2052
      %4949 = vmatpush1.bf16.msra.mxu0 %v2051
      %4950 = vmatprep.subr.bf16.mxu0 %v2050
      %4951 = vmatpush1.bf16.msra.mxu0 %v2049
      %4952 = vmatprep.subr.bf16.mxu0 %v2048
      %4953 = vmatpush1.bf16.msra.mxu0 %v2047
      %4954 = vmatprep.subr.bf16.mxu0 %v2046
      %4955 = vmatpush1.bf16.msra.mxu0 %v2045
      %4956 = vmatprep.subr.bf16.mxu0 %v2044
      %4957 = vmatpush1.bf16.msra.mxu0 %v2043
      %4958 = vmatprep.subr.bf16.mxu0 %v2042
      %4959 = vmatpush1.bf16.msra.mxu0 %v2041
      %4960 = vmatprep.subr.bf16.mxu0 %v2072
      %4961 = vmatpush2.bf16.msra.mxu0 %v2071
      %4962 = vmatprep.subr.bf16.mxu0 %v2070
      %4963 = vmatpush2.bf16.msra.mxu0 %v2069
      %4964 = vmatprep.subr.bf16.mxu0 %v2068
      %4965 = vmatpush2.bf16.msra.mxu0 %v2067
      %4966 = vmatprep.subr.bf16.mxu0 %v2066
      %4967 = vmatpush2.bf16.msra.mxu0 %v2065
      %4968 = vmatprep.subr.bf16.mxu0 %v2064
      %4969 = vmatpush2.bf16.msra.mxu0 %v2063
      %4970 = vmatprep.subr.bf16.mxu0 %v2062
      %4971 = vmatpush2.bf16.msra.mxu0 %v2061
      %4972 = vmatprep.subr.bf16.mxu0 %v2060
      %4973 = vmatpush2.bf16.msra.mxu0 %v2059
      %4974 = vmatprep.subr.bf16.mxu0 %v2058
      %4975 = vmatpush2.bf16.msra.mxu0 %v2057
      %4976 = vmatprep.mubr.bf16.mxu0 %v4933
      %4977 = vmatmul.mubr.bf16.gmra.mxu0 %v4932
      %v4978 = vpop.f32.mrf.mxu0
      %v4979 = vadd.f32 0.0, %v4978
      %v4980 = vpop.f32.mrf.mxu0
      %v4981 = vadd.f32 0.0, %v4980
      %v4982 = vpop.f32.mrf.mxu0
      %v4983 = vpop.f32.mrf.mxu0
      %4984 = vdwg.mxu0
      %4985 = vmatprep.subr.bf16.mxu0 %v2088
      %4986 = vmatpush1.bf16.msra.mxu0 %v2087
      %4987 = vmatprep.subr.bf16.mxu0 %v2086
      %4988 = vmatpush1.bf16.msra.mxu0 %v2085
      %4989 = vmatprep.subr.bf16.mxu0 %v2084
      %4990 = vmatpush1.bf16.msra.mxu0 %v2083
      %4991 = vmatprep.subr.bf16.mxu0 %v2082
      %4992 = vmatpush1.bf16.msra.mxu0 %v2081
      %4993 = vmatprep.subr.bf16.mxu0 %v2080
      %4994 = vmatpush1.bf16.msra.mxu0 %v2079
      %4995 = vmatprep.subr.bf16.mxu0 %v2078
      %4996 = vmatpush1.bf16.msra.mxu0 %v2077
      %4997 = vmatprep.subr.bf16.mxu0 %v2076
      %4998 = vmatpush1.bf16.msra.mxu0 %v2075
      %4999 = vmatprep.subr.bf16.mxu0 %v2074
      %5000 = vmatpush1.bf16.msra.mxu0 %v2073
      %5001 = vmatprep.subr.bf16.mxu0 %v2104
      %5002 = vmatpush2.bf16.msra.mxu0 %v2103
      %5003 = vmatprep.subr.bf16.mxu0 %v2102
      %5004 = vmatpush2.bf16.msra.mxu0 %v2101
      %5005 = vmatprep.subr.bf16.mxu0 %v2100
      %5006 = vmatpush2.bf16.msra.mxu0 %v2099
      %5007 = vmatprep.subr.bf16.mxu0 %v2098
      %5008 = vmatpush2.bf16.msra.mxu0 %v2097
      %5009 = vmatprep.subr.bf16.mxu0 %v2096
      %5010 = vmatpush2.bf16.msra.mxu0 %v2095
      %5011 = vmatprep.subr.bf16.mxu0 %v2094
      %5012 = vmatpush2.bf16.msra.mxu0 %v2093
      %5013 = vmatprep.subr.bf16.mxu0 %v2092
      %5014 = vmatpush2.bf16.msra.mxu0 %v2091
      %5015 = vmatprep.subr.bf16.mxu0 %v2090
      %5016 = vmatpush2.bf16.msra.mxu0 %v2089
      %5017 = vmatprep.mubr.bf16.mxu0 %v4935
      %5018 = vmatmul.mubr.bf16.gmra.mxu0 %v4934
      %v5019 = vpop.f32.mrf.mxu0
      %v5020 = vadd.f32 %v4979, %v5019
      %v5021 = vpop.f32.mrf.mxu0
      %v5022 = vadd.f32 %v4981, %v5021
      %v5023 = vpop.f32.mrf.mxu0
      %v5024 = vpop.f32.mrf.mxu0
      %5025 = vdwg.mxu0
      %5026 = vmatprep.subr.bf16.mxu0 %v2120
      %5027 = vmatpush1.bf16.msra.mxu0 %v2119
      %5028 = vmatprep.subr.bf16.mxu0 %v2118
      %5029 = vmatpush1.bf16.msra.mxu0 %v2117
      %5030 = vmatprep.subr.bf16.mxu0 %v2116
      %5031 = vmatpush1.bf16.msra.mxu0 %v2115
      %5032 = vmatprep.subr.bf16.mxu0 %v2114
      %5033 = vmatpush1.bf16.msra.mxu0 %v2113
      %5034 = vmatprep.subr.bf16.mxu0 %v2112
      %5035 = vmatpush1.bf16.msra.mxu0 %v2111
      %5036 = vmatprep.subr.bf16.mxu0 %v2110
      %5037 = vmatpush1.bf16.msra.mxu0 %v2109
      %5038 = vmatprep.subr.bf16.mxu0 %v2108
      %5039 = vmatpush1.bf16.msra.mxu0 %v2107
      %5040 = vmatprep.subr.bf16.mxu0 %v2106
      %5041 = vmatpush1.bf16.msra.mxu0 %v2105
      %5042 = vmatprep.subr.bf16.mxu0 %v2136
      %5043 = vmatpush2.bf16.msra.mxu0 %v2135
      %5044 = vmatprep.subr.bf16.mxu0 %v2134
      %5045 = vmatpush2.bf16.msra.mxu0 %v2133
      %5046 = vmatprep.subr.bf16.mxu0 %v2132
      %5047 = vmatpush2.bf16.msra.mxu0 %v2131
      %5048 = vmatprep.subr.bf16.mxu0 %v2130
      %5049 = vmatpush2.bf16.msra.mxu0 %v2129
      %5050 = vmatprep.subr.bf16.mxu0 %v2128
      %5051 = vmatpush2.bf16.msra.mxu0 %v2127
      %5052 = vmatprep.subr.bf16.mxu0 %v2126
      %5053 = vmatpush2.bf16.msra.mxu0 %v2125
      %5054 = vmatprep.subr.bf16.mxu0 %v2124
      %5055 = vmatpush2.bf16.msra.mxu0 %v2123
      %5056 = vmatprep.subr.bf16.mxu0 %v2122
      %5057 = vmatpush2.bf16.msra.mxu0 %v2121
      %5058 = vmatprep.mubr.bf16.mxu0 %v4937
      %5059 = vmatmul.mubr.bf16.gmra.mxu0 %v4936
      %v5060 = vpop.f32.mrf.mxu0
      %v5061 = vadd.f32 %v5020, %v5060
      %v5062 = vpop.f32.mrf.mxu0
      %v5063 = vadd.f32 %v5022, %v5062
      %v5064 = vpop.f32.mrf.mxu0
      %v5065 = vpop.f32.mrf.mxu0
      %5066 = vdwg.mxu0
      %v5067 = vadd.f32 %v4913, %v5061
      %v5068 = vadd.f32 %v4915, %v5063
      %v5069 = vadd.f32 %v5067, %v466
      %v5070 = vadd.f32 %v5068, %v470
      %v5071 = vmax.f32 %v5069, 0.0
      %v5072 = vmax.f32 %v5070, 0.0
      %s5073 = scalar_lea.vmem %s170, 96
      %5074 = vst [vmem:[%s5073] sm:$0x7f] %v5071
      %5075 = vst [vmem:[%s5073 + $0x8] sm:$0x7f] %v5072
      %p5076 = scmp.lt.s32.totalorder %s14, 1
      %s5077 = scalar_select %p5076, %s14, 1
      %s5078 = smul.addr %s5077, 14
      %s5079 = smul.addr %s5078, 8
      %s5080 = scalar_lea.vmem %s3, %s5079
      // Predicated region
      $region33: #{_inception_red_forward.4} parent=31 // pred_check
        %p5081 = pneg %p100
      $region34: #{_inception_red_forward.4} parent=31 // pred_check_branch
        %5083 = sbr.rel (%p5081) target = $region36
      $region35: #{_inception_red_forward.4} parent=31 // pred_region
        _
      $region36: #{_inception_red_forward.4} parent=31 // pred_fallthru
        _
    $region32: #{_inception_red_forward.4} parent=5 // pred_fallthru
      _
    %p5084 = scmp.le.s32.totalorder 2, %s9
    // Predicated region
    $region37: #{_inception_red_forward.4} parent=5 // pred_check
      %p5085 = pneg %p5084
    $region38: #{_inception_red_forward.4} parent=5 // pred_check_branch
      %5087 = sbr.rel (%p5085) target = $region40
    $region39: #{_inception_red_forward.4} parent=5 // pred_region
      %s5088 = ssub.s32 %s9, 2
      // Predicated region
      $region41: #{_inception_red_forward.4} parent=39 // pred_check
        %p5089 = pneg %p106
      $region42: #{_inception_red_forward.4} parent=39 // pred_check_branch
        %5091 = sbr.rel (%p5089) target = $region44
      $region43: #{_inception_red_forward.4} parent=39 // pred_region
        %p5092 = scmp.lt.s32.totalorder %s15, 1
        %s5093 = scalar_select %p5092, %s15, 1
        %s5094 = smul.addr %s5093, 14
        %s5095 = smul.addr %s5094, 8
        %s5096 = scalar_lea.vmem %s3, %s5095
      $region44: #{_inception_red_forward.4} parent=39 // pred_fallthru
        _
    $region40: #{_inception_red_forward.4} parent=5 // pred_fallthru
      _
  $region6: #{_inception_red_forward.4} parent=0 // loop_footer
    %s13 = sadd.s32 1, %s9
  $region7: #{_inception_red_forward.4} parent=0 // loop_footer_branch
    %8 = sbr.rel target = $region3
  $region8: #{_inception_red_forward.4} parent=0 // loop_exit
    _

</llo_original>
